<compile_context>
chip_gen: v7x
topology: tpu7x:2x2x1
jax: 0.10.0
libtpu: 0.0.40
codegen_flags: <defaults>
</compile_context>

<pallas_src>
import jax
import jax.numpy as jnp
from jax.experimental import pallas as pl
from jax.experimental.pallas import tpu as pltpu

EPS = 1e-5
LANE = 128
REAL_CHANNELS = [3, 32, 64, 128, 256]   # ConvInputModel: 3->32->64->128->256


def _round_up(n, m):
    return ((n + m - 1) // m) * m


def _make_kernel(n_batch, spatial, cpad):
    """Fused 4-layer kernel body.

    spatial: list of (Ho, Wo) output sizes per layer.
    cpad:    padded channel counts; cpad[0] = padded input channels,
             cpad[l+1] = padded Cout of layer l.
    """
    n_layers = len(spatial)

    def kernel(*refs):
        x_ref = refs[0]
        layer_refs = [refs[1 + 4 * l: 1 + 4 * (l + 1)] for l in range(n_layers)]
        out_ref = refs[1 + 4 * n_layers]
        patch_ref = refs[2 + 4 * n_layers]
        act_refs = refs[3 + 4 * n_layers:]      # padded inputs of layers 2..L

        # Zero the padded activation buffers once: the spatial border and the
        # channel-padding lanes must be exact zeros (conv padding / BN).
        for act in act_refs:
            act[...] = jnp.zeros_like(act)

        for l in range(n_layers):
            ho, wo = spatial[l]
            cin_p, cout_p = cpad[l], cpad[l + 1]
            w_ref, b_ref, g_ref, bt_ref = layer_refs[l]
            src = x_ref if l == 0 else act_refs[l - 1]
            m_rows = n_batch * ho * wo
            k_dim = 9 * cin_p

            # ---- fused im2col: assemble (M, 9*Cin) patches in VMEM scratch.
            # src layout (N, 2*ho+2, wo+1, 2*cin_p): padded NHWC with the W
            # axis pair-split, so the stride-2 taps are contiguous slices:
            #   kw=0 -> lanes [0,C)  of super-columns [0, wo)
            #   kw=1 -> lanes [C,2C) of super-columns [0, wo)
            #   kw=2 -> lanes [0,C)  of super-columns [1, wo+1)
            for n in range(n_batch):
                for i in range(ho):
                    r0 = (n * ho + i) * wo
                    for kh in range(3):
                        r = 2 * i + kh
                        c0 = 3 * kh * cin_p
                        patch_ref[r0:r0 + wo, c0:c0 + 2 * cin_p] = (
                            src[n, r, 0:wo, 0:2 * cin_p])
                        patch_ref[r0:r0 + wo,
                                  c0 + 2 * cin_p:c0 + 3 * cin_p] = (
                            src[n, r, 1:1 + wo, 0:cin_p])

            # ---- conv = one MXU matmul (bf16 x bf16, f32 accumulation).
            lhs = patch_ref[0:m_rows, 0:k_dim].astype(jnp.bfloat16)
            y = jnp.dot(lhs, w_ref[...], preferred_element_type=jnp.float32)
            y = jnp.maximum(y + b_ref[...], 0.0)          # conv bias + ReLU

            # ---- BatchNorm2d, training mode: biased batch stats over M rows.
            mean = jnp.mean(y, axis=0, keepdims=True)
            var = jnp.mean(jnp.square(y - mean), axis=0, keepdims=True)
            scale = g_ref[...] * jax.lax.rsqrt(var + EPS)
            shift = bt_ref[...] - mean * scale
            y = y * scale + shift
            # TODO(synk): running_mean/running_var buffer updates (a training
            # side effect that does not change the forward output) are skipped.

            if l == n_layers - 1:
                out_ref[...] = y                          # (M, 256) lane-dense
            else:
                # Scatter rows into the next layer's pair-split padded input.
                dst = act_refs[l]
                for n in range(n_batch):
                    for i in range(ho):
                        base = (n * ho + i) * wo
                        for j in range(wo):
                            s, t = (j + 1) // 2, (j + 1) % 2
                            dst[n, i + 1, s:s + 1,
                                t * cout_p:(t + 1) * cout_p] = (
                                y[base + j:base + j + 1, :])

    return kernel


def conv_input_model(img_nchw, params):
    """Forward pass of ConvInputModel. img_nchw: (N, 3, H, W) float32 (NCHW)."""
    img_nchw = img_nchw.astype(jnp.float32)
    n_batch, cin, h, w = img_nchw.shape
    n_layers = len(params)
    assert h % (2 ** n_layers) == 0 and w % (2 ** n_layers) == 0, (h, w)

    # Output spatial size of every layer (k=3, stride=2, pad=1 on even sizes).
    spatial, hh, ww = [], h, w
    for _ in range(n_layers):
        hh, ww = hh // 2, ww // 2
        spatial.append((hh, ww))

    cpad = [_round_up(cin, LANE)] + [p[0].shape[1] for p in params]
    for l in range(n_layers):
        assert params[l][0].shape[0] == 9 * cpad[l]

    # Host-side glue (raw image only): NCHW -> NHWC, zero-pad channels to the
    # lane width and the spatial border by 1, then pair-split the W axis so
    # in-kernel tap extraction needs only contiguous slices.
    x = jnp.transpose(img_nchw, (0, 2, 3, 1))
    x = jnp.pad(x, ((0, 0), (1, 1), (1, 1), (0, cpad[0] - cin)))
    x = x.reshape(n_batch, h + 2, (w + 2) // 2, 2 * cpad[0])

    ho_l, wo_l = spatial[-1]
    m_last = n_batch * ho_l * wo_l
    m_max = max(n_batch * a * b for a, b in spatial)
    k_max = 9 * max(cpad[:-1])

    scratch = [pltpu.VMEM((m_max, k_max), jnp.float32)]
    for l in range(n_layers - 1):
        nho, nwo = spatial[l + 1]            # next layer's output size
        scratch.append(
            pltpu.VMEM((n_batch, 2 * nho + 2, nwo + 1, 2 * cpad[l + 1]),
                       jnp.float32))

    flat_inputs = [x] + [a for p in params for a in p]

    def full_spec(arr):
        nd = arr.ndim
        return pl.BlockSpec(arr.shape, lambda i, _nd=nd: (0,) * _nd)

    flops = sum(2 * n_batch * a * b * 9 * cpad[l] * cpad[l + 1]
                for l, (a, b) in enumerate(spatial))
    bytes_accessed = sum(int(a.size) * a.dtype.itemsize for a in flat_inputs)
    bytes_accessed += m_last * cpad[-1] * 4

    out = pl.pallas_call(
        _make_kernel(n_batch, spatial, cpad),
        out_shape=jax.ShapeDtypeStruct((m_last, cpad[-1]), jnp.float32),
        grid=(1,),
        in_specs=[full_spec(a) for a in flat_inputs],
        out_specs=pl.BlockSpec((m_last, cpad[-1]), lambda i: (0, 0)),
        scratch_shapes=scratch,
        compiler_params=pltpu.CompilerParams(
            dimension_semantics=("arbitrary",)),
        cost_estimate=pl.CostEstimate(flops=int(flops),
                                      transcendentals=int(sum(cpad[1:])),
                                      bytes_accessed=int(bytes_accessed)),
    )(*flat_inputs)

    cout = REAL_CHANNELS[-1]
    out = out[:, :cout].reshape(n_batch, ho_l, wo_l, cout)
    return jnp.transpose(out, (0, 3, 1, 2))               # back to NCHW


def init_params(key):
    """Deterministic synthetic parameters matching the module's shapes, packed
    into the padded (9*Cin_p, Cout_p) matmul layout used by the kernel."""
    dims = list(zip(REAL_CHANNELS[:-1], REAL_CHANNELS[1:]))
    params = []
    for i, (cin, cout) in enumerate(dims):
        kw_, kb_ = jax.random.split(jax.random.fold_in(key, i))
        cin_p, cout_p = _round_up(cin, LANE), _round_up(cout, LANE)
        # PyTorch conv weight layout (Cout, Cin, kh, kw) -> (kh, kw, Cin, Cout),
        # zero-pad channels to lane multiples, flatten to (9*Cin_p, Cout_p).
        w_oihw = 0.1 * jax.random.normal(kw_, (cout, cin, 3, 3), jnp.float32)
        w_mm = jnp.transpose(w_oihw, (2, 3, 1, 0))
        w_mm = jnp.pad(w_mm,
                       ((0, 0), (0, 0), (0, cin_p - cin), (0, cout_p - cout)))
        w_mm = w_mm.reshape(9 * cin_p, cout_p).astype(jnp.bfloat16)
        b = 0.1 * jax.random.normal(kb_, (cout,), jnp.float32)
        b = jnp.pad(b, (0, cout_p - cout)).reshape(1, cout_p)
        gamma = jnp.pad(jnp.ones((cout,), jnp.float32),
                        (0, cout_p - cout)).reshape(1, cout_p)   # BN default
        beta = jnp.zeros((1, cout_p), jnp.float32)
        params.append((w_mm, b, gamma, beta))
    return params


if __name__ == "__main__":
    key = jax.random.PRNGKey(0)
    params = init_params(key)

    # Small input consistent with the module: N=2, C=3, 16x16 image.
    img = jax.random.normal(jax.random.fold_in(key, 100), (2, 3, 16, 16),
                            jnp.float32)

    fwd = jax.jit(conv_input_model)
    out = jax.block_until_ready(fwd(img, params))

    # 16 -> 8 -> 4 -> 2 -> 1 spatially; 256 channels out.
    assert out.shape == (2, 256, 1, 1), out.shape
    assert bool(jnp.all(jnp.isfinite(out)))
    print("KERNEL_OK")
</pallas_src>

<mosaic_0001>
module attributes {stable_mosaic.version = 11 : i64} {
  func.func @kernel(%arg0: i32, %arg1: memref<2x18x9x256xf32, #tpu.memory_space<vmem>>, %arg2: memref<1152x128xbf16, #tpu.memory_space<vmem>>, %arg3: memref<1x128xf32, #tpu.memory_space<vmem>>, %arg4: memref<1x128xf32, #tpu.memory_space<vmem>>, %arg5: memref<1x128xf32, #tpu.memory_space<vmem>>, %arg6: memref<1152x128xbf16, #tpu.memory_space<vmem>>, %arg7: memref<1x128xf32, #tpu.memory_space<vmem>>, %arg8: memref<1x128xf32, #tpu.memory_space<vmem>>, %arg9: memref<1x128xf32, #tpu.memory_space<vmem>>, %arg10: memref<1152x128xbf16, #tpu.memory_space<vmem>>, %arg11: memref<1x128xf32, #tpu.memory_space<vmem>>, %arg12: memref<1x128xf32, #tpu.memory_space<vmem>>, %arg13: memref<1x128xf32, #tpu.memory_space<vmem>>, %arg14: memref<1152x256xbf16, #tpu.memory_space<vmem>>, %arg15: memref<1x256xf32, #tpu.memory_space<vmem>>, %arg16: memref<1x256xf32, #tpu.memory_space<vmem>>, %arg17: memref<1x256xf32, #tpu.memory_space<vmem>>, %arg18: memref<2x256xf32, #tpu.memory_space<vmem>>, %arg19: memref<128x1152xf32, #tpu.memory_space<vmem>>, %arg20: memref<2x10x5x256xf32, #tpu.memory_space<vmem>>, %arg21: memref<2x6x3x256xf32, #tpu.memory_space<vmem>>, %arg22: memref<2x4x2x256xf32, #tpu.memory_space<vmem>>) attributes {dimension_semantics = [#tpu.dimension_semantics<arbitrary>], iteration_bounds = array<i64: 1>, scalar_prefetch = 0 : i64, scratch_operands = 4 : i64, tpu.core_type = #tpu.core_type<tc>, window_params = [{pipeline_mode = #tpu.pipeline_mode<synchronous>, transform_indices = @transform_0, window_bounds = array<i64: 2, 18, 9, 256>}, {pipeline_mode = #tpu.pipeline_mode<synchronous>, transform_indices = @transform_1, window_bounds = array<i64: 1152, 128>}, {pipeline_mode = #tpu.pipeline_mode<synchronous>, transform_indices = @transform_2, window_bounds = array<i64: 1, 128>}, {pipeline_mode = #tpu.pipeline_mode<synchronous>, transform_indices = @transform_3, window_bounds = array<i64: 1, 128>}, {pipeline_mode = #tpu.pipeline_mode<synchronous>, transform_indices = @transform_4, window_bounds = array<i64: 1, 128>}, {pipeline_mode = #tpu.pipeline_mode<synchronous>, transform_indices = @transform_5, window_bounds = array<i64: 1152, 128>}, {pipeline_mode = #tpu.pipeline_mode<synchronous>, transform_indices = @transform_6, window_bounds = array<i64: 1, 128>}, {pipeline_mode = #tpu.pipeline_mode<synchronous>, transform_indices = @transform_7, window_bounds = array<i64: 1, 128>}, {pipeline_mode = #tpu.pipeline_mode<synchronous>, transform_indices = @transform_8, window_bounds = array<i64: 1, 128>}, {pipeline_mode = #tpu.pipeline_mode<synchronous>, transform_indices = @transform_9, window_bounds = array<i64: 1152, 128>}, {pipeline_mode = #tpu.pipeline_mode<synchronous>, transform_indices = @transform_10, window_bounds = array<i64: 1, 128>}, {pipeline_mode = #tpu.pipeline_mode<synchronous>, transform_indices = @transform_11, window_bounds = array<i64: 1, 128>}, {pipeline_mode = #tpu.pipeline_mode<synchronous>, transform_indices = @transform_12, window_bounds = array<i64: 1, 128>}, {pipeline_mode = #tpu.pipeline_mode<synchronous>, transform_indices = @transform_13, window_bounds = array<i64: 1152, 256>}, {pipeline_mode = #tpu.pipeline_mode<synchronous>, transform_indices = @transform_14, window_bounds = array<i64: 1, 256>}, {pipeline_mode = #tpu.pipeline_mode<synchronous>, transform_indices = @transform_15, window_bounds = array<i64: 1, 256>}, {pipeline_mode = #tpu.pipeline_mode<synchronous>, transform_indices = @transform_16, window_bounds = array<i64: 1, 256>}, {pipeline_mode = #tpu.pipeline_mode<synchronous>, transform_indices = @transform_17, window_bounds = array<i64: 2, 256>}]} {
    %cst = arith.constant 0.000000e+00 : f32
    %0 = vector.broadcast %cst : f32 to vector<2x10x5x256xf32>
    %c0 = arith.constant 0 : index
    %c0_0 = arith.constant 0 : index
    %c0_1 = arith.constant 0 : index
    %c0_2 = arith.constant 0 : index
    %1 = vector.load %arg20[%c0, %c0_0, %c0_1, %c0_2] : memref<2x10x5x256xf32, #tpu.memory_space<vmem>>, vector<2x10x5x256xf32>
    tpu.vector_store %arg20[%c0, %c0_0, %c0_1, %c0_2], %0 {strides = array<i32>} : memref<2x10x5x256xf32, #tpu.memory_space<vmem>>, vector<2x10x5x256xf32>,
    %cst_3 = arith.constant 0.000000e+00 : f32
    %2 = vector.broadcast %cst_3 : f32 to vector<2x6x3x256xf32>
    %c0_4 = arith.constant 0 : index
    %c0_5 = arith.constant 0 : index
    %c0_6 = arith.constant 0 : index
    %c0_7 = arith.constant 0 : index
    %3 = vector.load %arg21[%c0_4, %c0_5, %c0_6, %c0_7] : memref<2x6x3x256xf32, #tpu.memory_space<vmem>>, vector<2x6x3x256xf32>
    tpu.vector_store %arg21[%c0_4, %c0_5, %c0_6, %c0_7], %2 {strides = array<i32>} : memref<2x6x3x256xf32, #tpu.memory_space<vmem>>, vector<2x6x3x256xf32>,
    %cst_8 = arith.constant 0.000000e+00 : f32
    %4 = vector.broadcast %cst_8 : f32 to vector<2x4x2x256xf32>
    %c0_9 = arith.constant 0 : index
    %c0_10 = arith.constant 0 : index
    %c0_11 = arith.constant 0 : index
    %c0_12 = arith.constant 0 : index
    %5 = vector.load %arg22[%c0_9, %c0_10, %c0_11, %c0_12] : memref<2x4x2x256xf32, #tpu.memory_space<vmem>>, vector<2x4x2x256xf32>
    tpu.vector_store %arg22[%c0_9, %c0_10, %c0_11, %c0_12], %4 {strides = array<i32>} : memref<2x4x2x256xf32, #tpu.memory_space<vmem>>, vector<2x4x2x256xf32>,
    %c0_13 = arith.constant 0 : index
    %c0_14 = arith.constant 0 : index
    %c0_15 = arith.constant 0 : index
    %c0_16 = arith.constant 0 : index
    %6 = vector.load %arg1[%c0_13, %c0_14, %c0_15, %c0_16] : memref<2x18x9x256xf32, #tpu.memory_space<vmem>>, vector<1x1x8x256xf32>
    %7 = vector.shape_cast %6 : vector<1x1x8x256xf32> to vector<8x256xf32>
    %c0_17 = arith.constant 0 : index
    %c0_18 = arith.constant 0 : index
    %8 = vector.load %arg19[%c0_17, %c0_18] : memref<128x1152xf32, #tpu.memory_space<vmem>>, vector<8x256xf32>
    tpu.vector_store %arg19[%c0_17, %c0_18], %7 {strides = array<i32>} : memref<128x1152xf32, #tpu.memory_space<vmem>>, vector<8x256xf32>,
    %c0_19 = arith.constant 0 : index
    %c0_20 = arith.constant 0 : index
    %c1 = arith.constant 1 : index
    %c0_21 = arith.constant 0 : index
    %9 = vector.load %arg1[%c0_19, %c0_20, %c1, %c0_21] : memref<2x18x9x256xf32, #tpu.memory_space<vmem>>, vector<1x1x8x128xf32>
    %10 = vector.shape_cast %9 : vector<1x1x8x128xf32> to vector<8x128xf32>
    %c0_22 = arith.constant 0 : index
    %c256 = arith.constant 256 : index
    %11 = vector.load %arg19[%c0_22, %c256] : memref<128x1152xf32, #tpu.memory_space<vmem>>, vector<8x128xf32>
    tpu.vector_store %arg19[%c0_22, %c256], %10 {strides = array<i32>} : memref<128x1152xf32, #tpu.memory_space<vmem>>, vector<8x128xf32>,
    %c0_23 = arith.constant 0 : index
    %c1_24 = arith.constant 1 : index
    %c0_25 = arith.constant 0 : index
    %c0_26 = arith.constant 0 : index
    %12 = vector.load %arg1[%c0_23, %c1_24, %c0_25, %c0_26] : memref<2x18x9x256xf32, #tpu.memory_space<vmem>>, vector<1x1x8x256xf32>
    %13 = vector.shape_cast %12 : vector<1x1x8x256xf32> to vector<8x256xf32>
    %c0_27 = arith.constant 0 : index
    %c384 = arith.constant 384 : index
    %14 = vector.load %arg19[%c0_27, %c384] : memref<128x1152xf32, #tpu.memory_space<vmem>>, vector<8x256xf32>
    tpu.vector_store %arg19[%c0_27, %c384], %13 {strides = array<i32>} : memref<128x1152xf32, #tpu.memory_space<vmem>>, vector<8x256xf32>,
    %c0_28 = arith.constant 0 : index
    %c1_29 = arith.constant 1 : index
    %c1_30 = arith.constant 1 : index
    %c0_31 = arith.constant 0 : index
    %15 = vector.load %arg1[%c0_28, %c1_29, %c1_30, %c0_31] : memref<2x18x9x256xf32, #tpu.memory_space<vmem>>, vector<1x1x8x128xf32>
    %16 = vector.shape_cast %15 : vector<1x1x8x128xf32> to vector<8x128xf32>
    %c0_32 = arith.constant 0 : index
    %c640 = arith.constant 640 : index
    %17 = vector.load %arg19[%c0_32, %c640] : memref<128x1152xf32, #tpu.memory_space<vmem>>, vector<8x128xf32>
    tpu.vector_store %arg19[%c0_32, %c640], %16 {strides = array<i32>} : memref<128x1152xf32, #tpu.memory_space<vmem>>, vector<8x128xf32>,
    %c0_33 = arith.constant 0 : index
    %c2 = arith.constant 2 : index
    %c0_34 = arith.constant 0 : index
    %c0_35 = arith.constant 0 : index
    %18 = vector.load %arg1[%c0_33, %c2, %c0_34, %c0_35] : memref<2x18x9x256xf32, #tpu.memory_space<vmem>>, vector<1x1x8x256xf32>
    %19 = vector.shape_cast %18 : vector<1x1x8x256xf32> to vector<8x256xf32>
    %c0_36 = arith.constant 0 : index
    %c768 = arith.constant 768 : index
    %20 = vector.load %arg19[%c0_36, %c768] : memref<128x1152xf32, #tpu.memory_space<vmem>>, vector<8x256xf32>
    tpu.vector_store %arg19[%c0_36, %c768], %19 {strides = array<i32>} : memref<128x1152xf32, #tpu.memory_space<vmem>>, vector<8x256xf32>,
    %c0_37 = arith.constant 0 : index
    %c2_38 = arith.constant 2 : index
    %c1_39 = arith.constant 1 : index
    %c0_40 = arith.constant 0 : index
    %21 = vector.load %arg1[%c0_37, %c2_38, %c1_39, %c0_40] : memref<2x18x9x256xf32, #tpu.memory_space<vmem>>, vector<1x1x8x128xf32>
    %22 = vector.shape_cast %21 : vector<1x1x8x128xf32> to vector<8x128xf32>
    %c0_41 = arith.constant 0 : index
    %c1024 = arith.constant 1024 : index
    %23 = vector.load %arg19[%c0_41, %c1024] : memref<128x1152xf32, #tpu.memory_space<vmem>>, vector<8x128xf32>
    tpu.vector_store %arg19[%c0_41, %c1024], %22 {strides = array<i32>} : memref<128x1152xf32, #tpu.memory_space<vmem>>, vector<8x128xf32>,
    %c0_42 = arith.constant 0 : index
    %c2_43 = arith.constant 2 : index
    %c0_44 = arith.constant 0 : index
    %c0_45 = arith.constant 0 : index
    %24 = vector.load %arg1[%c0_42, %c2_43, %c0_44, %c0_45] : memref<2x18x9x256xf32, #tpu.memory_space<vmem>>, vector<1x1x8x256xf32>
    %25 = vector.shape_cast %24 : vector<1x1x8x256xf32> to vector<8x256xf32>
    %c8 = arith.constant 8 : index
    %c0_46 = arith.constant 0 : index
    %26 = vector.load %arg19[%c8, %c0_46] : memref<128x1152xf32, #tpu.memory_space<vmem>>, vector<8x256xf32>
    tpu.vector_store %arg19[%c8, %c0_46], %25 {strides = array<i32>} : memref<128x1152xf32, #tpu.memory_space<vmem>>, vector<8x256xf32>,
    %c0_47 = arith.constant 0 : index
    %c2_48 = arith.constant 2 : index
    %c1_49 = arith.constant 1 : index
    %c0_50 = arith.constant 0 : index
    %27 = vector.load %arg1[%c0_47, %c2_48, %c1_49, %c0_50] : memref<2x18x9x256xf32, #tpu.memory_space<vmem>>, vector<1x1x8x128xf32>
    %28 = vector.shape_cast %27 : vector<1x1x8x128xf32> to vector<8x128xf32>
    %c8_51 = arith.constant 8 : index
    %c256_52 = arith.constant 256 : index
    %29 = vector.load %arg19[%c8_51, %c256_52] : memref<128x1152xf32, #tpu.memory_space<vmem>>, vector<8x128xf32>
    tpu.vector_store %arg19[%c8_51, %c256_52], %28 {strides = array<i32>} : memref<128x1152xf32, #tpu.memory_space<vmem>>, vector<8x128xf32>,
    %c0_53 = arith.constant 0 : index
    %c3 = arith.constant 3 : index
    %c0_54 = arith.constant 0 : index
    %c0_55 = arith.constant 0 : index
    %30 = vector.load %arg1[%c0_53, %c3, %c0_54, %c0_55] : memref<2x18x9x256xf32, #tpu.memory_space<vmem>>, vector<1x1x8x256xf32>
    %31 = vector.shape_cast %30 : vector<1x1x8x256xf32> to vector<8x256xf32>
    %c8_56 = arith.constant 8 : index
    %c384_57 = arith.constant 384 : index
    %32 = vector.load %arg19[%c8_56, %c384_57] : memref<128x1152xf32, #tpu.memory_space<vmem>>, vector<8x256xf32>
    tpu.vector_store %arg19[%c8_56, %c384_57], %31 {strides = array<i32>} : memref<128x1152xf32, #tpu.memory_space<vmem>>, vector<8x256xf32>,
    %c0_58 = arith.constant 0 : index
    %c3_59 = arith.constant 3 : index
    %c1_60 = arith.constant 1 : index
    %c0_61 = arith.constant 0 : index
    %33 = vector.load %arg1[%c0_58, %c3_59, %c1_60, %c0_61] : memref<2x18x9x256xf32, #tpu.memory_space<vmem>>, vector<1x1x8x128xf32>
    %34 = vector.shape_cast %33 : vector<1x1x8x128xf32> to vector<8x128xf32>
    %c8_62 = arith.constant 8 : index
    %c640_63 = arith.constant 640 : index
    %35 = vector.load %arg19[%c8_62, %c640_63] : memref<128x1152xf32, #tpu.memory_space<vmem>>, vector<8x128xf32>
    tpu.vector_store %arg19[%c8_62, %c640_63], %34 {strides = array<i32>} : memref<128x1152xf32, #tpu.memory_space<vmem>>, vector<8x128xf32>,
    %c0_64 = arith.constant 0 : index
    %c4 = arith.constant 4 : index
    %c0_65 = arith.constant 0 : index
    %c0_66 = arith.constant 0 : index
    %36 = vector.load %arg1[%c0_64, %c4, %c0_65, %c0_66] : memref<2x18x9x256xf32, #tpu.memory_space<vmem>>, vector<1x1x8x256xf32>
    %37 = vector.shape_cast %36 : vector<1x1x8x256xf32> to vector<8x256xf32>
    %c8_67 = arith.constant 8 : index
    %c768_68 = arith.constant 768 : index
    %38 = vector.load %arg19[%c8_67, %c768_68] : memref<128x1152xf32, #tpu.memory_space<vmem>>, vector<8x256xf32>
    tpu.vector_store %arg19[%c8_67, %c768_68], %37 {strides = array<i32>} : memref<128x1152xf32, #tpu.memory_space<vmem>>, vector<8x256xf32>,
    %c0_69 = arith.constant 0 : index
    %c4_70 = arith.constant 4 : index
    %c1_71 = arith.constant 1 : index
    %c0_72 = arith.constant 0 : index
    %39 = vector.load %arg1[%c0_69, %c4_70, %c1_71, %c0_72] : memref<2x18x9x256xf32, #tpu.memory_space<vmem>>, vector<1x1x8x128xf32>
    %40 = vector.shape_cast %39 : vector<1x1x8x128xf32> to vector<8x128xf32>
    %c8_73 = arith.constant 8 : index
    %c1024_74 = arith.constant 1024 : index
    %41 = vector.load %arg19[%c8_73, %c1024_74] : memref<128x1152xf32, #tpu.memory_space<vmem>>, vector<8x128xf32>
    tpu.vector_store %arg19[%c8_73, %c1024_74], %40 {strides = array<i32>} : memref<128x1152xf32, #tpu.memory_space<vmem>>, vector<8x128xf32>,
    %c0_75 = arith.constant 0 : index
    %c4_76 = arith.constant 4 : index
    %c0_77 = arith.constant 0 : index
    %c0_78 = arith.constant 0 : index
    %42 = vector.load %arg1[%c0_75, %c4_76, %c0_77, %c0_78] : memref<2x18x9x256xf32, #tpu.memory_space<vmem>>, vector<1x1x8x256xf32>
    %43 = vector.shape_cast %42 : vector<1x1x8x256xf32> to vector<8x256xf32>
    %c16 = arith.constant 16 : index
    %c0_79 = arith.constant 0 : index
    %44 = vector.load %arg19[%c16, %c0_79] : memref<128x1152xf32, #tpu.memory_space<vmem>>, vector<8x256xf32>
    tpu.vector_store %arg19[%c16, %c0_79], %43 {strides = array<i32>} : memref<128x1152xf32, #tpu.memory_space<vmem>>, vector<8x256xf32>,
    %c0_80 = arith.constant 0 : index
    %c4_81 = arith.constant 4 : index
    %c1_82 = arith.constant 1 : index
    %c0_83 = arith.constant 0 : index
    %45 = vector.load %arg1[%c0_80, %c4_81, %c1_82, %c0_83] : memref<2x18x9x256xf32, #tpu.memory_space<vmem>>, vector<1x1x8x128xf32>
    %46 = vector.shape_cast %45 : vector<1x1x8x128xf32> to vector<8x128xf32>
    %c16_84 = arith.constant 16 : index
    %c256_85 = arith.constant 256 : index
    %47 = vector.load %arg19[%c16_84, %c256_85] : memref<128x1152xf32, #tpu.memory_space<vmem>>, vector<8x128xf32>
    tpu.vector_store %arg19[%c16_84, %c256_85], %46 {strides = array<i32>} : memref<128x1152xf32, #tpu.memory_space<vmem>>, vector<8x128xf32>,
    %c0_86 = arith.constant 0 : index
    %c5 = arith.constant 5 : index
    %c0_87 = arith.constant 0 : index
    %c0_88 = arith.constant 0 : index
    %48 = vector.load %arg1[%c0_86, %c5, %c0_87, %c0_88] : memref<2x18x9x256xf32, #tpu.memory_space<vmem>>, vector<1x1x8x256xf32>
    %49 = vector.shape_cast %48 : vector<1x1x8x256xf32> to vector<8x256xf32>
    %c16_89 = arith.constant 16 : index
    %c384_90 = arith.constant 384 : index
    %50 = vector.load %arg19[%c16_89, %c384_90] : memref<128x1152xf32, #tpu.memory_space<vmem>>, vector<8x256xf32>
    tpu.vector_store %arg19[%c16_89, %c384_90], %49 {strides = array<i32>} : memref<128x1152xf32, #tpu.memory_space<vmem>>, vector<8x256xf32>,
    %c0_91 = arith.constant 0 : index
    %c5_92 = arith.constant 5 : index
    %c1_93 = arith.constant 1 : index
    %c0_94 = arith.constant 0 : index
    %51 = vector.load %arg1[%c0_91, %c5_92, %c1_93, %c0_94] : memref<2x18x9x256xf32, #tpu.memory_space<vmem>>, vector<1x1x8x128xf32>
    %52 = vector.shape_cast %51 : vector<1x1x8x128xf32> to vector<8x128xf32>
    %c16_95 = arith.constant 16 : index
    %c640_96 = arith.constant 640 : index
    %53 = vector.load %arg19[%c16_95, %c640_96] : memref<128x1152xf32, #tpu.memory_space<vmem>>, vector<8x128xf32>
    tpu.vector_store %arg19[%c16_95, %c640_96], %52 {strides = array<i32>} : memref<128x1152xf32, #tpu.memory_space<vmem>>, vector<8x128xf32>,
    %c0_97 = arith.constant 0 : index
    %c6 = arith.constant 6 : index
    %c0_98 = arith.constant 0 : index
    %c0_99 = arith.constant 0 : index
    %54 = vector.load %arg1[%c0_97, %c6, %c0_98, %c0_99] : memref<2x18x9x256xf32, #tpu.memory_space<vmem>>, vector<1x1x8x256xf32>
    %55 = vector.shape_cast %54 : vector<1x1x8x256xf32> to vector<8x256xf32>
    %c16_100 = arith.constant 16 : index
    %c768_101 = arith.constant 768 : index
    %56 = vector.load %arg19[%c16_100, %c768_101] : memref<128x1152xf32, #tpu.memory_space<vmem>>, vector<8x256xf32>
    tpu.vector_store %arg19[%c16_100, %c768_101], %55 {strides = array<i32>} : memref<128x1152xf32, #tpu.memory_space<vmem>>, vector<8x256xf32>,
    %c0_102 = arith.constant 0 : index
    %c6_103 = arith.constant 6 : index
    %c1_104 = arith.constant 1 : index
    %c0_105 = arith.constant 0 : index
    %57 = vector.load %arg1[%c0_102, %c6_103, %c1_104, %c0_105] : memref<2x18x9x256xf32, #tpu.memory_space<vmem>>, vector<1x1x8x128xf32>
    %58 = vector.shape_cast %57 : vector<1x1x8x128xf32> to vector<8x128xf32>
    %c16_106 = arith.constant 16 : index
    %c1024_107 = arith.constant 1024 : index
    %59 = vector.load %arg19[%c16_106, %c1024_107] : memref<128x1152xf32, #tpu.memory_space<vmem>>, vector<8x128xf32>
    tpu.vector_store %arg19[%c16_106, %c1024_107], %58 {strides = array<i32>} : memref<128x1152xf32, #tpu.memory_space<vmem>>, vector<8x128xf32>,
    %c0_108 = arith.constant 0 : index
    %c6_109 = arith.constant 6 : index
    %c0_110 = arith.constant 0 : index
    %c0_111 = arith.constant 0 : index
    %60 = vector.load %arg1[%c0_108, %c6_109, %c0_110, %c0_111] : memref<2x18x9x256xf32, #tpu.memory_space<vmem>>, vector<1x1x8x256xf32>
    %61 = vector.shape_cast %60 : vector<1x1x8x256xf32> to vector<8x256xf32>
    %c24 = arith.constant 24 : index
    %c0_112 = arith.constant 0 : index
    %62 = vector.load %arg19[%c24, %c0_112] : memref<128x1152xf32, #tpu.memory_space<vmem>>, vector<8x256xf32>
    tpu.vector_store %arg19[%c24, %c0_112], %61 {strides = array<i32>} : memref<128x1152xf32, #tpu.memory_space<vmem>>, vector<8x256xf32>,
    %c0_113 = arith.constant 0 : index
    %c6_114 = arith.constant 6 : index
    %c1_115 = arith.constant 1 : index
    %c0_116 = arith.constant 0 : index
    %63 = vector.load %arg1[%c0_113, %c6_114, %c1_115, %c0_116] : memref<2x18x9x256xf32, #tpu.memory_space<vmem>>, vector<1x1x8x128xf32>
    %64 = vector.shape_cast %63 : vector<1x1x8x128xf32> to vector<8x128xf32>
    %c24_117 = arith.constant 24 : index
    %c256_118 = arith.constant 256 : index
    %65 = vector.load %arg19[%c24_117, %c256_118] : memref<128x1152xf32, #tpu.memory_space<vmem>>, vector<8x128xf32>
    tpu.vector_store %arg19[%c24_117, %c256_118], %64 {strides = array<i32>} : memref<128x1152xf32, #tpu.memory_space<vmem>>, vector<8x128xf32>,
    %c0_119 = arith.constant 0 : index
    %c7 = arith.constant 7 : index
    %c0_120 = arith.constant 0 : index
    %c0_121 = arith.constant 0 : index
    %66 = vector.load %arg1[%c0_119, %c7, %c0_120, %c0_121] : memref<2x18x9x256xf32, #tpu.memory_space<vmem>>, vector<1x1x8x256xf32>
    %67 = vector.shape_cast %66 : vector<1x1x8x256xf32> to vector<8x256xf32>
    %c24_122 = arith.constant 24 : index
    %c384_123 = arith.constant 384 : index
    %68 = vector.load %arg19[%c24_122, %c384_123] : memref<128x1152xf32, #tpu.memory_space<vmem>>, vector<8x256xf32>
    tpu.vector_store %arg19[%c24_122, %c384_123], %67 {strides = array<i32>} : memref<128x1152xf32, #tpu.memory_space<vmem>>, vector<8x256xf32>,
    %c0_124 = arith.constant 0 : index
    %c7_125 = arith.constant 7 : index
    %c1_126 = arith.constant 1 : index
    %c0_127 = arith.constant 0 : index
    %69 = vector.load %arg1[%c0_124, %c7_125, %c1_126, %c0_127] : memref<2x18x9x256xf32, #tpu.memory_space<vmem>>, vector<1x1x8x128xf32>
    %70 = vector.shape_cast %69 : vector<1x1x8x128xf32> to vector<8x128xf32>
    %c24_128 = arith.constant 24 : index
    %c640_129 = arith.constant 640 : index
    %71 = vector.load %arg19[%c24_128, %c640_129] : memref<128x1152xf32, #tpu.memory_space<vmem>>, vector<8x128xf32>
    tpu.vector_store %arg19[%c24_128, %c640_129], %70 {strides = array<i32>} : memref<128x1152xf32, #tpu.memory_space<vmem>>, vector<8x128xf32>,
    %c0_130 = arith.constant 0 : index
    %c8_131 = arith.constant 8 : index
    %c0_132 = arith.constant 0 : index
    %c0_133 = arith.constant 0 : index
    %72 = vector.load %arg1[%c0_130, %c8_131, %c0_132, %c0_133] : memref<2x18x9x256xf32, #tpu.memory_space<vmem>>, vector<1x1x8x256xf32>
    %73 = vector.shape_cast %72 : vector<1x1x8x256xf32> to vector<8x256xf32>
    %c24_134 = arith.constant 24 : index
    %c768_135 = arith.constant 768 : index
    %74 = vector.load %arg19[%c24_134, %c768_135] : memref<128x1152xf32, #tpu.memory_space<vmem>>, vector<8x256xf32>
    tpu.vector_store %arg19[%c24_134, %c768_135], %73 {strides = array<i32>} : memref<128x1152xf32, #tpu.memory_space<vmem>>, vector<8x256xf32>,
    %c0_136 = arith.constant 0 : index
    %c8_137 = arith.constant 8 : index
    %c1_138 = arith.constant 1 : index
    %c0_139 = arith.constant 0 : index
    %75 = vector.load %arg1[%c0_136, %c8_137, %c1_138, %c0_139] : memref<2x18x9x256xf32, #tpu.memory_space<vmem>>, vector<1x1x8x128xf32>
    %76 = vector.shape_cast %75 : vector<1x1x8x128xf32> to vector<8x128xf32>
    %c24_140 = arith.constant 24 : index
    %c1024_141 = arith.constant 1024 : index
    %77 = vector.load %arg19[%c24_140, %c1024_141] : memref<128x1152xf32, #tpu.memory_space<vmem>>, vector<8x128xf32>
    tpu.vector_store %arg19[%c24_140, %c1024_141], %76 {strides = array<i32>} : memref<128x1152xf32, #tpu.memory_space<vmem>>, vector<8x128xf32>,
    %c0_142 = arith.constant 0 : index
    %c8_143 = arith.constant 8 : index
    %c0_144 = arith.constant 0 : index
    %c0_145 = arith.constant 0 : index
    %78 = vector.load %arg1[%c0_142, %c8_143, %c0_144, %c0_145] : memref<2x18x9x256xf32, #tpu.memory_space<vmem>>, vector<1x1x8x256xf32>
    %79 = vector.shape_cast %78 : vector<1x1x8x256xf32> to vector<8x256xf32>
    %c32 = arith.constant 32 : index
    %c0_146 = arith.constant 0 : index
    %80 = vector.load %arg19[%c32, %c0_146] : memref<128x1152xf32, #tpu.memory_space<vmem>>, vector<8x256xf32>
    tpu.vector_store %arg19[%c32, %c0_146], %79 {strides = array<i32>} : memref<128x1152xf32, #tpu.memory_space<vmem>>, vector<8x256xf32>,
    %c0_147 = arith.constant 0 : index
    %c8_148 = arith.constant 8 : index
    %c1_149 = arith.constant 1 : index
    %c0_150 = arith.constant 0 : index
    %81 = vector.load %arg1[%c0_147, %c8_148, %c1_149, %c0_150] : memref<2x18x9x256xf32, #tpu.memory_space<vmem>>, vector<1x1x8x128xf32>
    %82 = vector.shape_cast %81 : vector<1x1x8x128xf32> to vector<8x128xf32>
    %c32_151 = arith.constant 32 : index
    %c256_152 = arith.constant 256 : index
    %83 = vector.load %arg19[%c32_151, %c256_152] : memref<128x1152xf32, #tpu.memory_space<vmem>>, vector<8x128xf32>
    tpu.vector_store %arg19[%c32_151, %c256_152], %82 {strides = array<i32>} : memref<128x1152xf32, #tpu.memory_space<vmem>>, vector<8x128xf32>,
    %c0_153 = arith.constant 0 : index
    %c9 = arith.constant 9 : index
    %c0_154 = arith.constant 0 : index
    %c0_155 = arith.constant 0 : index
    %84 = vector.load %arg1[%c0_153, %c9, %c0_154, %c0_155] : memref<2x18x9x256xf32, #tpu.memory_space<vmem>>, vector<1x1x8x256xf32>
    %85 = vector.shape_cast %84 : vector<1x1x8x256xf32> to vector<8x256xf32>
    %c32_156 = arith.constant 32 : index
    %c384_157 = arith.constant 384 : index
    %86 = vector.load %arg19[%c32_156, %c384_157] : memref<128x1152xf32, #tpu.memory_space<vmem>>, vector<8x256xf32>
    tpu.vector_store %arg19[%c32_156, %c384_157], %85 {strides = array<i32>} : memref<128x1152xf32, #tpu.memory_space<vmem>>, vector<8x256xf32>,
    %c0_158 = arith.constant 0 : index
    %c9_159 = arith.constant 9 : index
    %c1_160 = arith.constant 1 : index
    %c0_161 = arith.constant 0 : index
    %87 = vector.load %arg1[%c0_158, %c9_159, %c1_160, %c0_161] : memref<2x18x9x256xf32, #tpu.memory_space<vmem>>, vector<1x1x8x128xf32>
    %88 = vector.shape_cast %87 : vector<1x1x8x128xf32> to vector<8x128xf32>
    %c32_162 = arith.constant 32 : index
    %c640_163 = arith.constant 640 : index
    %89 = vector.load %arg19[%c32_162, %c640_163] : memref<128x1152xf32, #tpu.memory_space<vmem>>, vector<8x128xf32>
    tpu.vector_store %arg19[%c32_162, %c640_163], %88 {strides = array<i32>} : memref<128x1152xf32, #tpu.memory_space<vmem>>, vector<8x128xf32>,
    %c0_164 = arith.constant 0 : index
    %c10 = arith.constant 10 : index
    %c0_165 = arith.constant 0 : index
    %c0_166 = arith.constant 0 : index
    %90 = vector.load %arg1[%c0_164, %c10, %c0_165, %c0_166] : memref<2x18x9x256xf32, #tpu.memory_space<vmem>>, vector<1x1x8x256xf32>
    %91 = vector.shape_cast %90 : vector<1x1x8x256xf32> to vector<8x256xf32>
    %c32_167 = arith.constant 32 : index
    %c768_168 = arith.constant 768 : index
    %92 = vector.load %arg19[%c32_167, %c768_168] : memref<128x1152xf32, #tpu.memory_space<vmem>>, vector<8x256xf32>
    tpu.vector_store %arg19[%c32_167, %c768_168], %91 {strides = array<i32>} : memref<128x1152xf32, #tpu.memory_space<vmem>>, vector<8x256xf32>,
    %c0_169 = arith.constant 0 : index
    %c10_170 = arith.constant 10 : index
    %c1_171 = arith.constant 1 : index
    %c0_172 = arith.constant 0 : index
    %93 = vector.load %arg1[%c0_169, %c10_170, %c1_171, %c0_172] : memref<2x18x9x256xf32, #tpu.memory_space<vmem>>, vector<1x1x8x128xf32>
    %94 = vector.shape_cast %93 : vector<1x1x8x128xf32> to vector<8x128xf32>
    %c32_173 = arith.constant 32 : index
    %c1024_174 = arith.constant 1024 : index
    %95 = vector.load %arg19[%c32_173, %c1024_174] : memref<128x1152xf32, #tpu.memory_space<vmem>>, vector<8x128xf32>
    tpu.vector_store %arg19[%c32_173, %c1024_174], %94 {strides = array<i32>} : memref<128x1152xf32, #tpu.memory_space<vmem>>, vector<8x128xf32>,
    %c0_175 = arith.constant 0 : index
    %c10_176 = arith.constant 10 : index
    %c0_177 = arith.constant 0 : index
    %c0_178 = arith.constant 0 : index
    %96 = vector.load %arg1[%c0_175, %c10_176, %c0_177, %c0_178] : memref<2x18x9x256xf32, #tpu.memory_space<vmem>>, vector<1x1x8x256xf32>
    %97 = vector.shape_cast %96 : vector<1x1x8x256xf32> to vector<8x256xf32>
    %c40 = arith.constant 40 : index
    %c0_179 = arith.constant 0 : index
    %98 = vector.load %arg19[%c40, %c0_179] : memref<128x1152xf32, #tpu.memory_space<vmem>>, vector<8x256xf32>
    tpu.vector_store %arg19[%c40, %c0_179], %97 {strides = array<i32>} : memref<128x1152xf32, #tpu.memory_space<vmem>>, vector<8x256xf32>,
    %c0_180 = arith.constant 0 : index
    %c10_181 = arith.constant 10 : index
    %c1_182 = arith.constant 1 : index
    %c0_183 = arith.constant 0 : index
    %99 = vector.load %arg1[%c0_180, %c10_181, %c1_182, %c0_183] : memref<2x18x9x256xf32, #tpu.memory_space<vmem>>, vector<1x1x8x128xf32>
    %100 = vector.shape_cast %99 : vector<1x1x8x128xf32> to vector<8x128xf32>
    %c40_184 = arith.constant 40 : index
    %c256_185 = arith.constant 256 : index
    %101 = vector.load %arg19[%c40_184, %c256_185] : memref<128x1152xf32, #tpu.memory_space<vmem>>, vector<8x128xf32>
    tpu.vector_store %arg19[%c40_184, %c256_185], %100 {strides = array<i32>} : memref<128x1152xf32, #tpu.memory_space<vmem>>, vector<8x128xf32>,
    %c0_186 = arith.constant 0 : index
    %c11 = arith.constant 11 : index
    %c0_187 = arith.constant 0 : index
    %c0_188 = arith.constant 0 : index
    %102 = vector.load %arg1[%c0_186, %c11, %c0_187, %c0_188] : memref<2x18x9x256xf32, #tpu.memory_space<vmem>>, vector<1x1x8x256xf32>
    %103 = vector.shape_cast %102 : vector<1x1x8x256xf32> to vector<8x256xf32>
    %c40_189 = arith.constant 40 : index
    %c384_190 = arith.constant 384 : index
    %104 = vector.load %arg19[%c40_189, %c384_190] : memref<128x1152xf32, #tpu.memory_space<vmem>>, vector<8x256xf32>
    tpu.vector_store %arg19[%c40_189, %c384_190], %103 {strides = array<i32>} : memref<128x1152xf32, #tpu.memory_space<vmem>>, vector<8x256xf32>,
    %c0_191 = arith.constant 0 : index
    %c11_192 = arith.constant 11 : index
    %c1_193 = arith.constant 1 : index
    %c0_194 = arith.constant 0 : index
    %105 = vector.load %arg1[%c0_191, %c11_192, %c1_193, %c0_194] : memref<2x18x9x256xf32, #tpu.memory_space<vmem>>, vector<1x1x8x128xf32>
    %106 = vector.shape_cast %105 : vector<1x1x8x128xf32> to vector<8x128xf32>
    %c40_195 = arith.constant 40 : index
    %c640_196 = arith.constant 640 : index
    %107 = vector.load %arg19[%c40_195, %c640_196] : memref<128x1152xf32, #tpu.memory_space<vmem>>, vector<8x128xf32>
    tpu.vector_store %arg19[%c40_195, %c640_196], %106 {strides = array<i32>} : memref<128x1152xf32, #tpu.memory_space<vmem>>, vector<8x128xf32>,
    %c0_197 = arith.constant 0 : index
    %c12 = arith.constant 12 : index
    %c0_198 = arith.constant 0 : index
    %c0_199 = arith.constant 0 : index
    %108 = vector.load %arg1[%c0_197, %c12, %c0_198, %c0_199] : memref<2x18x9x256xf32, #tpu.memory_space<vmem>>, vector<1x1x8x256xf32>
    %109 = vector.shape_cast %108 : vector<1x1x8x256xf32> to vector<8x256xf32>
    %c40_200 = arith.constant 40 : index
    %c768_201 = arith.constant 768 : index
    %110 = vector.load %arg19[%c40_200, %c768_201] : memref<128x1152xf32, #tpu.memory_space<vmem>>, vector<8x256xf32>
    tpu.vector_store %arg19[%c40_200, %c768_201], %109 {strides = array<i32>} : memref<128x1152xf32, #tpu.memory_space<vmem>>, vector<8x256xf32>,
    %c0_202 = arith.constant 0 : index
    %c12_203 = arith.constant 12 : index
    %c1_204 = arith.constant 1 : index
    %c0_205 = arith.constant 0 : index
    %111 = vector.load %arg1[%c0_202, %c12_203, %c1_204, %c0_205] : memref<2x18x9x256xf32, #tpu.memory_space<vmem>>, vector<1x1x8x128xf32>
    %112 = vector.shape_cast %111 : vector<1x1x8x128xf32> to vector<8x128xf32>
    %c40_206 = arith.constant 40 : index
    %c1024_207 = arith.constant 1024 : index
    %113 = vector.load %arg19[%c40_206, %c1024_207] : memref<128x1152xf32, #tpu.memory_space<vmem>>, vector<8x128xf32>
    tpu.vector_store %arg19[%c40_206, %c1024_207], %112 {strides = array<i32>} : memref<128x1152xf32, #tpu.memory_space<vmem>>, vector<8x128xf32>,
    %c0_208 = arith.constant 0 : index
    %c12_209 = arith.constant 12 : index
    %c0_210 = arith.constant 0 : index
    %c0_211 = arith.constant 0 : index
    %114 = vector.load %arg1[%c0_208, %c12_209, %c0_210, %c0_211] : memref<2x18x9x256xf32, #tpu.memory_space<vmem>>, vector<1x1x8x256xf32>
    %115 = vector.shape_cast %114 : vector<1x1x8x256xf32> to vector<8x256xf32>
    %c48 = arith.constant 48 : index
    %c0_212 = arith.constant 0 : index
    %116 = vector.load %arg19[%c48, %c0_212] : memref<128x1152xf32, #tpu.memory_space<vmem>>, vector<8x256xf32>
    tpu.vector_store %arg19[%c48, %c0_212], %115 {strides = array<i32>} : memref<128x1152xf32, #tpu.memory_space<vmem>>, vector<8x256xf32>,
    %c0_213 = arith.constant 0 : index
    %c12_214 = arith.constant 12 : index
    %c1_215 = arith.constant 1 : index
    %c0_216 = arith.constant 0 : index
    %117 = vector.load %arg1[%c0_213, %c12_214, %c1_215, %c0_216] : memref<2x18x9x256xf32, #tpu.memory_space<vmem>>, vector<1x1x8x128xf32>
    %118 = vector.shape_cast %117 : vector<1x1x8x128xf32> to vector<8x128xf32>
    %c48_217 = arith.constant 48 : index
    %c256_218 = arith.constant 256 : index
    %119 = vector.load %arg19[%c48_217, %c256_218] : memref<128x1152xf32, #tpu.memory_space<vmem>>, vector<8x128xf32>
    tpu.vector_store %arg19[%c48_217, %c256_218], %118 {strides = array<i32>} : memref<128x1152xf32, #tpu.memory_space<vmem>>, vector<8x128xf32>,
    %c0_219 = arith.constant 0 : index
    %c13 = arith.constant 13 : index
    %c0_220 = arith.constant 0 : index
    %c0_221 = arith.constant 0 : index
    %120 = vector.load %arg1[%c0_219, %c13, %c0_220, %c0_221] : memref<2x18x9x256xf32, #tpu.memory_space<vmem>>, vector<1x1x8x256xf32>
    %121 = vector.shape_cast %120 : vector<1x1x8x256xf32> to vector<8x256xf32>
    %c48_222 = arith.constant 48 : index
    %c384_223 = arith.constant 384 : index
    %122 = vector.load %arg19[%c48_222, %c384_223] : memref<128x1152xf32, #tpu.memory_space<vmem>>, vector<8x256xf32>
    tpu.vector_store %arg19[%c48_222, %c384_223], %121 {strides = array<i32>} : memref<128x1152xf32, #tpu.memory_space<vmem>>, vector<8x256xf32>,
    %c0_224 = arith.constant 0 : index
    %c13_225 = arith.constant 13 : index
    %c1_226 = arith.constant 1 : index
    %c0_227 = arith.constant 0 : index
    %123 = vector.load %arg1[%c0_224, %c13_225, %c1_226, %c0_227] : memref<2x18x9x256xf32, #tpu.memory_space<vmem>>, vector<1x1x8x128xf32>
    %124 = vector.shape_cast %123 : vector<1x1x8x128xf32> to vector<8x128xf32>
    %c48_228 = arith.constant 48 : index
    %c640_229 = arith.constant 640 : index
    %125 = vector.load %arg19[%c48_228, %c640_229] : memref<128x1152xf32, #tpu.memory_space<vmem>>, vector<8x128xf32>
    tpu.vector_store %arg19[%c48_228, %c640_229], %124 {strides = array<i32>} : memref<128x1152xf32, #tpu.memory_space<vmem>>, vector<8x128xf32>,
    %c0_230 = arith.constant 0 : index
    %c14 = arith.constant 14 : index
    %c0_231 = arith.constant 0 : index
    %c0_232 = arith.constant 0 : index
    %126 = vector.load %arg1[%c0_230, %c14, %c0_231, %c0_232] : memref<2x18x9x256xf32, #tpu.memory_space<vmem>>, vector<1x1x8x256xf32>
    %127 = vector.shape_cast %126 : vector<1x1x8x256xf32> to vector<8x256xf32>
    %c48_233 = arith.constant 48 : index
    %c768_234 = arith.constant 768 : index
    %128 = vector.load %arg19[%c48_233, %c768_234] : memref<128x1152xf32, #tpu.memory_space<vmem>>, vector<8x256xf32>
    tpu.vector_store %arg19[%c48_233, %c768_234], %127 {strides = array<i32>} : memref<128x1152xf32, #tpu.memory_space<vmem>>, vector<8x256xf32>,
    %c0_235 = arith.constant 0 : index
    %c14_236 = arith.constant 14 : index
    %c1_237 = arith.constant 1 : index
    %c0_238 = arith.constant 0 : index
    %129 = vector.load %arg1[%c0_235, %c14_236, %c1_237, %c0_238] : memref<2x18x9x256xf32, #tpu.memory_space<vmem>>, vector<1x1x8x128xf32>
    %130 = vector.shape_cast %129 : vector<1x1x8x128xf32> to vector<8x128xf32>
    %c48_239 = arith.constant 48 : index
    %c1024_240 = arith.constant 1024 : index
    %131 = vector.load %arg19[%c48_239, %c1024_240] : memref<128x1152xf32, #tpu.memory_space<vmem>>, vector<8x128xf32>
    tpu.vector_store %arg19[%c48_239, %c1024_240], %130 {strides = array<i32>} : memref<128x1152xf32, #tpu.memory_space<vmem>>, vector<8x128xf32>,
    %c0_241 = arith.constant 0 : index
    %c14_242 = arith.constant 14 : index
    %c0_243 = arith.constant 0 : index
    %c0_244 = arith.constant 0 : index
    %132 = vector.load %arg1[%c0_241, %c14_242, %c0_243, %c0_244] : memref<2x18x9x256xf32, #tpu.memory_space<vmem>>, vector<1x1x8x256xf32>
    %133 = vector.shape_cast %132 : vector<1x1x8x256xf32> to vector<8x256xf32>
    %c56 = arith.constant 56 : index
    %c0_245 = arith.constant 0 : index
    %134 = vector.load %arg19[%c56, %c0_245] : memref<128x1152xf32, #tpu.memory_space<vmem>>, vector<8x256xf32>
    tpu.vector_store %arg19[%c56, %c0_245], %133 {strides = array<i32>} : memref<128x1152xf32, #tpu.memory_space<vmem>>, vector<8x256xf32>,
    %c0_246 = arith.constant 0 : index
    %c14_247 = arith.constant 14 : index
    %c1_248 = arith.constant 1 : index
    %c0_249 = arith.constant 0 : index
    %135 = vector.load %arg1[%c0_246, %c14_247, %c1_248, %c0_249] : memref<2x18x9x256xf32, #tpu.memory_space<vmem>>, vector<1x1x8x128xf32>
    %136 = vector.shape_cast %135 : vector<1x1x8x128xf32> to vector<8x128xf32>
    %c56_250 = arith.constant 56 : index
    %c256_251 = arith.constant 256 : index
    %137 = vector.load %arg19[%c56_250, %c256_251] : memref<128x1152xf32, #tpu.memory_space<vmem>>, vector<8x128xf32>
    tpu.vector_store %arg19[%c56_250, %c256_251], %136 {strides = array<i32>} : memref<128x1152xf32, #tpu.memory_space<vmem>>, vector<8x128xf32>,
    %c0_252 = arith.constant 0 : index
    %c15 = arith.constant 15 : index
    %c0_253 = arith.constant 0 : index
    %c0_254 = arith.constant 0 : index
    %138 = vector.load %arg1[%c0_252, %c15, %c0_253, %c0_254] : memref<2x18x9x256xf32, #tpu.memory_space<vmem>>, vector<1x1x8x256xf32>
    %139 = vector.shape_cast %138 : vector<1x1x8x256xf32> to vector<8x256xf32>
    %c56_255 = arith.constant 56 : index
    %c384_256 = arith.constant 384 : index
    %140 = vector.load %arg19[%c56_255, %c384_256] : memref<128x1152xf32, #tpu.memory_space<vmem>>, vector<8x256xf32>
    tpu.vector_store %arg19[%c56_255, %c384_256], %139 {strides = array<i32>} : memref<128x1152xf32, #tpu.memory_space<vmem>>, vector<8x256xf32>,
    %c0_257 = arith.constant 0 : index
    %c15_258 = arith.constant 15 : index
    %c1_259 = arith.constant 1 : index
    %c0_260 = arith.constant 0 : index
    %141 = vector.load %arg1[%c0_257, %c15_258, %c1_259, %c0_260] : memref<2x18x9x256xf32, #tpu.memory_space<vmem>>, vector<1x1x8x128xf32>
    %142 = vector.shape_cast %141 : vector<1x1x8x128xf32> to vector<8x128xf32>
    %c56_261 = arith.constant 56 : index
    %c640_262 = arith.constant 640 : index
    %143 = vector.load %arg19[%c56_261, %c640_262] : memref<128x1152xf32, #tpu.memory_space<vmem>>, vector<8x128xf32>
    tpu.vector_store %arg19[%c56_261, %c640_262], %142 {strides = array<i32>} : memref<128x1152xf32, #tpu.memory_space<vmem>>, vector<8x128xf32>,
    %c0_263 = arith.constant 0 : index
    %c16_264 = arith.constant 16 : index
    %c0_265 = arith.constant 0 : index
    %c0_266 = arith.constant 0 : index
    %144 = vector.load %arg1[%c0_263, %c16_264, %c0_265, %c0_266] : memref<2x18x9x256xf32, #tpu.memory_space<vmem>>, vector<1x1x8x256xf32>
    %145 = vector.shape_cast %144 : vector<1x1x8x256xf32> to vector<8x256xf32>
    %c56_267 = arith.constant 56 : index
    %c768_268 = arith.constant 768 : index
    %146 = vector.load %arg19[%c56_267, %c768_268] : memref<128x1152xf32, #tpu.memory_space<vmem>>, vector<8x256xf32>
    tpu.vector_store %arg19[%c56_267, %c768_268], %145 {strides = array<i32>} : memref<128x1152xf32, #tpu.memory_space<vmem>>, vector<8x256xf32>,
    %c0_269 = arith.constant 0 : index
    %c16_270 = arith.constant 16 : index
    %c1_271 = arith.constant 1 : index
    %c0_272 = arith.constant 0 : index
    %147 = vector.load %arg1[%c0_269, %c16_270, %c1_271, %c0_272] : memref<2x18x9x256xf32, #tpu.memory_space<vmem>>, vector<1x1x8x128xf32>
    %148 = vector.shape_cast %147 : vector<1x1x8x128xf32> to vector<8x128xf32>
    %c56_273 = arith.constant 56 : index
    %c1024_274 = arith.constant 1024 : index
    %149 = vector.load %arg19[%c56_273, %c1024_274] : memref<128x1152xf32, #tpu.memory_space<vmem>>, vector<8x128xf32>
    tpu.vector_store %arg19[%c56_273, %c1024_274], %148 {strides = array<i32>} : memref<128x1152xf32, #tpu.memory_space<vmem>>, vector<8x128xf32>,
    %c1_275 = arith.constant 1 : index
    %c0_276 = arith.constant 0 : index
    %c0_277 = arith.constant 0 : index
    %c0_278 = arith.constant 0 : index
    %150 = vector.load %arg1[%c1_275, %c0_276, %c0_277, %c0_278] : memref<2x18x9x256xf32, #tpu.memory_space<vmem>>, vector<1x1x8x256xf32>
    %151 = vector.shape_cast %150 : vector<1x1x8x256xf32> to vector<8x256xf32>
    %c64 = arith.constant 64 : index
    %c0_279 = arith.constant 0 : index
    %152 = vector.load %arg19[%c64, %c0_279] : memref<128x1152xf32, #tpu.memory_space<vmem>>, vector<8x256xf32>
    tpu.vector_store %arg19[%c64, %c0_279], %151 {strides = array<i32>} : memref<128x1152xf32, #tpu.memory_space<vmem>>, vector<8x256xf32>,
    %c1_280 = arith.constant 1 : index
    %c0_281 = arith.constant 0 : index
    %c1_282 = arith.constant 1 : index
    %c0_283 = arith.constant 0 : index
    %153 = vector.load %arg1[%c1_280, %c0_281, %c1_282, %c0_283] : memref<2x18x9x256xf32, #tpu.memory_space<vmem>>, vector<1x1x8x128xf32>
    %154 = vector.shape_cast %153 : vector<1x1x8x128xf32> to vector<8x128xf32>
    %c64_284 = arith.constant 64 : index
    %c256_285 = arith.constant 256 : index
    %155 = vector.load %arg19[%c64_284, %c256_285] : memref<128x1152xf32, #tpu.memory_space<vmem>>, vector<8x128xf32>
    tpu.vector_store %arg19[%c64_284, %c256_285], %154 {strides = array<i32>} : memref<128x1152xf32, #tpu.memory_space<vmem>>, vector<8x128xf32>,
    %c1_286 = arith.constant 1 : index
    %c1_287 = arith.constant 1 : index
    %c0_288 = arith.constant 0 : index
    %c0_289 = arith.constant 0 : index
    %156 = vector.load %arg1[%c1_286, %c1_287, %c0_288, %c0_289] : memref<2x18x9x256xf32, #tpu.memory_space<vmem>>, vector<1x1x8x256xf32>
    %157 = vector.shape_cast %156 : vector<1x1x8x256xf32> to vector<8x256xf32>
    %c64_290 = arith.constant 64 : index
    %c384_291 = arith.constant 384 : index
    %158 = vector.load %arg19[%c64_290, %c384_291] : memref<128x1152xf32, #tpu.memory_space<vmem>>, vector<8x256xf32>
    tpu.vector_store %arg19[%c64_290, %c384_291], %157 {strides = array<i32>} : memref<128x1152xf32, #tpu.memory_space<vmem>>, vector<8x256xf32>,
    %c1_292 = arith.constant 1 : index
    %c1_293 = arith.constant 1 : index
    %c1_294 = arith.constant 1 : index
    %c0_295 = arith.constant 0 : index
    %159 = vector.load %arg1[%c1_292, %c1_293, %c1_294, %c0_295] : memref<2x18x9x256xf32, #tpu.memory_space<vmem>>, vector<1x1x8x128xf32>
    %160 = vector.shape_cast %159 : vector<1x1x8x128xf32> to vector<8x128xf32>
    %c64_296 = arith.constant 64 : index
    %c640_297 = arith.constant 640 : index
    %161 = vector.load %arg19[%c64_296, %c640_297] : memref<128x1152xf32, #tpu.memory_space<vmem>>, vector<8x128xf32>
    tpu.vector_store %arg19[%c64_296, %c640_297], %160 {strides = array<i32>} : memref<128x1152xf32, #tpu.memory_space<vmem>>, vector<8x128xf32>,
    %c1_298 = arith.constant 1 : index
    %c2_299 = arith.constant 2 : index
    %c0_300 = arith.constant 0 : index
    %c0_301 = arith.constant 0 : index
    %162 = vector.load %arg1[%c1_298, %c2_299, %c0_300, %c0_301] : memref<2x18x9x256xf32, #tpu.memory_space<vmem>>, vector<1x1x8x256xf32>
    %163 = vector.shape_cast %162 : vector<1x1x8x256xf32> to vector<8x256xf32>
    %c64_302 = arith.constant 64 : index
    %c768_303 = arith.constant 768 : index
    %164 = vector.load %arg19[%c64_302, %c768_303] : memref<128x1152xf32, #tpu.memory_space<vmem>>, vector<8x256xf32>
    tpu.vector_store %arg19[%c64_302, %c768_303], %163 {strides = array<i32>} : memref<128x1152xf32, #tpu.memory_space<vmem>>, vector<8x256xf32>,
    %c1_304 = arith.constant 1 : index
    %c2_305 = arith.constant 2 : index
    %c1_306 = arith.constant 1 : index
    %c0_307 = arith.constant 0 : index
    %165 = vector.load %arg1[%c1_304, %c2_305, %c1_306, %c0_307] : memref<2x18x9x256xf32, #tpu.memory_space<vmem>>, vector<1x1x8x128xf32>
    %166 = vector.shape_cast %165 : vector<1x1x8x128xf32> to vector<8x128xf32>
    %c64_308 = arith.constant 64 : index
    %c1024_309 = arith.constant 1024 : index
    %167 = vector.load %arg19[%c64_308, %c1024_309] : memref<128x1152xf32, #tpu.memory_space<vmem>>, vector<8x128xf32>
    tpu.vector_store %arg19[%c64_308, %c1024_309], %166 {strides = array<i32>} : memref<128x1152xf32, #tpu.memory_space<vmem>>, vector<8x128xf32>,
    %c1_310 = arith.constant 1 : index
    %c2_311 = arith.constant 2 : index
    %c0_312 = arith.constant 0 : index
    %c0_313 = arith.constant 0 : index
    %168 = vector.load %arg1[%c1_310, %c2_311, %c0_312, %c0_313] : memref<2x18x9x256xf32, #tpu.memory_space<vmem>>, vector<1x1x8x256xf32>
    %169 = vector.shape_cast %168 : vector<1x1x8x256xf32> to vector<8x256xf32>
    %c72 = arith.constant 72 : index
    %c0_314 = arith.constant 0 : index
    %170 = vector.load %arg19[%c72, %c0_314] : memref<128x1152xf32, #tpu.memory_space<vmem>>, vector<8x256xf32>
    tpu.vector_store %arg19[%c72, %c0_314], %169 {strides = array<i32>} : memref<128x1152xf32, #tpu.memory_space<vmem>>, vector<8x256xf32>,
    %c1_315 = arith.constant 1 : index
    %c2_316 = arith.constant 2 : index
    %c1_317 = arith.constant 1 : index
    %c0_318 = arith.constant 0 : index
    %171 = vector.load %arg1[%c1_315, %c2_316, %c1_317, %c0_318] : memref<2x18x9x256xf32, #tpu.memory_space<vmem>>, vector<1x1x8x128xf32>
    %172 = vector.shape_cast %171 : vector<1x1x8x128xf32> to vector<8x128xf32>
    %c72_319 = arith.constant 72 : index
    %c256_320 = arith.constant 256 : index
    %173 = vector.load %arg19[%c72_319, %c256_320] : memref<128x1152xf32, #tpu.memory_space<vmem>>, vector<8x128xf32>
    tpu.vector_store %arg19[%c72_319, %c256_320], %172 {strides = array<i32>} : memref<128x1152xf32, #tpu.memory_space<vmem>>, vector<8x128xf32>,
    %c1_321 = arith.constant 1 : index
    %c3_322 = arith.constant 3 : index
    %c0_323 = arith.constant 0 : index
    %c0_324 = arith.constant 0 : index
    %174 = vector.load %arg1[%c1_321, %c3_322, %c0_323, %c0_324] : memref<2x18x9x256xf32, #tpu.memory_space<vmem>>, vector<1x1x8x256xf32>
    %175 = vector.shape_cast %174 : vector<1x1x8x256xf32> to vector<8x256xf32>
    %c72_325 = arith.constant 72 : index
    %c384_326 = arith.constant 384 : index
    %176 = vector.load %arg19[%c72_325, %c384_326] : memref<128x1152xf32, #tpu.memory_space<vmem>>, vector<8x256xf32>
    tpu.vector_store %arg19[%c72_325, %c384_326], %175 {strides = array<i32>} : memref<128x1152xf32, #tpu.memory_space<vmem>>, vector<8x256xf32>,
    %c1_327 = arith.constant 1 : index
    %c3_328 = arith.constant 3 : index
    %c1_329 = arith.constant 1 : index
    %c0_330 = arith.constant 0 : index
    %177 = vector.load %arg1[%c1_327, %c3_328, %c1_329, %c0_330] : memref<2x18x9x256xf32, #tpu.memory_space<vmem>>, vector<1x1x8x128xf32>
    %178 = vector.shape_cast %177 : vector<1x1x8x128xf32> to vector<8x128xf32>
    %c72_331 = arith.constant 72 : index
    %c640_332 = arith.constant 640 : index
    %179 = vector.load %arg19[%c72_331, %c640_332] : memref<128x1152xf32, #tpu.memory_space<vmem>>, vector<8x128xf32>
    tpu.vector_store %arg19[%c72_331, %c640_332], %178 {strides = array<i32>} : memref<128x1152xf32, #tpu.memory_space<vmem>>, vector<8x128xf32>,
    %c1_333 = arith.constant 1 : index
    %c4_334 = arith.constant 4 : index
    %c0_335 = arith.constant 0 : index
    %c0_336 = arith.constant 0 : index
    %180 = vector.load %arg1[%c1_333, %c4_334, %c0_335, %c0_336] : memref<2x18x9x256xf32, #tpu.memory_space<vmem>>, vector<1x1x8x256xf32>
    %181 = vector.shape_cast %180 : vector<1x1x8x256xf32> to vector<8x256xf32>
    %c72_337 = arith.constant 72 : index
    %c768_338 = arith.constant 768 : index
    %182 = vector.load %arg19[%c72_337, %c768_338] : memref<128x1152xf32, #tpu.memory_space<vmem>>, vector<8x256xf32>
    tpu.vector_store %arg19[%c72_337, %c768_338], %181 {strides = array<i32>} : memref<128x1152xf32, #tpu.memory_space<vmem>>, vector<8x256xf32>,
    %c1_339 = arith.constant 1 : index
    %c4_340 = arith.constant 4 : index
    %c1_341 = arith.constant 1 : index
    %c0_342 = arith.constant 0 : index
    %183 = vector.load %arg1[%c1_339, %c4_340, %c1_341, %c0_342] : memref<2x18x9x256xf32, #tpu.memory_space<vmem>>, vector<1x1x8x128xf32>
    %184 = vector.shape_cast %183 : vector<1x1x8x128xf32> to vector<8x128xf32>
    %c72_343 = arith.constant 72 : index
    %c1024_344 = arith.constant 1024 : index
    %185 = vector.load %arg19[%c72_343, %c1024_344] : memref<128x1152xf32, #tpu.memory_space<vmem>>, vector<8x128xf32>
    tpu.vector_store %arg19[%c72_343, %c1024_344], %184 {strides = array<i32>} : memref<128x1152xf32, #tpu.memory_space<vmem>>, vector<8x128xf32>,
    %c1_345 = arith.constant 1 : index
    %c4_346 = arith.constant 4 : index
    %c0_347 = arith.constant 0 : index
    %c0_348 = arith.constant 0 : index
    %186 = vector.load %arg1[%c1_345, %c4_346, %c0_347, %c0_348] : memref<2x18x9x256xf32, #tpu.memory_space<vmem>>, vector<1x1x8x256xf32>
    %187 = vector.shape_cast %186 : vector<1x1x8x256xf32> to vector<8x256xf32>
    %c80 = arith.constant 80 : index
    %c0_349 = arith.constant 0 : index
    %188 = vector.load %arg19[%c80, %c0_349] : memref<128x1152xf32, #tpu.memory_space<vmem>>, vector<8x256xf32>
    tpu.vector_store %arg19[%c80, %c0_349], %187 {strides = array<i32>} : memref<128x1152xf32, #tpu.memory_space<vmem>>, vector<8x256xf32>,
    %c1_350 = arith.constant 1 : index
    %c4_351 = arith.constant 4 : index
    %c1_352 = arith.constant 1 : index
    %c0_353 = arith.constant 0 : index
    %189 = vector.load %arg1[%c1_350, %c4_351, %c1_352, %c0_353] : memref<2x18x9x256xf32, #tpu.memory_space<vmem>>, vector<1x1x8x128xf32>
    %190 = vector.shape_cast %189 : vector<1x1x8x128xf32> to vector<8x128xf32>
    %c80_354 = arith.constant 80 : index
    %c256_355 = arith.constant 256 : index
    %191 = vector.load %arg19[%c80_354, %c256_355] : memref<128x1152xf32, #tpu.memory_space<vmem>>, vector<8x128xf32>
    tpu.vector_store %arg19[%c80_354, %c256_355], %190 {strides = array<i32>} : memref<128x1152xf32, #tpu.memory_space<vmem>>, vector<8x128xf32>,
    %c1_356 = arith.constant 1 : index
    %c5_357 = arith.constant 5 : index
    %c0_358 = arith.constant 0 : index
    %c0_359 = arith.constant 0 : index
    %192 = vector.load %arg1[%c1_356, %c5_357, %c0_358, %c0_359] : memref<2x18x9x256xf32, #tpu.memory_space<vmem>>, vector<1x1x8x256xf32>
    %193 = vector.shape_cast %192 : vector<1x1x8x256xf32> to vector<8x256xf32>
    %c80_360 = arith.constant 80 : index
    %c384_361 = arith.constant 384 : index
    %194 = vector.load %arg19[%c80_360, %c384_361] : memref<128x1152xf32, #tpu.memory_space<vmem>>, vector<8x256xf32>
    tpu.vector_store %arg19[%c80_360, %c384_361], %193 {strides = array<i32>} : memref<128x1152xf32, #tpu.memory_space<vmem>>, vector<8x256xf32>,
    %c1_362 = arith.constant 1 : index
    %c5_363 = arith.constant 5 : index
    %c1_364 = arith.constant 1 : index
    %c0_365 = arith.constant 0 : index
    %195 = vector.load %arg1[%c1_362, %c5_363, %c1_364, %c0_365] : memref<2x18x9x256xf32, #tpu.memory_space<vmem>>, vector<1x1x8x128xf32>
    %196 = vector.shape_cast %195 : vector<1x1x8x128xf32> to vector<8x128xf32>
    %c80_366 = arith.constant 80 : index
    %c640_367 = arith.constant 640 : index
    %197 = vector.load %arg19[%c80_366, %c640_367] : memref<128x1152xf32, #tpu.memory_space<vmem>>, vector<8x128xf32>
    tpu.vector_store %arg19[%c80_366, %c640_367], %196 {strides = array<i32>} : memref<128x1152xf32, #tpu.memory_space<vmem>>, vector<8x128xf32>,
    %c1_368 = arith.constant 1 : index
    %c6_369 = arith.constant 6 : index
    %c0_370 = arith.constant 0 : index
    %c0_371 = arith.constant 0 : index
    %198 = vector.load %arg1[%c1_368, %c6_369, %c0_370, %c0_371] : memref<2x18x9x256xf32, #tpu.memory_space<vmem>>, vector<1x1x8x256xf32>
    %199 = vector.shape_cast %198 : vector<1x1x8x256xf32> to vector<8x256xf32>
    %c80_372 = arith.constant 80 : index
    %c768_373 = arith.constant 768 : index
    %200 = vector.load %arg19[%c80_372, %c768_373] : memref<128x1152xf32, #tpu.memory_space<vmem>>, vector<8x256xf32>
    tpu.vector_store %arg19[%c80_372, %c768_373], %199 {strides = array<i32>} : memref<128x1152xf32, #tpu.memory_space<vmem>>, vector<8x256xf32>,
    %c1_374 = arith.constant 1 : index
    %c6_375 = arith.constant 6 : index
    %c1_376 = arith.constant 1 : index
    %c0_377 = arith.constant 0 : index
    %201 = vector.load %arg1[%c1_374, %c6_375, %c1_376, %c0_377] : memref<2x18x9x256xf32, #tpu.memory_space<vmem>>, vector<1x1x8x128xf32>
    %202 = vector.shape_cast %201 : vector<1x1x8x128xf32> to vector<8x128xf32>
    %c80_378 = arith.constant 80 : index
    %c1024_379 = arith.constant 1024 : index
    %203 = vector.load %arg19[%c80_378, %c1024_379] : memref<128x1152xf32, #tpu.memory_space<vmem>>, vector<8x128xf32>
    tpu.vector_store %arg19[%c80_378, %c1024_379], %202 {strides = array<i32>} : memref<128x1152xf32, #tpu.memory_space<vmem>>, vector<8x128xf32>,
    %c1_380 = arith.constant 1 : index
    %c6_381 = arith.constant 6 : index
    %c0_382 = arith.constant 0 : index
    %c0_383 = arith.constant 0 : index
    %204 = vector.load %arg1[%c1_380, %c6_381, %c0_382, %c0_383] : memref<2x18x9x256xf32, #tpu.memory_space<vmem>>, vector<1x1x8x256xf32>
    %205 = vector.shape_cast %204 : vector<1x1x8x256xf32> to vector<8x256xf32>
    %c88 = arith.constant 88 : index
    %c0_384 = arith.constant 0 : index
    %206 = vector.load %arg19[%c88, %c0_384] : memref<128x1152xf32, #tpu.memory_space<vmem>>, vector<8x256xf32>
    tpu.vector_store %arg19[%c88, %c0_384], %205 {strides = array<i32>} : memref<128x1152xf32, #tpu.memory_space<vmem>>, vector<8x256xf32>,
    %c1_385 = arith.constant 1 : index
    %c6_386 = arith.constant 6 : index
    %c1_387 = arith.constant 1 : index
    %c0_388 = arith.constant 0 : index
    %207 = vector.load %arg1[%c1_385, %c6_386, %c1_387, %c0_388] : memref<2x18x9x256xf32, #tpu.memory_space<vmem>>, vector<1x1x8x128xf32>
    %208 = vector.shape_cast %207 : vector<1x1x8x128xf32> to vector<8x128xf32>
    %c88_389 = arith.constant 88 : index
    %c256_390 = arith.constant 256 : index
    %209 = vector.load %arg19[%c88_389, %c256_390] : memref<128x1152xf32, #tpu.memory_space<vmem>>, vector<8x128xf32>
    tpu.vector_store %arg19[%c88_389, %c256_390], %208 {strides = array<i32>} : memref<128x1152xf32, #tpu.memory_space<vmem>>, vector<8x128xf32>,
    %c1_391 = arith.constant 1 : index
    %c7_392 = arith.constant 7 : index
    %c0_393 = arith.constant 0 : index
    %c0_394 = arith.constant 0 : index
    %210 = vector.load %arg1[%c1_391, %c7_392, %c0_393, %c0_394] : memref<2x18x9x256xf32, #tpu.memory_space<vmem>>, vector<1x1x8x256xf32>
    %211 = vector.shape_cast %210 : vector<1x1x8x256xf32> to vector<8x256xf32>
    %c88_395 = arith.constant 88 : index
    %c384_396 = arith.constant 384 : index
    %212 = vector.load %arg19[%c88_395, %c384_396] : memref<128x1152xf32, #tpu.memory_space<vmem>>, vector<8x256xf32>
    tpu.vector_store %arg19[%c88_395, %c384_396], %211 {strides = array<i32>} : memref<128x1152xf32, #tpu.memory_space<vmem>>, vector<8x256xf32>,
    %c1_397 = arith.constant 1 : index
    %c7_398 = arith.constant 7 : index
    %c1_399 = arith.constant 1 : index
    %c0_400 = arith.constant 0 : index
    %213 = vector.load %arg1[%c1_397, %c7_398, %c1_399, %c0_400] : memref<2x18x9x256xf32, #tpu.memory_space<vmem>>, vector<1x1x8x128xf32>
    %214 = vector.shape_cast %213 : vector<1x1x8x128xf32> to vector<8x128xf32>
    %c88_401 = arith.constant 88 : index
    %c640_402 = arith.constant 640 : index
    %215 = vector.load %arg19[%c88_401, %c640_402] : memref<128x1152xf32, #tpu.memory_space<vmem>>, vector<8x128xf32>
    tpu.vector_store %arg19[%c88_401, %c640_402], %214 {strides = array<i32>} : memref<128x1152xf32, #tpu.memory_space<vmem>>, vector<8x128xf32>,
    %c1_403 = arith.constant 1 : index
    %c8_404 = arith.constant 8 : index
    %c0_405 = arith.constant 0 : index
    %c0_406 = arith.constant 0 : index
    %216 = vector.load %arg1[%c1_403, %c8_404, %c0_405, %c0_406] : memref<2x18x9x256xf32, #tpu.memory_space<vmem>>, vector<1x1x8x256xf32>
    %217 = vector.shape_cast %216 : vector<1x1x8x256xf32> to vector<8x256xf32>
    %c88_407 = arith.constant 88 : index
    %c768_408 = arith.constant 768 : index
    %218 = vector.load %arg19[%c88_407, %c768_408] : memref<128x1152xf32, #tpu.memory_space<vmem>>, vector<8x256xf32>
    tpu.vector_store %arg19[%c88_407, %c768_408], %217 {strides = array<i32>} : memref<128x1152xf32, #tpu.memory_space<vmem>>, vector<8x256xf32>,
    %c1_409 = arith.constant 1 : index
    %c8_410 = arith.constant 8 : index
    %c1_411 = arith.constant 1 : index
    %c0_412 = arith.constant 0 : index
    %219 = vector.load %arg1[%c1_409, %c8_410, %c1_411, %c0_412] : memref<2x18x9x256xf32, #tpu.memory_space<vmem>>, vector<1x1x8x128xf32>
    %220 = vector.shape_cast %219 : vector<1x1x8x128xf32> to vector<8x128xf32>
    %c88_413 = arith.constant 88 : index
    %c1024_414 = arith.constant 1024 : index
    %221 = vector.load %arg19[%c88_413, %c1024_414] : memref<128x1152xf32, #tpu.memory_space<vmem>>, vector<8x128xf32>
    tpu.vector_store %arg19[%c88_413, %c1024_414], %220 {strides = array<i32>} : memref<128x1152xf32, #tpu.memory_space<vmem>>, vector<8x128xf32>,
    %c1_415 = arith.constant 1 : index
    %c8_416 = arith.constant 8 : index
    %c0_417 = arith.constant 0 : index
    %c0_418 = arith.constant 0 : index
    %222 = vector.load %arg1[%c1_415, %c8_416, %c0_417, %c0_418] : memref<2x18x9x256xf32, #tpu.memory_space<vmem>>, vector<1x1x8x256xf32>
    %223 = vector.shape_cast %222 : vector<1x1x8x256xf32> to vector<8x256xf32>
    %c96 = arith.constant 96 : index
    %c0_419 = arith.constant 0 : index
    %224 = vector.load %arg19[%c96, %c0_419] : memref<128x1152xf32, #tpu.memory_space<vmem>>, vector<8x256xf32>
    tpu.vector_store %arg19[%c96, %c0_419], %223 {strides = array<i32>} : memref<128x1152xf32, #tpu.memory_space<vmem>>, vector<8x256xf32>,
    %c1_420 = arith.constant 1 : index
    %c8_421 = arith.constant 8 : index
    %c1_422 = arith.constant 1 : index
    %c0_423 = arith.constant 0 : index
    %225 = vector.load %arg1[%c1_420, %c8_421, %c1_422, %c0_423] : memref<2x18x9x256xf32, #tpu.memory_space<vmem>>, vector<1x1x8x128xf32>
    %226 = vector.shape_cast %225 : vector<1x1x8x128xf32> to vector<8x128xf32>
    %c96_424 = arith.constant 96 : index
    %c256_425 = arith.constant 256 : index
    %227 = vector.load %arg19[%c96_424, %c256_425] : memref<128x1152xf32, #tpu.memory_space<vmem>>, vector<8x128xf32>
    tpu.vector_store %arg19[%c96_424, %c256_425], %226 {strides = array<i32>} : memref<128x1152xf32, #tpu.memory_space<vmem>>, vector<8x128xf32>,
    %c1_426 = arith.constant 1 : index
    %c9_427 = arith.constant 9 : index
    %c0_428 = arith.constant 0 : index
    %c0_429 = arith.constant 0 : index
    %228 = vector.load %arg1[%c1_426, %c9_427, %c0_428, %c0_429] : memref<2x18x9x256xf32, #tpu.memory_space<vmem>>, vector<1x1x8x256xf32>
    %229 = vector.shape_cast %228 : vector<1x1x8x256xf32> to vector<8x256xf32>
    %c96_430 = arith.constant 96 : index
    %c384_431 = arith.constant 384 : index
    %230 = vector.load %arg19[%c96_430, %c384_431] : memref<128x1152xf32, #tpu.memory_space<vmem>>, vector<8x256xf32>
    tpu.vector_store %arg19[%c96_430, %c384_431], %229 {strides = array<i32>} : memref<128x1152xf32, #tpu.memory_space<vmem>>, vector<8x256xf32>,
    %c1_432 = arith.constant 1 : index
    %c9_433 = arith.constant 9 : index
    %c1_434 = arith.constant 1 : index
    %c0_435 = arith.constant 0 : index
    %231 = vector.load %arg1[%c1_432, %c9_433, %c1_434, %c0_435] : memref<2x18x9x256xf32, #tpu.memory_space<vmem>>, vector<1x1x8x128xf32>
    %232 = vector.shape_cast %231 : vector<1x1x8x128xf32> to vector<8x128xf32>
    %c96_436 = arith.constant 96 : index
    %c640_437 = arith.constant 640 : index
    %233 = vector.load %arg19[%c96_436, %c640_437] : memref<128x1152xf32, #tpu.memory_space<vmem>>, vector<8x128xf32>
    tpu.vector_store %arg19[%c96_436, %c640_437], %232 {strides = array<i32>} : memref<128x1152xf32, #tpu.memory_space<vmem>>, vector<8x128xf32>,
    %c1_438 = arith.constant 1 : index
    %c10_439 = arith.constant 10 : index
    %c0_440 = arith.constant 0 : index
    %c0_441 = arith.constant 0 : index
    %234 = vector.load %arg1[%c1_438, %c10_439, %c0_440, %c0_441] : memref<2x18x9x256xf32, #tpu.memory_space<vmem>>, vector<1x1x8x256xf32>
    %235 = vector.shape_cast %234 : vector<1x1x8x256xf32> to vector<8x256xf32>
    %c96_442 = arith.constant 96 : index
    %c768_443 = arith.constant 768 : index
    %236 = vector.load %arg19[%c96_442, %c768_443] : memref<128x1152xf32, #tpu.memory_space<vmem>>, vector<8x256xf32>
    tpu.vector_store %arg19[%c96_442, %c768_443], %235 {strides = array<i32>} : memref<128x1152xf32, #tpu.memory_space<vmem>>, vector<8x256xf32>,
    %c1_444 = arith.constant 1 : index
    %c10_445 = arith.constant 10 : index
    %c1_446 = arith.constant 1 : index
    %c0_447 = arith.constant 0 : index
    %237 = vector.load %arg1[%c1_444, %c10_445, %c1_446, %c0_447] : memref<2x18x9x256xf32, #tpu.memory_space<vmem>>, vector<1x1x8x128xf32>
    %238 = vector.shape_cast %237 : vector<1x1x8x128xf32> to vector<8x128xf32>
    %c96_448 = arith.constant 96 : index
    %c1024_449 = arith.constant 1024 : index
    %239 = vector.load %arg19[%c96_448, %c1024_449] : memref<128x1152xf32, #tpu.memory_space<vmem>>, vector<8x128xf32>
    tpu.vector_store %arg19[%c96_448, %c1024_449], %238 {strides = array<i32>} : memref<128x1152xf32, #tpu.memory_space<vmem>>, vector<8x128xf32>,
    %c1_450 = arith.constant 1 : index
    %c10_451 = arith.constant 10 : index
    %c0_452 = arith.constant 0 : index
    %c0_453 = arith.constant 0 : index
    %240 = vector.load %arg1[%c1_450, %c10_451, %c0_452, %c0_453] : memref<2x18x9x256xf32, #tpu.memory_space<vmem>>, vector<1x1x8x256xf32>
    %241 = vector.shape_cast %240 : vector<1x1x8x256xf32> to vector<8x256xf32>
    %c104 = arith.constant 104 : index
    %c0_454 = arith.constant 0 : index
    %242 = vector.load %arg19[%c104, %c0_454] : memref<128x1152xf32, #tpu.memory_space<vmem>>, vector<8x256xf32>
    tpu.vector_store %arg19[%c104, %c0_454], %241 {strides = array<i32>} : memref<128x1152xf32, #tpu.memory_space<vmem>>, vector<8x256xf32>,
    %c1_455 = arith.constant 1 : index
    %c10_456 = arith.constant 10 : index
    %c1_457 = arith.constant 1 : index
    %c0_458 = arith.constant 0 : index
    %243 = vector.load %arg1[%c1_455, %c10_456, %c1_457, %c0_458] : memref<2x18x9x256xf32, #tpu.memory_space<vmem>>, vector<1x1x8x128xf32>
    %244 = vector.shape_cast %243 : vector<1x1x8x128xf32> to vector<8x128xf32>
    %c104_459 = arith.constant 104 : index
    %c256_460 = arith.constant 256 : index
    %245 = vector.load %arg19[%c104_459, %c256_460] : memref<128x1152xf32, #tpu.memory_space<vmem>>, vector<8x128xf32>
    tpu.vector_store %arg19[%c104_459, %c256_460], %244 {strides = array<i32>} : memref<128x1152xf32, #tpu.memory_space<vmem>>, vector<8x128xf32>,
    %c1_461 = arith.constant 1 : index
    %c11_462 = arith.constant 11 : index
    %c0_463 = arith.constant 0 : index
    %c0_464 = arith.constant 0 : index
    %246 = vector.load %arg1[%c1_461, %c11_462, %c0_463, %c0_464] : memref<2x18x9x256xf32, #tpu.memory_space<vmem>>, vector<1x1x8x256xf32>
    %247 = vector.shape_cast %246 : vector<1x1x8x256xf32> to vector<8x256xf32>
    %c104_465 = arith.constant 104 : index
    %c384_466 = arith.constant 384 : index
    %248 = vector.load %arg19[%c104_465, %c384_466] : memref<128x1152xf32, #tpu.memory_space<vmem>>, vector<8x256xf32>
    tpu.vector_store %arg19[%c104_465, %c384_466], %247 {strides = array<i32>} : memref<128x1152xf32, #tpu.memory_space<vmem>>, vector<8x256xf32>,
    %c1_467 = arith.constant 1 : index
    %c11_468 = arith.constant 11 : index
    %c1_469 = arith.constant 1 : index
    %c0_470 = arith.constant 0 : index
    %249 = vector.load %arg1[%c1_467, %c11_468, %c1_469, %c0_470] : memref<2x18x9x256xf32, #tpu.memory_space<vmem>>, vector<1x1x8x128xf32>
    %250 = vector.shape_cast %249 : vector<1x1x8x128xf32> to vector<8x128xf32>
    %c104_471 = arith.constant 104 : index
    %c640_472 = arith.constant 640 : index
    %251 = vector.load %arg19[%c104_471, %c640_472] : memref<128x1152xf32, #tpu.memory_space<vmem>>, vector<8x128xf32>
    tpu.vector_store %arg19[%c104_471, %c640_472], %250 {strides = array<i32>} : memref<128x1152xf32, #tpu.memory_space<vmem>>, vector<8x128xf32>,
    %c1_473 = arith.constant 1 : index
    %c12_474 = arith.constant 12 : index
    %c0_475 = arith.constant 0 : index
    %c0_476 = arith.constant 0 : index
    %252 = vector.load %arg1[%c1_473, %c12_474, %c0_475, %c0_476] : memref<2x18x9x256xf32, #tpu.memory_space<vmem>>, vector<1x1x8x256xf32>
    %253 = vector.shape_cast %252 : vector<1x1x8x256xf32> to vector<8x256xf32>
    %c104_477 = arith.constant 104 : index
    %c768_478 = arith.constant 768 : index
    %254 = vector.load %arg19[%c104_477, %c768_478] : memref<128x1152xf32, #tpu.memory_space<vmem>>, vector<8x256xf32>
    tpu.vector_store %arg19[%c104_477, %c768_478], %253 {strides = array<i32>} : memref<128x1152xf32, #tpu.memory_space<vmem>>, vector<8x256xf32>,
    %c1_479 = arith.constant 1 : index
    %c12_480 = arith.constant 12 : index
    %c1_481 = arith.constant 1 : index
    %c0_482 = arith.constant 0 : index
    %255 = vector.load %arg1[%c1_479, %c12_480, %c1_481, %c0_482] : memref<2x18x9x256xf32, #tpu.memory_space<vmem>>, vector<1x1x8x128xf32>
    %256 = vector.shape_cast %255 : vector<1x1x8x128xf32> to vector<8x128xf32>
    %c104_483 = arith.constant 104 : index
    %c1024_484 = arith.constant 1024 : index
    %257 = vector.load %arg19[%c104_483, %c1024_484] : memref<128x1152xf32, #tpu.memory_space<vmem>>, vector<8x128xf32>
    tpu.vector_store %arg19[%c104_483, %c1024_484], %256 {strides = array<i32>} : memref<128x1152xf32, #tpu.memory_space<vmem>>, vector<8x128xf32>,
    %c1_485 = arith.constant 1 : index
    %c12_486 = arith.constant 12 : index
    %c0_487 = arith.constant 0 : index
    %c0_488 = arith.constant 0 : index
    %258 = vector.load %arg1[%c1_485, %c12_486, %c0_487, %c0_488] : memref<2x18x9x256xf32, #tpu.memory_space<vmem>>, vector<1x1x8x256xf32>
    %259 = vector.shape_cast %258 : vector<1x1x8x256xf32> to vector<8x256xf32>
    %c112 = arith.constant 112 : index
    %c0_489 = arith.constant 0 : index
    %260 = vector.load %arg19[%c112, %c0_489] : memref<128x1152xf32, #tpu.memory_space<vmem>>, vector<8x256xf32>
    tpu.vector_store %arg19[%c112, %c0_489], %259 {strides = array<i32>} : memref<128x1152xf32, #tpu.memory_space<vmem>>, vector<8x256xf32>,
    %c1_490 = arith.constant 1 : index
    %c12_491 = arith.constant 12 : index
    %c1_492 = arith.constant 1 : index
    %c0_493 = arith.constant 0 : index
    %261 = vector.load %arg1[%c1_490, %c12_491, %c1_492, %c0_493] : memref<2x18x9x256xf32, #tpu.memory_space<vmem>>, vector<1x1x8x128xf32>
    %262 = vector.shape_cast %261 : vector<1x1x8x128xf32> to vector<8x128xf32>
    %c112_494 = arith.constant 112 : index
    %c256_495 = arith.constant 256 : index
    %263 = vector.load %arg19[%c112_494, %c256_495] : memref<128x1152xf32, #tpu.memory_space<vmem>>, vector<8x128xf32>
    tpu.vector_store %arg19[%c112_494, %c256_495], %262 {strides = array<i32>} : memref<128x1152xf32, #tpu.memory_space<vmem>>, vector<8x128xf32>,
    %c1_496 = arith.constant 1 : index
    %c13_497 = arith.constant 13 : index
    %c0_498 = arith.constant 0 : index
    %c0_499 = arith.constant 0 : index
    %264 = vector.load %arg1[%c1_496, %c13_497, %c0_498, %c0_499] : memref<2x18x9x256xf32, #tpu.memory_space<vmem>>, vector<1x1x8x256xf32>
    %265 = vector.shape_cast %264 : vector<1x1x8x256xf32> to vector<8x256xf32>
    %c112_500 = arith.constant 112 : index
    %c384_501 = arith.constant 384 : index
    %266 = vector.load %arg19[%c112_500, %c384_501] : memref<128x1152xf32, #tpu.memory_space<vmem>>, vector<8x256xf32>
    tpu.vector_store %arg19[%c112_500, %c384_501], %265 {strides = array<i32>} : memref<128x1152xf32, #tpu.memory_space<vmem>>, vector<8x256xf32>,
    %c1_502 = arith.constant 1 : index
    %c13_503 = arith.constant 13 : index
    %c1_504 = arith.constant 1 : index
    %c0_505 = arith.constant 0 : index
    %267 = vector.load %arg1[%c1_502, %c13_503, %c1_504, %c0_505] : memref<2x18x9x256xf32, #tpu.memory_space<vmem>>, vector<1x1x8x128xf32>
    %268 = vector.shape_cast %267 : vector<1x1x8x128xf32> to vector<8x128xf32>
    %c112_506 = arith.constant 112 : index
    %c640_507 = arith.constant 640 : index
    %269 = vector.load %arg19[%c112_506, %c640_507] : memref<128x1152xf32, #tpu.memory_space<vmem>>, vector<8x128xf32>
    tpu.vector_store %arg19[%c112_506, %c640_507], %268 {strides = array<i32>} : memref<128x1152xf32, #tpu.memory_space<vmem>>, vector<8x128xf32>,
    %c1_508 = arith.constant 1 : index
    %c14_509 = arith.constant 14 : index
    %c0_510 = arith.constant 0 : index
    %c0_511 = arith.constant 0 : index
    %270 = vector.load %arg1[%c1_508, %c14_509, %c0_510, %c0_511] : memref<2x18x9x256xf32, #tpu.memory_space<vmem>>, vector<1x1x8x256xf32>
    %271 = vector.shape_cast %270 : vector<1x1x8x256xf32> to vector<8x256xf32>
    %c112_512 = arith.constant 112 : index
    %c768_513 = arith.constant 768 : index
    %272 = vector.load %arg19[%c112_512, %c768_513] : memref<128x1152xf32, #tpu.memory_space<vmem>>, vector<8x256xf32>
    tpu.vector_store %arg19[%c112_512, %c768_513], %271 {strides = array<i32>} : memref<128x1152xf32, #tpu.memory_space<vmem>>, vector<8x256xf32>,
    %c1_514 = arith.constant 1 : index
    %c14_515 = arith.constant 14 : index
    %c1_516 = arith.constant 1 : index
    %c0_517 = arith.constant 0 : index
    %273 = vector.load %arg1[%c1_514, %c14_515, %c1_516, %c0_517] : memref<2x18x9x256xf32, #tpu.memory_space<vmem>>, vector<1x1x8x128xf32>
    %274 = vector.shape_cast %273 : vector<1x1x8x128xf32> to vector<8x128xf32>
    %c112_518 = arith.constant 112 : index
    %c1024_519 = arith.constant 1024 : index
    %275 = vector.load %arg19[%c112_518, %c1024_519] : memref<128x1152xf32, #tpu.memory_space<vmem>>, vector<8x128xf32>
    tpu.vector_store %arg19[%c112_518, %c1024_519], %274 {strides = array<i32>} : memref<128x1152xf32, #tpu.memory_space<vmem>>, vector<8x128xf32>,
    %c1_520 = arith.constant 1 : index
    %c14_521 = arith.constant 14 : index
    %c0_522 = arith.constant 0 : index
    %c0_523 = arith.constant 0 : index
    %276 = vector.load %arg1[%c1_520, %c14_521, %c0_522, %c0_523] : memref<2x18x9x256xf32, #tpu.memory_space<vmem>>, vector<1x1x8x256xf32>
    %277 = vector.shape_cast %276 : vector<1x1x8x256xf32> to vector<8x256xf32>
    %c120 = arith.constant 120 : index
    %c0_524 = arith.constant 0 : index
    %278 = vector.load %arg19[%c120, %c0_524] : memref<128x1152xf32, #tpu.memory_space<vmem>>, vector<8x256xf32>
    tpu.vector_store %arg19[%c120, %c0_524], %277 {strides = array<i32>} : memref<128x1152xf32, #tpu.memory_space<vmem>>, vector<8x256xf32>,
    %c1_525 = arith.constant 1 : index
    %c14_526 = arith.constant 14 : index
    %c1_527 = arith.constant 1 : index
    %c0_528 = arith.constant 0 : index
    %279 = vector.load %arg1[%c1_525, %c14_526, %c1_527, %c0_528] : memref<2x18x9x256xf32, #tpu.memory_space<vmem>>, vector<1x1x8x128xf32>
    %280 = vector.shape_cast %279 : vector<1x1x8x128xf32> to vector<8x128xf32>
    %c120_529 = arith.constant 120 : index
    %c256_530 = arith.constant 256 : index
    %281 = vector.load %arg19[%c120_529, %c256_530] : memref<128x1152xf32, #tpu.memory_space<vmem>>, vector<8x128xf32>
    tpu.vector_store %arg19[%c120_529, %c256_530], %280 {strides = array<i32>} : memref<128x1152xf32, #tpu.memory_space<vmem>>, vector<8x128xf32>,
    %c1_531 = arith.constant 1 : index
    %c15_532 = arith.constant 15 : index
    %c0_533 = arith.constant 0 : index
    %c0_534 = arith.constant 0 : index
    %282 = vector.load %arg1[%c1_531, %c15_532, %c0_533, %c0_534] : memref<2x18x9x256xf32, #tpu.memory_space<vmem>>, vector<1x1x8x256xf32>
    %283 = vector.shape_cast %282 : vector<1x1x8x256xf32> to vector<8x256xf32>
    %c120_535 = arith.constant 120 : index
    %c384_536 = arith.constant 384 : index
    %284 = vector.load %arg19[%c120_535, %c384_536] : memref<128x1152xf32, #tpu.memory_space<vmem>>, vector<8x256xf32>
    tpu.vector_store %arg19[%c120_535, %c384_536], %283 {strides = array<i32>} : memref<128x1152xf32, #tpu.memory_space<vmem>>, vector<8x256xf32>,
    %c1_537 = arith.constant 1 : index
    %c15_538 = arith.constant 15 : index
    %c1_539 = arith.constant 1 : index
    %c0_540 = arith.constant 0 : index
    %285 = vector.load %arg1[%c1_537, %c15_538, %c1_539, %c0_540] : memref<2x18x9x256xf32, #tpu.memory_space<vmem>>, vector<1x1x8x128xf32>
    %286 = vector.shape_cast %285 : vector<1x1x8x128xf32> to vector<8x128xf32>
    %c120_541 = arith.constant 120 : index
    %c640_542 = arith.constant 640 : index
    %287 = vector.load %arg19[%c120_541, %c640_542] : memref<128x1152xf32, #tpu.memory_space<vmem>>, vector<8x128xf32>
    tpu.vector_store %arg19[%c120_541, %c640_542], %286 {strides = array<i32>} : memref<128x1152xf32, #tpu.memory_space<vmem>>, vector<8x128xf32>,
    %c1_543 = arith.constant 1 : index
    %c16_544 = arith.constant 16 : index
    %c0_545 = arith.constant 0 : index
    %c0_546 = arith.constant 0 : index
    %288 = vector.load %arg1[%c1_543, %c16_544, %c0_545, %c0_546] : memref<2x18x9x256xf32, #tpu.memory_space<vmem>>, vector<1x1x8x256xf32>
    %289 = vector.shape_cast %288 : vector<1x1x8x256xf32> to vector<8x256xf32>
    %c120_547 = arith.constant 120 : index
    %c768_548 = arith.constant 768 : index
    %290 = vector.load %arg19[%c120_547, %c768_548] : memref<128x1152xf32, #tpu.memory_space<vmem>>, vector<8x256xf32>
    tpu.vector_store %arg19[%c120_547, %c768_548], %289 {strides = array<i32>} : memref<128x1152xf32, #tpu.memory_space<vmem>>, vector<8x256xf32>,
    %c1_549 = arith.constant 1 : index
    %c16_550 = arith.constant 16 : index
    %c1_551 = arith.constant 1 : index
    %c0_552 = arith.constant 0 : index
    %291 = vector.load %arg1[%c1_549, %c16_550, %c1_551, %c0_552] : memref<2x18x9x256xf32, #tpu.memory_space<vmem>>, vector<1x1x8x128xf32>
    %292 = vector.shape_cast %291 : vector<1x1x8x128xf32> to vector<8x128xf32>
    %c120_553 = arith.constant 120 : index
    %c1024_554 = arith.constant 1024 : index
    %293 = vector.load %arg19[%c120_553, %c1024_554] : memref<128x1152xf32, #tpu.memory_space<vmem>>, vector<8x128xf32>
    tpu.vector_store %arg19[%c120_553, %c1024_554], %292 {strides = array<i32>} : memref<128x1152xf32, #tpu.memory_space<vmem>>, vector<8x128xf32>,
    %c0_555 = arith.constant 0 : index
    %c0_556 = arith.constant 0 : index
    %294 = vector.load %arg19[%c0_555, %c0_556] : memref<128x1152xf32, #tpu.memory_space<vmem>>, vector<128x1152xf32>
    %295 = arith.truncf %294 : vector<128x1152xf32> to vector<128x1152xbf16>
    %c0_557 = arith.constant 0 : index
    %c0_558 = arith.constant 0 : index
    %296 = vector.load %arg2[%c0_557, %c0_558] : memref<1152x128xbf16, #tpu.memory_space<vmem>>, vector<1152x128xbf16>
    %cst_559 = arith.constant dense<0.000000e+00> : vector<128x128xf32>
    %297 = tpu.matmul %295, %296, %cst_559 {dimension_numbers = #tpu.dot_dimension_numbers<[1], [0], [0], [1], [0, 0, 1, 1], [], []>} : vector<128x1152xbf16>, vector<1152x128xbf16>, vector<128x128xf32> -> vector<128x128xf32>
    %c0_560 = arith.constant 0 : index
    %c0_561 = arith.constant 0 : index
    %298 = vector.load %arg3[%c0_560, %c0_561] : memref<1x128xf32, #tpu.memory_space<vmem>>, vector<1x128xf32>
    %299 = vector.broadcast %298 : vector<1x128xf32> to vector<128x128xf32>
    %300 = arith.addf %297, %299 : vector<128x128xf32>
    %cst_562 = arith.constant 0.000000e+00 : f32
    %301 = vector.broadcast %cst_562 : f32 to vector<128x128xf32>
    %302 = arith.maximumf %300, %301 : vector<128x128xf32>
    %cst_563 = arith.constant dense<0.000000e+00> : vector<128xf32>
    %303 = vector.multi_reduction <add>, %302, %cst_563 [0] : vector<128x128xf32> to vector<128xf32>
    %304 = vector.shape_cast %303 : vector<128xf32> to vector<1x128xf32>
    %cst_564 = arith.constant 1.280000e+02 : f32
    %305 = vector.broadcast %cst_564 : f32 to vector<1x128xf32>
    %306 = arith.divf %304, %305 : vector<1x128xf32>
    %307 = vector.broadcast %306 : vector<1x128xf32> to vector<128x128xf32>
    %308 = arith.subf %302, %307 : vector<128x128xf32>
    %309 = arith.mulf %308, %308 : vector<128x128xf32>
    %cst_565 = arith.constant dense<0.000000e+00> : vector<128xf32>
    %310 = vector.multi_reduction <add>, %309, %cst_565 [0] : vector<128x128xf32> to vector<128xf32>
    %311 = vector.shape_cast %310 : vector<128xf32> to vector<1x128xf32>
    %cst_566 = arith.constant 1.280000e+02 : f32
    %312 = vector.broadcast %cst_566 : f32 to vector<1x128xf32>
    %313 = arith.divf %311, %312 : vector<1x128xf32>
    %c0_567 = arith.constant 0 : index
    %c0_568 = arith.constant 0 : index
    %314 = vector.load %arg4[%c0_567, %c0_568] : memref<1x128xf32, #tpu.memory_space<vmem>>, vector<1x128xf32>
    %cst_569 = arith.constant 9.99999974E-6 : f32
    %315 = vector.broadcast %cst_569 : f32 to vector<1x128xf32>
    %316 = arith.addf %313, %315 : vector<1x128xf32>
    %317 = math.rsqrt %316 : vector<1x128xf32>
    %318 = arith.mulf %314, %317 : vector<1x128xf32>
    %c0_570 = arith.constant 0 : index
    %c0_571 = arith.constant 0 : index
    %319 = vector.load %arg5[%c0_570, %c0_571] : memref<1x128xf32, #tpu.memory_space<vmem>>, vector<1x128xf32>
    %320 = arith.mulf %306, %318 : vector<1x128xf32>
    %321 = arith.subf %319, %320 : vector<1x128xf32>
    %322 = vector.broadcast %318 : vector<1x128xf32> to vector<128x128xf32>
    %323 = arith.mulf %302, %322 : vector<128x128xf32>
    %324 = vector.broadcast %321 : vector<1x128xf32> to vector<128x128xf32>
    %325 = arith.addf %323, %324 : vector<128x128xf32>
    %326 = vector.extract_strided_slice %325 {offsets = [0, 0], sizes = [1, 128], strides = [1, 1]} : vector<128x128xf32> to vector<1x128xf32>
    %c0_572 = arith.constant 0 : index
    %c1_573 = arith.constant 1 : index
    %c0_574 = arith.constant 0 : index
    %c128 = arith.constant 128 : index
    %327 = vector.load %arg20[%c0_572, %c1_573, %c0_574, %c128] : memref<2x10x5x256xf32, #tpu.memory_space<vmem>>, vector<1x1x1x128xf32>
    %328 = vector.shape_cast %327 : vector<1x1x1x128xf32> to vector<1x128xf32>
    %329 = vector.shape_cast %326 : vector<1x128xf32> to vector<1x1x1x128xf32>
    tpu.vector_store %arg20[%c0_572, %c1_573, %c0_574, %c128], %329 {strides = array<i32>} : memref<2x10x5x256xf32, #tpu.memory_space<vmem>>, vector<1x1x1x128xf32>,
    %330 = vector.extract_strided_slice %325 {offsets = [1, 0], sizes = [1, 128], strides = [1, 1]} : vector<128x128xf32> to vector<1x128xf32>
    %c0_575 = arith.constant 0 : index
    %c1_576 = arith.constant 1 : index
    %c1_577 = arith.constant 1 : index
    %c0_578 = arith.constant 0 : index
    %331 = vector.load %arg20[%c0_575, %c1_576, %c1_577, %c0_578] : memref<2x10x5x256xf32, #tpu.memory_space<vmem>>, vector<1x1x1x128xf32>
    %332 = vector.shape_cast %331 : vector<1x1x1x128xf32> to vector<1x128xf32>
    %333 = vector.shape_cast %330 : vector<1x128xf32> to vector<1x1x1x128xf32>
    tpu.vector_store %arg20[%c0_575, %c1_576, %c1_577, %c0_578], %333 {strides = array<i32>} : memref<2x10x5x256xf32, #tpu.memory_space<vmem>>, vector<1x1x1x128xf32>,
    %334 = vector.extract_strided_slice %325 {offsets = [2, 0], sizes = [1, 128], strides = [1, 1]} : vector<128x128xf32> to vector<1x128xf32>
    %c0_579 = arith.constant 0 : index
    %c1_580 = arith.constant 1 : index
    %c1_581 = arith.constant 1 : index
    %c128_582 = arith.constant 128 : index
    %335 = vector.load %arg20[%c0_579, %c1_580, %c1_581, %c128_582] : memref<2x10x5x256xf32, #tpu.memory_space<vmem>>, vector<1x1x1x128xf32>
    %336 = vector.shape_cast %335 : vector<1x1x1x128xf32> to vector<1x128xf32>
    %337 = vector.shape_cast %334 : vector<1x128xf32> to vector<1x1x1x128xf32>
    tpu.vector_store %arg20[%c0_579, %c1_580, %c1_581, %c128_582], %337 {strides = array<i32>} : memref<2x10x5x256xf32, #tpu.memory_space<vmem>>, vector<1x1x1x128xf32>,
    %338 = vector.extract_strided_slice %325 {offsets = [3, 0], sizes = [1, 128], strides = [1, 1]} : vector<128x128xf32> to vector<1x128xf32>
    %c0_583 = arith.constant 0 : index
    %c1_584 = arith.constant 1 : index
    %c2_585 = arith.constant 2 : index
    %c0_586 = arith.constant 0 : index
    %339 = vector.load %arg20[%c0_583, %c1_584, %c2_585, %c0_586] : memref<2x10x5x256xf32, #tpu.memory_space<vmem>>, vector<1x1x1x128xf32>
    %340 = vector.shape_cast %339 : vector<1x1x1x128xf32> to vector<1x128xf32>
    %341 = vector.shape_cast %338 : vector<1x128xf32> to vector<1x1x1x128xf32>
    tpu.vector_store %arg20[%c0_583, %c1_584, %c2_585, %c0_586], %341 {strides = array<i32>} : memref<2x10x5x256xf32, #tpu.memory_space<vmem>>, vector<1x1x1x128xf32>,
    %342 = vector.extract_strided_slice %325 {offsets = [4, 0], sizes = [1, 128], strides = [1, 1]} : vector<128x128xf32> to vector<1x128xf32>
    %c0_587 = arith.constant 0 : index
    %c1_588 = arith.constant 1 : index
    %c2_589 = arith.constant 2 : index
    %c128_590 = arith.constant 128 : index
    %343 = vector.load %arg20[%c0_587, %c1_588, %c2_589, %c128_590] : memref<2x10x5x256xf32, #tpu.memory_space<vmem>>, vector<1x1x1x128xf32>
    %344 = vector.shape_cast %343 : vector<1x1x1x128xf32> to vector<1x128xf32>
    %345 = vector.shape_cast %342 : vector<1x128xf32> to vector<1x1x1x128xf32>
    tpu.vector_store %arg20[%c0_587, %c1_588, %c2_589, %c128_590], %345 {strides = array<i32>} : memref<2x10x5x256xf32, #tpu.memory_space<vmem>>, vector<1x1x1x128xf32>,
    %346 = vector.extract_strided_slice %325 {offsets = [5, 0], sizes = [1, 128], strides = [1, 1]} : vector<128x128xf32> to vector<1x128xf32>
    %c0_591 = arith.constant 0 : index
    %c1_592 = arith.constant 1 : index
    %c3_593 = arith.constant 3 : index
    %c0_594 = arith.constant 0 : index
    %347 = vector.load %arg20[%c0_591, %c1_592, %c3_593, %c0_594] : memref<2x10x5x256xf32, #tpu.memory_space<vmem>>, vector<1x1x1x128xf32>
    %348 = vector.shape_cast %347 : vector<1x1x1x128xf32> to vector<1x128xf32>
    %349 = vector.shape_cast %346 : vector<1x128xf32> to vector<1x1x1x128xf32>
    tpu.vector_store %arg20[%c0_591, %c1_592, %c3_593, %c0_594], %349 {strides = array<i32>} : memref<2x10x5x256xf32, #tpu.memory_space<vmem>>, vector<1x1x1x128xf32>,
    %350 = vector.extract_strided_slice %325 {offsets = [6, 0], sizes = [1, 128], strides = [1, 1]} : vector<128x128xf32> to vector<1x128xf32>
    %c0_595 = arith.constant 0 : index
    %c1_596 = arith.constant 1 : index
    %c3_597 = arith.constant 3 : index
    %c128_598 = arith.constant 128 : index
    %351 = vector.load %arg20[%c0_595, %c1_596, %c3_597, %c128_598] : memref<2x10x5x256xf32, #tpu.memory_space<vmem>>, vector<1x1x1x128xf32>
    %352 = vector.shape_cast %351 : vector<1x1x1x128xf32> to vector<1x128xf32>
    %353 = vector.shape_cast %350 : vector<1x128xf32> to vector<1x1x1x128xf32>
    tpu.vector_store %arg20[%c0_595, %c1_596, %c3_597, %c128_598], %353 {strides = array<i32>} : memref<2x10x5x256xf32, #tpu.memory_space<vmem>>, vector<1x1x1x128xf32>,
    %354 = vector.extract_strided_slice %325 {offsets = [7, 0], sizes = [1, 128], strides = [1, 1]} : vector<128x128xf32> to vector<1x128xf32>
    %c0_599 = arith.constant 0 : index
    %c1_600 = arith.constant 1 : index
    %c4_601 = arith.constant 4 : index
    %c0_602 = arith.constant 0 : index
    %355 = vector.load %arg20[%c0_599, %c1_600, %c4_601, %c0_602] : memref<2x10x5x256xf32, #tpu.memory_space<vmem>>, vector<1x1x1x128xf32>
    %356 = vector.shape_cast %355 : vector<1x1x1x128xf32> to vector<1x128xf32>
    %357 = vector.shape_cast %354 : vector<1x128xf32> to vector<1x1x1x128xf32>
    tpu.vector_store %arg20[%c0_599, %c1_600, %c4_601, %c0_602], %357 {strides = array<i32>} : memref<2x10x5x256xf32, #tpu.memory_space<vmem>>, vector<1x1x1x128xf32>,
    %358 = vector.extract_strided_slice %325 {offsets = [8, 0], sizes = [1, 128], strides = [1, 1]} : vector<128x128xf32> to vector<1x128xf32>
    %c0_603 = arith.constant 0 : index
    %c2_604 = arith.constant 2 : index
    %c0_605 = arith.constant 0 : index
    %c128_606 = arith.constant 128 : index
    %359 = vector.load %arg20[%c0_603, %c2_604, %c0_605, %c128_606] : memref<2x10x5x256xf32, #tpu.memory_space<vmem>>, vector<1x1x1x128xf32>
    %360 = vector.shape_cast %359 : vector<1x1x1x128xf32> to vector<1x128xf32>
    %361 = vector.shape_cast %358 : vector<1x128xf32> to vector<1x1x1x128xf32>
    tpu.vector_store %arg20[%c0_603, %c2_604, %c0_605, %c128_606], %361 {strides = array<i32>} : memref<2x10x5x256xf32, #tpu.memory_space<vmem>>, vector<1x1x1x128xf32>,
    %362 = vector.extract_strided_slice %325 {offsets = [9, 0], sizes = [1, 128], strides = [1, 1]} : vector<128x128xf32> to vector<1x128xf32>
    %c0_607 = arith.constant 0 : index
    %c2_608 = arith.constant 2 : index
    %c1_609 = arith.constant 1 : index
    %c0_610 = arith.constant 0 : index
    %363 = vector.load %arg20[%c0_607, %c2_608, %c1_609, %c0_610] : memref<2x10x5x256xf32, #tpu.memory_space<vmem>>, vector<1x1x1x128xf32>
    %364 = vector.shape_cast %363 : vector<1x1x1x128xf32> to vector<1x128xf32>
    %365 = vector.shape_cast %362 : vector<1x128xf32> to vector<1x1x1x128xf32>
    tpu.vector_store %arg20[%c0_607, %c2_608, %c1_609, %c0_610], %365 {strides = array<i32>} : memref<2x10x5x256xf32, #tpu.memory_space<vmem>>, vector<1x1x1x128xf32>,
    %366 = vector.extract_strided_slice %325 {offsets = [10, 0], sizes = [1, 128], strides = [1, 1]} : vector<128x128xf32> to vector<1x128xf32>
    %c0_611 = arith.constant 0 : index
    %c2_612 = arith.constant 2 : index
    %c1_613 = arith.constant 1 : index
    %c128_614 = arith.constant 128 : index
    %367 = vector.load %arg20[%c0_611, %c2_612, %c1_613, %c128_614] : memref<2x10x5x256xf32, #tpu.memory_space<vmem>>, vector<1x1x1x128xf32>
    %368 = vector.shape_cast %367 : vector<1x1x1x128xf32> to vector<1x128xf32>
    %369 = vector.shape_cast %366 : vector<1x128xf32> to vector<1x1x1x128xf32>
    tpu.vector_store %arg20[%c0_611, %c2_612, %c1_613, %c128_614], %369 {strides = array<i32>} : memref<2x10x5x256xf32, #tpu.memory_space<vmem>>, vector<1x1x1x128xf32>,
    %370 = vector.extract_strided_slice %325 {offsets = [11, 0], sizes = [1, 128], strides = [1, 1]} : vector<128x128xf32> to vector<1x128xf32>
    %c0_615 = arith.constant 0 : index
    %c2_616 = arith.constant 2 : index
    %c2_617 = arith.constant 2 : index
    %c0_618 = arith.constant 0 : index
    %371 = vector.load %arg20[%c0_615, %c2_616, %c2_617, %c0_618] : memref<2x10x5x256xf32, #tpu.memory_space<vmem>>, vector<1x1x1x128xf32>
    %372 = vector.shape_cast %371 : vector<1x1x1x128xf32> to vector<1x128xf32>
    %373 = vector.shape_cast %370 : vector<1x128xf32> to vector<1x1x1x128xf32>
    tpu.vector_store %arg20[%c0_615, %c2_616, %c2_617, %c0_618], %373 {strides = array<i32>} : memref<2x10x5x256xf32, #tpu.memory_space<vmem>>, vector<1x1x1x128xf32>,
    %374 = vector.extract_strided_slice %325 {offsets = [12, 0], sizes = [1, 128], strides = [1, 1]} : vector<128x128xf32> to vector<1x128xf32>
    %c0_619 = arith.constant 0 : index
    %c2_620 = arith.constant 2 : index
    %c2_621 = arith.constant 2 : index
    %c128_622 = arith.constant 128 : index
    %375 = vector.load %arg20[%c0_619, %c2_620, %c2_621, %c128_622] : memref<2x10x5x256xf32, #tpu.memory_space<vmem>>, vector<1x1x1x128xf32>
    %376 = vector.shape_cast %375 : vector<1x1x1x128xf32> to vector<1x128xf32>
    %377 = vector.shape_cast %374 : vector<1x128xf32> to vector<1x1x1x128xf32>
    tpu.vector_store %arg20[%c0_619, %c2_620, %c2_621, %c128_622], %377 {strides = array<i32>} : memref<2x10x5x256xf32, #tpu.memory_space<vmem>>, vector<1x1x1x128xf32>,
    %378 = vector.extract_strided_slice %325 {offsets = [13, 0], sizes = [1, 128], strides = [1, 1]} : vector<128x128xf32> to vector<1x128xf32>
    %c0_623 = arith.constant 0 : index
    %c2_624 = arith.constant 2 : index
    %c3_625 = arith.constant 3 : index
    %c0_626 = arith.constant 0 : index
    %379 = vector.load %arg20[%c0_623, %c2_624, %c3_625, %c0_626] : memref<2x10x5x256xf32, #tpu.memory_space<vmem>>, vector<1x1x1x128xf32>
    %380 = vector.shape_cast %379 : vector<1x1x1x128xf32> to vector<1x128xf32>
    %381 = vector.shape_cast %378 : vector<1x128xf32> to vector<1x1x1x128xf32>
    tpu.vector_store %arg20[%c0_623, %c2_624, %c3_625, %c0_626], %381 {strides = array<i32>} : memref<2x10x5x256xf32, #tpu.memory_space<vmem>>, vector<1x1x1x128xf32>,
    %382 = vector.extract_strided_slice %325 {offsets = [14, 0], sizes = [1, 128], strides = [1, 1]} : vector<128x128xf32> to vector<1x128xf32>
    %c0_627 = arith.constant 0 : index
    %c2_628 = arith.constant 2 : index
    %c3_629 = arith.constant 3 : index
    %c128_630 = arith.constant 128 : index
    %383 = vector.load %arg20[%c0_627, %c2_628, %c3_629, %c128_630] : memref<2x10x5x256xf32, #tpu.memory_space<vmem>>, vector<1x1x1x128xf32>
    %384 = vector.shape_cast %383 : vector<1x1x1x128xf32> to vector<1x128xf32>
    %385 = vector.shape_cast %382 : vector<1x128xf32> to vector<1x1x1x128xf32>
    tpu.vector_store %arg20[%c0_627, %c2_628, %c3_629, %c128_630], %385 {strides = array<i32>} : memref<2x10x5x256xf32, #tpu.memory_space<vmem>>, vector<1x1x1x128xf32>,
    %386 = vector.extract_strided_slice %325 {offsets = [15, 0], sizes = [1, 128], strides = [1, 1]} : vector<128x128xf32> to vector<1x128xf32>
    %c0_631 = arith.constant 0 : index
    %c2_632 = arith.constant 2 : index
    %c4_633 = arith.constant 4 : index
    %c0_634 = arith.constant 0 : index
    %387 = vector.load %arg20[%c0_631, %c2_632, %c4_633, %c0_634] : memref<2x10x5x256xf32, #tpu.memory_space<vmem>>, vector<1x1x1x128xf32>
    %388 = vector.shape_cast %387 : vector<1x1x1x128xf32> to vector<1x128xf32>
    %389 = vector.shape_cast %386 : vector<1x128xf32> to vector<1x1x1x128xf32>
    tpu.vector_store %arg20[%c0_631, %c2_632, %c4_633, %c0_634], %389 {strides = array<i32>} : memref<2x10x5x256xf32, #tpu.memory_space<vmem>>, vector<1x1x1x128xf32>,
    %390 = vector.extract_strided_slice %325 {offsets = [16, 0], sizes = [1, 128], strides = [1, 1]} : vector<128x128xf32> to vector<1x128xf32>
    %c0_635 = arith.constant 0 : index
    %c3_636 = arith.constant 3 : index
    %c0_637 = arith.constant 0 : index
    %c128_638 = arith.constant 128 : index
    %391 = vector.load %arg20[%c0_635, %c3_636, %c0_637, %c128_638] : memref<2x10x5x256xf32, #tpu.memory_space<vmem>>, vector<1x1x1x128xf32>
    %392 = vector.shape_cast %391 : vector<1x1x1x128xf32> to vector<1x128xf32>
    %393 = vector.shape_cast %390 : vector<1x128xf32> to vector<1x1x1x128xf32>
    tpu.vector_store %arg20[%c0_635, %c3_636, %c0_637, %c128_638], %393 {strides = array<i32>} : memref<2x10x5x256xf32, #tpu.memory_space<vmem>>, vector<1x1x1x128xf32>,
    %394 = vector.extract_strided_slice %325 {offsets = [17, 0], sizes = [1, 128], strides = [1, 1]} : vector<128x128xf32> to vector<1x128xf32>
    %c0_639 = arith.constant 0 : index
    %c3_640 = arith.constant 3 : index
    %c1_641 = arith.constant 1 : index
    %c0_642 = arith.constant 0 : index
    %395 = vector.load %arg20[%c0_639, %c3_640, %c1_641, %c0_642] : memref<2x10x5x256xf32, #tpu.memory_space<vmem>>, vector<1x1x1x128xf32>
    %396 = vector.shape_cast %395 : vector<1x1x1x128xf32> to vector<1x128xf32>
    %397 = vector.shape_cast %394 : vector<1x128xf32> to vector<1x1x1x128xf32>
    tpu.vector_store %arg20[%c0_639, %c3_640, %c1_641, %c0_642], %397 {strides = array<i32>} : memref<2x10x5x256xf32, #tpu.memory_space<vmem>>, vector<1x1x1x128xf32>,
    %398 = vector.extract_strided_slice %325 {offsets = [18, 0], sizes = [1, 128], strides = [1, 1]} : vector<128x128xf32> to vector<1x128xf32>
    %c0_643 = arith.constant 0 : index
    %c3_644 = arith.constant 3 : index
    %c1_645 = arith.constant 1 : index
    %c128_646 = arith.constant 128 : index
    %399 = vector.load %arg20[%c0_643, %c3_644, %c1_645, %c128_646] : memref<2x10x5x256xf32, #tpu.memory_space<vmem>>, vector<1x1x1x128xf32>
    %400 = vector.shape_cast %399 : vector<1x1x1x128xf32> to vector<1x128xf32>
    %401 = vector.shape_cast %398 : vector<1x128xf32> to vector<1x1x1x128xf32>
    tpu.vector_store %arg20[%c0_643, %c3_644, %c1_645, %c128_646], %401 {strides = array<i32>} : memref<2x10x5x256xf32, #tpu.memory_space<vmem>>, vector<1x1x1x128xf32>,
    %402 = vector.extract_strided_slice %325 {offsets = [19, 0], sizes = [1, 128], strides = [1, 1]} : vector<128x128xf32> to vector<1x128xf32>
    %c0_647 = arith.constant 0 : index
    %c3_648 = arith.constant 3 : index
    %c2_649 = arith.constant 2 : index
    %c0_650 = arith.constant 0 : index
    %403 = vector.load %arg20[%c0_647, %c3_648, %c2_649, %c0_650] : memref<2x10x5x256xf32, #tpu.memory_space<vmem>>, vector<1x1x1x128xf32>
    %404 = vector.shape_cast %403 : vector<1x1x1x128xf32> to vector<1x128xf32>
    %405 = vector.shape_cast %402 : vector<1x128xf32> to vector<1x1x1x128xf32>
    tpu.vector_store %arg20[%c0_647, %c3_648, %c2_649, %c0_650], %405 {strides = array<i32>} : memref<2x10x5x256xf32, #tpu.memory_space<vmem>>, vector<1x1x1x128xf32>,
    %406 = vector.extract_strided_slice %325 {offsets = [20, 0], sizes = [1, 128], strides = [1, 1]} : vector<128x128xf32> to vector<1x128xf32>
    %c0_651 = arith.constant 0 : index
    %c3_652 = arith.constant 3 : index
    %c2_653 = arith.constant 2 : index
    %c128_654 = arith.constant 128 : index
    %407 = vector.load %arg20[%c0_651, %c3_652, %c2_653, %c128_654] : memref<2x10x5x256xf32, #tpu.memory_space<vmem>>, vector<1x1x1x128xf32>
    %408 = vector.shape_cast %407 : vector<1x1x1x128xf32> to vector<1x128xf32>
    %409 = vector.shape_cast %406 : vector<1x128xf32> to vector<1x1x1x128xf32>
    tpu.vector_store %arg20[%c0_651, %c3_652, %c2_653, %c128_654], %409 {strides = array<i32>} : memref<2x10x5x256xf32, #tpu.memory_space<vmem>>, vector<1x1x1x128xf32>,
    %410 = vector.extract_strided_slice %325 {offsets = [21, 0], sizes = [1, 128], strides = [1, 1]} : vector<128x128xf32> to vector<1x128xf32>
    %c0_655 = arith.constant 0 : index
    %c3_656 = arith.constant 3 : index
    %c3_657 = arith.constant 3 : index
    %c0_658 = arith.constant 0 : index
    %411 = vector.load %arg20[%c0_655, %c3_656, %c3_657, %c0_658] : memref<2x10x5x256xf32, #tpu.memory_space<vmem>>, vector<1x1x1x128xf32>
    %412 = vector.shape_cast %411 : vector<1x1x1x128xf32> to vector<1x128xf32>
    %413 = vector.shape_cast %410 : vector<1x128xf32> to vector<1x1x1x128xf32>
    tpu.vector_store %arg20[%c0_655, %c3_656, %c3_657, %c0_658], %413 {strides = array<i32>} : memref<2x10x5x256xf32, #tpu.memory_space<vmem>>, vector<1x1x1x128xf32>,
    %414 = vector.extract_strided_slice %325 {offsets = [22, 0], sizes = [1, 128], strides = [1, 1]} : vector<128x128xf32> to vector<1x128xf32>
    %c0_659 = arith.constant 0 : index
    %c3_660 = arith.constant 3 : index
    %c3_661 = arith.constant 3 : index
    %c128_662 = arith.constant 128 : index
    %415 = vector.load %arg20[%c0_659, %c3_660, %c3_661, %c128_662] : memref<2x10x5x256xf32, #tpu.memory_space<vmem>>, vector<1x1x1x128xf32>
    %416 = vector.shape_cast %415 : vector<1x1x1x128xf32> to vector<1x128xf32>
    %417 = vector.shape_cast %414 : vector<1x128xf32> to vector<1x1x1x128xf32>
    tpu.vector_store %arg20[%c0_659, %c3_660, %c3_661, %c128_662], %417 {strides = array<i32>} : memref<2x10x5x256xf32, #tpu.memory_space<vmem>>, vector<1x1x1x128xf32>,
    %418 = vector.extract_strided_slice %325 {offsets = [23, 0], sizes = [1, 128], strides = [1, 1]} : vector<128x128xf32> to vector<1x128xf32>
    %c0_663 = arith.constant 0 : index
    %c3_664 = arith.constant 3 : index
    %c4_665 = arith.constant 4 : index
    %c0_666 = arith.constant 0 : index
    %419 = vector.load %arg20[%c0_663, %c3_664, %c4_665, %c0_666] : memref<2x10x5x256xf32, #tpu.memory_space<vmem>>, vector<1x1x1x128xf32>
    %420 = vector.shape_cast %419 : vector<1x1x1x128xf32> to vector<1x128xf32>
    %421 = vector.shape_cast %418 : vector<1x128xf32> to vector<1x1x1x128xf32>
    tpu.vector_store %arg20[%c0_663, %c3_664, %c4_665, %c0_666], %421 {strides = array<i32>} : memref<2x10x5x256xf32, #tpu.memory_space<vmem>>, vector<1x1x1x128xf32>,
    %422 = vector.extract_strided_slice %325 {offsets = [24, 0], sizes = [1, 128], strides = [1, 1]} : vector<128x128xf32> to vector<1x128xf32>
    %c0_667 = arith.constant 0 : index
    %c4_668 = arith.constant 4 : index
    %c0_669 = arith.constant 0 : index
    %c128_670 = arith.constant 128 : index
    %423 = vector.load %arg20[%c0_667, %c4_668, %c0_669, %c128_670] : memref<2x10x5x256xf32, #tpu.memory_space<vmem>>, vector<1x1x1x128xf32>
    %424 = vector.shape_cast %423 : vector<1x1x1x128xf32> to vector<1x128xf32>
    %425 = vector.shape_cast %422 : vector<1x128xf32> to vector<1x1x1x128xf32>
    tpu.vector_store %arg20[%c0_667, %c4_668, %c0_669, %c128_670], %425 {strides = array<i32>} : memref<2x10x5x256xf32, #tpu.memory_space<vmem>>, vector<1x1x1x128xf32>,
    %426 = vector.extract_strided_slice %325 {offsets = [25, 0], sizes = [1, 128], strides = [1, 1]} : vector<128x128xf32> to vector<1x128xf32>
    %c0_671 = arith.constant 0 : index
    %c4_672 = arith.constant 4 : index
    %c1_673 = arith.constant 1 : index
    %c0_674 = arith.constant 0 : index
    %427 = vector.load %arg20[%c0_671, %c4_672, %c1_673, %c0_674] : memref<2x10x5x256xf32, #tpu.memory_space<vmem>>, vector<1x1x1x128xf32>
    %428 = vector.shape_cast %427 : vector<1x1x1x128xf32> to vector<1x128xf32>
    %429 = vector.shape_cast %426 : vector<1x128xf32> to vector<1x1x1x128xf32>
    tpu.vector_store %arg20[%c0_671, %c4_672, %c1_673, %c0_674], %429 {strides = array<i32>} : memref<2x10x5x256xf32, #tpu.memory_space<vmem>>, vector<1x1x1x128xf32>,
    %430 = vector.extract_strided_slice %325 {offsets = [26, 0], sizes = [1, 128], strides = [1, 1]} : vector<128x128xf32> to vector<1x128xf32>
    %c0_675 = arith.constant 0 : index
    %c4_676 = arith.constant 4 : index
    %c1_677 = arith.constant 1 : index
    %c128_678 = arith.constant 128 : index
    %431 = vector.load %arg20[%c0_675, %c4_676, %c1_677, %c128_678] : memref<2x10x5x256xf32, #tpu.memory_space<vmem>>, vector<1x1x1x128xf32>
    %432 = vector.shape_cast %431 : vector<1x1x1x128xf32> to vector<1x128xf32>
    %433 = vector.shape_cast %430 : vector<1x128xf32> to vector<1x1x1x128xf32>
    tpu.vector_store %arg20[%c0_675, %c4_676, %c1_677, %c128_678], %433 {strides = array<i32>} : memref<2x10x5x256xf32, #tpu.memory_space<vmem>>, vector<1x1x1x128xf32>,
    %434 = vector.extract_strided_slice %325 {offsets = [27, 0], sizes = [1, 128], strides = [1, 1]} : vector<128x128xf32> to vector<1x128xf32>
    %c0_679 = arith.constant 0 : index
    %c4_680 = arith.constant 4 : index
    %c2_681 = arith.constant 2 : index
    %c0_682 = arith.constant 0 : index
    %435 = vector.load %arg20[%c0_679, %c4_680, %c2_681, %c0_682] : memref<2x10x5x256xf32, #tpu.memory_space<vmem>>, vector<1x1x1x128xf32>
    %436 = vector.shape_cast %435 : vector<1x1x1x128xf32> to vector<1x128xf32>
    %437 = vector.shape_cast %434 : vector<1x128xf32> to vector<1x1x1x128xf32>
    tpu.vector_store %arg20[%c0_679, %c4_680, %c2_681, %c0_682], %437 {strides = array<i32>} : memref<2x10x5x256xf32, #tpu.memory_space<vmem>>, vector<1x1x1x128xf32>,
    %438 = vector.extract_strided_slice %325 {offsets = [28, 0], sizes = [1, 128], strides = [1, 1]} : vector<128x128xf32> to vector<1x128xf32>
    %c0_683 = arith.constant 0 : index
    %c4_684 = arith.constant 4 : index
    %c2_685 = arith.constant 2 : index
    %c128_686 = arith.constant 128 : index
    %439 = vector.load %arg20[%c0_683, %c4_684, %c2_685, %c128_686] : memref<2x10x5x256xf32, #tpu.memory_space<vmem>>, vector<1x1x1x128xf32>
    %440 = vector.shape_cast %439 : vector<1x1x1x128xf32> to vector<1x128xf32>
    %441 = vector.shape_cast %438 : vector<1x128xf32> to vector<1x1x1x128xf32>
    tpu.vector_store %arg20[%c0_683, %c4_684, %c2_685, %c128_686], %441 {strides = array<i32>} : memref<2x10x5x256xf32, #tpu.memory_space<vmem>>, vector<1x1x1x128xf32>,
    %442 = vector.extract_strided_slice %325 {offsets = [29, 0], sizes = [1, 128], strides = [1, 1]} : vector<128x128xf32> to vector<1x128xf32>
    %c0_687 = arith.constant 0 : index
    %c4_688 = arith.constant 4 : index
    %c3_689 = arith.constant 3 : index
    %c0_690 = arith.constant 0 : index
    %443 = vector.load %arg20[%c0_687, %c4_688, %c3_689, %c0_690] : memref<2x10x5x256xf32, #tpu.memory_space<vmem>>, vector<1x1x1x128xf32>
    %444 = vector.shape_cast %443 : vector<1x1x1x128xf32> to vector<1x128xf32>
    %445 = vector.shape_cast %442 : vector<1x128xf32> to vector<1x1x1x128xf32>
    tpu.vector_store %arg20[%c0_687, %c4_688, %c3_689, %c0_690], %445 {strides = array<i32>} : memref<2x10x5x256xf32, #tpu.memory_space<vmem>>, vector<1x1x1x128xf32>,
    %446 = vector.extract_strided_slice %325 {offsets = [30, 0], sizes = [1, 128], strides = [1, 1]} : vector<128x128xf32> to vector<1x128xf32>
    %c0_691 = arith.constant 0 : index
    %c4_692 = arith.constant 4 : index
    %c3_693 = arith.constant 3 : index
    %c128_694 = arith.constant 128 : index
    %447 = vector.load %arg20[%c0_691, %c4_692, %c3_693, %c128_694] : memref<2x10x5x256xf32, #tpu.memory_space<vmem>>, vector<1x1x1x128xf32>
    %448 = vector.shape_cast %447 : vector<1x1x1x128xf32> to vector<1x128xf32>
    %449 = vector.shape_cast %446 : vector<1x128xf32> to vector<1x1x1x128xf32>
    tpu.vector_store %arg20[%c0_691, %c4_692, %c3_693, %c128_694], %449 {strides = array<i32>} : memref<2x10x5x256xf32, #tpu.memory_space<vmem>>, vector<1x1x1x128xf32>,
    %450 = vector.extract_strided_slice %325 {offsets = [31, 0], sizes = [1, 128], strides = [1, 1]} : vector<128x128xf32> to vector<1x128xf32>
    %c0_695 = arith.constant 0 : index
    %c4_696 = arith.constant 4 : index
    %c4_697 = arith.constant 4 : index
    %c0_698 = arith.constant 0 : index
    %451 = vector.load %arg20[%c0_695, %c4_696, %c4_697, %c0_698] : memref<2x10x5x256xf32, #tpu.memory_space<vmem>>, vector<1x1x1x128xf32>
    %452 = vector.shape_cast %451 : vector<1x1x1x128xf32> to vector<1x128xf32>
    %453 = vector.shape_cast %450 : vector<1x128xf32> to vector<1x1x1x128xf32>
    tpu.vector_store %arg20[%c0_695, %c4_696, %c4_697, %c0_698], %453 {strides = array<i32>} : memref<2x10x5x256xf32, #tpu.memory_space<vmem>>, vector<1x1x1x128xf32>,
    %454 = vector.extract_strided_slice %325 {offsets = [32, 0], sizes = [1, 128], strides = [1, 1]} : vector<128x128xf32> to vector<1x128xf32>
    %c0_699 = arith.constant 0 : index
    %c5_700 = arith.constant 5 : index
    %c0_701 = arith.constant 0 : index
    %c128_702 = arith.constant 128 : index
    %455 = vector.load %arg20[%c0_699, %c5_700, %c0_701, %c128_702] : memref<2x10x5x256xf32, #tpu.memory_space<vmem>>, vector<1x1x1x128xf32>
    %456 = vector.shape_cast %455 : vector<1x1x1x128xf32> to vector<1x128xf32>
    %457 = vector.shape_cast %454 : vector<1x128xf32> to vector<1x1x1x128xf32>
    tpu.vector_store %arg20[%c0_699, %c5_700, %c0_701, %c128_702], %457 {strides = array<i32>} : memref<2x10x5x256xf32, #tpu.memory_space<vmem>>, vector<1x1x1x128xf32>,
    %458 = vector.extract_strided_slice %325 {offsets = [33, 0], sizes = [1, 128], strides = [1, 1]} : vector<128x128xf32> to vector<1x128xf32>
    %c0_703 = arith.constant 0 : index
    %c5_704 = arith.constant 5 : index
    %c1_705 = arith.constant 1 : index
    %c0_706 = arith.constant 0 : index
    %459 = vector.load %arg20[%c0_703, %c5_704, %c1_705, %c0_706] : memref<2x10x5x256xf32, #tpu.memory_space<vmem>>, vector<1x1x1x128xf32>
    %460 = vector.shape_cast %459 : vector<1x1x1x128xf32> to vector<1x128xf32>
    %461 = vector.shape_cast %458 : vector<1x128xf32> to vector<1x1x1x128xf32>
    tpu.vector_store %arg20[%c0_703, %c5_704, %c1_705, %c0_706], %461 {strides = array<i32>} : memref<2x10x5x256xf32, #tpu.memory_space<vmem>>, vector<1x1x1x128xf32>,
    %462 = vector.extract_strided_slice %325 {offsets = [34, 0], sizes = [1, 128], strides = [1, 1]} : vector<128x128xf32> to vector<1x128xf32>
    %c0_707 = arith.constant 0 : index
    %c5_708 = arith.constant 5 : index
    %c1_709 = arith.constant 1 : index
    %c128_710 = arith.constant 128 : index
    %463 = vector.load %arg20[%c0_707, %c5_708, %c1_709, %c128_710] : memref<2x10x5x256xf32, #tpu.memory_space<vmem>>, vector<1x1x1x128xf32>
    %464 = vector.shape_cast %463 : vector<1x1x1x128xf32> to vector<1x128xf32>
    %465 = vector.shape_cast %462 : vector<1x128xf32> to vector<1x1x1x128xf32>
    tpu.vector_store %arg20[%c0_707, %c5_708, %c1_709, %c128_710], %465 {strides = array<i32>} : memref<2x10x5x256xf32, #tpu.memory_space<vmem>>, vector<1x1x1x128xf32>,
    %466 = vector.extract_strided_slice %325 {offsets = [35, 0], sizes = [1, 128], strides = [1, 1]} : vector<128x128xf32> to vector<1x128xf32>
    %c0_711 = arith.constant 0 : index
    %c5_712 = arith.constant 5 : index
    %c2_713 = arith.constant 2 : index
    %c0_714 = arith.constant 0 : index
    %467 = vector.load %arg20[%c0_711, %c5_712, %c2_713, %c0_714] : memref<2x10x5x256xf32, #tpu.memory_space<vmem>>, vector<1x1x1x128xf32>
    %468 = vector.shape_cast %467 : vector<1x1x1x128xf32> to vector<1x128xf32>
    %469 = vector.shape_cast %466 : vector<1x128xf32> to vector<1x1x1x128xf32>
    tpu.vector_store %arg20[%c0_711, %c5_712, %c2_713, %c0_714], %469 {strides = array<i32>} : memref<2x10x5x256xf32, #tpu.memory_space<vmem>>, vector<1x1x1x128xf32>,
    %470 = vector.extract_strided_slice %325 {offsets = [36, 0], sizes = [1, 128], strides = [1, 1]} : vector<128x128xf32> to vector<1x128xf32>
    %c0_715 = arith.constant 0 : index
    %c5_716 = arith.constant 5 : index
    %c2_717 = arith.constant 2 : index
    %c128_718 = arith.constant 128 : index
    %471 = vector.load %arg20[%c0_715, %c5_716, %c2_717, %c128_718] : memref<2x10x5x256xf32, #tpu.memory_space<vmem>>, vector<1x1x1x128xf32>
    %472 = vector.shape_cast %471 : vector<1x1x1x128xf32> to vector<1x128xf32>
    %473 = vector.shape_cast %470 : vector<1x128xf32> to vector<1x1x1x128xf32>
    tpu.vector_store %arg20[%c0_715, %c5_716, %c2_717, %c128_718], %473 {strides = array<i32>} : memref<2x10x5x256xf32, #tpu.memory_space<vmem>>, vector<1x1x1x128xf32>,
    %474 = vector.extract_strided_slice %325 {offsets = [37, 0], sizes = [1, 128], strides = [1, 1]} : vector<128x128xf32> to vector<1x128xf32>
    %c0_719 = arith.constant 0 : index
    %c5_720 = arith.constant 5 : index
    %c3_721 = arith.constant 3 : index
    %c0_722 = arith.constant 0 : index
    %475 = vector.load %arg20[%c0_719, %c5_720, %c3_721, %c0_722] : memref<2x10x5x256xf32, #tpu.memory_space<vmem>>, vector<1x1x1x128xf32>
    %476 = vector.shape_cast %475 : vector<1x1x1x128xf32> to vector<1x128xf32>
    %477 = vector.shape_cast %474 : vector<1x128xf32> to vector<1x1x1x128xf32>
    tpu.vector_store %arg20[%c0_719, %c5_720, %c3_721, %c0_722], %477 {strides = array<i32>} : memref<2x10x5x256xf32, #tpu.memory_space<vmem>>, vector<1x1x1x128xf32>,
    %478 = vector.extract_strided_slice %325 {offsets = [38, 0], sizes = [1, 128], strides = [1, 1]} : vector<128x128xf32> to vector<1x128xf32>
    %c0_723 = arith.constant 0 : index
    %c5_724 = arith.constant 5 : index
    %c3_725 = arith.constant 3 : index
    %c128_726 = arith.constant 128 : index
    %479 = vector.load %arg20[%c0_723, %c5_724, %c3_725, %c128_726] : memref<2x10x5x256xf32, #tpu.memory_space<vmem>>, vector<1x1x1x128xf32>
    %480 = vector.shape_cast %479 : vector<1x1x1x128xf32> to vector<1x128xf32>
    %481 = vector.shape_cast %478 : vector<1x128xf32> to vector<1x1x1x128xf32>
    tpu.vector_store %arg20[%c0_723, %c5_724, %c3_725, %c128_726], %481 {strides = array<i32>} : memref<2x10x5x256xf32, #tpu.memory_space<vmem>>, vector<1x1x1x128xf32>,
    %482 = vector.extract_strided_slice %325 {offsets = [39, 0], sizes = [1, 128], strides = [1, 1]} : vector<128x128xf32> to vector<1x128xf32>
    %c0_727 = arith.constant 0 : index
    %c5_728 = arith.constant 5 : index
    %c4_729 = arith.constant 4 : index
    %c0_730 = arith.constant 0 : index
    %483 = vector.load %arg20[%c0_727, %c5_728, %c4_729, %c0_730] : memref<2x10x5x256xf32, #tpu.memory_space<vmem>>, vector<1x1x1x128xf32>
    %484 = vector.shape_cast %483 : vector<1x1x1x128xf32> to vector<1x128xf32>
    %485 = vector.shape_cast %482 : vector<1x128xf32> to vector<1x1x1x128xf32>
    tpu.vector_store %arg20[%c0_727, %c5_728, %c4_729, %c0_730], %485 {strides = array<i32>} : memref<2x10x5x256xf32, #tpu.memory_space<vmem>>, vector<1x1x1x128xf32>,
    %486 = vector.extract_strided_slice %325 {offsets = [40, 0], sizes = [1, 128], strides = [1, 1]} : vector<128x128xf32> to vector<1x128xf32>
    %c0_731 = arith.constant 0 : index
    %c6_732 = arith.constant 6 : index
    %c0_733 = arith.constant 0 : index
    %c128_734 = arith.constant 128 : index
    %487 = vector.load %arg20[%c0_731, %c6_732, %c0_733, %c128_734] : memref<2x10x5x256xf32, #tpu.memory_space<vmem>>, vector<1x1x1x128xf32>
    %488 = vector.shape_cast %487 : vector<1x1x1x128xf32> to vector<1x128xf32>
    %489 = vector.shape_cast %486 : vector<1x128xf32> to vector<1x1x1x128xf32>
    tpu.vector_store %arg20[%c0_731, %c6_732, %c0_733, %c128_734], %489 {strides = array<i32>} : memref<2x10x5x256xf32, #tpu.memory_space<vmem>>, vector<1x1x1x128xf32>,
    %490 = vector.extract_strided_slice %325 {offsets = [41, 0], sizes = [1, 128], strides = [1, 1]} : vector<128x128xf32> to vector<1x128xf32>
    %c0_735 = arith.constant 0 : index
    %c6_736 = arith.constant 6 : index
    %c1_737 = arith.constant 1 : index
    %c0_738 = arith.constant 0 : index
    %491 = vector.load %arg20[%c0_735, %c6_736, %c1_737, %c0_738] : memref<2x10x5x256xf32, #tpu.memory_space<vmem>>, vector<1x1x1x128xf32>
    %492 = vector.shape_cast %491 : vector<1x1x1x128xf32> to vector<1x128xf32>
    %493 = vector.shape_cast %490 : vector<1x128xf32> to vector<1x1x1x128xf32>
    tpu.vector_store %arg20[%c0_735, %c6_736, %c1_737, %c0_738], %493 {strides = array<i32>} : memref<2x10x5x256xf32, #tpu.memory_space<vmem>>, vector<1x1x1x128xf32>,
    %494 = vector.extract_strided_slice %325 {offsets = [42, 0], sizes = [1, 128], strides = [1, 1]} : vector<128x128xf32> to vector<1x128xf32>
    %c0_739 = arith.constant 0 : index
    %c6_740 = arith.constant 6 : index
    %c1_741 = arith.constant 1 : index
    %c128_742 = arith.constant 128 : index
    %495 = vector.load %arg20[%c0_739, %c6_740, %c1_741, %c128_742] : memref<2x10x5x256xf32, #tpu.memory_space<vmem>>, vector<1x1x1x128xf32>
    %496 = vector.shape_cast %495 : vector<1x1x1x128xf32> to vector<1x128xf32>
    %497 = vector.shape_cast %494 : vector<1x128xf32> to vector<1x1x1x128xf32>
    tpu.vector_store %arg20[%c0_739, %c6_740, %c1_741, %c128_742], %497 {strides = array<i32>} : memref<2x10x5x256xf32, #tpu.memory_space<vmem>>, vector<1x1x1x128xf32>,
    %498 = vector.extract_strided_slice %325 {offsets = [43, 0], sizes = [1, 128], strides = [1, 1]} : vector<128x128xf32> to vector<1x128xf32>
    %c0_743 = arith.constant 0 : index
    %c6_744 = arith.constant 6 : index
    %c2_745 = arith.constant 2 : index
    %c0_746 = arith.constant 0 : index
    %499 = vector.load %arg20[%c0_743, %c6_744, %c2_745, %c0_746] : memref<2x10x5x256xf32, #tpu.memory_space<vmem>>, vector<1x1x1x128xf32>
    %500 = vector.shape_cast %499 : vector<1x1x1x128xf32> to vector<1x128xf32>
    %501 = vector.shape_cast %498 : vector<1x128xf32> to vector<1x1x1x128xf32>
    tpu.vector_store %arg20[%c0_743, %c6_744, %c2_745, %c0_746], %501 {strides = array<i32>} : memref<2x10x5x256xf32, #tpu.memory_space<vmem>>, vector<1x1x1x128xf32>,
    %502 = vector.extract_strided_slice %325 {offsets = [44, 0], sizes = [1, 128], strides = [1, 1]} : vector<128x128xf32> to vector<1x128xf32>
    %c0_747 = arith.constant 0 : index
    %c6_748 = arith.constant 6 : index
    %c2_749 = arith.constant 2 : index
    %c128_750 = arith.constant 128 : index
    %503 = vector.load %arg20[%c0_747, %c6_748, %c2_749, %c128_750] : memref<2x10x5x256xf32, #tpu.memory_space<vmem>>, vector<1x1x1x128xf32>
    %504 = vector.shape_cast %503 : vector<1x1x1x128xf32> to vector<1x128xf32>
    %505 = vector.shape_cast %502 : vector<1x128xf32> to vector<1x1x1x128xf32>
    tpu.vector_store %arg20[%c0_747, %c6_748, %c2_749, %c128_750], %505 {strides = array<i32>} : memref<2x10x5x256xf32, #tpu.memory_space<vmem>>, vector<1x1x1x128xf32>,
    %506 = vector.extract_strided_slice %325 {offsets = [45, 0], sizes = [1, 128], strides = [1, 1]} : vector<128x128xf32> to vector<1x128xf32>
    %c0_751 = arith.constant 0 : index
    %c6_752 = arith.constant 6 : index
    %c3_753 = arith.constant 3 : index
    %c0_754 = arith.constant 0 : index
    %507 = vector.load %arg20[%c0_751, %c6_752, %c3_753, %c0_754] : memref<2x10x5x256xf32, #tpu.memory_space<vmem>>, vector<1x1x1x128xf32>
    %508 = vector.shape_cast %507 : vector<1x1x1x128xf32> to vector<1x128xf32>
    %509 = vector.shape_cast %506 : vector<1x128xf32> to vector<1x1x1x128xf32>
    tpu.vector_store %arg20[%c0_751, %c6_752, %c3_753, %c0_754], %509 {strides = array<i32>} : memref<2x10x5x256xf32, #tpu.memory_space<vmem>>, vector<1x1x1x128xf32>,
    %510 = vector.extract_strided_slice %325 {offsets = [46, 0], sizes = [1, 128], strides = [1, 1]} : vector<128x128xf32> to vector<1x128xf32>
    %c0_755 = arith.constant 0 : index
    %c6_756 = arith.constant 6 : index
    %c3_757 = arith.constant 3 : index
    %c128_758 = arith.constant 128 : index
    %511 = vector.load %arg20[%c0_755, %c6_756, %c3_757, %c128_758] : memref<2x10x5x256xf32, #tpu.memory_space<vmem>>, vector<1x1x1x128xf32>
    %512 = vector.shape_cast %511 : vector<1x1x1x128xf32> to vector<1x128xf32>
    %513 = vector.shape_cast %510 : vector<1x128xf32> to vector<1x1x1x128xf32>
    tpu.vector_store %arg20[%c0_755, %c6_756, %c3_757, %c128_758], %513 {strides = array<i32>} : memref<2x10x5x256xf32, #tpu.memory_space<vmem>>, vector<1x1x1x128xf32>,
    %514 = vector.extract_strided_slice %325 {offsets = [47, 0], sizes = [1, 128], strides = [1, 1]} : vector<128x128xf32> to vector<1x128xf32>
    %c0_759 = arith.constant 0 : index
    %c6_760 = arith.constant 6 : index
    %c4_761 = arith.constant 4 : index
    %c0_762 = arith.constant 0 : index
    %515 = vector.load %arg20[%c0_759, %c6_760, %c4_761, %c0_762] : memref<2x10x5x256xf32, #tpu.memory_space<vmem>>, vector<1x1x1x128xf32>
    %516 = vector.shape_cast %515 : vector<1x1x1x128xf32> to vector<1x128xf32>
    %517 = vector.shape_cast %514 : vector<1x128xf32> to vector<1x1x1x128xf32>
    tpu.vector_store %arg20[%c0_759, %c6_760, %c4_761, %c0_762], %517 {strides = array<i32>} : memref<2x10x5x256xf32, #tpu.memory_space<vmem>>, vector<1x1x1x128xf32>,
    %518 = vector.extract_strided_slice %325 {offsets = [48, 0], sizes = [1, 128], strides = [1, 1]} : vector<128x128xf32> to vector<1x128xf32>
    %c0_763 = arith.constant 0 : index
    %c7_764 = arith.constant 7 : index
    %c0_765 = arith.constant 0 : index
    %c128_766 = arith.constant 128 : index
    %519 = vector.load %arg20[%c0_763, %c7_764, %c0_765, %c128_766] : memref<2x10x5x256xf32, #tpu.memory_space<vmem>>, vector<1x1x1x128xf32>
    %520 = vector.shape_cast %519 : vector<1x1x1x128xf32> to vector<1x128xf32>
    %521 = vector.shape_cast %518 : vector<1x128xf32> to vector<1x1x1x128xf32>
    tpu.vector_store %arg20[%c0_763, %c7_764, %c0_765, %c128_766], %521 {strides = array<i32>} : memref<2x10x5x256xf32, #tpu.memory_space<vmem>>, vector<1x1x1x128xf32>,
    %522 = vector.extract_strided_slice %325 {offsets = [49, 0], sizes = [1, 128], strides = [1, 1]} : vector<128x128xf32> to vector<1x128xf32>
    %c0_767 = arith.constant 0 : index
    %c7_768 = arith.constant 7 : index
    %c1_769 = arith.constant 1 : index
    %c0_770 = arith.constant 0 : index
    %523 = vector.load %arg20[%c0_767, %c7_768, %c1_769, %c0_770] : memref<2x10x5x256xf32, #tpu.memory_space<vmem>>, vector<1x1x1x128xf32>
    %524 = vector.shape_cast %523 : vector<1x1x1x128xf32> to vector<1x128xf32>
    %525 = vector.shape_cast %522 : vector<1x128xf32> to vector<1x1x1x128xf32>
    tpu.vector_store %arg20[%c0_767, %c7_768, %c1_769, %c0_770], %525 {strides = array<i32>} : memref<2x10x5x256xf32, #tpu.memory_space<vmem>>, vector<1x1x1x128xf32>,
    %526 = vector.extract_strided_slice %325 {offsets = [50, 0], sizes = [1, 128], strides = [1, 1]} : vector<128x128xf32> to vector<1x128xf32>
    %c0_771 = arith.constant 0 : index
    %c7_772 = arith.constant 7 : index
    %c1_773 = arith.constant 1 : index
    %c128_774 = arith.constant 128 : index
    %527 = vector.load %arg20[%c0_771, %c7_772, %c1_773, %c128_774] : memref<2x10x5x256xf32, #tpu.memory_space<vmem>>, vector<1x1x1x128xf32>
    %528 = vector.shape_cast %527 : vector<1x1x1x128xf32> to vector<1x128xf32>
    %529 = vector.shape_cast %526 : vector<1x128xf32> to vector<1x1x1x128xf32>
    tpu.vector_store %arg20[%c0_771, %c7_772, %c1_773, %c128_774], %529 {strides = array<i32>} : memref<2x10x5x256xf32, #tpu.memory_space<vmem>>, vector<1x1x1x128xf32>,
    %530 = vector.extract_strided_slice %325 {offsets = [51, 0], sizes = [1, 128], strides = [1, 1]} : vector<128x128xf32> to vector<1x128xf32>
    %c0_775 = arith.constant 0 : index
    %c7_776 = arith.constant 7 : index
    %c2_777 = arith.constant 2 : index
    %c0_778 = arith.constant 0 : index
    %531 = vector.load %arg20[%c0_775, %c7_776, %c2_777, %c0_778] : memref<2x10x5x256xf32, #tpu.memory_space<vmem>>, vector<1x1x1x128xf32>
    %532 = vector.shape_cast %531 : vector<1x1x1x128xf32> to vector<1x128xf32>
    %533 = vector.shape_cast %530 : vector<1x128xf32> to vector<1x1x1x128xf32>
    tpu.vector_store %arg20[%c0_775, %c7_776, %c2_777, %c0_778], %533 {strides = array<i32>} : memref<2x10x5x256xf32, #tpu.memory_space<vmem>>, vector<1x1x1x128xf32>,
    %534 = vector.extract_strided_slice %325 {offsets = [52, 0], sizes = [1, 128], strides = [1, 1]} : vector<128x128xf32> to vector<1x128xf32>
    %c0_779 = arith.constant 0 : index
    %c7_780 = arith.constant 7 : index
    %c2_781 = arith.constant 2 : index
    %c128_782 = arith.constant 128 : index
    %535 = vector.load %arg20[%c0_779, %c7_780, %c2_781, %c128_782] : memref<2x10x5x256xf32, #tpu.memory_space<vmem>>, vector<1x1x1x128xf32>
    %536 = vector.shape_cast %535 : vector<1x1x1x128xf32> to vector<1x128xf32>
    %537 = vector.shape_cast %534 : vector<1x128xf32> to vector<1x1x1x128xf32>
    tpu.vector_store %arg20[%c0_779, %c7_780, %c2_781, %c128_782], %537 {strides = array<i32>} : memref<2x10x5x256xf32, #tpu.memory_space<vmem>>, vector<1x1x1x128xf32>,
    %538 = vector.extract_strided_slice %325 {offsets = [53, 0], sizes = [1, 128], strides = [1, 1]} : vector<128x128xf32> to vector<1x128xf32>
    %c0_783 = arith.constant 0 : index
    %c7_784 = arith.constant 7 : index
    %c3_785 = arith.constant 3 : index
    %c0_786 = arith.constant 0 : index
    %539 = vector.load %arg20[%c0_783, %c7_784, %c3_785, %c0_786] : memref<2x10x5x256xf32, #tpu.memory_space<vmem>>, vector<1x1x1x128xf32>
    %540 = vector.shape_cast %539 : vector<1x1x1x128xf32> to vector<1x128xf32>
    %541 = vector.shape_cast %538 : vector<1x128xf32> to vector<1x1x1x128xf32>
    tpu.vector_store %arg20[%c0_783, %c7_784, %c3_785, %c0_786], %541 {strides = array<i32>} : memref<2x10x5x256xf32, #tpu.memory_space<vmem>>, vector<1x1x1x128xf32>,
    %542 = vector.extract_strided_slice %325 {offsets = [54, 0], sizes = [1, 128], strides = [1, 1]} : vector<128x128xf32> to vector<1x128xf32>
    %c0_787 = arith.constant 0 : index
    %c7_788 = arith.constant 7 : index
    %c3_789 = arith.constant 3 : index
    %c128_790 = arith.constant 128 : index
    %543 = vector.load %arg20[%c0_787, %c7_788, %c3_789, %c128_790] : memref<2x10x5x256xf32, #tpu.memory_space<vmem>>, vector<1x1x1x128xf32>
    %544 = vector.shape_cast %543 : vector<1x1x1x128xf32> to vector<1x128xf32>
    %545 = vector.shape_cast %542 : vector<1x128xf32> to vector<1x1x1x128xf32>
    tpu.vector_store %arg20[%c0_787, %c7_788, %c3_789, %c128_790], %545 {strides = array<i32>} : memref<2x10x5x256xf32, #tpu.memory_space<vmem>>, vector<1x1x1x128xf32>,
    %546 = vector.extract_strided_slice %325 {offsets = [55, 0], sizes = [1, 128], strides = [1, 1]} : vector<128x128xf32> to vector<1x128xf32>
    %c0_791 = arith.constant 0 : index
    %c7_792 = arith.constant 7 : index
    %c4_793 = arith.constant 4 : index
    %c0_794 = arith.constant 0 : index
    %547 = vector.load %arg20[%c0_791, %c7_792, %c4_793, %c0_794] : memref<2x10x5x256xf32, #tpu.memory_space<vmem>>, vector<1x1x1x128xf32>
    %548 = vector.shape_cast %547 : vector<1x1x1x128xf32> to vector<1x128xf32>
    %549 = vector.shape_cast %546 : vector<1x128xf32> to vector<1x1x1x128xf32>
    tpu.vector_store %arg20[%c0_791, %c7_792, %c4_793, %c0_794], %549 {strides = array<i32>} : memref<2x10x5x256xf32, #tpu.memory_space<vmem>>, vector<1x1x1x128xf32>,
    %550 = vector.extract_strided_slice %325 {offsets = [56, 0], sizes = [1, 128], strides = [1, 1]} : vector<128x128xf32> to vector<1x128xf32>
    %c0_795 = arith.constant 0 : index
    %c8_796 = arith.constant 8 : index
    %c0_797 = arith.constant 0 : index
    %c128_798 = arith.constant 128 : index
    %551 = vector.load %arg20[%c0_795, %c8_796, %c0_797, %c128_798] : memref<2x10x5x256xf32, #tpu.memory_space<vmem>>, vector<1x1x1x128xf32>
    %552 = vector.shape_cast %551 : vector<1x1x1x128xf32> to vector<1x128xf32>
    %553 = vector.shape_cast %550 : vector<1x128xf32> to vector<1x1x1x128xf32>
    tpu.vector_store %arg20[%c0_795, %c8_796, %c0_797, %c128_798], %553 {strides = array<i32>} : memref<2x10x5x256xf32, #tpu.memory_space<vmem>>, vector<1x1x1x128xf32>,
    %554 = vector.extract_strided_slice %325 {offsets = [57, 0], sizes = [1, 128], strides = [1, 1]} : vector<128x128xf32> to vector<1x128xf32>
    %c0_799 = arith.constant 0 : index
    %c8_800 = arith.constant 8 : index
    %c1_801 = arith.constant 1 : index
    %c0_802 = arith.constant 0 : index
    %555 = vector.load %arg20[%c0_799, %c8_800, %c1_801, %c0_802] : memref<2x10x5x256xf32, #tpu.memory_space<vmem>>, vector<1x1x1x128xf32>
    %556 = vector.shape_cast %555 : vector<1x1x1x128xf32> to vector<1x128xf32>
    %557 = vector.shape_cast %554 : vector<1x128xf32> to vector<1x1x1x128xf32>
    tpu.vector_store %arg20[%c0_799, %c8_800, %c1_801, %c0_802], %557 {strides = array<i32>} : memref<2x10x5x256xf32, #tpu.memory_space<vmem>>, vector<1x1x1x128xf32>,
    %558 = vector.extract_strided_slice %325 {offsets = [58, 0], sizes = [1, 128], strides = [1, 1]} : vector<128x128xf32> to vector<1x128xf32>
    %c0_803 = arith.constant 0 : index
    %c8_804 = arith.constant 8 : index
    %c1_805 = arith.constant 1 : index
    %c128_806 = arith.constant 128 : index
    %559 = vector.load %arg20[%c0_803, %c8_804, %c1_805, %c128_806] : memref<2x10x5x256xf32, #tpu.memory_space<vmem>>, vector<1x1x1x128xf32>
    %560 = vector.shape_cast %559 : vector<1x1x1x128xf32> to vector<1x128xf32>
    %561 = vector.shape_cast %558 : vector<1x128xf32> to vector<1x1x1x128xf32>
    tpu.vector_store %arg20[%c0_803, %c8_804, %c1_805, %c128_806], %561 {strides = array<i32>} : memref<2x10x5x256xf32, #tpu.memory_space<vmem>>, vector<1x1x1x128xf32>,
    %562 = vector.extract_strided_slice %325 {offsets = [59, 0], sizes = [1, 128], strides = [1, 1]} : vector<128x128xf32> to vector<1x128xf32>
    %c0_807 = arith.constant 0 : index
    %c8_808 = arith.constant 8 : index
    %c2_809 = arith.constant 2 : index
    %c0_810 = arith.constant 0 : index
    %563 = vector.load %arg20[%c0_807, %c8_808, %c2_809, %c0_810] : memref<2x10x5x256xf32, #tpu.memory_space<vmem>>, vector<1x1x1x128xf32>
    %564 = vector.shape_cast %563 : vector<1x1x1x128xf32> to vector<1x128xf32>
    %565 = vector.shape_cast %562 : vector<1x128xf32> to vector<1x1x1x128xf32>
    tpu.vector_store %arg20[%c0_807, %c8_808, %c2_809, %c0_810], %565 {strides = array<i32>} : memref<2x10x5x256xf32, #tpu.memory_space<vmem>>, vector<1x1x1x128xf32>,
    %566 = vector.extract_strided_slice %325 {offsets = [60, 0], sizes = [1, 128], strides = [1, 1]} : vector<128x128xf32> to vector<1x128xf32>
    %c0_811 = arith.constant 0 : index
    %c8_812 = arith.constant 8 : index
    %c2_813 = arith.constant 2 : index
    %c128_814 = arith.constant 128 : index
    %567 = vector.load %arg20[%c0_811, %c8_812, %c2_813, %c128_814] : memref<2x10x5x256xf32, #tpu.memory_space<vmem>>, vector<1x1x1x128xf32>
    %568 = vector.shape_cast %567 : vector<1x1x1x128xf32> to vector<1x128xf32>
    %569 = vector.shape_cast %566 : vector<1x128xf32> to vector<1x1x1x128xf32>
    tpu.vector_store %arg20[%c0_811, %c8_812, %c2_813, %c128_814], %569 {strides = array<i32>} : memref<2x10x5x256xf32, #tpu.memory_space<vmem>>, vector<1x1x1x128xf32>,
    %570 = vector.extract_strided_slice %325 {offsets = [61, 0], sizes = [1, 128], strides = [1, 1]} : vector<128x128xf32> to vector<1x128xf32>
    %c0_815 = arith.constant 0 : index
    %c8_816 = arith.constant 8 : index
    %c3_817 = arith.constant 3 : index
    %c0_818 = arith.constant 0 : index
    %571 = vector.load %arg20[%c0_815, %c8_816, %c3_817, %c0_818] : memref<2x10x5x256xf32, #tpu.memory_space<vmem>>, vector<1x1x1x128xf32>
    %572 = vector.shape_cast %571 : vector<1x1x1x128xf32> to vector<1x128xf32>
    %573 = vector.shape_cast %570 : vector<1x128xf32> to vector<1x1x1x128xf32>
    tpu.vector_store %arg20[%c0_815, %c8_816, %c3_817, %c0_818], %573 {strides = array<i32>} : memref<2x10x5x256xf32, #tpu.memory_space<vmem>>, vector<1x1x1x128xf32>,
    %574 = vector.extract_strided_slice %325 {offsets = [62, 0], sizes = [1, 128], strides = [1, 1]} : vector<128x128xf32> to vector<1x128xf32>
    %c0_819 = arith.constant 0 : index
    %c8_820 = arith.constant 8 : index
    %c3_821 = arith.constant 3 : index
    %c128_822 = arith.constant 128 : index
    %575 = vector.load %arg20[%c0_819, %c8_820, %c3_821, %c128_822] : memref<2x10x5x256xf32, #tpu.memory_space<vmem>>, vector<1x1x1x128xf32>
    %576 = vector.shape_cast %575 : vector<1x1x1x128xf32> to vector<1x128xf32>
    %577 = vector.shape_cast %574 : vector<1x128xf32> to vector<1x1x1x128xf32>
    tpu.vector_store %arg20[%c0_819, %c8_820, %c3_821, %c128_822], %577 {strides = array<i32>} : memref<2x10x5x256xf32, #tpu.memory_space<vmem>>, vector<1x1x1x128xf32>,
    %578 = vector.extract_strided_slice %325 {offsets = [63, 0], sizes = [1, 128], strides = [1, 1]} : vector<128x128xf32> to vector<1x128xf32>
    %c0_823 = arith.constant 0 : index
    %c8_824 = arith.constant 8 : index
    %c4_825 = arith.constant 4 : index
    %c0_826 = arith.constant 0 : index
    %579 = vector.load %arg20[%c0_823, %c8_824, %c4_825, %c0_826] : memref<2x10x5x256xf32, #tpu.memory_space<vmem>>, vector<1x1x1x128xf32>
    %580 = vector.shape_cast %579 : vector<1x1x1x128xf32> to vector<1x128xf32>
    %581 = vector.shape_cast %578 : vector<1x128xf32> to vector<1x1x1x128xf32>
    tpu.vector_store %arg20[%c0_823, %c8_824, %c4_825, %c0_826], %581 {strides = array<i32>} : memref<2x10x5x256xf32, #tpu.memory_space<vmem>>, vector<1x1x1x128xf32>,
    %582 = vector.extract_strided_slice %325 {offsets = [64, 0], sizes = [1, 128], strides = [1, 1]} : vector<128x128xf32> to vector<1x128xf32>
    %c1_827 = arith.constant 1 : index
    %c1_828 = arith.constant 1 : index
    %c0_829 = arith.constant 0 : index
    %c128_830 = arith.constant 128 : index
    %583 = vector.load %arg20[%c1_827, %c1_828, %c0_829, %c128_830] : memref<2x10x5x256xf32, #tpu.memory_space<vmem>>, vector<1x1x1x128xf32>
    %584 = vector.shape_cast %583 : vector<1x1x1x128xf32> to vector<1x128xf32>
    %585 = vector.shape_cast %582 : vector<1x128xf32> to vector<1x1x1x128xf32>
    tpu.vector_store %arg20[%c1_827, %c1_828, %c0_829, %c128_830], %585 {strides = array<i32>} : memref<2x10x5x256xf32, #tpu.memory_space<vmem>>, vector<1x1x1x128xf32>,
    %586 = vector.extract_strided_slice %325 {offsets = [65, 0], sizes = [1, 128], strides = [1, 1]} : vector<128x128xf32> to vector<1x128xf32>
    %c1_831 = arith.constant 1 : index
    %c1_832 = arith.constant 1 : index
    %c1_833 = arith.constant 1 : index
    %c0_834 = arith.constant 0 : index
    %587 = vector.load %arg20[%c1_831, %c1_832, %c1_833, %c0_834] : memref<2x10x5x256xf32, #tpu.memory_space<vmem>>, vector<1x1x1x128xf32>
    %588 = vector.shape_cast %587 : vector<1x1x1x128xf32> to vector<1x128xf32>
    %589 = vector.shape_cast %586 : vector<1x128xf32> to vector<1x1x1x128xf32>
    tpu.vector_store %arg20[%c1_831, %c1_832, %c1_833, %c0_834], %589 {strides = array<i32>} : memref<2x10x5x256xf32, #tpu.memory_space<vmem>>, vector<1x1x1x128xf32>,
    %590 = vector.extract_strided_slice %325 {offsets = [66, 0], sizes = [1, 128], strides = [1, 1]} : vector<128x128xf32> to vector<1x128xf32>
    %c1_835 = arith.constant 1 : index
    %c1_836 = arith.constant 1 : index
    %c1_837 = arith.constant 1 : index
    %c128_838 = arith.constant 128 : index
    %591 = vector.load %arg20[%c1_835, %c1_836, %c1_837, %c128_838] : memref<2x10x5x256xf32, #tpu.memory_space<vmem>>, vector<1x1x1x128xf32>
    %592 = vector.shape_cast %591 : vector<1x1x1x128xf32> to vector<1x128xf32>
    %593 = vector.shape_cast %590 : vector<1x128xf32> to vector<1x1x1x128xf32>
    tpu.vector_store %arg20[%c1_835, %c1_836, %c1_837, %c128_838], %593 {strides = array<i32>} : memref<2x10x5x256xf32, #tpu.memory_space<vmem>>, vector<1x1x1x128xf32>,
    %594 = vector.extract_strided_slice %325 {offsets = [67, 0], sizes = [1, 128], strides = [1, 1]} : vector<128x128xf32> to vector<1x128xf32>
    %c1_839 = arith.constant 1 : index
    %c1_840 = arith.constant 1 : index
    %c2_841 = arith.constant 2 : index
    %c0_842 = arith.constant 0 : index
    %595 = vector.load %arg20[%c1_839, %c1_840, %c2_841, %c0_842] : memref<2x10x5x256xf32, #tpu.memory_space<vmem>>, vector<1x1x1x128xf32>
    %596 = vector.shape_cast %595 : vector<1x1x1x128xf32> to vector<1x128xf32>
    %597 = vector.shape_cast %594 : vector<1x128xf32> to vector<1x1x1x128xf32>
    tpu.vector_store %arg20[%c1_839, %c1_840, %c2_841, %c0_842], %597 {strides = array<i32>} : memref<2x10x5x256xf32, #tpu.memory_space<vmem>>, vector<1x1x1x128xf32>,
    %598 = vector.extract_strided_slice %325 {offsets = [68, 0], sizes = [1, 128], strides = [1, 1]} : vector<128x128xf32> to vector<1x128xf32>
    %c1_843 = arith.constant 1 : index
    %c1_844 = arith.constant 1 : index
    %c2_845 = arith.constant 2 : index
    %c128_846 = arith.constant 128 : index
    %599 = vector.load %arg20[%c1_843, %c1_844, %c2_845, %c128_846] : memref<2x10x5x256xf32, #tpu.memory_space<vmem>>, vector<1x1x1x128xf32>
    %600 = vector.shape_cast %599 : vector<1x1x1x128xf32> to vector<1x128xf32>
    %601 = vector.shape_cast %598 : vector<1x128xf32> to vector<1x1x1x128xf32>
    tpu.vector_store %arg20[%c1_843, %c1_844, %c2_845, %c128_846], %601 {strides = array<i32>} : memref<2x10x5x256xf32, #tpu.memory_space<vmem>>, vector<1x1x1x128xf32>,
    %602 = vector.extract_strided_slice %325 {offsets = [69, 0], sizes = [1, 128], strides = [1, 1]} : vector<128x128xf32> to vector<1x128xf32>
    %c1_847 = arith.constant 1 : index
    %c1_848 = arith.constant 1 : index
    %c3_849 = arith.constant 3 : index
    %c0_850 = arith.constant 0 : index
    %603 = vector.load %arg20[%c1_847, %c1_848, %c3_849, %c0_850] : memref<2x10x5x256xf32, #tpu.memory_space<vmem>>, vector<1x1x1x128xf32>
    %604 = vector.shape_cast %603 : vector<1x1x1x128xf32> to vector<1x128xf32>
    %605 = vector.shape_cast %602 : vector<1x128xf32> to vector<1x1x1x128xf32>
    tpu.vector_store %arg20[%c1_847, %c1_848, %c3_849, %c0_850], %605 {strides = array<i32>} : memref<2x10x5x256xf32, #tpu.memory_space<vmem>>, vector<1x1x1x128xf32>,
    %606 = vector.extract_strided_slice %325 {offsets = [70, 0], sizes = [1, 128], strides = [1, 1]} : vector<128x128xf32> to vector<1x128xf32>
    %c1_851 = arith.constant 1 : index
    %c1_852 = arith.constant 1 : index
    %c3_853 = arith.constant 3 : index
    %c128_854 = arith.constant 128 : index
    %607 = vector.load %arg20[%c1_851, %c1_852, %c3_853, %c128_854] : memref<2x10x5x256xf32, #tpu.memory_space<vmem>>, vector<1x1x1x128xf32>
    %608 = vector.shape_cast %607 : vector<1x1x1x128xf32> to vector<1x128xf32>
    %609 = vector.shape_cast %606 : vector<1x128xf32> to vector<1x1x1x128xf32>
    tpu.vector_store %arg20[%c1_851, %c1_852, %c3_853, %c128_854], %609 {strides = array<i32>} : memref<2x10x5x256xf32, #tpu.memory_space<vmem>>, vector<1x1x1x128xf32>,
    %610 = vector.extract_strided_slice %325 {offsets = [71, 0], sizes = [1, 128], strides = [1, 1]} : vector<128x128xf32> to vector<1x128xf32>
    %c1_855 = arith.constant 1 : index
    %c1_856 = arith.constant 1 : index
    %c4_857 = arith.constant 4 : index
    %c0_858 = arith.constant 0 : index
    %611 = vector.load %arg20[%c1_855, %c1_856, %c4_857, %c0_858] : memref<2x10x5x256xf32, #tpu.memory_space<vmem>>, vector<1x1x1x128xf32>
    %612 = vector.shape_cast %611 : vector<1x1x1x128xf32> to vector<1x128xf32>
    %613 = vector.shape_cast %610 : vector<1x128xf32> to vector<1x1x1x128xf32>
    tpu.vector_store %arg20[%c1_855, %c1_856, %c4_857, %c0_858], %613 {strides = array<i32>} : memref<2x10x5x256xf32, #tpu.memory_space<vmem>>, vector<1x1x1x128xf32>,
    %614 = vector.extract_strided_slice %325 {offsets = [72, 0], sizes = [1, 128], strides = [1, 1]} : vector<128x128xf32> to vector<1x128xf32>
    %c1_859 = arith.constant 1 : index
    %c2_860 = arith.constant 2 : index
    %c0_861 = arith.constant 0 : index
    %c128_862 = arith.constant 128 : index
    %615 = vector.load %arg20[%c1_859, %c2_860, %c0_861, %c128_862] : memref<2x10x5x256xf32, #tpu.memory_space<vmem>>, vector<1x1x1x128xf32>
    %616 = vector.shape_cast %615 : vector<1x1x1x128xf32> to vector<1x128xf32>
    %617 = vector.shape_cast %614 : vector<1x128xf32> to vector<1x1x1x128xf32>
    tpu.vector_store %arg20[%c1_859, %c2_860, %c0_861, %c128_862], %617 {strides = array<i32>} : memref<2x10x5x256xf32, #tpu.memory_space<vmem>>, vector<1x1x1x128xf32>,
    %618 = vector.extract_strided_slice %325 {offsets = [73, 0], sizes = [1, 128], strides = [1, 1]} : vector<128x128xf32> to vector<1x128xf32>
    %c1_863 = arith.constant 1 : index
    %c2_864 = arith.constant 2 : index
    %c1_865 = arith.constant 1 : index
    %c0_866 = arith.constant 0 : index
    %619 = vector.load %arg20[%c1_863, %c2_864, %c1_865, %c0_866] : memref<2x10x5x256xf32, #tpu.memory_space<vmem>>, vector<1x1x1x128xf32>
    %620 = vector.shape_cast %619 : vector<1x1x1x128xf32> to vector<1x128xf32>
    %621 = vector.shape_cast %618 : vector<1x128xf32> to vector<1x1x1x128xf32>
    tpu.vector_store %arg20[%c1_863, %c2_864, %c1_865, %c0_866], %621 {strides = array<i32>} : memref<2x10x5x256xf32, #tpu.memory_space<vmem>>, vector<1x1x1x128xf32>,
    %622 = vector.extract_strided_slice %325 {offsets = [74, 0], sizes = [1, 128], strides = [1, 1]} : vector<128x128xf32> to vector<1x128xf32>
    %c1_867 = arith.constant 1 : index
    %c2_868 = arith.constant 2 : index
    %c1_869 = arith.constant 1 : index
    %c128_870 = arith.constant 128 : index
    %623 = vector.load %arg20[%c1_867, %c2_868, %c1_869, %c128_870] : memref<2x10x5x256xf32, #tpu.memory_space<vmem>>, vector<1x1x1x128xf32>
    %624 = vector.shape_cast %623 : vector<1x1x1x128xf32> to vector<1x128xf32>
    %625 = vector.shape_cast %622 : vector<1x128xf32> to vector<1x1x1x128xf32>
    tpu.vector_store %arg20[%c1_867, %c2_868, %c1_869, %c128_870], %625 {strides = array<i32>} : memref<2x10x5x256xf32, #tpu.memory_space<vmem>>, vector<1x1x1x128xf32>,
    %626 = vector.extract_strided_slice %325 {offsets = [75, 0], sizes = [1, 128], strides = [1, 1]} : vector<128x128xf32> to vector<1x128xf32>
    %c1_871 = arith.constant 1 : index
    %c2_872 = arith.constant 2 : index
    %c2_873 = arith.constant 2 : index
    %c0_874 = arith.constant 0 : index
    %627 = vector.load %arg20[%c1_871, %c2_872, %c2_873, %c0_874] : memref<2x10x5x256xf32, #tpu.memory_space<vmem>>, vector<1x1x1x128xf32>
    %628 = vector.shape_cast %627 : vector<1x1x1x128xf32> to vector<1x128xf32>
    %629 = vector.shape_cast %626 : vector<1x128xf32> to vector<1x1x1x128xf32>
    tpu.vector_store %arg20[%c1_871, %c2_872, %c2_873, %c0_874], %629 {strides = array<i32>} : memref<2x10x5x256xf32, #tpu.memory_space<vmem>>, vector<1x1x1x128xf32>,
    %630 = vector.extract_strided_slice %325 {offsets = [76, 0], sizes = [1, 128], strides = [1, 1]} : vector<128x128xf32> to vector<1x128xf32>
    %c1_875 = arith.constant 1 : index
    %c2_876 = arith.constant 2 : index
    %c2_877 = arith.constant 2 : index
    %c128_878 = arith.constant 128 : index
    %631 = vector.load %arg20[%c1_875, %c2_876, %c2_877, %c128_878] : memref<2x10x5x256xf32, #tpu.memory_space<vmem>>, vector<1x1x1x128xf32>
    %632 = vector.shape_cast %631 : vector<1x1x1x128xf32> to vector<1x128xf32>
    %633 = vector.shape_cast %630 : vector<1x128xf32> to vector<1x1x1x128xf32>
    tpu.vector_store %arg20[%c1_875, %c2_876, %c2_877, %c128_878], %633 {strides = array<i32>} : memref<2x10x5x256xf32, #tpu.memory_space<vmem>>, vector<1x1x1x128xf32>,
    %634 = vector.extract_strided_slice %325 {offsets = [77, 0], sizes = [1, 128], strides = [1, 1]} : vector<128x128xf32> to vector<1x128xf32>
    %c1_879 = arith.constant 1 : index
    %c2_880 = arith.constant 2 : index
    %c3_881 = arith.constant 3 : index
    %c0_882 = arith.constant 0 : index
    %635 = vector.load %arg20[%c1_879, %c2_880, %c3_881, %c0_882] : memref<2x10x5x256xf32, #tpu.memory_space<vmem>>, vector<1x1x1x128xf32>
    %636 = vector.shape_cast %635 : vector<1x1x1x128xf32> to vector<1x128xf32>
    %637 = vector.shape_cast %634 : vector<1x128xf32> to vector<1x1x1x128xf32>
    tpu.vector_store %arg20[%c1_879, %c2_880, %c3_881, %c0_882], %637 {strides = array<i32>} : memref<2x10x5x256xf32, #tpu.memory_space<vmem>>, vector<1x1x1x128xf32>,
    %638 = vector.extract_strided_slice %325 {offsets = [78, 0], sizes = [1, 128], strides = [1, 1]} : vector<128x128xf32> to vector<1x128xf32>
    %c1_883 = arith.constant 1 : index
    %c2_884 = arith.constant 2 : index
    %c3_885 = arith.constant 3 : index
    %c128_886 = arith.constant 128 : index
    %639 = vector.load %arg20[%c1_883, %c2_884, %c3_885, %c128_886] : memref<2x10x5x256xf32, #tpu.memory_space<vmem>>, vector<1x1x1x128xf32>
    %640 = vector.shape_cast %639 : vector<1x1x1x128xf32> to vector<1x128xf32>
    %641 = vector.shape_cast %638 : vector<1x128xf32> to vector<1x1x1x128xf32>
    tpu.vector_store %arg20[%c1_883, %c2_884, %c3_885, %c128_886], %641 {strides = array<i32>} : memref<2x10x5x256xf32, #tpu.memory_space<vmem>>, vector<1x1x1x128xf32>,
    %642 = vector.extract_strided_slice %325 {offsets = [79, 0], sizes = [1, 128], strides = [1, 1]} : vector<128x128xf32> to vector<1x128xf32>
    %c1_887 = arith.constant 1 : index
    %c2_888 = arith.constant 2 : index
    %c4_889 = arith.constant 4 : index
    %c0_890 = arith.constant 0 : index
    %643 = vector.load %arg20[%c1_887, %c2_888, %c4_889, %c0_890] : memref<2x10x5x256xf32, #tpu.memory_space<vmem>>, vector<1x1x1x128xf32>
    %644 = vector.shape_cast %643 : vector<1x1x1x128xf32> to vector<1x128xf32>
    %645 = vector.shape_cast %642 : vector<1x128xf32> to vector<1x1x1x128xf32>
    tpu.vector_store %arg20[%c1_887, %c2_888, %c4_889, %c0_890], %645 {strides = array<i32>} : memref<2x10x5x256xf32, #tpu.memory_space<vmem>>, vector<1x1x1x128xf32>,
    %646 = vector.extract_strided_slice %325 {offsets = [80, 0], sizes = [1, 128], strides = [1, 1]} : vector<128x128xf32> to vector<1x128xf32>
    %c1_891 = arith.constant 1 : index
    %c3_892 = arith.constant 3 : index
    %c0_893 = arith.constant 0 : index
    %c128_894 = arith.constant 128 : index
    %647 = vector.load %arg20[%c1_891, %c3_892, %c0_893, %c128_894] : memref<2x10x5x256xf32, #tpu.memory_space<vmem>>, vector<1x1x1x128xf32>
    %648 = vector.shape_cast %647 : vector<1x1x1x128xf32> to vector<1x128xf32>
    %649 = vector.shape_cast %646 : vector<1x128xf32> to vector<1x1x1x128xf32>
    tpu.vector_store %arg20[%c1_891, %c3_892, %c0_893, %c128_894], %649 {strides = array<i32>} : memref<2x10x5x256xf32, #tpu.memory_space<vmem>>, vector<1x1x1x128xf32>,
    %650 = vector.extract_strided_slice %325 {offsets = [81, 0], sizes = [1, 128], strides = [1, 1]} : vector<128x128xf32> to vector<1x128xf32>
    %c1_895 = arith.constant 1 : index
    %c3_896 = arith.constant 3 : index
    %c1_897 = arith.constant 1 : index
    %c0_898 = arith.constant 0 : index
    %651 = vector.load %arg20[%c1_895, %c3_896, %c1_897, %c0_898] : memref<2x10x5x256xf32, #tpu.memory_space<vmem>>, vector<1x1x1x128xf32>
    %652 = vector.shape_cast %651 : vector<1x1x1x128xf32> to vector<1x128xf32>
    %653 = vector.shape_cast %650 : vector<1x128xf32> to vector<1x1x1x128xf32>
    tpu.vector_store %arg20[%c1_895, %c3_896, %c1_897, %c0_898], %653 {strides = array<i32>} : memref<2x10x5x256xf32, #tpu.memory_space<vmem>>, vector<1x1x1x128xf32>,
    %654 = vector.extract_strided_slice %325 {offsets = [82, 0], sizes = [1, 128], strides = [1, 1]} : vector<128x128xf32> to vector<1x128xf32>
    %c1_899 = arith.constant 1 : index
    %c3_900 = arith.constant 3 : index
    %c1_901 = arith.constant 1 : index
    %c128_902 = arith.constant 128 : index
    %655 = vector.load %arg20[%c1_899, %c3_900, %c1_901, %c128_902] : memref<2x10x5x256xf32, #tpu.memory_space<vmem>>, vector<1x1x1x128xf32>
    %656 = vector.shape_cast %655 : vector<1x1x1x128xf32> to vector<1x128xf32>
    %657 = vector.shape_cast %654 : vector<1x128xf32> to vector<1x1x1x128xf32>
    tpu.vector_store %arg20[%c1_899, %c3_900, %c1_901, %c128_902], %657 {strides = array<i32>} : memref<2x10x5x256xf32, #tpu.memory_space<vmem>>, vector<1x1x1x128xf32>,
    %658 = vector.extract_strided_slice %325 {offsets = [83, 0], sizes = [1, 128], strides = [1, 1]} : vector<128x128xf32> to vector<1x128xf32>
    %c1_903 = arith.constant 1 : index
    %c3_904 = arith.constant 3 : index
    %c2_905 = arith.constant 2 : index
    %c0_906 = arith.constant 0 : index
    %659 = vector.load %arg20[%c1_903, %c3_904, %c2_905, %c0_906] : memref<2x10x5x256xf32, #tpu.memory_space<vmem>>, vector<1x1x1x128xf32>
    %660 = vector.shape_cast %659 : vector<1x1x1x128xf32> to vector<1x128xf32>
    %661 = vector.shape_cast %658 : vector<1x128xf32> to vector<1x1x1x128xf32>
    tpu.vector_store %arg20[%c1_903, %c3_904, %c2_905, %c0_906], %661 {strides = array<i32>} : memref<2x10x5x256xf32, #tpu.memory_space<vmem>>, vector<1x1x1x128xf32>,
    %662 = vector.extract_strided_slice %325 {offsets = [84, 0], sizes = [1, 128], strides = [1, 1]} : vector<128x128xf32> to vector<1x128xf32>
    %c1_907 = arith.constant 1 : index
    %c3_908 = arith.constant 3 : index
    %c2_909 = arith.constant 2 : index
    %c128_910 = arith.constant 128 : index
    %663 = vector.load %arg20[%c1_907, %c3_908, %c2_909, %c128_910] : memref<2x10x5x256xf32, #tpu.memory_space<vmem>>, vector<1x1x1x128xf32>
    %664 = vector.shape_cast %663 : vector<1x1x1x128xf32> to vector<1x128xf32>
    %665 = vector.shape_cast %662 : vector<1x128xf32> to vector<1x1x1x128xf32>
    tpu.vector_store %arg20[%c1_907, %c3_908, %c2_909, %c128_910], %665 {strides = array<i32>} : memref<2x10x5x256xf32, #tpu.memory_space<vmem>>, vector<1x1x1x128xf32>,
    %666 = vector.extract_strided_slice %325 {offsets = [85, 0], sizes = [1, 128], strides = [1, 1]} : vector<128x128xf32> to vector<1x128xf32>
    %c1_911 = arith.constant 1 : index
    %c3_912 = arith.constant 3 : index
    %c3_913 = arith.constant 3 : index
    %c0_914 = arith.constant 0 : index
    %667 = vector.load %arg20[%c1_911, %c3_912, %c3_913, %c0_914] : memref<2x10x5x256xf32, #tpu.memory_space<vmem>>, vector<1x1x1x128xf32>
    %668 = vector.shape_cast %667 : vector<1x1x1x128xf32> to vector<1x128xf32>
    %669 = vector.shape_cast %666 : vector<1x128xf32> to vector<1x1x1x128xf32>
    tpu.vector_store %arg20[%c1_911, %c3_912, %c3_913, %c0_914], %669 {strides = array<i32>} : memref<2x10x5x256xf32, #tpu.memory_space<vmem>>, vector<1x1x1x128xf32>,
    %670 = vector.extract_strided_slice %325 {offsets = [86, 0], sizes = [1, 128], strides = [1, 1]} : vector<128x128xf32> to vector<1x128xf32>
    %c1_915 = arith.constant 1 : index
    %c3_916 = arith.constant 3 : index
    %c3_917 = arith.constant 3 : index
    %c128_918 = arith.constant 128 : index
    %671 = vector.load %arg20[%c1_915, %c3_916, %c3_917, %c128_918] : memref<2x10x5x256xf32, #tpu.memory_space<vmem>>, vector<1x1x1x128xf32>
    %672 = vector.shape_cast %671 : vector<1x1x1x128xf32> to vector<1x128xf32>
    %673 = vector.shape_cast %670 : vector<1x128xf32> to vector<1x1x1x128xf32>
    tpu.vector_store %arg20[%c1_915, %c3_916, %c3_917, %c128_918], %673 {strides = array<i32>} : memref<2x10x5x256xf32, #tpu.memory_space<vmem>>, vector<1x1x1x128xf32>,
    %674 = vector.extract_strided_slice %325 {offsets = [87, 0], sizes = [1, 128], strides = [1, 1]} : vector<128x128xf32> to vector<1x128xf32>
    %c1_919 = arith.constant 1 : index
    %c3_920 = arith.constant 3 : index
    %c4_921 = arith.constant 4 : index
    %c0_922 = arith.constant 0 : index
    %675 = vector.load %arg20[%c1_919, %c3_920, %c4_921, %c0_922] : memref<2x10x5x256xf32, #tpu.memory_space<vmem>>, vector<1x1x1x128xf32>
    %676 = vector.shape_cast %675 : vector<1x1x1x128xf32> to vector<1x128xf32>
    %677 = vector.shape_cast %674 : vector<1x128xf32> to vector<1x1x1x128xf32>
    tpu.vector_store %arg20[%c1_919, %c3_920, %c4_921, %c0_922], %677 {strides = array<i32>} : memref<2x10x5x256xf32, #tpu.memory_space<vmem>>, vector<1x1x1x128xf32>,
    %678 = vector.extract_strided_slice %325 {offsets = [88, 0], sizes = [1, 128], strides = [1, 1]} : vector<128x128xf32> to vector<1x128xf32>
    %c1_923 = arith.constant 1 : index
    %c4_924 = arith.constant 4 : index
    %c0_925 = arith.constant 0 : index
    %c128_926 = arith.constant 128 : index
    %679 = vector.load %arg20[%c1_923, %c4_924, %c0_925, %c128_926] : memref<2x10x5x256xf32, #tpu.memory_space<vmem>>, vector<1x1x1x128xf32>
    %680 = vector.shape_cast %679 : vector<1x1x1x128xf32> to vector<1x128xf32>
    %681 = vector.shape_cast %678 : vector<1x128xf32> to vector<1x1x1x128xf32>
    tpu.vector_store %arg20[%c1_923, %c4_924, %c0_925, %c128_926], %681 {strides = array<i32>} : memref<2x10x5x256xf32, #tpu.memory_space<vmem>>, vector<1x1x1x128xf32>,
    %682 = vector.extract_strided_slice %325 {offsets = [89, 0], sizes = [1, 128], strides = [1, 1]} : vector<128x128xf32> to vector<1x128xf32>
    %c1_927 = arith.constant 1 : index
    %c4_928 = arith.constant 4 : index
    %c1_929 = arith.constant 1 : index
    %c0_930 = arith.constant 0 : index
    %683 = vector.load %arg20[%c1_927, %c4_928, %c1_929, %c0_930] : memref<2x10x5x256xf32, #tpu.memory_space<vmem>>, vector<1x1x1x128xf32>
    %684 = vector.shape_cast %683 : vector<1x1x1x128xf32> to vector<1x128xf32>
    %685 = vector.shape_cast %682 : vector<1x128xf32> to vector<1x1x1x128xf32>
    tpu.vector_store %arg20[%c1_927, %c4_928, %c1_929, %c0_930], %685 {strides = array<i32>} : memref<2x10x5x256xf32, #tpu.memory_space<vmem>>, vector<1x1x1x128xf32>,
    %686 = vector.extract_strided_slice %325 {offsets = [90, 0], sizes = [1, 128], strides = [1, 1]} : vector<128x128xf32> to vector<1x128xf32>
    %c1_931 = arith.constant 1 : index
    %c4_932 = arith.constant 4 : index
    %c1_933 = arith.constant 1 : index
    %c128_934 = arith.constant 128 : index
    %687 = vector.load %arg20[%c1_931, %c4_932, %c1_933, %c128_934] : memref<2x10x5x256xf32, #tpu.memory_space<vmem>>, vector<1x1x1x128xf32>
    %688 = vector.shape_cast %687 : vector<1x1x1x128xf32> to vector<1x128xf32>
    %689 = vector.shape_cast %686 : vector<1x128xf32> to vector<1x1x1x128xf32>
    tpu.vector_store %arg20[%c1_931, %c4_932, %c1_933, %c128_934], %689 {strides = array<i32>} : memref<2x10x5x256xf32, #tpu.memory_space<vmem>>, vector<1x1x1x128xf32>,
    %690 = vector.extract_strided_slice %325 {offsets = [91, 0], sizes = [1, 128], strides = [1, 1]} : vector<128x128xf32> to vector<1x128xf32>
    %c1_935 = arith.constant 1 : index
    %c4_936 = arith.constant 4 : index
    %c2_937 = arith.constant 2 : index
    %c0_938 = arith.constant 0 : index
    %691 = vector.load %arg20[%c1_935, %c4_936, %c2_937, %c0_938] : memref<2x10x5x256xf32, #tpu.memory_space<vmem>>, vector<1x1x1x128xf32>
    %692 = vector.shape_cast %691 : vector<1x1x1x128xf32> to vector<1x128xf32>
    %693 = vector.shape_cast %690 : vector<1x128xf32> to vector<1x1x1x128xf32>
    tpu.vector_store %arg20[%c1_935, %c4_936, %c2_937, %c0_938], %693 {strides = array<i32>} : memref<2x10x5x256xf32, #tpu.memory_space<vmem>>, vector<1x1x1x128xf32>,
    %694 = vector.extract_strided_slice %325 {offsets = [92, 0], sizes = [1, 128], strides = [1, 1]} : vector<128x128xf32> to vector<1x128xf32>
    %c1_939 = arith.constant 1 : index
    %c4_940 = arith.constant 4 : index
    %c2_941 = arith.constant 2 : index
    %c128_942 = arith.constant 128 : index
    %695 = vector.load %arg20[%c1_939, %c4_940, %c2_941, %c128_942] : memref<2x10x5x256xf32, #tpu.memory_space<vmem>>, vector<1x1x1x128xf32>
    %696 = vector.shape_cast %695 : vector<1x1x1x128xf32> to vector<1x128xf32>
    %697 = vector.shape_cast %694 : vector<1x128xf32> to vector<1x1x1x128xf32>
    tpu.vector_store %arg20[%c1_939, %c4_940, %c2_941, %c128_942], %697 {strides = array<i32>} : memref<2x10x5x256xf32, #tpu.memory_space<vmem>>, vector<1x1x1x128xf32>,
    %698 = vector.extract_strided_slice %325 {offsets = [93, 0], sizes = [1, 128], strides = [1, 1]} : vector<128x128xf32> to vector<1x128xf32>
    %c1_943 = arith.constant 1 : index
    %c4_944 = arith.constant 4 : index
    %c3_945 = arith.constant 3 : index
    %c0_946 = arith.constant 0 : index
    %699 = vector.load %arg20[%c1_943, %c4_944, %c3_945, %c0_946] : memref<2x10x5x256xf32, #tpu.memory_space<vmem>>, vector<1x1x1x128xf32>
    %700 = vector.shape_cast %699 : vector<1x1x1x128xf32> to vector<1x128xf32>
    %701 = vector.shape_cast %698 : vector<1x128xf32> to vector<1x1x1x128xf32>
    tpu.vector_store %arg20[%c1_943, %c4_944, %c3_945, %c0_946], %701 {strides = array<i32>} : memref<2x10x5x256xf32, #tpu.memory_space<vmem>>, vector<1x1x1x128xf32>,
    %702 = vector.extract_strided_slice %325 {offsets = [94, 0], sizes = [1, 128], strides = [1, 1]} : vector<128x128xf32> to vector<1x128xf32>
    %c1_947 = arith.constant 1 : index
    %c4_948 = arith.constant 4 : index
    %c3_949 = arith.constant 3 : index
    %c128_950 = arith.constant 128 : index
    %703 = vector.load %arg20[%c1_947, %c4_948, %c3_949, %c128_950] : memref<2x10x5x256xf32, #tpu.memory_space<vmem>>, vector<1x1x1x128xf32>
    %704 = vector.shape_cast %703 : vector<1x1x1x128xf32> to vector<1x128xf32>
    %705 = vector.shape_cast %702 : vector<1x128xf32> to vector<1x1x1x128xf32>
    tpu.vector_store %arg20[%c1_947, %c4_948, %c3_949, %c128_950], %705 {strides = array<i32>} : memref<2x10x5x256xf32, #tpu.memory_space<vmem>>, vector<1x1x1x128xf32>,
    %706 = vector.extract_strided_slice %325 {offsets = [95, 0], sizes = [1, 128], strides = [1, 1]} : vector<128x128xf32> to vector<1x128xf32>
    %c1_951 = arith.constant 1 : index
    %c4_952 = arith.constant 4 : index
    %c4_953 = arith.constant 4 : index
    %c0_954 = arith.constant 0 : index
    %707 = vector.load %arg20[%c1_951, %c4_952, %c4_953, %c0_954] : memref<2x10x5x256xf32, #tpu.memory_space<vmem>>, vector<1x1x1x128xf32>
    %708 = vector.shape_cast %707 : vector<1x1x1x128xf32> to vector<1x128xf32>
    %709 = vector.shape_cast %706 : vector<1x128xf32> to vector<1x1x1x128xf32>
    tpu.vector_store %arg20[%c1_951, %c4_952, %c4_953, %c0_954], %709 {strides = array<i32>} : memref<2x10x5x256xf32, #tpu.memory_space<vmem>>, vector<1x1x1x128xf32>,
    %710 = vector.extract_strided_slice %325 {offsets = [96, 0], sizes = [1, 128], strides = [1, 1]} : vector<128x128xf32> to vector<1x128xf32>
    %c1_955 = arith.constant 1 : index
    %c5_956 = arith.constant 5 : index
    %c0_957 = arith.constant 0 : index
    %c128_958 = arith.constant 128 : index
    %711 = vector.load %arg20[%c1_955, %c5_956, %c0_957, %c128_958] : memref<2x10x5x256xf32, #tpu.memory_space<vmem>>, vector<1x1x1x128xf32>
    %712 = vector.shape_cast %711 : vector<1x1x1x128xf32> to vector<1x128xf32>
    %713 = vector.shape_cast %710 : vector<1x128xf32> to vector<1x1x1x128xf32>
    tpu.vector_store %arg20[%c1_955, %c5_956, %c0_957, %c128_958], %713 {strides = array<i32>} : memref<2x10x5x256xf32, #tpu.memory_space<vmem>>, vector<1x1x1x128xf32>,
    %714 = vector.extract_strided_slice %325 {offsets = [97, 0], sizes = [1, 128], strides = [1, 1]} : vector<128x128xf32> to vector<1x128xf32>
    %c1_959 = arith.constant 1 : index
    %c5_960 = arith.constant 5 : index
    %c1_961 = arith.constant 1 : index
    %c0_962 = arith.constant 0 : index
    %715 = vector.load %arg20[%c1_959, %c5_960, %c1_961, %c0_962] : memref<2x10x5x256xf32, #tpu.memory_space<vmem>>, vector<1x1x1x128xf32>
    %716 = vector.shape_cast %715 : vector<1x1x1x128xf32> to vector<1x128xf32>
    %717 = vector.shape_cast %714 : vector<1x128xf32> to vector<1x1x1x128xf32>
    tpu.vector_store %arg20[%c1_959, %c5_960, %c1_961, %c0_962], %717 {strides = array<i32>} : memref<2x10x5x256xf32, #tpu.memory_space<vmem>>, vector<1x1x1x128xf32>,
    %718 = vector.extract_strided_slice %325 {offsets = [98, 0], sizes = [1, 128], strides = [1, 1]} : vector<128x128xf32> to vector<1x128xf32>
    %c1_963 = arith.constant 1 : index
    %c5_964 = arith.constant 5 : index
    %c1_965 = arith.constant 1 : index
    %c128_966 = arith.constant 128 : index
    %719 = vector.load %arg20[%c1_963, %c5_964, %c1_965, %c128_966] : memref<2x10x5x256xf32, #tpu.memory_space<vmem>>, vector<1x1x1x128xf32>
    %720 = vector.shape_cast %719 : vector<1x1x1x128xf32> to vector<1x128xf32>
    %721 = vector.shape_cast %718 : vector<1x128xf32> to vector<1x1x1x128xf32>
    tpu.vector_store %arg20[%c1_963, %c5_964, %c1_965, %c128_966], %721 {strides = array<i32>} : memref<2x10x5x256xf32, #tpu.memory_space<vmem>>, vector<1x1x1x128xf32>,
    %722 = vector.extract_strided_slice %325 {offsets = [99, 0], sizes = [1, 128], strides = [1, 1]} : vector<128x128xf32> to vector<1x128xf32>
    %c1_967 = arith.constant 1 : index
    %c5_968 = arith.constant 5 : index
    %c2_969 = arith.constant 2 : index
    %c0_970 = arith.constant 0 : index
    %723 = vector.load %arg20[%c1_967, %c5_968, %c2_969, %c0_970] : memref<2x10x5x256xf32, #tpu.memory_space<vmem>>, vector<1x1x1x128xf32>
    %724 = vector.shape_cast %723 : vector<1x1x1x128xf32> to vector<1x128xf32>
    %725 = vector.shape_cast %722 : vector<1x128xf32> to vector<1x1x1x128xf32>
    tpu.vector_store %arg20[%c1_967, %c5_968, %c2_969, %c0_970], %725 {strides = array<i32>} : memref<2x10x5x256xf32, #tpu.memory_space<vmem>>, vector<1x1x1x128xf32>,
    %726 = vector.extract_strided_slice %325 {offsets = [100, 0], sizes = [1, 128], strides = [1, 1]} : vector<128x128xf32> to vector<1x128xf32>
    %c1_971 = arith.constant 1 : index
    %c5_972 = arith.constant 5 : index
    %c2_973 = arith.constant 2 : index
    %c128_974 = arith.constant 128 : index
    %727 = vector.load %arg20[%c1_971, %c5_972, %c2_973, %c128_974] : memref<2x10x5x256xf32, #tpu.memory_space<vmem>>, vector<1x1x1x128xf32>
    %728 = vector.shape_cast %727 : vector<1x1x1x128xf32> to vector<1x128xf32>
    %729 = vector.shape_cast %726 : vector<1x128xf32> to vector<1x1x1x128xf32>
    tpu.vector_store %arg20[%c1_971, %c5_972, %c2_973, %c128_974], %729 {strides = array<i32>} : memref<2x10x5x256xf32, #tpu.memory_space<vmem>>, vector<1x1x1x128xf32>,
    %730 = vector.extract_strided_slice %325 {offsets = [101, 0], sizes = [1, 128], strides = [1, 1]} : vector<128x128xf32> to vector<1x128xf32>
    %c1_975 = arith.constant 1 : index
    %c5_976 = arith.constant 5 : index
    %c3_977 = arith.constant 3 : index
    %c0_978 = arith.constant 0 : index
    %731 = vector.load %arg20[%c1_975, %c5_976, %c3_977, %c0_978] : memref<2x10x5x256xf32, #tpu.memory_space<vmem>>, vector<1x1x1x128xf32>
    %732 = vector.shape_cast %731 : vector<1x1x1x128xf32> to vector<1x128xf32>
    %733 = vector.shape_cast %730 : vector<1x128xf32> to vector<1x1x1x128xf32>
    tpu.vector_store %arg20[%c1_975, %c5_976, %c3_977, %c0_978], %733 {strides = array<i32>} : memref<2x10x5x256xf32, #tpu.memory_space<vmem>>, vector<1x1x1x128xf32>,
    %734 = vector.extract_strided_slice %325 {offsets = [102, 0], sizes = [1, 128], strides = [1, 1]} : vector<128x128xf32> to vector<1x128xf32>
    %c1_979 = arith.constant 1 : index
    %c5_980 = arith.constant 5 : index
    %c3_981 = arith.constant 3 : index
    %c128_982 = arith.constant 128 : index
    %735 = vector.load %arg20[%c1_979, %c5_980, %c3_981, %c128_982] : memref<2x10x5x256xf32, #tpu.memory_space<vmem>>, vector<1x1x1x128xf32>
    %736 = vector.shape_cast %735 : vector<1x1x1x128xf32> to vector<1x128xf32>
    %737 = vector.shape_cast %734 : vector<1x128xf32> to vector<1x1x1x128xf32>
    tpu.vector_store %arg20[%c1_979, %c5_980, %c3_981, %c128_982], %737 {strides = array<i32>} : memref<2x10x5x256xf32, #tpu.memory_space<vmem>>, vector<1x1x1x128xf32>,
    %738 = vector.extract_strided_slice %325 {offsets = [103, 0], sizes = [1, 128], strides = [1, 1]} : vector<128x128xf32> to vector<1x128xf32>
    %c1_983 = arith.constant 1 : index
    %c5_984 = arith.constant 5 : index
    %c4_985 = arith.constant 4 : index
    %c0_986 = arith.constant 0 : index
    %739 = vector.load %arg20[%c1_983, %c5_984, %c4_985, %c0_986] : memref<2x10x5x256xf32, #tpu.memory_space<vmem>>, vector<1x1x1x128xf32>
    %740 = vector.shape_cast %739 : vector<1x1x1x128xf32> to vector<1x128xf32>
    %741 = vector.shape_cast %738 : vector<1x128xf32> to vector<1x1x1x128xf32>
    tpu.vector_store %arg20[%c1_983, %c5_984, %c4_985, %c0_986], %741 {strides = array<i32>} : memref<2x10x5x256xf32, #tpu.memory_space<vmem>>, vector<1x1x1x128xf32>,
    %742 = vector.extract_strided_slice %325 {offsets = [104, 0], sizes = [1, 128], strides = [1, 1]} : vector<128x128xf32> to vector<1x128xf32>
    %c1_987 = arith.constant 1 : index
    %c6_988 = arith.constant 6 : index
    %c0_989 = arith.constant 0 : index
    %c128_990 = arith.constant 128 : index
    %743 = vector.load %arg20[%c1_987, %c6_988, %c0_989, %c128_990] : memref<2x10x5x256xf32, #tpu.memory_space<vmem>>, vector<1x1x1x128xf32>
    %744 = vector.shape_cast %743 : vector<1x1x1x128xf32> to vector<1x128xf32>
    %745 = vector.shape_cast %742 : vector<1x128xf32> to vector<1x1x1x128xf32>
    tpu.vector_store %arg20[%c1_987, %c6_988, %c0_989, %c128_990], %745 {strides = array<i32>} : memref<2x10x5x256xf32, #tpu.memory_space<vmem>>, vector<1x1x1x128xf32>,
    %746 = vector.extract_strided_slice %325 {offsets = [105, 0], sizes = [1, 128], strides = [1, 1]} : vector<128x128xf32> to vector<1x128xf32>
    %c1_991 = arith.constant 1 : index
    %c6_992 = arith.constant 6 : index
    %c1_993 = arith.constant 1 : index
    %c0_994 = arith.constant 0 : index
    %747 = vector.load %arg20[%c1_991, %c6_992, %c1_993, %c0_994] : memref<2x10x5x256xf32, #tpu.memory_space<vmem>>, vector<1x1x1x128xf32>
    %748 = vector.shape_cast %747 : vector<1x1x1x128xf32> to vector<1x128xf32>
    %749 = vector.shape_cast %746 : vector<1x128xf32> to vector<1x1x1x128xf32>
    tpu.vector_store %arg20[%c1_991, %c6_992, %c1_993, %c0_994], %749 {strides = array<i32>} : memref<2x10x5x256xf32, #tpu.memory_space<vmem>>, vector<1x1x1x128xf32>,
    %750 = vector.extract_strided_slice %325 {offsets = [106, 0], sizes = [1, 128], strides = [1, 1]} : vector<128x128xf32> to vector<1x128xf32>
    %c1_995 = arith.constant 1 : index
    %c6_996 = arith.constant 6 : index
    %c1_997 = arith.constant 1 : index
    %c128_998 = arith.constant 128 : index
    %751 = vector.load %arg20[%c1_995, %c6_996, %c1_997, %c128_998] : memref<2x10x5x256xf32, #tpu.memory_space<vmem>>, vector<1x1x1x128xf32>
    %752 = vector.shape_cast %751 : vector<1x1x1x128xf32> to vector<1x128xf32>
    %753 = vector.shape_cast %750 : vector<1x128xf32> to vector<1x1x1x128xf32>
    tpu.vector_store %arg20[%c1_995, %c6_996, %c1_997, %c128_998], %753 {strides = array<i32>} : memref<2x10x5x256xf32, #tpu.memory_space<vmem>>, vector<1x1x1x128xf32>,
    %754 = vector.extract_strided_slice %325 {offsets = [107, 0], sizes = [1, 128], strides = [1, 1]} : vector<128x128xf32> to vector<1x128xf32>
    %c1_999 = arith.constant 1 : index
    %c6_1000 = arith.constant 6 : index
    %c2_1001 = arith.constant 2 : index
    %c0_1002 = arith.constant 0 : index
    %755 = vector.load %arg20[%c1_999, %c6_1000, %c2_1001, %c0_1002] : memref<2x10x5x256xf32, #tpu.memory_space<vmem>>, vector<1x1x1x128xf32>
    %756 = vector.shape_cast %755 : vector<1x1x1x128xf32> to vector<1x128xf32>
    %757 = vector.shape_cast %754 : vector<1x128xf32> to vector<1x1x1x128xf32>
    tpu.vector_store %arg20[%c1_999, %c6_1000, %c2_1001, %c0_1002], %757 {strides = array<i32>} : memref<2x10x5x256xf32, #tpu.memory_space<vmem>>, vector<1x1x1x128xf32>,
    %758 = vector.extract_strided_slice %325 {offsets = [108, 0], sizes = [1, 128], strides = [1, 1]} : vector<128x128xf32> to vector<1x128xf32>
    %c1_1003 = arith.constant 1 : index
    %c6_1004 = arith.constant 6 : index
    %c2_1005 = arith.constant 2 : index
    %c128_1006 = arith.constant 128 : index
    %759 = vector.load %arg20[%c1_1003, %c6_1004, %c2_1005, %c128_1006] : memref<2x10x5x256xf32, #tpu.memory_space<vmem>>, vector<1x1x1x128xf32>
    %760 = vector.shape_cast %759 : vector<1x1x1x128xf32> to vector<1x128xf32>
    %761 = vector.shape_cast %758 : vector<1x128xf32> to vector<1x1x1x128xf32>
    tpu.vector_store %arg20[%c1_1003, %c6_1004, %c2_1005, %c128_1006], %761 {strides = array<i32>} : memref<2x10x5x256xf32, #tpu.memory_space<vmem>>, vector<1x1x1x128xf32>,
    %762 = vector.extract_strided_slice %325 {offsets = [109, 0], sizes = [1, 128], strides = [1, 1]} : vector<128x128xf32> to vector<1x128xf32>
    %c1_1007 = arith.constant 1 : index
    %c6_1008 = arith.constant 6 : index
    %c3_1009 = arith.constant 3 : index
    %c0_1010 = arith.constant 0 : index
    %763 = vector.load %arg20[%c1_1007, %c6_1008, %c3_1009, %c0_1010] : memref<2x10x5x256xf32, #tpu.memory_space<vmem>>, vector<1x1x1x128xf32>
    %764 = vector.shape_cast %763 : vector<1x1x1x128xf32> to vector<1x128xf32>
    %765 = vector.shape_cast %762 : vector<1x128xf32> to vector<1x1x1x128xf32>
    tpu.vector_store %arg20[%c1_1007, %c6_1008, %c3_1009, %c0_1010], %765 {strides = array<i32>} : memref<2x10x5x256xf32, #tpu.memory_space<vmem>>, vector<1x1x1x128xf32>,
    %766 = vector.extract_strided_slice %325 {offsets = [110, 0], sizes = [1, 128], strides = [1, 1]} : vector<128x128xf32> to vector<1x128xf32>
    %c1_1011 = arith.constant 1 : index
    %c6_1012 = arith.constant 6 : index
    %c3_1013 = arith.constant 3 : index
    %c128_1014 = arith.constant 128 : index
    %767 = vector.load %arg20[%c1_1011, %c6_1012, %c3_1013, %c128_1014] : memref<2x10x5x256xf32, #tpu.memory_space<vmem>>, vector<1x1x1x128xf32>
    %768 = vector.shape_cast %767 : vector<1x1x1x128xf32> to vector<1x128xf32>
    %769 = vector.shape_cast %766 : vector<1x128xf32> to vector<1x1x1x128xf32>
    tpu.vector_store %arg20[%c1_1011, %c6_1012, %c3_1013, %c128_1014], %769 {strides = array<i32>} : memref<2x10x5x256xf32, #tpu.memory_space<vmem>>, vector<1x1x1x128xf32>,
    %770 = vector.extract_strided_slice %325 {offsets = [111, 0], sizes = [1, 128], strides = [1, 1]} : vector<128x128xf32> to vector<1x128xf32>
    %c1_1015 = arith.constant 1 : index
    %c6_1016 = arith.constant 6 : index
    %c4_1017 = arith.constant 4 : index
    %c0_1018 = arith.constant 0 : index
    %771 = vector.load %arg20[%c1_1015, %c6_1016, %c4_1017, %c0_1018] : memref<2x10x5x256xf32, #tpu.memory_space<vmem>>, vector<1x1x1x128xf32>
    %772 = vector.shape_cast %771 : vector<1x1x1x128xf32> to vector<1x128xf32>
    %773 = vector.shape_cast %770 : vector<1x128xf32> to vector<1x1x1x128xf32>
    tpu.vector_store %arg20[%c1_1015, %c6_1016, %c4_1017, %c0_1018], %773 {strides = array<i32>} : memref<2x10x5x256xf32, #tpu.memory_space<vmem>>, vector<1x1x1x128xf32>,
    %774 = vector.extract_strided_slice %325 {offsets = [112, 0], sizes = [1, 128], strides = [1, 1]} : vector<128x128xf32> to vector<1x128xf32>
    %c1_1019 = arith.constant 1 : index
    %c7_1020 = arith.constant 7 : index
    %c0_1021 = arith.constant 0 : index
    %c128_1022 = arith.constant 128 : index
    %775 = vector.load %arg20[%c1_1019, %c7_1020, %c0_1021, %c128_1022] : memref<2x10x5x256xf32, #tpu.memory_space<vmem>>, vector<1x1x1x128xf32>
    %776 = vector.shape_cast %775 : vector<1x1x1x128xf32> to vector<1x128xf32>
    %777 = vector.shape_cast %774 : vector<1x128xf32> to vector<1x1x1x128xf32>
    tpu.vector_store %arg20[%c1_1019, %c7_1020, %c0_1021, %c128_1022], %777 {strides = array<i32>} : memref<2x10x5x256xf32, #tpu.memory_space<vmem>>, vector<1x1x1x128xf32>,
    %778 = vector.extract_strided_slice %325 {offsets = [113, 0], sizes = [1, 128], strides = [1, 1]} : vector<128x128xf32> to vector<1x128xf32>
    %c1_1023 = arith.constant 1 : index
    %c7_1024 = arith.constant 7 : index
    %c1_1025 = arith.constant 1 : index
    %c0_1026 = arith.constant 0 : index
    %779 = vector.load %arg20[%c1_1023, %c7_1024, %c1_1025, %c0_1026] : memref<2x10x5x256xf32, #tpu.memory_space<vmem>>, vector<1x1x1x128xf32>
    %780 = vector.shape_cast %779 : vector<1x1x1x128xf32> to vector<1x128xf32>
    %781 = vector.shape_cast %778 : vector<1x128xf32> to vector<1x1x1x128xf32>
    tpu.vector_store %arg20[%c1_1023, %c7_1024, %c1_1025, %c0_1026], %781 {strides = array<i32>} : memref<2x10x5x256xf32, #tpu.memory_space<vmem>>, vector<1x1x1x128xf32>,
    %782 = vector.extract_strided_slice %325 {offsets = [114, 0], sizes = [1, 128], strides = [1, 1]} : vector<128x128xf32> to vector<1x128xf32>
    %c1_1027 = arith.constant 1 : index
    %c7_1028 = arith.constant 7 : index
    %c1_1029 = arith.constant 1 : index
    %c128_1030 = arith.constant 128 : index
    %783 = vector.load %arg20[%c1_1027, %c7_1028, %c1_1029, %c128_1030] : memref<2x10x5x256xf32, #tpu.memory_space<vmem>>, vector<1x1x1x128xf32>
    %784 = vector.shape_cast %783 : vector<1x1x1x128xf32> to vector<1x128xf32>
    %785 = vector.shape_cast %782 : vector<1x128xf32> to vector<1x1x1x128xf32>
    tpu.vector_store %arg20[%c1_1027, %c7_1028, %c1_1029, %c128_1030], %785 {strides = array<i32>} : memref<2x10x5x256xf32, #tpu.memory_space<vmem>>, vector<1x1x1x128xf32>,
    %786 = vector.extract_strided_slice %325 {offsets = [115, 0], sizes = [1, 128], strides = [1, 1]} : vector<128x128xf32> to vector<1x128xf32>
    %c1_1031 = arith.constant 1 : index
    %c7_1032 = arith.constant 7 : index
    %c2_1033 = arith.constant 2 : index
    %c0_1034 = arith.constant 0 : index
    %787 = vector.load %arg20[%c1_1031, %c7_1032, %c2_1033, %c0_1034] : memref<2x10x5x256xf32, #tpu.memory_space<vmem>>, vector<1x1x1x128xf32>
    %788 = vector.shape_cast %787 : vector<1x1x1x128xf32> to vector<1x128xf32>
    %789 = vector.shape_cast %786 : vector<1x128xf32> to vector<1x1x1x128xf32>
    tpu.vector_store %arg20[%c1_1031, %c7_1032, %c2_1033, %c0_1034], %789 {strides = array<i32>} : memref<2x10x5x256xf32, #tpu.memory_space<vmem>>, vector<1x1x1x128xf32>,
    %790 = vector.extract_strided_slice %325 {offsets = [116, 0], sizes = [1, 128], strides = [1, 1]} : vector<128x128xf32> to vector<1x128xf32>
    %c1_1035 = arith.constant 1 : index
    %c7_1036 = arith.constant 7 : index
    %c2_1037 = arith.constant 2 : index
    %c128_1038 = arith.constant 128 : index
    %791 = vector.load %arg20[%c1_1035, %c7_1036, %c2_1037, %c128_1038] : memref<2x10x5x256xf32, #tpu.memory_space<vmem>>, vector<1x1x1x128xf32>
    %792 = vector.shape_cast %791 : vector<1x1x1x128xf32> to vector<1x128xf32>
    %793 = vector.shape_cast %790 : vector<1x128xf32> to vector<1x1x1x128xf32>
    tpu.vector_store %arg20[%c1_1035, %c7_1036, %c2_1037, %c128_1038], %793 {strides = array<i32>} : memref<2x10x5x256xf32, #tpu.memory_space<vmem>>, vector<1x1x1x128xf32>,
    %794 = vector.extract_strided_slice %325 {offsets = [117, 0], sizes = [1, 128], strides = [1, 1]} : vector<128x128xf32> to vector<1x128xf32>
    %c1_1039 = arith.constant 1 : index
    %c7_1040 = arith.constant 7 : index
    %c3_1041 = arith.constant 3 : index
    %c0_1042 = arith.constant 0 : index
    %795 = vector.load %arg20[%c1_1039, %c7_1040, %c3_1041, %c0_1042] : memref<2x10x5x256xf32, #tpu.memory_space<vmem>>, vector<1x1x1x128xf32>
    %796 = vector.shape_cast %795 : vector<1x1x1x128xf32> to vector<1x128xf32>
    %797 = vector.shape_cast %794 : vector<1x128xf32> to vector<1x1x1x128xf32>
    tpu.vector_store %arg20[%c1_1039, %c7_1040, %c3_1041, %c0_1042], %797 {strides = array<i32>} : memref<2x10x5x256xf32, #tpu.memory_space<vmem>>, vector<1x1x1x128xf32>,
    %798 = vector.extract_strided_slice %325 {offsets = [118, 0], sizes = [1, 128], strides = [1, 1]} : vector<128x128xf32> to vector<1x128xf32>
    %c1_1043 = arith.constant 1 : index
    %c7_1044 = arith.constant 7 : index
    %c3_1045 = arith.constant 3 : index
    %c128_1046 = arith.constant 128 : index
    %799 = vector.load %arg20[%c1_1043, %c7_1044, %c3_1045, %c128_1046] : memref<2x10x5x256xf32, #tpu.memory_space<vmem>>, vector<1x1x1x128xf32>
    %800 = vector.shape_cast %799 : vector<1x1x1x128xf32> to vector<1x128xf32>
    %801 = vector.shape_cast %798 : vector<1x128xf32> to vector<1x1x1x128xf32>
    tpu.vector_store %arg20[%c1_1043, %c7_1044, %c3_1045, %c128_1046], %801 {strides = array<i32>} : memref<2x10x5x256xf32, #tpu.memory_space<vmem>>, vector<1x1x1x128xf32>,
    %802 = vector.extract_strided_slice %325 {offsets = [119, 0], sizes = [1, 128], strides = [1, 1]} : vector<128x128xf32> to vector<1x128xf32>
    %c1_1047 = arith.constant 1 : index
    %c7_1048 = arith.constant 7 : index
    %c4_1049 = arith.constant 4 : index
    %c0_1050 = arith.constant 0 : index
    %803 = vector.load %arg20[%c1_1047, %c7_1048, %c4_1049, %c0_1050] : memref<2x10x5x256xf32, #tpu.memory_space<vmem>>, vector<1x1x1x128xf32>
    %804 = vector.shape_cast %803 : vector<1x1x1x128xf32> to vector<1x128xf32>
    %805 = vector.shape_cast %802 : vector<1x128xf32> to vector<1x1x1x128xf32>
    tpu.vector_store %arg20[%c1_1047, %c7_1048, %c4_1049, %c0_1050], %805 {strides = array<i32>} : memref<2x10x5x256xf32, #tpu.memory_space<vmem>>, vector<1x1x1x128xf32>,
    %806 = vector.extract_strided_slice %325 {offsets = [120, 0], sizes = [1, 128], strides = [1, 1]} : vector<128x128xf32> to vector<1x128xf32>
    %c1_1051 = arith.constant 1 : index
    %c8_1052 = arith.constant 8 : index
    %c0_1053 = arith.constant 0 : index
    %c128_1054 = arith.constant 128 : index
    %807 = vector.load %arg20[%c1_1051, %c8_1052, %c0_1053, %c128_1054] : memref<2x10x5x256xf32, #tpu.memory_space<vmem>>, vector<1x1x1x128xf32>
    %808 = vector.shape_cast %807 : vector<1x1x1x128xf32> to vector<1x128xf32>
    %809 = vector.shape_cast %806 : vector<1x128xf32> to vector<1x1x1x128xf32>
    tpu.vector_store %arg20[%c1_1051, %c8_1052, %c0_1053, %c128_1054], %809 {strides = array<i32>} : memref<2x10x5x256xf32, #tpu.memory_space<vmem>>, vector<1x1x1x128xf32>,
    %810 = vector.extract_strided_slice %325 {offsets = [121, 0], sizes = [1, 128], strides = [1, 1]} : vector<128x128xf32> to vector<1x128xf32>
    %c1_1055 = arith.constant 1 : index
    %c8_1056 = arith.constant 8 : index
    %c1_1057 = arith.constant 1 : index
    %c0_1058 = arith.constant 0 : index
    %811 = vector.load %arg20[%c1_1055, %c8_1056, %c1_1057, %c0_1058] : memref<2x10x5x256xf32, #tpu.memory_space<vmem>>, vector<1x1x1x128xf32>
    %812 = vector.shape_cast %811 : vector<1x1x1x128xf32> to vector<1x128xf32>
    %813 = vector.shape_cast %810 : vector<1x128xf32> to vector<1x1x1x128xf32>
    tpu.vector_store %arg20[%c1_1055, %c8_1056, %c1_1057, %c0_1058], %813 {strides = array<i32>} : memref<2x10x5x256xf32, #tpu.memory_space<vmem>>, vector<1x1x1x128xf32>,
    %814 = vector.extract_strided_slice %325 {offsets = [122, 0], sizes = [1, 128], strides = [1, 1]} : vector<128x128xf32> to vector<1x128xf32>
    %c1_1059 = arith.constant 1 : index
    %c8_1060 = arith.constant 8 : index
    %c1_1061 = arith.constant 1 : index
    %c128_1062 = arith.constant 128 : index
    %815 = vector.load %arg20[%c1_1059, %c8_1060, %c1_1061, %c128_1062] : memref<2x10x5x256xf32, #tpu.memory_space<vmem>>, vector<1x1x1x128xf32>
    %816 = vector.shape_cast %815 : vector<1x1x1x128xf32> to vector<1x128xf32>
    %817 = vector.shape_cast %814 : vector<1x128xf32> to vector<1x1x1x128xf32>
    tpu.vector_store %arg20[%c1_1059, %c8_1060, %c1_1061, %c128_1062], %817 {strides = array<i32>} : memref<2x10x5x256xf32, #tpu.memory_space<vmem>>, vector<1x1x1x128xf32>,
    %818 = vector.extract_strided_slice %325 {offsets = [123, 0], sizes = [1, 128], strides = [1, 1]} : vector<128x128xf32> to vector<1x128xf32>
    %c1_1063 = arith.constant 1 : index
    %c8_1064 = arith.constant 8 : index
    %c2_1065 = arith.constant 2 : index
    %c0_1066 = arith.constant 0 : index
    %819 = vector.load %arg20[%c1_1063, %c8_1064, %c2_1065, %c0_1066] : memref<2x10x5x256xf32, #tpu.memory_space<vmem>>, vector<1x1x1x128xf32>
    %820 = vector.shape_cast %819 : vector<1x1x1x128xf32> to vector<1x128xf32>
    %821 = vector.shape_cast %818 : vector<1x128xf32> to vector<1x1x1x128xf32>
    tpu.vector_store %arg20[%c1_1063, %c8_1064, %c2_1065, %c0_1066], %821 {strides = array<i32>} : memref<2x10x5x256xf32, #tpu.memory_space<vmem>>, vector<1x1x1x128xf32>,
    %822 = vector.extract_strided_slice %325 {offsets = [124, 0], sizes = [1, 128], strides = [1, 1]} : vector<128x128xf32> to vector<1x128xf32>
    %c1_1067 = arith.constant 1 : index
    %c8_1068 = arith.constant 8 : index
    %c2_1069 = arith.constant 2 : index
    %c128_1070 = arith.constant 128 : index
    %823 = vector.load %arg20[%c1_1067, %c8_1068, %c2_1069, %c128_1070] : memref<2x10x5x256xf32, #tpu.memory_space<vmem>>, vector<1x1x1x128xf32>
    %824 = vector.shape_cast %823 : vector<1x1x1x128xf32> to vector<1x128xf32>
    %825 = vector.shape_cast %822 : vector<1x128xf32> to vector<1x1x1x128xf32>
    tpu.vector_store %arg20[%c1_1067, %c8_1068, %c2_1069, %c128_1070], %825 {strides = array<i32>} : memref<2x10x5x256xf32, #tpu.memory_space<vmem>>, vector<1x1x1x128xf32>,
    %826 = vector.extract_strided_slice %325 {offsets = [125, 0], sizes = [1, 128], strides = [1, 1]} : vector<128x128xf32> to vector<1x128xf32>
    %c1_1071 = arith.constant 1 : index
    %c8_1072 = arith.constant 8 : index
    %c3_1073 = arith.constant 3 : index
    %c0_1074 = arith.constant 0 : index
    %827 = vector.load %arg20[%c1_1071, %c8_1072, %c3_1073, %c0_1074] : memref<2x10x5x256xf32, #tpu.memory_space<vmem>>, vector<1x1x1x128xf32>
    %828 = vector.shape_cast %827 : vector<1x1x1x128xf32> to vector<1x128xf32>
    %829 = vector.shape_cast %826 : vector<1x128xf32> to vector<1x1x1x128xf32>
    tpu.vector_store %arg20[%c1_1071, %c8_1072, %c3_1073, %c0_1074], %829 {strides = array<i32>} : memref<2x10x5x256xf32, #tpu.memory_space<vmem>>, vector<1x1x1x128xf32>,
    %830 = vector.extract_strided_slice %325 {offsets = [126, 0], sizes = [1, 128], strides = [1, 1]} : vector<128x128xf32> to vector<1x128xf32>
    %c1_1075 = arith.constant 1 : index
    %c8_1076 = arith.constant 8 : index
    %c3_1077 = arith.constant 3 : index
    %c128_1078 = arith.constant 128 : index
    %831 = vector.load %arg20[%c1_1075, %c8_1076, %c3_1077, %c128_1078] : memref<2x10x5x256xf32, #tpu.memory_space<vmem>>, vector<1x1x1x128xf32>
    %832 = vector.shape_cast %831 : vector<1x1x1x128xf32> to vector<1x128xf32>
    %833 = vector.shape_cast %830 : vector<1x128xf32> to vector<1x1x1x128xf32>
    tpu.vector_store %arg20[%c1_1075, %c8_1076, %c3_1077, %c128_1078], %833 {strides = array<i32>} : memref<2x10x5x256xf32, #tpu.memory_space<vmem>>, vector<1x1x1x128xf32>,
    %834 = vector.extract_strided_slice %325 {offsets = [127, 0], sizes = [1, 128], strides = [1, 1]} : vector<128x128xf32> to vector<1x128xf32>
    %c1_1079 = arith.constant 1 : index
    %c8_1080 = arith.constant 8 : index
    %c4_1081 = arith.constant 4 : index
    %c0_1082 = arith.constant 0 : index
    %835 = vector.load %arg20[%c1_1079, %c8_1080, %c4_1081, %c0_1082] : memref<2x10x5x256xf32, #tpu.memory_space<vmem>>, vector<1x1x1x128xf32>
    %836 = vector.shape_cast %835 : vector<1x1x1x128xf32> to vector<1x128xf32>
    %837 = vector.shape_cast %834 : vector<1x128xf32> to vector<1x1x1x128xf32>
    tpu.vector_store %arg20[%c1_1079, %c8_1080, %c4_1081, %c0_1082], %837 {strides = array<i32>} : memref<2x10x5x256xf32, #tpu.memory_space<vmem>>, vector<1x1x1x128xf32>,
    %c0_1083 = arith.constant 0 : index
    %c0_1084 = arith.constant 0 : index
    %c0_1085 = arith.constant 0 : index
    %c0_1086 = arith.constant 0 : index
    %838 = vector.load %arg20[%c0_1083, %c0_1084, %c0_1085, %c0_1086] : memref<2x10x5x256xf32, #tpu.memory_space<vmem>>, vector<1x1x4x256xf32>
    %839 = vector.shape_cast %838 : vector<1x1x4x256xf32> to vector<4x256xf32>
    %c0_1087 = arith.constant 0 : index
    %c0_1088 = arith.constant 0 : index
    %840 = vector.load %arg19[%c0_1087, %c0_1088] : memref<128x1152xf32, #tpu.memory_space<vmem>>, vector<4x256xf32>
    tpu.vector_store %arg19[%c0_1087, %c0_1088], %839 {strides = array<i32>} : memref<128x1152xf32, #tpu.memory_space<vmem>>, vector<4x256xf32>,
    %c0_1089 = arith.constant 0 : index
    %c0_1090 = arith.constant 0 : index
    %c1_1091 = arith.constant 1 : index
    %c0_1092 = arith.constant 0 : index
    %841 = vector.load %arg20[%c0_1089, %c0_1090, %c1_1091, %c0_1092] : memref<2x10x5x256xf32, #tpu.memory_space<vmem>>, vector<1x1x4x128xf32>
    %842 = vector.shape_cast %841 : vector<1x1x4x128xf32> to vector<4x128xf32>
    %c0_1093 = arith.constant 0 : index
    %c256_1094 = arith.constant 256 : index
    %843 = vector.load %arg19[%c0_1093, %c256_1094] : memref<128x1152xf32, #tpu.memory_space<vmem>>, vector<4x128xf32>
    tpu.vector_store %arg19[%c0_1093, %c256_1094], %842 {strides = array<i32>} : memref<128x1152xf32, #tpu.memory_space<vmem>>, vector<4x128xf32>,
    %c0_1095 = arith.constant 0 : index
    %c1_1096 = arith.constant 1 : index
    %c0_1097 = arith.constant 0 : index
    %c0_1098 = arith.constant 0 : index
    %844 = vector.load %arg20[%c0_1095, %c1_1096, %c0_1097, %c0_1098] : memref<2x10x5x256xf32, #tpu.memory_space<vmem>>, vector<1x1x4x256xf32>
    %845 = vector.shape_cast %844 : vector<1x1x4x256xf32> to vector<4x256xf32>
    %c0_1099 = arith.constant 0 : index
    %c384_1100 = arith.constant 384 : index
    %846 = vector.load %arg19[%c0_1099, %c384_1100] : memref<128x1152xf32, #tpu.memory_space<vmem>>, vector<4x256xf32>
    tpu.vector_store %arg19[%c0_1099, %c384_1100], %845 {strides = array<i32>} : memref<128x1152xf32, #tpu.memory_space<vmem>>, vector<4x256xf32>,
    %c0_1101 = arith.constant 0 : index
    %c1_1102 = arith.constant 1 : index
    %c1_1103 = arith.constant 1 : index
    %c0_1104 = arith.constant 0 : index
    %847 = vector.load %arg20[%c0_1101, %c1_1102, %c1_1103, %c0_1104] : memref<2x10x5x256xf32, #tpu.memory_space<vmem>>, vector<1x1x4x128xf32>
    %848 = vector.shape_cast %847 : vector<1x1x4x128xf32> to vector<4x128xf32>
    %c0_1105 = arith.constant 0 : index
    %c640_1106 = arith.constant 640 : index
    %849 = vector.load %arg19[%c0_1105, %c640_1106] : memref<128x1152xf32, #tpu.memory_space<vmem>>, vector<4x128xf32>
    tpu.vector_store %arg19[%c0_1105, %c640_1106], %848 {strides = array<i32>} : memref<128x1152xf32, #tpu.memory_space<vmem>>, vector<4x128xf32>,
    %c0_1107 = arith.constant 0 : index
    %c2_1108 = arith.constant 2 : index
    %c0_1109 = arith.constant 0 : index
    %c0_1110 = arith.constant 0 : index
    %850 = vector.load %arg20[%c0_1107, %c2_1108, %c0_1109, %c0_1110] : memref<2x10x5x256xf32, #tpu.memory_space<vmem>>, vector<1x1x4x256xf32>
    %851 = vector.shape_cast %850 : vector<1x1x4x256xf32> to vector<4x256xf32>
    %c0_1111 = arith.constant 0 : index
    %c768_1112 = arith.constant 768 : index
    %852 = vector.load %arg19[%c0_1111, %c768_1112] : memref<128x1152xf32, #tpu.memory_space<vmem>>, vector<4x256xf32>
    tpu.vector_store %arg19[%c0_1111, %c768_1112], %851 {strides = array<i32>} : memref<128x1152xf32, #tpu.memory_space<vmem>>, vector<4x256xf32>,
    %c0_1113 = arith.constant 0 : index
    %c2_1114 = arith.constant 2 : index
    %c1_1115 = arith.constant 1 : index
    %c0_1116 = arith.constant 0 : index
    %853 = vector.load %arg20[%c0_1113, %c2_1114, %c1_1115, %c0_1116] : memref<2x10x5x256xf32, #tpu.memory_space<vmem>>, vector<1x1x4x128xf32>
    %854 = vector.shape_cast %853 : vector<1x1x4x128xf32> to vector<4x128xf32>
    %c0_1117 = arith.constant 0 : index
    %c1024_1118 = arith.constant 1024 : index
    %855 = vector.load %arg19[%c0_1117, %c1024_1118] : memref<128x1152xf32, #tpu.memory_space<vmem>>, vector<4x128xf32>
    tpu.vector_store %arg19[%c0_1117, %c1024_1118], %854 {strides = array<i32>} : memref<128x1152xf32, #tpu.memory_space<vmem>>, vector<4x128xf32>,
    %c0_1119 = arith.constant 0 : index
    %c2_1120 = arith.constant 2 : index
    %c0_1121 = arith.constant 0 : index
    %c0_1122 = arith.constant 0 : index
    %856 = vector.load %arg20[%c0_1119, %c2_1120, %c0_1121, %c0_1122] : memref<2x10x5x256xf32, #tpu.memory_space<vmem>>, vector<1x1x4x256xf32>
    %857 = vector.shape_cast %856 : vector<1x1x4x256xf32> to vector<4x256xf32>
    %c4_1123 = arith.constant 4 : index
    %c0_1124 = arith.constant 0 : index
    %858 = vector.load %arg19[%c4_1123, %c0_1124] : memref<128x1152xf32, #tpu.memory_space<vmem>>, vector<4x256xf32>
    tpu.vector_store %arg19[%c4_1123, %c0_1124], %857 {strides = array<i32>} : memref<128x1152xf32, #tpu.memory_space<vmem>>, vector<4x256xf32>,
    %c0_1125 = arith.constant 0 : index
    %c2_1126 = arith.constant 2 : index
    %c1_1127 = arith.constant 1 : index
    %c0_1128 = arith.constant 0 : index
    %859 = vector.load %arg20[%c0_1125, %c2_1126, %c1_1127, %c0_1128] : memref<2x10x5x256xf32, #tpu.memory_space<vmem>>, vector<1x1x4x128xf32>
    %860 = vector.shape_cast %859 : vector<1x1x4x128xf32> to vector<4x128xf32>
    %c4_1129 = arith.constant 4 : index
    %c256_1130 = arith.constant 256 : index
    %861 = vector.load %arg19[%c4_1129, %c256_1130] : memref<128x1152xf32, #tpu.memory_space<vmem>>, vector<4x128xf32>
    tpu.vector_store %arg19[%c4_1129, %c256_1130], %860 {strides = array<i32>} : memref<128x1152xf32, #tpu.memory_space<vmem>>, vector<4x128xf32>,
    %c0_1131 = arith.constant 0 : index
    %c3_1132 = arith.constant 3 : index
    %c0_1133 = arith.constant 0 : index
    %c0_1134 = arith.constant 0 : index
    %862 = vector.load %arg20[%c0_1131, %c3_1132, %c0_1133, %c0_1134] : memref<2x10x5x256xf32, #tpu.memory_space<vmem>>, vector<1x1x4x256xf32>
    %863 = vector.shape_cast %862 : vector<1x1x4x256xf32> to vector<4x256xf32>
    %c4_1135 = arith.constant 4 : index
    %c384_1136 = arith.constant 384 : index
    %864 = vector.load %arg19[%c4_1135, %c384_1136] : memref<128x1152xf32, #tpu.memory_space<vmem>>, vector<4x256xf32>
    tpu.vector_store %arg19[%c4_1135, %c384_1136], %863 {strides = array<i32>} : memref<128x1152xf32, #tpu.memory_space<vmem>>, vector<4x256xf32>,
    %c0_1137 = arith.constant 0 : index
    %c3_1138 = arith.constant 3 : index
    %c1_1139 = arith.constant 1 : index
    %c0_1140 = arith.constant 0 : index
    %865 = vector.load %arg20[%c0_1137, %c3_1138, %c1_1139, %c0_1140] : memref<2x10x5x256xf32, #tpu.memory_space<vmem>>, vector<1x1x4x128xf32>
    %866 = vector.shape_cast %865 : vector<1x1x4x128xf32> to vector<4x128xf32>
    %c4_1141 = arith.constant 4 : index
    %c640_1142 = arith.constant 640 : index
    %867 = vector.load %arg19[%c4_1141, %c640_1142] : memref<128x1152xf32, #tpu.memory_space<vmem>>, vector<4x128xf32>
    tpu.vector_store %arg19[%c4_1141, %c640_1142], %866 {strides = array<i32>} : memref<128x1152xf32, #tpu.memory_space<vmem>>, vector<4x128xf32>,
    %c0_1143 = arith.constant 0 : index
    %c4_1144 = arith.constant 4 : index
    %c0_1145 = arith.constant 0 : index
    %c0_1146 = arith.constant 0 : index
    %868 = vector.load %arg20[%c0_1143, %c4_1144, %c0_1145, %c0_1146] : memref<2x10x5x256xf32, #tpu.memory_space<vmem>>, vector<1x1x4x256xf32>
    %869 = vector.shape_cast %868 : vector<1x1x4x256xf32> to vector<4x256xf32>
    %c4_1147 = arith.constant 4 : index
    %c768_1148 = arith.constant 768 : index
    %870 = vector.load %arg19[%c4_1147, %c768_1148] : memref<128x1152xf32, #tpu.memory_space<vmem>>, vector<4x256xf32>
    tpu.vector_store %arg19[%c4_1147, %c768_1148], %869 {strides = array<i32>} : memref<128x1152xf32, #tpu.memory_space<vmem>>, vector<4x256xf32>,
    %c0_1149 = arith.constant 0 : index
    %c4_1150 = arith.constant 4 : index
    %c1_1151 = arith.constant 1 : index
    %c0_1152 = arith.constant 0 : index
    %871 = vector.load %arg20[%c0_1149, %c4_1150, %c1_1151, %c0_1152] : memref<2x10x5x256xf32, #tpu.memory_space<vmem>>, vector<1x1x4x128xf32>
    %872 = vector.shape_cast %871 : vector<1x1x4x128xf32> to vector<4x128xf32>
    %c4_1153 = arith.constant 4 : index
    %c1024_1154 = arith.constant 1024 : index
    %873 = vector.load %arg19[%c4_1153, %c1024_1154] : memref<128x1152xf32, #tpu.memory_space<vmem>>, vector<4x128xf32>
    tpu.vector_store %arg19[%c4_1153, %c1024_1154], %872 {strides = array<i32>} : memref<128x1152xf32, #tpu.memory_space<vmem>>, vector<4x128xf32>,
    %c0_1155 = arith.constant 0 : index
    %c4_1156 = arith.constant 4 : index
    %c0_1157 = arith.constant 0 : index
    %c0_1158 = arith.constant 0 : index
    %874 = vector.load %arg20[%c0_1155, %c4_1156, %c0_1157, %c0_1158] : memref<2x10x5x256xf32, #tpu.memory_space<vmem>>, vector<1x1x4x256xf32>
    %875 = vector.shape_cast %874 : vector<1x1x4x256xf32> to vector<4x256xf32>
    %c8_1159 = arith.constant 8 : index
    %c0_1160 = arith.constant 0 : index
    %876 = vector.load %arg19[%c8_1159, %c0_1160] : memref<128x1152xf32, #tpu.memory_space<vmem>>, vector<4x256xf32>
    tpu.vector_store %arg19[%c8_1159, %c0_1160], %875 {strides = array<i32>} : memref<128x1152xf32, #tpu.memory_space<vmem>>, vector<4x256xf32>,
    %c0_1161 = arith.constant 0 : index
    %c4_1162 = arith.constant 4 : index
    %c1_1163 = arith.constant 1 : index
    %c0_1164 = arith.constant 0 : index
    %877 = vector.load %arg20[%c0_1161, %c4_1162, %c1_1163, %c0_1164] : memref<2x10x5x256xf32, #tpu.memory_space<vmem>>, vector<1x1x4x128xf32>
    %878 = vector.shape_cast %877 : vector<1x1x4x128xf32> to vector<4x128xf32>
    %c8_1165 = arith.constant 8 : index
    %c256_1166 = arith.constant 256 : index
    %879 = vector.load %arg19[%c8_1165, %c256_1166] : memref<128x1152xf32, #tpu.memory_space<vmem>>, vector<4x128xf32>
    tpu.vector_store %arg19[%c8_1165, %c256_1166], %878 {strides = array<i32>} : memref<128x1152xf32, #tpu.memory_space<vmem>>, vector<4x128xf32>,
    %c0_1167 = arith.constant 0 : index
    %c5_1168 = arith.constant 5 : index
    %c0_1169 = arith.constant 0 : index
    %c0_1170 = arith.constant 0 : index
    %880 = vector.load %arg20[%c0_1167, %c5_1168, %c0_1169, %c0_1170] : memref<2x10x5x256xf32, #tpu.memory_space<vmem>>, vector<1x1x4x256xf32>
    %881 = vector.shape_cast %880 : vector<1x1x4x256xf32> to vector<4x256xf32>
    %c8_1171 = arith.constant 8 : index
    %c384_1172 = arith.constant 384 : index
    %882 = vector.load %arg19[%c8_1171, %c384_1172] : memref<128x1152xf32, #tpu.memory_space<vmem>>, vector<4x256xf32>
    tpu.vector_store %arg19[%c8_1171, %c384_1172], %881 {strides = array<i32>} : memref<128x1152xf32, #tpu.memory_space<vmem>>, vector<4x256xf32>,
    %c0_1173 = arith.constant 0 : index
    %c5_1174 = arith.constant 5 : index
    %c1_1175 = arith.constant 1 : index
    %c0_1176 = arith.constant 0 : index
    %883 = vector.load %arg20[%c0_1173, %c5_1174, %c1_1175, %c0_1176] : memref<2x10x5x256xf32, #tpu.memory_space<vmem>>, vector<1x1x4x128xf32>
    %884 = vector.shape_cast %883 : vector<1x1x4x128xf32> to vector<4x128xf32>
    %c8_1177 = arith.constant 8 : index
    %c640_1178 = arith.constant 640 : index
    %885 = vector.load %arg19[%c8_1177, %c640_1178] : memref<128x1152xf32, #tpu.memory_space<vmem>>, vector<4x128xf32>
    tpu.vector_store %arg19[%c8_1177, %c640_1178], %884 {strides = array<i32>} : memref<128x1152xf32, #tpu.memory_space<vmem>>, vector<4x128xf32>,
    %c0_1179 = arith.constant 0 : index
    %c6_1180 = arith.constant 6 : index
    %c0_1181 = arith.constant 0 : index
    %c0_1182 = arith.constant 0 : index
    %886 = vector.load %arg20[%c0_1179, %c6_1180, %c0_1181, %c0_1182] : memref<2x10x5x256xf32, #tpu.memory_space<vmem>>, vector<1x1x4x256xf32>
    %887 = vector.shape_cast %886 : vector<1x1x4x256xf32> to vector<4x256xf32>
    %c8_1183 = arith.constant 8 : index
    %c768_1184 = arith.constant 768 : index
    %888 = vector.load %arg19[%c8_1183, %c768_1184] : memref<128x1152xf32, #tpu.memory_space<vmem>>, vector<4x256xf32>
    tpu.vector_store %arg19[%c8_1183, %c768_1184], %887 {strides = array<i32>} : memref<128x1152xf32, #tpu.memory_space<vmem>>, vector<4x256xf32>,
    %c0_1185 = arith.constant 0 : index
    %c6_1186 = arith.constant 6 : index
    %c1_1187 = arith.constant 1 : index
    %c0_1188 = arith.constant 0 : index
    %889 = vector.load %arg20[%c0_1185, %c6_1186, %c1_1187, %c0_1188] : memref<2x10x5x256xf32, #tpu.memory_space<vmem>>, vector<1x1x4x128xf32>
    %890 = vector.shape_cast %889 : vector<1x1x4x128xf32> to vector<4x128xf32>
    %c8_1189 = arith.constant 8 : index
    %c1024_1190 = arith.constant 1024 : index
    %891 = vector.load %arg19[%c8_1189, %c1024_1190] : memref<128x1152xf32, #tpu.memory_space<vmem>>, vector<4x128xf32>
    tpu.vector_store %arg19[%c8_1189, %c1024_1190], %890 {strides = array<i32>} : memref<128x1152xf32, #tpu.memory_space<vmem>>, vector<4x128xf32>,
    %c0_1191 = arith.constant 0 : index
    %c6_1192 = arith.constant 6 : index
    %c0_1193 = arith.constant 0 : index
    %c0_1194 = arith.constant 0 : index
    %892 = vector.load %arg20[%c0_1191, %c6_1192, %c0_1193, %c0_1194] : memref<2x10x5x256xf32, #tpu.memory_space<vmem>>, vector<1x1x4x256xf32>
    %893 = vector.shape_cast %892 : vector<1x1x4x256xf32> to vector<4x256xf32>
    %c12_1195 = arith.constant 12 : index
    %c0_1196 = arith.constant 0 : index
    %894 = vector.load %arg19[%c12_1195, %c0_1196] : memref<128x1152xf32, #tpu.memory_space<vmem>>, vector<4x256xf32>
    tpu.vector_store %arg19[%c12_1195, %c0_1196], %893 {strides = array<i32>} : memref<128x1152xf32, #tpu.memory_space<vmem>>, vector<4x256xf32>,
    %c0_1197 = arith.constant 0 : index
    %c6_1198 = arith.constant 6 : index
    %c1_1199 = arith.constant 1 : index
    %c0_1200 = arith.constant 0 : index
    %895 = vector.load %arg20[%c0_1197, %c6_1198, %c1_1199, %c0_1200] : memref<2x10x5x256xf32, #tpu.memory_space<vmem>>, vector<1x1x4x128xf32>
    %896 = vector.shape_cast %895 : vector<1x1x4x128xf32> to vector<4x128xf32>
    %c12_1201 = arith.constant 12 : index
    %c256_1202 = arith.constant 256 : index
    %897 = vector.load %arg19[%c12_1201, %c256_1202] : memref<128x1152xf32, #tpu.memory_space<vmem>>, vector<4x128xf32>
    tpu.vector_store %arg19[%c12_1201, %c256_1202], %896 {strides = array<i32>} : memref<128x1152xf32, #tpu.memory_space<vmem>>, vector<4x128xf32>,
    %c0_1203 = arith.constant 0 : index
    %c7_1204 = arith.constant 7 : index
    %c0_1205 = arith.constant 0 : index
    %c0_1206 = arith.constant 0 : index
    %898 = vector.load %arg20[%c0_1203, %c7_1204, %c0_1205, %c0_1206] : memref<2x10x5x256xf32, #tpu.memory_space<vmem>>, vector<1x1x4x256xf32>
    %899 = vector.shape_cast %898 : vector<1x1x4x256xf32> to vector<4x256xf32>
    %c12_1207 = arith.constant 12 : index
    %c384_1208 = arith.constant 384 : index
    %900 = vector.load %arg19[%c12_1207, %c384_1208] : memref<128x1152xf32, #tpu.memory_space<vmem>>, vector<4x256xf32>
    tpu.vector_store %arg19[%c12_1207, %c384_1208], %899 {strides = array<i32>} : memref<128x1152xf32, #tpu.memory_space<vmem>>, vector<4x256xf32>,
    %c0_1209 = arith.constant 0 : index
    %c7_1210 = arith.constant 7 : index
    %c1_1211 = arith.constant 1 : index
    %c0_1212 = arith.constant 0 : index
    %901 = vector.load %arg20[%c0_1209, %c7_1210, %c1_1211, %c0_1212] : memref<2x10x5x256xf32, #tpu.memory_space<vmem>>, vector<1x1x4x128xf32>
    %902 = vector.shape_cast %901 : vector<1x1x4x128xf32> to vector<4x128xf32>
    %c12_1213 = arith.constant 12 : index
    %c640_1214 = arith.constant 640 : index
    %903 = vector.load %arg19[%c12_1213, %c640_1214] : memref<128x1152xf32, #tpu.memory_space<vmem>>, vector<4x128xf32>
    tpu.vector_store %arg19[%c12_1213, %c640_1214], %902 {strides = array<i32>} : memref<128x1152xf32, #tpu.memory_space<vmem>>, vector<4x128xf32>,
    %c0_1215 = arith.constant 0 : index
    %c8_1216 = arith.constant 8 : index
    %c0_1217 = arith.constant 0 : index
    %c0_1218 = arith.constant 0 : index
    %904 = vector.load %arg20[%c0_1215, %c8_1216, %c0_1217, %c0_1218] : memref<2x10x5x256xf32, #tpu.memory_space<vmem>>, vector<1x1x4x256xf32>
    %905 = vector.shape_cast %904 : vector<1x1x4x256xf32> to vector<4x256xf32>
    %c12_1219 = arith.constant 12 : index
    %c768_1220 = arith.constant 768 : index
    %906 = vector.load %arg19[%c12_1219, %c768_1220] : memref<128x1152xf32, #tpu.memory_space<vmem>>, vector<4x256xf32>
    tpu.vector_store %arg19[%c12_1219, %c768_1220], %905 {strides = array<i32>} : memref<128x1152xf32, #tpu.memory_space<vmem>>, vector<4x256xf32>,
    %c0_1221 = arith.constant 0 : index
    %c8_1222 = arith.constant 8 : index
    %c1_1223 = arith.constant 1 : index
    %c0_1224 = arith.constant 0 : index
    %907 = vector.load %arg20[%c0_1221, %c8_1222, %c1_1223, %c0_1224] : memref<2x10x5x256xf32, #tpu.memory_space<vmem>>, vector<1x1x4x128xf32>
    %908 = vector.shape_cast %907 : vector<1x1x4x128xf32> to vector<4x128xf32>
    %c12_1225 = arith.constant 12 : index
    %c1024_1226 = arith.constant 1024 : index
    %909 = vector.load %arg19[%c12_1225, %c1024_1226] : memref<128x1152xf32, #tpu.memory_space<vmem>>, vector<4x128xf32>
    tpu.vector_store %arg19[%c12_1225, %c1024_1226], %908 {strides = array<i32>} : memref<128x1152xf32, #tpu.memory_space<vmem>>, vector<4x128xf32>,
    %c1_1227 = arith.constant 1 : index
    %c0_1228 = arith.constant 0 : index
    %c0_1229 = arith.constant 0 : index
    %c0_1230 = arith.constant 0 : index
    %910 = vector.load %arg20[%c1_1227, %c0_1228, %c0_1229, %c0_1230] : memref<2x10x5x256xf32, #tpu.memory_space<vmem>>, vector<1x1x4x256xf32>
    %911 = vector.shape_cast %910 : vector<1x1x4x256xf32> to vector<4x256xf32>
    %c16_1231 = arith.constant 16 : index
    %c0_1232 = arith.constant 0 : index
    %912 = vector.load %arg19[%c16_1231, %c0_1232] : memref<128x1152xf32, #tpu.memory_space<vmem>>, vector<4x256xf32>
    tpu.vector_store %arg19[%c16_1231, %c0_1232], %911 {strides = array<i32>} : memref<128x1152xf32, #tpu.memory_space<vmem>>, vector<4x256xf32>,
    %c1_1233 = arith.constant 1 : index
    %c0_1234 = arith.constant 0 : index
    %c1_1235 = arith.constant 1 : index
    %c0_1236 = arith.constant 0 : index
    %913 = vector.load %arg20[%c1_1233, %c0_1234, %c1_1235, %c0_1236] : memref<2x10x5x256xf32, #tpu.memory_space<vmem>>, vector<1x1x4x128xf32>
    %914 = vector.shape_cast %913 : vector<1x1x4x128xf32> to vector<4x128xf32>
    %c16_1237 = arith.constant 16 : index
    %c256_1238 = arith.constant 256 : index
    %915 = vector.load %arg19[%c16_1237, %c256_1238] : memref<128x1152xf32, #tpu.memory_space<vmem>>, vector<4x128xf32>
    tpu.vector_store %arg19[%c16_1237, %c256_1238], %914 {strides = array<i32>} : memref<128x1152xf32, #tpu.memory_space<vmem>>, vector<4x128xf32>,
    %c1_1239 = arith.constant 1 : index
    %c1_1240 = arith.constant 1 : index
    %c0_1241 = arith.constant 0 : index
    %c0_1242 = arith.constant 0 : index
    %916 = vector.load %arg20[%c1_1239, %c1_1240, %c0_1241, %c0_1242] : memref<2x10x5x256xf32, #tpu.memory_space<vmem>>, vector<1x1x4x256xf32>
    %917 = vector.shape_cast %916 : vector<1x1x4x256xf32> to vector<4x256xf32>
    %c16_1243 = arith.constant 16 : index
    %c384_1244 = arith.constant 384 : index
    %918 = vector.load %arg19[%c16_1243, %c384_1244] : memref<128x1152xf32, #tpu.memory_space<vmem>>, vector<4x256xf32>
    tpu.vector_store %arg19[%c16_1243, %c384_1244], %917 {strides = array<i32>} : memref<128x1152xf32, #tpu.memory_space<vmem>>, vector<4x256xf32>,
    %c1_1245 = arith.constant 1 : index
    %c1_1246 = arith.constant 1 : index
    %c1_1247 = arith.constant 1 : index
    %c0_1248 = arith.constant 0 : index
    %919 = vector.load %arg20[%c1_1245, %c1_1246, %c1_1247, %c0_1248] : memref<2x10x5x256xf32, #tpu.memory_space<vmem>>, vector<1x1x4x128xf32>
    %920 = vector.shape_cast %919 : vector<1x1x4x128xf32> to vector<4x128xf32>
    %c16_1249 = arith.constant 16 : index
    %c640_1250 = arith.constant 640 : index
    %921 = vector.load %arg19[%c16_1249, %c640_1250] : memref<128x1152xf32, #tpu.memory_space<vmem>>, vector<4x128xf32>
    tpu.vector_store %arg19[%c16_1249, %c640_1250], %920 {strides = array<i32>} : memref<128x1152xf32, #tpu.memory_space<vmem>>, vector<4x128xf32>,
    %c1_1251 = arith.constant 1 : index
    %c2_1252 = arith.constant 2 : index
    %c0_1253 = arith.constant 0 : index
    %c0_1254 = arith.constant 0 : index
    %922 = vector.load %arg20[%c1_1251, %c2_1252, %c0_1253, %c0_1254] : memref<2x10x5x256xf32, #tpu.memory_space<vmem>>, vector<1x1x4x256xf32>
    %923 = vector.shape_cast %922 : vector<1x1x4x256xf32> to vector<4x256xf32>
    %c16_1255 = arith.constant 16 : index
    %c768_1256 = arith.constant 768 : index
    %924 = vector.load %arg19[%c16_1255, %c768_1256] : memref<128x1152xf32, #tpu.memory_space<vmem>>, vector<4x256xf32>
    tpu.vector_store %arg19[%c16_1255, %c768_1256], %923 {strides = array<i32>} : memref<128x1152xf32, #tpu.memory_space<vmem>>, vector<4x256xf32>,
    %c1_1257 = arith.constant 1 : index
    %c2_1258 = arith.constant 2 : index
    %c1_1259 = arith.constant 1 : index
    %c0_1260 = arith.constant 0 : index
    %925 = vector.load %arg20[%c1_1257, %c2_1258, %c1_1259, %c0_1260] : memref<2x10x5x256xf32, #tpu.memory_space<vmem>>, vector<1x1x4x128xf32>
    %926 = vector.shape_cast %925 : vector<1x1x4x128xf32> to vector<4x128xf32>
    %c16_1261 = arith.constant 16 : index
    %c1024_1262 = arith.constant 1024 : index
    %927 = vector.load %arg19[%c16_1261, %c1024_1262] : memref<128x1152xf32, #tpu.memory_space<vmem>>, vector<4x128xf32>
    tpu.vector_store %arg19[%c16_1261, %c1024_1262], %926 {strides = array<i32>} : memref<128x1152xf32, #tpu.memory_space<vmem>>, vector<4x128xf32>,
    %c1_1263 = arith.constant 1 : index
    %c2_1264 = arith.constant 2 : index
    %c0_1265 = arith.constant 0 : index
    %c0_1266 = arith.constant 0 : index
    %928 = vector.load %arg20[%c1_1263, %c2_1264, %c0_1265, %c0_1266] : memref<2x10x5x256xf32, #tpu.memory_space<vmem>>, vector<1x1x4x256xf32>
    %929 = vector.shape_cast %928 : vector<1x1x4x256xf32> to vector<4x256xf32>
    %c20 = arith.constant 20 : index
    %c0_1267 = arith.constant 0 : index
    %930 = vector.load %arg19[%c20, %c0_1267] : memref<128x1152xf32, #tpu.memory_space<vmem>>, vector<4x256xf32>
    tpu.vector_store %arg19[%c20, %c0_1267], %929 {strides = array<i32>} : memref<128x1152xf32, #tpu.memory_space<vmem>>, vector<4x256xf32>,
    %c1_1268 = arith.constant 1 : index
    %c2_1269 = arith.constant 2 : index
    %c1_1270 = arith.constant 1 : index
    %c0_1271 = arith.constant 0 : index
    %931 = vector.load %arg20[%c1_1268, %c2_1269, %c1_1270, %c0_1271] : memref<2x10x5x256xf32, #tpu.memory_space<vmem>>, vector<1x1x4x128xf32>
    %932 = vector.shape_cast %931 : vector<1x1x4x128xf32> to vector<4x128xf32>
    %c20_1272 = arith.constant 20 : index
    %c256_1273 = arith.constant 256 : index
    %933 = vector.load %arg19[%c20_1272, %c256_1273] : memref<128x1152xf32, #tpu.memory_space<vmem>>, vector<4x128xf32>
    tpu.vector_store %arg19[%c20_1272, %c256_1273], %932 {strides = array<i32>} : memref<128x1152xf32, #tpu.memory_space<vmem>>, vector<4x128xf32>,
    %c1_1274 = arith.constant 1 : index
    %c3_1275 = arith.constant 3 : index
    %c0_1276 = arith.constant 0 : index
    %c0_1277 = arith.constant 0 : index
    %934 = vector.load %arg20[%c1_1274, %c3_1275, %c0_1276, %c0_1277] : memref<2x10x5x256xf32, #tpu.memory_space<vmem>>, vector<1x1x4x256xf32>
    %935 = vector.shape_cast %934 : vector<1x1x4x256xf32> to vector<4x256xf32>
    %c20_1278 = arith.constant 20 : index
    %c384_1279 = arith.constant 384 : index
    %936 = vector.load %arg19[%c20_1278, %c384_1279] : memref<128x1152xf32, #tpu.memory_space<vmem>>, vector<4x256xf32>
    tpu.vector_store %arg19[%c20_1278, %c384_1279], %935 {strides = array<i32>} : memref<128x1152xf32, #tpu.memory_space<vmem>>, vector<4x256xf32>,
    %c1_1280 = arith.constant 1 : index
    %c3_1281 = arith.constant 3 : index
    %c1_1282 = arith.constant 1 : index
    %c0_1283 = arith.constant 0 : index
    %937 = vector.load %arg20[%c1_1280, %c3_1281, %c1_1282, %c0_1283] : memref<2x10x5x256xf32, #tpu.memory_space<vmem>>, vector<1x1x4x128xf32>
    %938 = vector.shape_cast %937 : vector<1x1x4x128xf32> to vector<4x128xf32>
    %c20_1284 = arith.constant 20 : index
    %c640_1285 = arith.constant 640 : index
    %939 = vector.load %arg19[%c20_1284, %c640_1285] : memref<128x1152xf32, #tpu.memory_space<vmem>>, vector<4x128xf32>
    tpu.vector_store %arg19[%c20_1284, %c640_1285], %938 {strides = array<i32>} : memref<128x1152xf32, #tpu.memory_space<vmem>>, vector<4x128xf32>,
    %c1_1286 = arith.constant 1 : index
    %c4_1287 = arith.constant 4 : index
    %c0_1288 = arith.constant 0 : index
    %c0_1289 = arith.constant 0 : index
    %940 = vector.load %arg20[%c1_1286, %c4_1287, %c0_1288, %c0_1289] : memref<2x10x5x256xf32, #tpu.memory_space<vmem>>, vector<1x1x4x256xf32>
    %941 = vector.shape_cast %940 : vector<1x1x4x256xf32> to vector<4x256xf32>
    %c20_1290 = arith.constant 20 : index
    %c768_1291 = arith.constant 768 : index
    %942 = vector.load %arg19[%c20_1290, %c768_1291] : memref<128x1152xf32, #tpu.memory_space<vmem>>, vector<4x256xf32>
    tpu.vector_store %arg19[%c20_1290, %c768_1291], %941 {strides = array<i32>} : memref<128x1152xf32, #tpu.memory_space<vmem>>, vector<4x256xf32>,
    %c1_1292 = arith.constant 1 : index
    %c4_1293 = arith.constant 4 : index
    %c1_1294 = arith.constant 1 : index
    %c0_1295 = arith.constant 0 : index
    %943 = vector.load %arg20[%c1_1292, %c4_1293, %c1_1294, %c0_1295] : memref<2x10x5x256xf32, #tpu.memory_space<vmem>>, vector<1x1x4x128xf32>
    %944 = vector.shape_cast %943 : vector<1x1x4x128xf32> to vector<4x128xf32>
    %c20_1296 = arith.constant 20 : index
    %c1024_1297 = arith.constant 1024 : index
    %945 = vector.load %arg19[%c20_1296, %c1024_1297] : memref<128x1152xf32, #tpu.memory_space<vmem>>, vector<4x128xf32>
    tpu.vector_store %arg19[%c20_1296, %c1024_1297], %944 {strides = array<i32>} : memref<128x1152xf32, #tpu.memory_space<vmem>>, vector<4x128xf32>,
    %c1_1298 = arith.constant 1 : index
    %c4_1299 = arith.constant 4 : index
    %c0_1300 = arith.constant 0 : index
    %c0_1301 = arith.constant 0 : index
    %946 = vector.load %arg20[%c1_1298, %c4_1299, %c0_1300, %c0_1301] : memref<2x10x5x256xf32, #tpu.memory_space<vmem>>, vector<1x1x4x256xf32>
    %947 = vector.shape_cast %946 : vector<1x1x4x256xf32> to vector<4x256xf32>
    %c24_1302 = arith.constant 24 : index
    %c0_1303 = arith.constant 0 : index
    %948 = vector.load %arg19[%c24_1302, %c0_1303] : memref<128x1152xf32, #tpu.memory_space<vmem>>, vector<4x256xf32>
    tpu.vector_store %arg19[%c24_1302, %c0_1303], %947 {strides = array<i32>} : memref<128x1152xf32, #tpu.memory_space<vmem>>, vector<4x256xf32>,
    %c1_1304 = arith.constant 1 : index
    %c4_1305 = arith.constant 4 : index
    %c1_1306 = arith.constant 1 : index
    %c0_1307 = arith.constant 0 : index
    %949 = vector.load %arg20[%c1_1304, %c4_1305, %c1_1306, %c0_1307] : memref<2x10x5x256xf32, #tpu.memory_space<vmem>>, vector<1x1x4x128xf32>
    %950 = vector.shape_cast %949 : vector<1x1x4x128xf32> to vector<4x128xf32>
    %c24_1308 = arith.constant 24 : index
    %c256_1309 = arith.constant 256 : index
    %951 = vector.load %arg19[%c24_1308, %c256_1309] : memref<128x1152xf32, #tpu.memory_space<vmem>>, vector<4x128xf32>
    tpu.vector_store %arg19[%c24_1308, %c256_1309], %950 {strides = array<i32>} : memref<128x1152xf32, #tpu.memory_space<vmem>>, vector<4x128xf32>,
    %c1_1310 = arith.constant 1 : index
    %c5_1311 = arith.constant 5 : index
    %c0_1312 = arith.constant 0 : index
    %c0_1313 = arith.constant 0 : index
    %952 = vector.load %arg20[%c1_1310, %c5_1311, %c0_1312, %c0_1313] : memref<2x10x5x256xf32, #tpu.memory_space<vmem>>, vector<1x1x4x256xf32>
    %953 = vector.shape_cast %952 : vector<1x1x4x256xf32> to vector<4x256xf32>
    %c24_1314 = arith.constant 24 : index
    %c384_1315 = arith.constant 384 : index
    %954 = vector.load %arg19[%c24_1314, %c384_1315] : memref<128x1152xf32, #tpu.memory_space<vmem>>, vector<4x256xf32>
    tpu.vector_store %arg19[%c24_1314, %c384_1315], %953 {strides = array<i32>} : memref<128x1152xf32, #tpu.memory_space<vmem>>, vector<4x256xf32>,
    %c1_1316 = arith.constant 1 : index
    %c5_1317 = arith.constant 5 : index
    %c1_1318 = arith.constant 1 : index
    %c0_1319 = arith.constant 0 : index
    %955 = vector.load %arg20[%c1_1316, %c5_1317, %c1_1318, %c0_1319] : memref<2x10x5x256xf32, #tpu.memory_space<vmem>>, vector<1x1x4x128xf32>
    %956 = vector.shape_cast %955 : vector<1x1x4x128xf32> to vector<4x128xf32>
    %c24_1320 = arith.constant 24 : index
    %c640_1321 = arith.constant 640 : index
    %957 = vector.load %arg19[%c24_1320, %c640_1321] : memref<128x1152xf32, #tpu.memory_space<vmem>>, vector<4x128xf32>
    tpu.vector_store %arg19[%c24_1320, %c640_1321], %956 {strides = array<i32>} : memref<128x1152xf32, #tpu.memory_space<vmem>>, vector<4x128xf32>,
    %c1_1322 = arith.constant 1 : index
    %c6_1323 = arith.constant 6 : index
    %c0_1324 = arith.constant 0 : index
    %c0_1325 = arith.constant 0 : index
    %958 = vector.load %arg20[%c1_1322, %c6_1323, %c0_1324, %c0_1325] : memref<2x10x5x256xf32, #tpu.memory_space<vmem>>, vector<1x1x4x256xf32>
    %959 = vector.shape_cast %958 : vector<1x1x4x256xf32> to vector<4x256xf32>
    %c24_1326 = arith.constant 24 : index
    %c768_1327 = arith.constant 768 : index
    %960 = vector.load %arg19[%c24_1326, %c768_1327] : memref<128x1152xf32, #tpu.memory_space<vmem>>, vector<4x256xf32>
    tpu.vector_store %arg19[%c24_1326, %c768_1327], %959 {strides = array<i32>} : memref<128x1152xf32, #tpu.memory_space<vmem>>, vector<4x256xf32>,
    %c1_1328 = arith.constant 1 : index
    %c6_1329 = arith.constant 6 : index
    %c1_1330 = arith.constant 1 : index
    %c0_1331 = arith.constant 0 : index
    %961 = vector.load %arg20[%c1_1328, %c6_1329, %c1_1330, %c0_1331] : memref<2x10x5x256xf32, #tpu.memory_space<vmem>>, vector<1x1x4x128xf32>
    %962 = vector.shape_cast %961 : vector<1x1x4x128xf32> to vector<4x128xf32>
    %c24_1332 = arith.constant 24 : index
    %c1024_1333 = arith.constant 1024 : index
    %963 = vector.load %arg19[%c24_1332, %c1024_1333] : memref<128x1152xf32, #tpu.memory_space<vmem>>, vector<4x128xf32>
    tpu.vector_store %arg19[%c24_1332, %c1024_1333], %962 {strides = array<i32>} : memref<128x1152xf32, #tpu.memory_space<vmem>>, vector<4x128xf32>,
    %c1_1334 = arith.constant 1 : index
    %c6_1335 = arith.constant 6 : index
    %c0_1336 = arith.constant 0 : index
    %c0_1337 = arith.constant 0 : index
    %964 = vector.load %arg20[%c1_1334, %c6_1335, %c0_1336, %c0_1337] : memref<2x10x5x256xf32, #tpu.memory_space<vmem>>, vector<1x1x4x256xf32>
    %965 = vector.shape_cast %964 : vector<1x1x4x256xf32> to vector<4x256xf32>
    %c28 = arith.constant 28 : index
    %c0_1338 = arith.constant 0 : index
    %966 = vector.load %arg19[%c28, %c0_1338] : memref<128x1152xf32, #tpu.memory_space<vmem>>, vector<4x256xf32>
    tpu.vector_store %arg19[%c28, %c0_1338], %965 {strides = array<i32>} : memref<128x1152xf32, #tpu.memory_space<vmem>>, vector<4x256xf32>,
    %c1_1339 = arith.constant 1 : index
    %c6_1340 = arith.constant 6 : index
    %c1_1341 = arith.constant 1 : index
    %c0_1342 = arith.constant 0 : index
    %967 = vector.load %arg20[%c1_1339, %c6_1340, %c1_1341, %c0_1342] : memref<2x10x5x256xf32, #tpu.memory_space<vmem>>, vector<1x1x4x128xf32>
    %968 = vector.shape_cast %967 : vector<1x1x4x128xf32> to vector<4x128xf32>
    %c28_1343 = arith.constant 28 : index
    %c256_1344 = arith.constant 256 : index
    %969 = vector.load %arg19[%c28_1343, %c256_1344] : memref<128x1152xf32, #tpu.memory_space<vmem>>, vector<4x128xf32>
    tpu.vector_store %arg19[%c28_1343, %c256_1344], %968 {strides = array<i32>} : memref<128x1152xf32, #tpu.memory_space<vmem>>, vector<4x128xf32>,
    %c1_1345 = arith.constant 1 : index
    %c7_1346 = arith.constant 7 : index
    %c0_1347 = arith.constant 0 : index
    %c0_1348 = arith.constant 0 : index
    %970 = vector.load %arg20[%c1_1345, %c7_1346, %c0_1347, %c0_1348] : memref<2x10x5x256xf32, #tpu.memory_space<vmem>>, vector<1x1x4x256xf32>
    %971 = vector.shape_cast %970 : vector<1x1x4x256xf32> to vector<4x256xf32>
    %c28_1349 = arith.constant 28 : index
    %c384_1350 = arith.constant 384 : index
    %972 = vector.load %arg19[%c28_1349, %c384_1350] : memref<128x1152xf32, #tpu.memory_space<vmem>>, vector<4x256xf32>
    tpu.vector_store %arg19[%c28_1349, %c384_1350], %971 {strides = array<i32>} : memref<128x1152xf32, #tpu.memory_space<vmem>>, vector<4x256xf32>,
    %c1_1351 = arith.constant 1 : index
    %c7_1352 = arith.constant 7 : index
    %c1_1353 = arith.constant 1 : index
    %c0_1354 = arith.constant 0 : index
    %973 = vector.load %arg20[%c1_1351, %c7_1352, %c1_1353, %c0_1354] : memref<2x10x5x256xf32, #tpu.memory_space<vmem>>, vector<1x1x4x128xf32>
    %974 = vector.shape_cast %973 : vector<1x1x4x128xf32> to vector<4x128xf32>
    %c28_1355 = arith.constant 28 : index
    %c640_1356 = arith.constant 640 : index
    %975 = vector.load %arg19[%c28_1355, %c640_1356] : memref<128x1152xf32, #tpu.memory_space<vmem>>, vector<4x128xf32>
    tpu.vector_store %arg19[%c28_1355, %c640_1356], %974 {strides = array<i32>} : memref<128x1152xf32, #tpu.memory_space<vmem>>, vector<4x128xf32>,
    %c1_1357 = arith.constant 1 : index
    %c8_1358 = arith.constant 8 : index
    %c0_1359 = arith.constant 0 : index
    %c0_1360 = arith.constant 0 : index
    %976 = vector.load %arg20[%c1_1357, %c8_1358, %c0_1359, %c0_1360] : memref<2x10x5x256xf32, #tpu.memory_space<vmem>>, vector<1x1x4x256xf32>
    %977 = vector.shape_cast %976 : vector<1x1x4x256xf32> to vector<4x256xf32>
    %c28_1361 = arith.constant 28 : index
    %c768_1362 = arith.constant 768 : index
    %978 = vector.load %arg19[%c28_1361, %c768_1362] : memref<128x1152xf32, #tpu.memory_space<vmem>>, vector<4x256xf32>
    tpu.vector_store %arg19[%c28_1361, %c768_1362], %977 {strides = array<i32>} : memref<128x1152xf32, #tpu.memory_space<vmem>>, vector<4x256xf32>,
    %c1_1363 = arith.constant 1 : index
    %c8_1364 = arith.constant 8 : index
    %c1_1365 = arith.constant 1 : index
    %c0_1366 = arith.constant 0 : index
    %979 = vector.load %arg20[%c1_1363, %c8_1364, %c1_1365, %c0_1366] : memref<2x10x5x256xf32, #tpu.memory_space<vmem>>, vector<1x1x4x128xf32>
    %980 = vector.shape_cast %979 : vector<1x1x4x128xf32> to vector<4x128xf32>
    %c28_1367 = arith.constant 28 : index
    %c1024_1368 = arith.constant 1024 : index
    %981 = vector.load %arg19[%c28_1367, %c1024_1368] : memref<128x1152xf32, #tpu.memory_space<vmem>>, vector<4x128xf32>
    tpu.vector_store %arg19[%c28_1367, %c1024_1368], %980 {strides = array<i32>} : memref<128x1152xf32, #tpu.memory_space<vmem>>, vector<4x128xf32>,
    %c0_1369 = arith.constant 0 : index
    %c0_1370 = arith.constant 0 : index
    %982 = vector.load %arg19[%c0_1369, %c0_1370] : memref<128x1152xf32, #tpu.memory_space<vmem>>, vector<32x1152xf32>
    %983 = arith.truncf %982 : vector<32x1152xf32> to vector<32x1152xbf16>
    %c0_1371 = arith.constant 0 : index
    %c0_1372 = arith.constant 0 : index
    %984 = vector.load %arg6[%c0_1371, %c0_1372] : memref<1152x128xbf16, #tpu.memory_space<vmem>>, vector<1152x128xbf16>
    %cst_1373 = arith.constant dense<0.000000e+00> : vector<32x128xf32>
    %985 = tpu.matmul %983, %984, %cst_1373 {dimension_numbers = #tpu.dot_dimension_numbers<[1], [0], [0], [1], [0, 0, 1, 1], [], []>} : vector<32x1152xbf16>, vector<1152x128xbf16>, vector<32x128xf32> -> vector<32x128xf32>
    %c0_1374 = arith.constant 0 : index
    %c0_1375 = arith.constant 0 : index
    %986 = vector.load %arg7[%c0_1374, %c0_1375] : memref<1x128xf32, #tpu.memory_space<vmem>>, vector<1x128xf32>
    %987 = vector.broadcast %986 : vector<1x128xf32> to vector<32x128xf32>
    %988 = arith.addf %985, %987 : vector<32x128xf32>
    %cst_1376 = arith.constant 0.000000e+00 : f32
    %989 = vector.broadcast %cst_1376 : f32 to vector<32x128xf32>
    %990 = arith.maximumf %988, %989 : vector<32x128xf32>
    %cst_1377 = arith.constant dense<0.000000e+00> : vector<128xf32>
    %991 = vector.multi_reduction <add>, %990, %cst_1377 [0] : vector<32x128xf32> to vector<128xf32>
    %992 = vector.shape_cast %991 : vector<128xf32> to vector<1x128xf32>
    %cst_1378 = arith.constant 3.200000e+01 : f32
    %993 = vector.broadcast %cst_1378 : f32 to vector<1x128xf32>
    %994 = arith.divf %992, %993 : vector<1x128xf32>
    %995 = vector.broadcast %994 : vector<1x128xf32> to vector<32x128xf32>
    %996 = arith.subf %990, %995 : vector<32x128xf32>
    %997 = arith.mulf %996, %996 : vector<32x128xf32>
    %cst_1379 = arith.constant dense<0.000000e+00> : vector<128xf32>
    %998 = vector.multi_reduction <add>, %997, %cst_1379 [0] : vector<32x128xf32> to vector<128xf32>
    %999 = vector.shape_cast %998 : vector<128xf32> to vector<1x128xf32>
    %cst_1380 = arith.constant 3.200000e+01 : f32
    %1000 = vector.broadcast %cst_1380 : f32 to vector<1x128xf32>
    %1001 = arith.divf %999, %1000 : vector<1x128xf32>
    %c0_1381 = arith.constant 0 : index
    %c0_1382 = arith.constant 0 : index
    %1002 = vector.load %arg8[%c0_1381, %c0_1382] : memref<1x128xf32, #tpu.memory_space<vmem>>, vector<1x128xf32>
    %cst_1383 = arith.constant 9.99999974E-6 : f32
    %1003 = vector.broadcast %cst_1383 : f32 to vector<1x128xf32>
    %1004 = arith.addf %1001, %1003 : vector<1x128xf32>
    %1005 = math.rsqrt %1004 : vector<1x128xf32>
    %1006 = arith.mulf %1002, %1005 : vector<1x128xf32>
    %c0_1384 = arith.constant 0 : index
    %c0_1385 = arith.constant 0 : index
    %1007 = vector.load %arg9[%c0_1384, %c0_1385] : memref<1x128xf32, #tpu.memory_space<vmem>>, vector<1x128xf32>
    %1008 = arith.mulf %994, %1006 : vector<1x128xf32>
    %1009 = arith.subf %1007, %1008 : vector<1x128xf32>
    %1010 = vector.broadcast %1006 : vector<1x128xf32> to vector<32x128xf32>
    %1011 = arith.mulf %990, %1010 : vector<32x128xf32>
    %1012 = vector.broadcast %1009 : vector<1x128xf32> to vector<32x128xf32>
    %1013 = arith.addf %1011, %1012 : vector<32x128xf32>
    %1014 = vector.extract_strided_slice %1013 {offsets = [0, 0], sizes = [1, 128], strides = [1, 1]} : vector<32x128xf32> to vector<1x128xf32>
    %c0_1386 = arith.constant 0 : index
    %c1_1387 = arith.constant 1 : index
    %c0_1388 = arith.constant 0 : index
    %c128_1389 = arith.constant 128 : index
    %1015 = vector.load %arg21[%c0_1386, %c1_1387, %c0_1388, %c128_1389] : memref<2x6x3x256xf32, #tpu.memory_space<vmem>>, vector<1x1x1x128xf32>
    %1016 = vector.shape_cast %1015 : vector<1x1x1x128xf32> to vector<1x128xf32>
    %1017 = vector.shape_cast %1014 : vector<1x128xf32> to vector<1x1x1x128xf32>
    tpu.vector_store %arg21[%c0_1386, %c1_1387, %c0_1388, %c128_1389], %1017 {strides = array<i32>} : memref<2x6x3x256xf32, #tpu.memory_space<vmem>>, vector<1x1x1x128xf32>,
    %1018 = vector.extract_strided_slice %1013 {offsets = [1, 0], sizes = [1, 128], strides = [1, 1]} : vector<32x128xf32> to vector<1x128xf32>
    %c0_1390 = arith.constant 0 : index
    %c1_1391 = arith.constant 1 : index
    %c1_1392 = arith.constant 1 : index
    %c0_1393 = arith.constant 0 : index
    %1019 = vector.load %arg21[%c0_1390, %c1_1391, %c1_1392, %c0_1393] : memref<2x6x3x256xf32, #tpu.memory_space<vmem>>, vector<1x1x1x128xf32>
    %1020 = vector.shape_cast %1019 : vector<1x1x1x128xf32> to vector<1x128xf32>
    %1021 = vector.shape_cast %1018 : vector<1x128xf32> to vector<1x1x1x128xf32>
    tpu.vector_store %arg21[%c0_1390, %c1_1391, %c1_1392, %c0_1393], %1021 {strides = array<i32>} : memref<2x6x3x256xf32, #tpu.memory_space<vmem>>, vector<1x1x1x128xf32>,
    %1022 = vector.extract_strided_slice %1013 {offsets = [2, 0], sizes = [1, 128], strides = [1, 1]} : vector<32x128xf32> to vector<1x128xf32>
    %c0_1394 = arith.constant 0 : index
    %c1_1395 = arith.constant 1 : index
    %c1_1396 = arith.constant 1 : index
    %c128_1397 = arith.constant 128 : index
    %1023 = vector.load %arg21[%c0_1394, %c1_1395, %c1_1396, %c128_1397] : memref<2x6x3x256xf32, #tpu.memory_space<vmem>>, vector<1x1x1x128xf32>
    %1024 = vector.shape_cast %1023 : vector<1x1x1x128xf32> to vector<1x128xf32>
    %1025 = vector.shape_cast %1022 : vector<1x128xf32> to vector<1x1x1x128xf32>
    tpu.vector_store %arg21[%c0_1394, %c1_1395, %c1_1396, %c128_1397], %1025 {strides = array<i32>} : memref<2x6x3x256xf32, #tpu.memory_space<vmem>>, vector<1x1x1x128xf32>,
    %1026 = vector.extract_strided_slice %1013 {offsets = [3, 0], sizes = [1, 128], strides = [1, 1]} : vector<32x128xf32> to vector<1x128xf32>
    %c0_1398 = arith.constant 0 : index
    %c1_1399 = arith.constant 1 : index
    %c2_1400 = arith.constant 2 : index
    %c0_1401 = arith.constant 0 : index
    %1027 = vector.load %arg21[%c0_1398, %c1_1399, %c2_1400, %c0_1401] : memref<2x6x3x256xf32, #tpu.memory_space<vmem>>, vector<1x1x1x128xf32>
    %1028 = vector.shape_cast %1027 : vector<1x1x1x128xf32> to vector<1x128xf32>
    %1029 = vector.shape_cast %1026 : vector<1x128xf32> to vector<1x1x1x128xf32>
    tpu.vector_store %arg21[%c0_1398, %c1_1399, %c2_1400, %c0_1401], %1029 {strides = array<i32>} : memref<2x6x3x256xf32, #tpu.memory_space<vmem>>, vector<1x1x1x128xf32>,
    %1030 = vector.extract_strided_slice %1013 {offsets = [4, 0], sizes = [1, 128], strides = [1, 1]} : vector<32x128xf32> to vector<1x128xf32>
    %c0_1402 = arith.constant 0 : index
    %c2_1403 = arith.constant 2 : index
    %c0_1404 = arith.constant 0 : index
    %c128_1405 = arith.constant 128 : index
    %1031 = vector.load %arg21[%c0_1402, %c2_1403, %c0_1404, %c128_1405] : memref<2x6x3x256xf32, #tpu.memory_space<vmem>>, vector<1x1x1x128xf32>
    %1032 = vector.shape_cast %1031 : vector<1x1x1x128xf32> to vector<1x128xf32>
    %1033 = vector.shape_cast %1030 : vector<1x128xf32> to vector<1x1x1x128xf32>
    tpu.vector_store %arg21[%c0_1402, %c2_1403, %c0_1404, %c128_1405], %1033 {strides = array<i32>} : memref<2x6x3x256xf32, #tpu.memory_space<vmem>>, vector<1x1x1x128xf32>,
    %1034 = vector.extract_strided_slice %1013 {offsets = [5, 0], sizes = [1, 128], strides = [1, 1]} : vector<32x128xf32> to vector<1x128xf32>
    %c0_1406 = arith.constant 0 : index
    %c2_1407 = arith.constant 2 : index
    %c1_1408 = arith.constant 1 : index
    %c0_1409 = arith.constant 0 : index
    %1035 = vector.load %arg21[%c0_1406, %c2_1407, %c1_1408, %c0_1409] : memref<2x6x3x256xf32, #tpu.memory_space<vmem>>, vector<1x1x1x128xf32>
    %1036 = vector.shape_cast %1035 : vector<1x1x1x128xf32> to vector<1x128xf32>
    %1037 = vector.shape_cast %1034 : vector<1x128xf32> to vector<1x1x1x128xf32>
    tpu.vector_store %arg21[%c0_1406, %c2_1407, %c1_1408, %c0_1409], %1037 {strides = array<i32>} : memref<2x6x3x256xf32, #tpu.memory_space<vmem>>, vector<1x1x1x128xf32>,
    %1038 = vector.extract_strided_slice %1013 {offsets = [6, 0], sizes = [1, 128], strides = [1, 1]} : vector<32x128xf32> to vector<1x128xf32>
    %c0_1410 = arith.constant 0 : index
    %c2_1411 = arith.constant 2 : index
    %c1_1412 = arith.constant 1 : index
    %c128_1413 = arith.constant 128 : index
    %1039 = vector.load %arg21[%c0_1410, %c2_1411, %c1_1412, %c128_1413] : memref<2x6x3x256xf32, #tpu.memory_space<vmem>>, vector<1x1x1x128xf32>
    %1040 = vector.shape_cast %1039 : vector<1x1x1x128xf32> to vector<1x128xf32>
    %1041 = vector.shape_cast %1038 : vector<1x128xf32> to vector<1x1x1x128xf32>
    tpu.vector_store %arg21[%c0_1410, %c2_1411, %c1_1412, %c128_1413], %1041 {strides = array<i32>} : memref<2x6x3x256xf32, #tpu.memory_space<vmem>>, vector<1x1x1x128xf32>,
    %1042 = vector.extract_strided_slice %1013 {offsets = [7, 0], sizes = [1, 128], strides = [1, 1]} : vector<32x128xf32> to vector<1x128xf32>
    %c0_1414 = arith.constant 0 : index
    %c2_1415 = arith.constant 2 : index
    %c2_1416 = arith.constant 2 : index
    %c0_1417 = arith.constant 0 : index
    %1043 = vector.load %arg21[%c0_1414, %c2_1415, %c2_1416, %c0_1417] : memref<2x6x3x256xf32, #tpu.memory_space<vmem>>, vector<1x1x1x128xf32>
    %1044 = vector.shape_cast %1043 : vector<1x1x1x128xf32> to vector<1x128xf32>
    %1045 = vector.shape_cast %1042 : vector<1x128xf32> to vector<1x1x1x128xf32>
    tpu.vector_store %arg21[%c0_1414, %c2_1415, %c2_1416, %c0_1417], %1045 {strides = array<i32>} : memref<2x6x3x256xf32, #tpu.memory_space<vmem>>, vector<1x1x1x128xf32>,
    %1046 = vector.extract_strided_slice %1013 {offsets = [8, 0], sizes = [1, 128], strides = [1, 1]} : vector<32x128xf32> to vector<1x128xf32>
    %c0_1418 = arith.constant 0 : index
    %c3_1419 = arith.constant 3 : index
    %c0_1420 = arith.constant 0 : index
    %c128_1421 = arith.constant 128 : index
    %1047 = vector.load %arg21[%c0_1418, %c3_1419, %c0_1420, %c128_1421] : memref<2x6x3x256xf32, #tpu.memory_space<vmem>>, vector<1x1x1x128xf32>
    %1048 = vector.shape_cast %1047 : vector<1x1x1x128xf32> to vector<1x128xf32>
    %1049 = vector.shape_cast %1046 : vector<1x128xf32> to vector<1x1x1x128xf32>
    tpu.vector_store %arg21[%c0_1418, %c3_1419, %c0_1420, %c128_1421], %1049 {strides = array<i32>} : memref<2x6x3x256xf32, #tpu.memory_space<vmem>>, vector<1x1x1x128xf32>,
    %1050 = vector.extract_strided_slice %1013 {offsets = [9, 0], sizes = [1, 128], strides = [1, 1]} : vector<32x128xf32> to vector<1x128xf32>
    %c0_1422 = arith.constant 0 : index
    %c3_1423 = arith.constant 3 : index
    %c1_1424 = arith.constant 1 : index
    %c0_1425 = arith.constant 0 : index
    %1051 = vector.load %arg21[%c0_1422, %c3_1423, %c1_1424, %c0_1425] : memref<2x6x3x256xf32, #tpu.memory_space<vmem>>, vector<1x1x1x128xf32>
    %1052 = vector.shape_cast %1051 : vector<1x1x1x128xf32> to vector<1x128xf32>
    %1053 = vector.shape_cast %1050 : vector<1x128xf32> to vector<1x1x1x128xf32>
    tpu.vector_store %arg21[%c0_1422, %c3_1423, %c1_1424, %c0_1425], %1053 {strides = array<i32>} : memref<2x6x3x256xf32, #tpu.memory_space<vmem>>, vector<1x1x1x128xf32>,
    %1054 = vector.extract_strided_slice %1013 {offsets = [10, 0], sizes = [1, 128], strides = [1, 1]} : vector<32x128xf32> to vector<1x128xf32>
    %c0_1426 = arith.constant 0 : index
    %c3_1427 = arith.constant 3 : index
    %c1_1428 = arith.constant 1 : index
    %c128_1429 = arith.constant 128 : index
    %1055 = vector.load %arg21[%c0_1426, %c3_1427, %c1_1428, %c128_1429] : memref<2x6x3x256xf32, #tpu.memory_space<vmem>>, vector<1x1x1x128xf32>
    %1056 = vector.shape_cast %1055 : vector<1x1x1x128xf32> to vector<1x128xf32>
    %1057 = vector.shape_cast %1054 : vector<1x128xf32> to vector<1x1x1x128xf32>
    tpu.vector_store %arg21[%c0_1426, %c3_1427, %c1_1428, %c128_1429], %1057 {strides = array<i32>} : memref<2x6x3x256xf32, #tpu.memory_space<vmem>>, vector<1x1x1x128xf32>,
    %1058 = vector.extract_strided_slice %1013 {offsets = [11, 0], sizes = [1, 128], strides = [1, 1]} : vector<32x128xf32> to vector<1x128xf32>
    %c0_1430 = arith.constant 0 : index
    %c3_1431 = arith.constant 3 : index
    %c2_1432 = arith.constant 2 : index
    %c0_1433 = arith.constant 0 : index
    %1059 = vector.load %arg21[%c0_1430, %c3_1431, %c2_1432, %c0_1433] : memref<2x6x3x256xf32, #tpu.memory_space<vmem>>, vector<1x1x1x128xf32>
    %1060 = vector.shape_cast %1059 : vector<1x1x1x128xf32> to vector<1x128xf32>
    %1061 = vector.shape_cast %1058 : vector<1x128xf32> to vector<1x1x1x128xf32>
    tpu.vector_store %arg21[%c0_1430, %c3_1431, %c2_1432, %c0_1433], %1061 {strides = array<i32>} : memref<2x6x3x256xf32, #tpu.memory_space<vmem>>, vector<1x1x1x128xf32>,
    %1062 = vector.extract_strided_slice %1013 {offsets = [12, 0], sizes = [1, 128], strides = [1, 1]} : vector<32x128xf32> to vector<1x128xf32>
    %c0_1434 = arith.constant 0 : index
    %c4_1435 = arith.constant 4 : index
    %c0_1436 = arith.constant 0 : index
    %c128_1437 = arith.constant 128 : index
    %1063 = vector.load %arg21[%c0_1434, %c4_1435, %c0_1436, %c128_1437] : memref<2x6x3x256xf32, #tpu.memory_space<vmem>>, vector<1x1x1x128xf32>
    %1064 = vector.shape_cast %1063 : vector<1x1x1x128xf32> to vector<1x128xf32>
    %1065 = vector.shape_cast %1062 : vector<1x128xf32> to vector<1x1x1x128xf32>
    tpu.vector_store %arg21[%c0_1434, %c4_1435, %c0_1436, %c128_1437], %1065 {strides = array<i32>} : memref<2x6x3x256xf32, #tpu.memory_space<vmem>>, vector<1x1x1x128xf32>,
    %1066 = vector.extract_strided_slice %1013 {offsets = [13, 0], sizes = [1, 128], strides = [1, 1]} : vector<32x128xf32> to vector<1x128xf32>
    %c0_1438 = arith.constant 0 : index
    %c4_1439 = arith.constant 4 : index
    %c1_1440 = arith.constant 1 : index
    %c0_1441 = arith.constant 0 : index
    %1067 = vector.load %arg21[%c0_1438, %c4_1439, %c1_1440, %c0_1441] : memref<2x6x3x256xf32, #tpu.memory_space<vmem>>, vector<1x1x1x128xf32>
    %1068 = vector.shape_cast %1067 : vector<1x1x1x128xf32> to vector<1x128xf32>
    %1069 = vector.shape_cast %1066 : vector<1x128xf32> to vector<1x1x1x128xf32>
    tpu.vector_store %arg21[%c0_1438, %c4_1439, %c1_1440, %c0_1441], %1069 {strides = array<i32>} : memref<2x6x3x256xf32, #tpu.memory_space<vmem>>, vector<1x1x1x128xf32>,
    %1070 = vector.extract_strided_slice %1013 {offsets = [14, 0], sizes = [1, 128], strides = [1, 1]} : vector<32x128xf32> to vector<1x128xf32>
    %c0_1442 = arith.constant 0 : index
    %c4_1443 = arith.constant 4 : index
    %c1_1444 = arith.constant 1 : index
    %c128_1445 = arith.constant 128 : index
    %1071 = vector.load %arg21[%c0_1442, %c4_1443, %c1_1444, %c128_1445] : memref<2x6x3x256xf32, #tpu.memory_space<vmem>>, vector<1x1x1x128xf32>
    %1072 = vector.shape_cast %1071 : vector<1x1x1x128xf32> to vector<1x128xf32>
    %1073 = vector.shape_cast %1070 : vector<1x128xf32> to vector<1x1x1x128xf32>
    tpu.vector_store %arg21[%c0_1442, %c4_1443, %c1_1444, %c128_1445], %1073 {strides = array<i32>} : memref<2x6x3x256xf32, #tpu.memory_space<vmem>>, vector<1x1x1x128xf32>,
    %1074 = vector.extract_strided_slice %1013 {offsets = [15, 0], sizes = [1, 128], strides = [1, 1]} : vector<32x128xf32> to vector<1x128xf32>
    %c0_1446 = arith.constant 0 : index
    %c4_1447 = arith.constant 4 : index
    %c2_1448 = arith.constant 2 : index
    %c0_1449 = arith.constant 0 : index
    %1075 = vector.load %arg21[%c0_1446, %c4_1447, %c2_1448, %c0_1449] : memref<2x6x3x256xf32, #tpu.memory_space<vmem>>, vector<1x1x1x128xf32>
    %1076 = vector.shape_cast %1075 : vector<1x1x1x128xf32> to vector<1x128xf32>
    %1077 = vector.shape_cast %1074 : vector<1x128xf32> to vector<1x1x1x128xf32>
    tpu.vector_store %arg21[%c0_1446, %c4_1447, %c2_1448, %c0_1449], %1077 {strides = array<i32>} : memref<2x6x3x256xf32, #tpu.memory_space<vmem>>, vector<1x1x1x128xf32>,
    %1078 = vector.extract_strided_slice %1013 {offsets = [16, 0], sizes = [1, 128], strides = [1, 1]} : vector<32x128xf32> to vector<1x128xf32>
    %c1_1450 = arith.constant 1 : index
    %c1_1451 = arith.constant 1 : index
    %c0_1452 = arith.constant 0 : index
    %c128_1453 = arith.constant 128 : index
    %1079 = vector.load %arg21[%c1_1450, %c1_1451, %c0_1452, %c128_1453] : memref<2x6x3x256xf32, #tpu.memory_space<vmem>>, vector<1x1x1x128xf32>
    %1080 = vector.shape_cast %1079 : vector<1x1x1x128xf32> to vector<1x128xf32>
    %1081 = vector.shape_cast %1078 : vector<1x128xf32> to vector<1x1x1x128xf32>
    tpu.vector_store %arg21[%c1_1450, %c1_1451, %c0_1452, %c128_1453], %1081 {strides = array<i32>} : memref<2x6x3x256xf32, #tpu.memory_space<vmem>>, vector<1x1x1x128xf32>,
    %1082 = vector.extract_strided_slice %1013 {offsets = [17, 0], sizes = [1, 128], strides = [1, 1]} : vector<32x128xf32> to vector<1x128xf32>
    %c1_1454 = arith.constant 1 : index
    %c1_1455 = arith.constant 1 : index
    %c1_1456 = arith.constant 1 : index
    %c0_1457 = arith.constant 0 : index
    %1083 = vector.load %arg21[%c1_1454, %c1_1455, %c1_1456, %c0_1457] : memref<2x6x3x256xf32, #tpu.memory_space<vmem>>, vector<1x1x1x128xf32>
    %1084 = vector.shape_cast %1083 : vector<1x1x1x128xf32> to vector<1x128xf32>
    %1085 = vector.shape_cast %1082 : vector<1x128xf32> to vector<1x1x1x128xf32>
    tpu.vector_store %arg21[%c1_1454, %c1_1455, %c1_1456, %c0_1457], %1085 {strides = array<i32>} : memref<2x6x3x256xf32, #tpu.memory_space<vmem>>, vector<1x1x1x128xf32>,
    %1086 = vector.extract_strided_slice %1013 {offsets = [18, 0], sizes = [1, 128], strides = [1, 1]} : vector<32x128xf32> to vector<1x128xf32>
    %c1_1458 = arith.constant 1 : index
    %c1_1459 = arith.constant 1 : index
    %c1_1460 = arith.constant 1 : index
    %c128_1461 = arith.constant 128 : index
    %1087 = vector.load %arg21[%c1_1458, %c1_1459, %c1_1460, %c128_1461] : memref<2x6x3x256xf32, #tpu.memory_space<vmem>>, vector<1x1x1x128xf32>
    %1088 = vector.shape_cast %1087 : vector<1x1x1x128xf32> to vector<1x128xf32>
    %1089 = vector.shape_cast %1086 : vector<1x128xf32> to vector<1x1x1x128xf32>
    tpu.vector_store %arg21[%c1_1458, %c1_1459, %c1_1460, %c128_1461], %1089 {strides = array<i32>} : memref<2x6x3x256xf32, #tpu.memory_space<vmem>>, vector<1x1x1x128xf32>,
    %1090 = vector.extract_strided_slice %1013 {offsets = [19, 0], sizes = [1, 128], strides = [1, 1]} : vector<32x128xf32> to vector<1x128xf32>
    %c1_1462 = arith.constant 1 : index
    %c1_1463 = arith.constant 1 : index
    %c2_1464 = arith.constant 2 : index
    %c0_1465 = arith.constant 0 : index
    %1091 = vector.load %arg21[%c1_1462, %c1_1463, %c2_1464, %c0_1465] : memref<2x6x3x256xf32, #tpu.memory_space<vmem>>, vector<1x1x1x128xf32>
    %1092 = vector.shape_cast %1091 : vector<1x1x1x128xf32> to vector<1x128xf32>
    %1093 = vector.shape_cast %1090 : vector<1x128xf32> to vector<1x1x1x128xf32>
    tpu.vector_store %arg21[%c1_1462, %c1_1463, %c2_1464, %c0_1465], %1093 {strides = array<i32>} : memref<2x6x3x256xf32, #tpu.memory_space<vmem>>, vector<1x1x1x128xf32>,
    %1094 = vector.extract_strided_slice %1013 {offsets = [20, 0], sizes = [1, 128], strides = [1, 1]} : vector<32x128xf32> to vector<1x128xf32>
    %c1_1466 = arith.constant 1 : index
    %c2_1467 = arith.constant 2 : index
    %c0_1468 = arith.constant 0 : index
    %c128_1469 = arith.constant 128 : index
    %1095 = vector.load %arg21[%c1_1466, %c2_1467, %c0_1468, %c128_1469] : memref<2x6x3x256xf32, #tpu.memory_space<vmem>>, vector<1x1x1x128xf32>
    %1096 = vector.shape_cast %1095 : vector<1x1x1x128xf32> to vector<1x128xf32>
    %1097 = vector.shape_cast %1094 : vector<1x128xf32> to vector<1x1x1x128xf32>
    tpu.vector_store %arg21[%c1_1466, %c2_1467, %c0_1468, %c128_1469], %1097 {strides = array<i32>} : memref<2x6x3x256xf32, #tpu.memory_space<vmem>>, vector<1x1x1x128xf32>,
    %1098 = vector.extract_strided_slice %1013 {offsets = [21, 0], sizes = [1, 128], strides = [1, 1]} : vector<32x128xf32> to vector<1x128xf32>
    %c1_1470 = arith.constant 1 : index
    %c2_1471 = arith.constant 2 : index
    %c1_1472 = arith.constant 1 : index
    %c0_1473 = arith.constant 0 : index
    %1099 = vector.load %arg21[%c1_1470, %c2_1471, %c1_1472, %c0_1473] : memref<2x6x3x256xf32, #tpu.memory_space<vmem>>, vector<1x1x1x128xf32>
    %1100 = vector.shape_cast %1099 : vector<1x1x1x128xf32> to vector<1x128xf32>
    %1101 = vector.shape_cast %1098 : vector<1x128xf32> to vector<1x1x1x128xf32>
    tpu.vector_store %arg21[%c1_1470, %c2_1471, %c1_1472, %c0_1473], %1101 {strides = array<i32>} : memref<2x6x3x256xf32, #tpu.memory_space<vmem>>, vector<1x1x1x128xf32>,
    %1102 = vector.extract_strided_slice %1013 {offsets = [22, 0], sizes = [1, 128], strides = [1, 1]} : vector<32x128xf32> to vector<1x128xf32>
    %c1_1474 = arith.constant 1 : index
    %c2_1475 = arith.constant 2 : index
    %c1_1476 = arith.constant 1 : index
    %c128_1477 = arith.constant 128 : index
    %1103 = vector.load %arg21[%c1_1474, %c2_1475, %c1_1476, %c128_1477] : memref<2x6x3x256xf32, #tpu.memory_space<vmem>>, vector<1x1x1x128xf32>
    %1104 = vector.shape_cast %1103 : vector<1x1x1x128xf32> to vector<1x128xf32>
    %1105 = vector.shape_cast %1102 : vector<1x128xf32> to vector<1x1x1x128xf32>
    tpu.vector_store %arg21[%c1_1474, %c2_1475, %c1_1476, %c128_1477], %1105 {strides = array<i32>} : memref<2x6x3x256xf32, #tpu.memory_space<vmem>>, vector<1x1x1x128xf32>,
    %1106 = vector.extract_strided_slice %1013 {offsets = [23, 0], sizes = [1, 128], strides = [1, 1]} : vector<32x128xf32> to vector<1x128xf32>
    %c1_1478 = arith.constant 1 : index
    %c2_1479 = arith.constant 2 : index
    %c2_1480 = arith.constant 2 : index
    %c0_1481 = arith.constant 0 : index
    %1107 = vector.load %arg21[%c1_1478, %c2_1479, %c2_1480, %c0_1481] : memref<2x6x3x256xf32, #tpu.memory_space<vmem>>, vector<1x1x1x128xf32>
    %1108 = vector.shape_cast %1107 : vector<1x1x1x128xf32> to vector<1x128xf32>
    %1109 = vector.shape_cast %1106 : vector<1x128xf32> to vector<1x1x1x128xf32>
    tpu.vector_store %arg21[%c1_1478, %c2_1479, %c2_1480, %c0_1481], %1109 {strides = array<i32>} : memref<2x6x3x256xf32, #tpu.memory_space<vmem>>, vector<1x1x1x128xf32>,
    %1110 = vector.extract_strided_slice %1013 {offsets = [24, 0], sizes = [1, 128], strides = [1, 1]} : vector<32x128xf32> to vector<1x128xf32>
    %c1_1482 = arith.constant 1 : index
    %c3_1483 = arith.constant 3 : index
    %c0_1484 = arith.constant 0 : index
    %c128_1485 = arith.constant 128 : index
    %1111 = vector.load %arg21[%c1_1482, %c3_1483, %c0_1484, %c128_1485] : memref<2x6x3x256xf32, #tpu.memory_space<vmem>>, vector<1x1x1x128xf32>
    %1112 = vector.shape_cast %1111 : vector<1x1x1x128xf32> to vector<1x128xf32>
    %1113 = vector.shape_cast %1110 : vector<1x128xf32> to vector<1x1x1x128xf32>
    tpu.vector_store %arg21[%c1_1482, %c3_1483, %c0_1484, %c128_1485], %1113 {strides = array<i32>} : memref<2x6x3x256xf32, #tpu.memory_space<vmem>>, vector<1x1x1x128xf32>,
    %1114 = vector.extract_strided_slice %1013 {offsets = [25, 0], sizes = [1, 128], strides = [1, 1]} : vector<32x128xf32> to vector<1x128xf32>
    %c1_1486 = arith.constant 1 : index
    %c3_1487 = arith.constant 3 : index
    %c1_1488 = arith.constant 1 : index
    %c0_1489 = arith.constant 0 : index
    %1115 = vector.load %arg21[%c1_1486, %c3_1487, %c1_1488, %c0_1489] : memref<2x6x3x256xf32, #tpu.memory_space<vmem>>, vector<1x1x1x128xf32>
    %1116 = vector.shape_cast %1115 : vector<1x1x1x128xf32> to vector<1x128xf32>
    %1117 = vector.shape_cast %1114 : vector<1x128xf32> to vector<1x1x1x128xf32>
    tpu.vector_store %arg21[%c1_1486, %c3_1487, %c1_1488, %c0_1489], %1117 {strides = array<i32>} : memref<2x6x3x256xf32, #tpu.memory_space<vmem>>, vector<1x1x1x128xf32>,
    %1118 = vector.extract_strided_slice %1013 {offsets = [26, 0], sizes = [1, 128], strides = [1, 1]} : vector<32x128xf32> to vector<1x128xf32>
    %c1_1490 = arith.constant 1 : index
    %c3_1491 = arith.constant 3 : index
    %c1_1492 = arith.constant 1 : index
    %c128_1493 = arith.constant 128 : index
    %1119 = vector.load %arg21[%c1_1490, %c3_1491, %c1_1492, %c128_1493] : memref<2x6x3x256xf32, #tpu.memory_space<vmem>>, vector<1x1x1x128xf32>
    %1120 = vector.shape_cast %1119 : vector<1x1x1x128xf32> to vector<1x128xf32>
    %1121 = vector.shape_cast %1118 : vector<1x128xf32> to vector<1x1x1x128xf32>
    tpu.vector_store %arg21[%c1_1490, %c3_1491, %c1_1492, %c128_1493], %1121 {strides = array<i32>} : memref<2x6x3x256xf32, #tpu.memory_space<vmem>>, vector<1x1x1x128xf32>,
    %1122 = vector.extract_strided_slice %1013 {offsets = [27, 0], sizes = [1, 128], strides = [1, 1]} : vector<32x128xf32> to vector<1x128xf32>
    %c1_1494 = arith.constant 1 : index
    %c3_1495 = arith.constant 3 : index
    %c2_1496 = arith.constant 2 : index
    %c0_1497 = arith.constant 0 : index
    %1123 = vector.load %arg21[%c1_1494, %c3_1495, %c2_1496, %c0_1497] : memref<2x6x3x256xf32, #tpu.memory_space<vmem>>, vector<1x1x1x128xf32>
    %1124 = vector.shape_cast %1123 : vector<1x1x1x128xf32> to vector<1x128xf32>
    %1125 = vector.shape_cast %1122 : vector<1x128xf32> to vector<1x1x1x128xf32>
    tpu.vector_store %arg21[%c1_1494, %c3_1495, %c2_1496, %c0_1497], %1125 {strides = array<i32>} : memref<2x6x3x256xf32, #tpu.memory_space<vmem>>, vector<1x1x1x128xf32>,
    %1126 = vector.extract_strided_slice %1013 {offsets = [28, 0], sizes = [1, 128], strides = [1, 1]} : vector<32x128xf32> to vector<1x128xf32>
    %c1_1498 = arith.constant 1 : index
    %c4_1499 = arith.constant 4 : index
    %c0_1500 = arith.constant 0 : index
    %c128_1501 = arith.constant 128 : index
    %1127 = vector.load %arg21[%c1_1498, %c4_1499, %c0_1500, %c128_1501] : memref<2x6x3x256xf32, #tpu.memory_space<vmem>>, vector<1x1x1x128xf32>
    %1128 = vector.shape_cast %1127 : vector<1x1x1x128xf32> to vector<1x128xf32>
    %1129 = vector.shape_cast %1126 : vector<1x128xf32> to vector<1x1x1x128xf32>
    tpu.vector_store %arg21[%c1_1498, %c4_1499, %c0_1500, %c128_1501], %1129 {strides = array<i32>} : memref<2x6x3x256xf32, #tpu.memory_space<vmem>>, vector<1x1x1x128xf32>,
    %1130 = vector.extract_strided_slice %1013 {offsets = [29, 0], sizes = [1, 128], strides = [1, 1]} : vector<32x128xf32> to vector<1x128xf32>
    %c1_1502 = arith.constant 1 : index
    %c4_1503 = arith.constant 4 : index
    %c1_1504 = arith.constant 1 : index
    %c0_1505 = arith.constant 0 : index
    %1131 = vector.load %arg21[%c1_1502, %c4_1503, %c1_1504, %c0_1505] : memref<2x6x3x256xf32, #tpu.memory_space<vmem>>, vector<1x1x1x128xf32>
    %1132 = vector.shape_cast %1131 : vector<1x1x1x128xf32> to vector<1x128xf32>
    %1133 = vector.shape_cast %1130 : vector<1x128xf32> to vector<1x1x1x128xf32>
    tpu.vector_store %arg21[%c1_1502, %c4_1503, %c1_1504, %c0_1505], %1133 {strides = array<i32>} : memref<2x6x3x256xf32, #tpu.memory_space<vmem>>, vector<1x1x1x128xf32>,
    %1134 = vector.extract_strided_slice %1013 {offsets = [30, 0], sizes = [1, 128], strides = [1, 1]} : vector<32x128xf32> to vector<1x128xf32>
    %c1_1506 = arith.constant 1 : index
    %c4_1507 = arith.constant 4 : index
    %c1_1508 = arith.constant 1 : index
    %c128_1509 = arith.constant 128 : index
    %1135 = vector.load %arg21[%c1_1506, %c4_1507, %c1_1508, %c128_1509] : memref<2x6x3x256xf32, #tpu.memory_space<vmem>>, vector<1x1x1x128xf32>
    %1136 = vector.shape_cast %1135 : vector<1x1x1x128xf32> to vector<1x128xf32>
    %1137 = vector.shape_cast %1134 : vector<1x128xf32> to vector<1x1x1x128xf32>
    tpu.vector_store %arg21[%c1_1506, %c4_1507, %c1_1508, %c128_1509], %1137 {strides = array<i32>} : memref<2x6x3x256xf32, #tpu.memory_space<vmem>>, vector<1x1x1x128xf32>,
    %1138 = vector.extract_strided_slice %1013 {offsets = [31, 0], sizes = [1, 128], strides = [1, 1]} : vector<32x128xf32> to vector<1x128xf32>
    %c1_1510 = arith.constant 1 : index
    %c4_1511 = arith.constant 4 : index
    %c2_1512 = arith.constant 2 : index
    %c0_1513 = arith.constant 0 : index
    %1139 = vector.load %arg21[%c1_1510, %c4_1511, %c2_1512, %c0_1513] : memref<2x6x3x256xf32, #tpu.memory_space<vmem>>, vector<1x1x1x128xf32>
    %1140 = vector.shape_cast %1139 : vector<1x1x1x128xf32> to vector<1x128xf32>
    %1141 = vector.shape_cast %1138 : vector<1x128xf32> to vector<1x1x1x128xf32>
    tpu.vector_store %arg21[%c1_1510, %c4_1511, %c2_1512, %c0_1513], %1141 {strides = array<i32>} : memref<2x6x3x256xf32, #tpu.memory_space<vmem>>, vector<1x1x1x128xf32>,
    %c0_1514 = arith.constant 0 : index
    %c0_1515 = arith.constant 0 : index
    %c0_1516 = arith.constant 0 : index
    %c0_1517 = arith.constant 0 : index
    %1142 = vector.load %arg21[%c0_1514, %c0_1515, %c0_1516, %c0_1517] : memref<2x6x3x256xf32, #tpu.memory_space<vmem>>, vector<1x1x2x256xf32>
    %1143 = vector.shape_cast %1142 : vector<1x1x2x256xf32> to vector<2x256xf32>
    %c0_1518 = arith.constant 0 : index
    %c0_1519 = arith.constant 0 : index
    %1144 = vector.load %arg19[%c0_1518, %c0_1519] : memref<128x1152xf32, #tpu.memory_space<vmem>>, vector<2x256xf32>
    tpu.vector_store %arg19[%c0_1518, %c0_1519], %1143 {strides = array<i32>} : memref<128x1152xf32, #tpu.memory_space<vmem>>, vector<2x256xf32>,
    %c0_1520 = arith.constant 0 : index
    %c0_1521 = arith.constant 0 : index
    %c1_1522 = arith.constant 1 : index
    %c0_1523 = arith.constant 0 : index
    %1145 = vector.load %arg21[%c0_1520, %c0_1521, %c1_1522, %c0_1523] : memref<2x6x3x256xf32, #tpu.memory_space<vmem>>, vector<1x1x2x128xf32>
    %1146 = vector.shape_cast %1145 : vector<1x1x2x128xf32> to vector<2x128xf32>
    %c0_1524 = arith.constant 0 : index
    %c256_1525 = arith.constant 256 : index
    %1147 = vector.load %arg19[%c0_1524, %c256_1525] : memref<128x1152xf32, #tpu.memory_space<vmem>>, vector<2x128xf32>
    tpu.vector_store %arg19[%c0_1524, %c256_1525], %1146 {strides = array<i32>} : memref<128x1152xf32, #tpu.memory_space<vmem>>, vector<2x128xf32>,
    %c0_1526 = arith.constant 0 : index
    %c1_1527 = arith.constant 1 : index
    %c0_1528 = arith.constant 0 : index
    %c0_1529 = arith.constant 0 : index
    %1148 = vector.load %arg21[%c0_1526, %c1_1527, %c0_1528, %c0_1529] : memref<2x6x3x256xf32, #tpu.memory_space<vmem>>, vector<1x1x2x256xf32>
    %1149 = vector.shape_cast %1148 : vector<1x1x2x256xf32> to vector<2x256xf32>
    %c0_1530 = arith.constant 0 : index
    %c384_1531 = arith.constant 384 : index
    %1150 = vector.load %arg19[%c0_1530, %c384_1531] : memref<128x1152xf32, #tpu.memory_space<vmem>>, vector<2x256xf32>
    tpu.vector_store %arg19[%c0_1530, %c384_1531], %1149 {strides = array<i32>} : memref<128x1152xf32, #tpu.memory_space<vmem>>, vector<2x256xf32>,
    %c0_1532 = arith.constant 0 : index
    %c1_1533 = arith.constant 1 : index
    %c1_1534 = arith.constant 1 : index
    %c0_1535 = arith.constant 0 : index
    %1151 = vector.load %arg21[%c0_1532, %c1_1533, %c1_1534, %c0_1535] : memref<2x6x3x256xf32, #tpu.memory_space<vmem>>, vector<1x1x2x128xf32>
    %1152 = vector.shape_cast %1151 : vector<1x1x2x128xf32> to vector<2x128xf32>
    %c0_1536 = arith.constant 0 : index
    %c640_1537 = arith.constant 640 : index
    %1153 = vector.load %arg19[%c0_1536, %c640_1537] : memref<128x1152xf32, #tpu.memory_space<vmem>>, vector<2x128xf32>
    tpu.vector_store %arg19[%c0_1536, %c640_1537], %1152 {strides = array<i32>} : memref<128x1152xf32, #tpu.memory_space<vmem>>, vector<2x128xf32>,
    %c0_1538 = arith.constant 0 : index
    %c2_1539 = arith.constant 2 : index
    %c0_1540 = arith.constant 0 : index
    %c0_1541 = arith.constant 0 : index
    %1154 = vector.load %arg21[%c0_1538, %c2_1539, %c0_1540, %c0_1541] : memref<2x6x3x256xf32, #tpu.memory_space<vmem>>, vector<1x1x2x256xf32>
    %1155 = vector.shape_cast %1154 : vector<1x1x2x256xf32> to vector<2x256xf32>
    %c0_1542 = arith.constant 0 : index
    %c768_1543 = arith.constant 768 : index
    %1156 = vector.load %arg19[%c0_1542, %c768_1543] : memref<128x1152xf32, #tpu.memory_space<vmem>>, vector<2x256xf32>
    tpu.vector_store %arg19[%c0_1542, %c768_1543], %1155 {strides = array<i32>} : memref<128x1152xf32, #tpu.memory_space<vmem>>, vector<2x256xf32>,
    %c0_1544 = arith.constant 0 : index
    %c2_1545 = arith.constant 2 : index
    %c1_1546 = arith.constant 1 : index
    %c0_1547 = arith.constant 0 : index
    %1157 = vector.load %arg21[%c0_1544, %c2_1545, %c1_1546, %c0_1547] : memref<2x6x3x256xf32, #tpu.memory_space<vmem>>, vector<1x1x2x128xf32>
    %1158 = vector.shape_cast %1157 : vector<1x1x2x128xf32> to vector<2x128xf32>
    %c0_1548 = arith.constant 0 : index
    %c1024_1549 = arith.constant 1024 : index
    %1159 = vector.load %arg19[%c0_1548, %c1024_1549] : memref<128x1152xf32, #tpu.memory_space<vmem>>, vector<2x128xf32>
    tpu.vector_store %arg19[%c0_1548, %c1024_1549], %1158 {strides = array<i32>} : memref<128x1152xf32, #tpu.memory_space<vmem>>, vector<2x128xf32>,
    %c0_1550 = arith.constant 0 : index
    %c2_1551 = arith.constant 2 : index
    %c0_1552 = arith.constant 0 : index
    %c0_1553 = arith.constant 0 : index
    %1160 = vector.load %arg21[%c0_1550, %c2_1551, %c0_1552, %c0_1553] : memref<2x6x3x256xf32, #tpu.memory_space<vmem>>, vector<1x1x2x256xf32>
    %1161 = vector.shape_cast %1160 : vector<1x1x2x256xf32> to vector<2x256xf32>
    %c2_1554 = arith.constant 2 : index
    %c0_1555 = arith.constant 0 : index
    %1162 = vector.load %arg19[%c2_1554, %c0_1555] : memref<128x1152xf32, #tpu.memory_space<vmem>>, vector<2x256xf32>
    tpu.vector_store %arg19[%c2_1554, %c0_1555], %1161 {strides = array<i32>} : memref<128x1152xf32, #tpu.memory_space<vmem>>, vector<2x256xf32>,
    %c0_1556 = arith.constant 0 : index
    %c2_1557 = arith.constant 2 : index
    %c1_1558 = arith.constant 1 : index
    %c0_1559 = arith.constant 0 : index
    %1163 = vector.load %arg21[%c0_1556, %c2_1557, %c1_1558, %c0_1559] : memref<2x6x3x256xf32, #tpu.memory_space<vmem>>, vector<1x1x2x128xf32>
    %1164 = vector.shape_cast %1163 : vector<1x1x2x128xf32> to vector<2x128xf32>
    %c2_1560 = arith.constant 2 : index
    %c256_1561 = arith.constant 256 : index
    %1165 = vector.load %arg19[%c2_1560, %c256_1561] : memref<128x1152xf32, #tpu.memory_space<vmem>>, vector<2x128xf32>
    tpu.vector_store %arg19[%c2_1560, %c256_1561], %1164 {strides = array<i32>} : memref<128x1152xf32, #tpu.memory_space<vmem>>, vector<2x128xf32>,
    %c0_1562 = arith.constant 0 : index
    %c3_1563 = arith.constant 3 : index
    %c0_1564 = arith.constant 0 : index
    %c0_1565 = arith.constant 0 : index
    %1166 = vector.load %arg21[%c0_1562, %c3_1563, %c0_1564, %c0_1565] : memref<2x6x3x256xf32, #tpu.memory_space<vmem>>, vector<1x1x2x256xf32>
    %1167 = vector.shape_cast %1166 : vector<1x1x2x256xf32> to vector<2x256xf32>
    %c2_1566 = arith.constant 2 : index
    %c384_1567 = arith.constant 384 : index
    %1168 = vector.load %arg19[%c2_1566, %c384_1567] : memref<128x1152xf32, #tpu.memory_space<vmem>>, vector<2x256xf32>
    tpu.vector_store %arg19[%c2_1566, %c384_1567], %1167 {strides = array<i32>} : memref<128x1152xf32, #tpu.memory_space<vmem>>, vector<2x256xf32>,
    %c0_1568 = arith.constant 0 : index
    %c3_1569 = arith.constant 3 : index
    %c1_1570 = arith.constant 1 : index
    %c0_1571 = arith.constant 0 : index
    %1169 = vector.load %arg21[%c0_1568, %c3_1569, %c1_1570, %c0_1571] : memref<2x6x3x256xf32, #tpu.memory_space<vmem>>, vector<1x1x2x128xf32>
    %1170 = vector.shape_cast %1169 : vector<1x1x2x128xf32> to vector<2x128xf32>
    %c2_1572 = arith.constant 2 : index
    %c640_1573 = arith.constant 640 : index
    %1171 = vector.load %arg19[%c2_1572, %c640_1573] : memref<128x1152xf32, #tpu.memory_space<vmem>>, vector<2x128xf32>
    tpu.vector_store %arg19[%c2_1572, %c640_1573], %1170 {strides = array<i32>} : memref<128x1152xf32, #tpu.memory_space<vmem>>, vector<2x128xf32>,
    %c0_1574 = arith.constant 0 : index
    %c4_1575 = arith.constant 4 : index
    %c0_1576 = arith.constant 0 : index
    %c0_1577 = arith.constant 0 : index
    %1172 = vector.load %arg21[%c0_1574, %c4_1575, %c0_1576, %c0_1577] : memref<2x6x3x256xf32, #tpu.memory_space<vmem>>, vector<1x1x2x256xf32>
    %1173 = vector.shape_cast %1172 : vector<1x1x2x256xf32> to vector<2x256xf32>
    %c2_1578 = arith.constant 2 : index
    %c768_1579 = arith.constant 768 : index
    %1174 = vector.load %arg19[%c2_1578, %c768_1579] : memref<128x1152xf32, #tpu.memory_space<vmem>>, vector<2x256xf32>
    tpu.vector_store %arg19[%c2_1578, %c768_1579], %1173 {strides = array<i32>} : memref<128x1152xf32, #tpu.memory_space<vmem>>, vector<2x256xf32>,
    %c0_1580 = arith.constant 0 : index
    %c4_1581 = arith.constant 4 : index
    %c1_1582 = arith.constant 1 : index
    %c0_1583 = arith.constant 0 : index
    %1175 = vector.load %arg21[%c0_1580, %c4_1581, %c1_1582, %c0_1583] : memref<2x6x3x256xf32, #tpu.memory_space<vmem>>, vector<1x1x2x128xf32>
    %1176 = vector.shape_cast %1175 : vector<1x1x2x128xf32> to vector<2x128xf32>
    %c2_1584 = arith.constant 2 : index
    %c1024_1585 = arith.constant 1024 : index
    %1177 = vector.load %arg19[%c2_1584, %c1024_1585] : memref<128x1152xf32, #tpu.memory_space<vmem>>, vector<2x128xf32>
    tpu.vector_store %arg19[%c2_1584, %c1024_1585], %1176 {strides = array<i32>} : memref<128x1152xf32, #tpu.memory_space<vmem>>, vector<2x128xf32>,
    %c1_1586 = arith.constant 1 : index
    %c0_1587 = arith.constant 0 : index
    %c0_1588 = arith.constant 0 : index
    %c0_1589 = arith.constant 0 : index
    %1178 = vector.load %arg21[%c1_1586, %c0_1587, %c0_1588, %c0_1589] : memref<2x6x3x256xf32, #tpu.memory_space<vmem>>, vector<1x1x2x256xf32>
    %1179 = vector.shape_cast %1178 : vector<1x1x2x256xf32> to vector<2x256xf32>
    %c4_1590 = arith.constant 4 : index
    %c0_1591 = arith.constant 0 : index
    %1180 = vector.load %arg19[%c4_1590, %c0_1591] : memref<128x1152xf32, #tpu.memory_space<vmem>>, vector<2x256xf32>
    tpu.vector_store %arg19[%c4_1590, %c0_1591], %1179 {strides = array<i32>} : memref<128x1152xf32, #tpu.memory_space<vmem>>, vector<2x256xf32>,
    %c1_1592 = arith.constant 1 : index
    %c0_1593 = arith.constant 0 : index
    %c1_1594 = arith.constant 1 : index
    %c0_1595 = arith.constant 0 : index
    %1181 = vector.load %arg21[%c1_1592, %c0_1593, %c1_1594, %c0_1595] : memref<2x6x3x256xf32, #tpu.memory_space<vmem>>, vector<1x1x2x128xf32>
    %1182 = vector.shape_cast %1181 : vector<1x1x2x128xf32> to vector<2x128xf32>
    %c4_1596 = arith.constant 4 : index
    %c256_1597 = arith.constant 256 : index
    %1183 = vector.load %arg19[%c4_1596, %c256_1597] : memref<128x1152xf32, #tpu.memory_space<vmem>>, vector<2x128xf32>
    tpu.vector_store %arg19[%c4_1596, %c256_1597], %1182 {strides = array<i32>} : memref<128x1152xf32, #tpu.memory_space<vmem>>, vector<2x128xf32>,
    %c1_1598 = arith.constant 1 : index
    %c1_1599 = arith.constant 1 : index
    %c0_1600 = arith.constant 0 : index
    %c0_1601 = arith.constant 0 : index
    %1184 = vector.load %arg21[%c1_1598, %c1_1599, %c0_1600, %c0_1601] : memref<2x6x3x256xf32, #tpu.memory_space<vmem>>, vector<1x1x2x256xf32>
    %1185 = vector.shape_cast %1184 : vector<1x1x2x256xf32> to vector<2x256xf32>
    %c4_1602 = arith.constant 4 : index
    %c384_1603 = arith.constant 384 : index
    %1186 = vector.load %arg19[%c4_1602, %c384_1603] : memref<128x1152xf32, #tpu.memory_space<vmem>>, vector<2x256xf32>
    tpu.vector_store %arg19[%c4_1602, %c384_1603], %1185 {strides = array<i32>} : memref<128x1152xf32, #tpu.memory_space<vmem>>, vector<2x256xf32>,
    %c1_1604 = arith.constant 1 : index
    %c1_1605 = arith.constant 1 : index
    %c1_1606 = arith.constant 1 : index
    %c0_1607 = arith.constant 0 : index
    %1187 = vector.load %arg21[%c1_1604, %c1_1605, %c1_1606, %c0_1607] : memref<2x6x3x256xf32, #tpu.memory_space<vmem>>, vector<1x1x2x128xf32>
    %1188 = vector.shape_cast %1187 : vector<1x1x2x128xf32> to vector<2x128xf32>
    %c4_1608 = arith.constant 4 : index
    %c640_1609 = arith.constant 640 : index
    %1189 = vector.load %arg19[%c4_1608, %c640_1609] : memref<128x1152xf32, #tpu.memory_space<vmem>>, vector<2x128xf32>
    tpu.vector_store %arg19[%c4_1608, %c640_1609], %1188 {strides = array<i32>} : memref<128x1152xf32, #tpu.memory_space<vmem>>, vector<2x128xf32>,
    %c1_1610 = arith.constant 1 : index
    %c2_1611 = arith.constant 2 : index
    %c0_1612 = arith.constant 0 : index
    %c0_1613 = arith.constant 0 : index
    %1190 = vector.load %arg21[%c1_1610, %c2_1611, %c0_1612, %c0_1613] : memref<2x6x3x256xf32, #tpu.memory_space<vmem>>, vector<1x1x2x256xf32>
    %1191 = vector.shape_cast %1190 : vector<1x1x2x256xf32> to vector<2x256xf32>
    %c4_1614 = arith.constant 4 : index
    %c768_1615 = arith.constant 768 : index
    %1192 = vector.load %arg19[%c4_1614, %c768_1615] : memref<128x1152xf32, #tpu.memory_space<vmem>>, vector<2x256xf32>
    tpu.vector_store %arg19[%c4_1614, %c768_1615], %1191 {strides = array<i32>} : memref<128x1152xf32, #tpu.memory_space<vmem>>, vector<2x256xf32>,
    %c1_1616 = arith.constant 1 : index
    %c2_1617 = arith.constant 2 : index
    %c1_1618 = arith.constant 1 : index
    %c0_1619 = arith.constant 0 : index
    %1193 = vector.load %arg21[%c1_1616, %c2_1617, %c1_1618, %c0_1619] : memref<2x6x3x256xf32, #tpu.memory_space<vmem>>, vector<1x1x2x128xf32>
    %1194 = vector.shape_cast %1193 : vector<1x1x2x128xf32> to vector<2x128xf32>
    %c4_1620 = arith.constant 4 : index
    %c1024_1621 = arith.constant 1024 : index
    %1195 = vector.load %arg19[%c4_1620, %c1024_1621] : memref<128x1152xf32, #tpu.memory_space<vmem>>, vector<2x128xf32>
    tpu.vector_store %arg19[%c4_1620, %c1024_1621], %1194 {strides = array<i32>} : memref<128x1152xf32, #tpu.memory_space<vmem>>, vector<2x128xf32>,
    %c1_1622 = arith.constant 1 : index
    %c2_1623 = arith.constant 2 : index
    %c0_1624 = arith.constant 0 : index
    %c0_1625 = arith.constant 0 : index
    %1196 = vector.load %arg21[%c1_1622, %c2_1623, %c0_1624, %c0_1625] : memref<2x6x3x256xf32, #tpu.memory_space<vmem>>, vector<1x1x2x256xf32>
    %1197 = vector.shape_cast %1196 : vector<1x1x2x256xf32> to vector<2x256xf32>
    %c6_1626 = arith.constant 6 : index
    %c0_1627 = arith.constant 0 : index
    %1198 = vector.load %arg19[%c6_1626, %c0_1627] : memref<128x1152xf32, #tpu.memory_space<vmem>>, vector<2x256xf32>
    tpu.vector_store %arg19[%c6_1626, %c0_1627], %1197 {strides = array<i32>} : memref<128x1152xf32, #tpu.memory_space<vmem>>, vector<2x256xf32>,
    %c1_1628 = arith.constant 1 : index
    %c2_1629 = arith.constant 2 : index
    %c1_1630 = arith.constant 1 : index
    %c0_1631 = arith.constant 0 : index
    %1199 = vector.load %arg21[%c1_1628, %c2_1629, %c1_1630, %c0_1631] : memref<2x6x3x256xf32, #tpu.memory_space<vmem>>, vector<1x1x2x128xf32>
    %1200 = vector.shape_cast %1199 : vector<1x1x2x128xf32> to vector<2x128xf32>
    %c6_1632 = arith.constant 6 : index
    %c256_1633 = arith.constant 256 : index
    %1201 = vector.load %arg19[%c6_1632, %c256_1633] : memref<128x1152xf32, #tpu.memory_space<vmem>>, vector<2x128xf32>
    tpu.vector_store %arg19[%c6_1632, %c256_1633], %1200 {strides = array<i32>} : memref<128x1152xf32, #tpu.memory_space<vmem>>, vector<2x128xf32>,
    %c1_1634 = arith.constant 1 : index
    %c3_1635 = arith.constant 3 : index
    %c0_1636 = arith.constant 0 : index
    %c0_1637 = arith.constant 0 : index
    %1202 = vector.load %arg21[%c1_1634, %c3_1635, %c0_1636, %c0_1637] : memref<2x6x3x256xf32, #tpu.memory_space<vmem>>, vector<1x1x2x256xf32>
    %1203 = vector.shape_cast %1202 : vector<1x1x2x256xf32> to vector<2x256xf32>
    %c6_1638 = arith.constant 6 : index
    %c384_1639 = arith.constant 384 : index
    %1204 = vector.load %arg19[%c6_1638, %c384_1639] : memref<128x1152xf32, #tpu.memory_space<vmem>>, vector<2x256xf32>
    tpu.vector_store %arg19[%c6_1638, %c384_1639], %1203 {strides = array<i32>} : memref<128x1152xf32, #tpu.memory_space<vmem>>, vector<2x256xf32>,
    %c1_1640 = arith.constant 1 : index
    %c3_1641 = arith.constant 3 : index
    %c1_1642 = arith.constant 1 : index
    %c0_1643 = arith.constant 0 : index
    %1205 = vector.load %arg21[%c1_1640, %c3_1641, %c1_1642, %c0_1643] : memref<2x6x3x256xf32, #tpu.memory_space<vmem>>, vector<1x1x2x128xf32>
    %1206 = vector.shape_cast %1205 : vector<1x1x2x128xf32> to vector<2x128xf32>
    %c6_1644 = arith.constant 6 : index
    %c640_1645 = arith.constant 640 : index
    %1207 = vector.load %arg19[%c6_1644, %c640_1645] : memref<128x1152xf32, #tpu.memory_space<vmem>>, vector<2x128xf32>
    tpu.vector_store %arg19[%c6_1644, %c640_1645], %1206 {strides = array<i32>} : memref<128x1152xf32, #tpu.memory_space<vmem>>, vector<2x128xf32>,
    %c1_1646 = arith.constant 1 : index
    %c4_1647 = arith.constant 4 : index
    %c0_1648 = arith.constant 0 : index
    %c0_1649 = arith.constant 0 : index
    %1208 = vector.load %arg21[%c1_1646, %c4_1647, %c0_1648, %c0_1649] : memref<2x6x3x256xf32, #tpu.memory_space<vmem>>, vector<1x1x2x256xf32>
    %1209 = vector.shape_cast %1208 : vector<1x1x2x256xf32> to vector<2x256xf32>
    %c6_1650 = arith.constant 6 : index
    %c768_1651 = arith.constant 768 : index
    %1210 = vector.load %arg19[%c6_1650, %c768_1651] : memref<128x1152xf32, #tpu.memory_space<vmem>>, vector<2x256xf32>
    tpu.vector_store %arg19[%c6_1650, %c768_1651], %1209 {strides = array<i32>} : memref<128x1152xf32, #tpu.memory_space<vmem>>, vector<2x256xf32>,
    %c1_1652 = arith.constant 1 : index
    %c4_1653 = arith.constant 4 : index
    %c1_1654 = arith.constant 1 : index
    %c0_1655 = arith.constant 0 : index
    %1211 = vector.load %arg21[%c1_1652, %c4_1653, %c1_1654, %c0_1655] : memref<2x6x3x256xf32, #tpu.memory_space<vmem>>, vector<1x1x2x128xf32>
    %1212 = vector.shape_cast %1211 : vector<1x1x2x128xf32> to vector<2x128xf32>
    %c6_1656 = arith.constant 6 : index
    %c1024_1657 = arith.constant 1024 : index
    %1213 = vector.load %arg19[%c6_1656, %c1024_1657] : memref<128x1152xf32, #tpu.memory_space<vmem>>, vector<2x128xf32>
    tpu.vector_store %arg19[%c6_1656, %c1024_1657], %1212 {strides = array<i32>} : memref<128x1152xf32, #tpu.memory_space<vmem>>, vector<2x128xf32>,
    %c0_1658 = arith.constant 0 : index
    %c0_1659 = arith.constant 0 : index
    %1214 = vector.load %arg19[%c0_1658, %c0_1659] : memref<128x1152xf32, #tpu.memory_space<vmem>>, vector<8x1152xf32>
    %1215 = arith.truncf %1214 : vector<8x1152xf32> to vector<8x1152xbf16>
    %c0_1660 = arith.constant 0 : index
    %c0_1661 = arith.constant 0 : index
    %1216 = vector.load %arg10[%c0_1660, %c0_1661] : memref<1152x128xbf16, #tpu.memory_space<vmem>>, vector<1152x128xbf16>
    %cst_1662 = arith.constant dense<0.000000e+00> : vector<8x128xf32>
    %1217 = tpu.matmul %1215, %1216, %cst_1662 {dimension_numbers = #tpu.dot_dimension_numbers<[1], [0], [0], [1], [0, 0, 1, 1], [], []>} : vector<8x1152xbf16>, vector<1152x128xbf16>, vector<8x128xf32> -> vector<8x128xf32>
    %c0_1663 = arith.constant 0 : index
    %c0_1664 = arith.constant 0 : index
    %1218 = vector.load %arg11[%c0_1663, %c0_1664] : memref<1x128xf32, #tpu.memory_space<vmem>>, vector<1x128xf32>
    %1219 = vector.broadcast %1218 : vector<1x128xf32> to vector<8x128xf32>
    %1220 = arith.addf %1217, %1219 : vector<8x128xf32>
    %cst_1665 = arith.constant 0.000000e+00 : f32
    %1221 = vector.broadcast %cst_1665 : f32 to vector<8x128xf32>
    %1222 = arith.maximumf %1220, %1221 : vector<8x128xf32>
    %cst_1666 = arith.constant dense<0.000000e+00> : vector<128xf32>
    %1223 = vector.multi_reduction <add>, %1222, %cst_1666 [0] : vector<8x128xf32> to vector<128xf32>
    %1224 = vector.shape_cast %1223 : vector<128xf32> to vector<1x128xf32>
    %cst_1667 = arith.constant 8.000000e+00 : f32
    %1225 = vector.broadcast %cst_1667 : f32 to vector<1x128xf32>
    %1226 = arith.divf %1224, %1225 : vector<1x128xf32>
    %1227 = vector.broadcast %1226 : vector<1x128xf32> to vector<8x128xf32>
    %1228 = arith.subf %1222, %1227 : vector<8x128xf32>
    %1229 = arith.mulf %1228, %1228 : vector<8x128xf32>
    %cst_1668 = arith.constant dense<0.000000e+00> : vector<128xf32>
    %1230 = vector.multi_reduction <add>, %1229, %cst_1668 [0] : vector<8x128xf32> to vector<128xf32>
    %1231 = vector.shape_cast %1230 : vector<128xf32> to vector<1x128xf32>
    %cst_1669 = arith.constant 8.000000e+00 : f32
    %1232 = vector.broadcast %cst_1669 : f32 to vector<1x128xf32>
    %1233 = arith.divf %1231, %1232 : vector<1x128xf32>
    %c0_1670 = arith.constant 0 : index
    %c0_1671 = arith.constant 0 : index
    %1234 = vector.load %arg12[%c0_1670, %c0_1671] : memref<1x128xf32, #tpu.memory_space<vmem>>, vector<1x128xf32>
    %cst_1672 = arith.constant 9.99999974E-6 : f32
    %1235 = vector.broadcast %cst_1672 : f32 to vector<1x128xf32>
    %1236 = arith.addf %1233, %1235 : vector<1x128xf32>
    %1237 = math.rsqrt %1236 : vector<1x128xf32>
    %1238 = arith.mulf %1234, %1237 : vector<1x128xf32>
    %c0_1673 = arith.constant 0 : index
    %c0_1674 = arith.constant 0 : index
    %1239 = vector.load %arg13[%c0_1673, %c0_1674] : memref<1x128xf32, #tpu.memory_space<vmem>>, vector<1x128xf32>
    %1240 = arith.mulf %1226, %1238 : vector<1x128xf32>
    %1241 = arith.subf %1239, %1240 : vector<1x128xf32>
    %1242 = vector.broadcast %1238 : vector<1x128xf32> to vector<8x128xf32>
    %1243 = arith.mulf %1222, %1242 : vector<8x128xf32>
    %1244 = vector.broadcast %1241 : vector<1x128xf32> to vector<8x128xf32>
    %1245 = arith.addf %1243, %1244 : vector<8x128xf32>
    %1246 = vector.extract_strided_slice %1245 {offsets = [0, 0], sizes = [1, 128], strides = [1, 1]} : vector<8x128xf32> to vector<1x128xf32>
    %c0_1675 = arith.constant 0 : index
    %c1_1676 = arith.constant 1 : index
    %c0_1677 = arith.constant 0 : index
    %c128_1678 = arith.constant 128 : index
    %1247 = vector.load %arg22[%c0_1675, %c1_1676, %c0_1677, %c128_1678] : memref<2x4x2x256xf32, #tpu.memory_space<vmem>>, vector<1x1x1x128xf32>
    %1248 = vector.shape_cast %1247 : vector<1x1x1x128xf32> to vector<1x128xf32>
    %1249 = vector.shape_cast %1246 : vector<1x128xf32> to vector<1x1x1x128xf32>
    tpu.vector_store %arg22[%c0_1675, %c1_1676, %c0_1677, %c128_1678], %1249 {strides = array<i32>} : memref<2x4x2x256xf32, #tpu.memory_space<vmem>>, vector<1x1x1x128xf32>,
    %1250 = vector.extract_strided_slice %1245 {offsets = [1, 0], sizes = [1, 128], strides = [1, 1]} : vector<8x128xf32> to vector<1x128xf32>
    %c0_1679 = arith.constant 0 : index
    %c1_1680 = arith.constant 1 : index
    %c1_1681 = arith.constant 1 : index
    %c0_1682 = arith.constant 0 : index
    %1251 = vector.load %arg22[%c0_1679, %c1_1680, %c1_1681, %c0_1682] : memref<2x4x2x256xf32, #tpu.memory_space<vmem>>, vector<1x1x1x128xf32>
    %1252 = vector.shape_cast %1251 : vector<1x1x1x128xf32> to vector<1x128xf32>
    %1253 = vector.shape_cast %1250 : vector<1x128xf32> to vector<1x1x1x128xf32>
    tpu.vector_store %arg22[%c0_1679, %c1_1680, %c1_1681, %c0_1682], %1253 {strides = array<i32>} : memref<2x4x2x256xf32, #tpu.memory_space<vmem>>, vector<1x1x1x128xf32>,
    %1254 = vector.extract_strided_slice %1245 {offsets = [2, 0], sizes = [1, 128], strides = [1, 1]} : vector<8x128xf32> to vector<1x128xf32>
    %c0_1683 = arith.constant 0 : index
    %c2_1684 = arith.constant 2 : index
    %c0_1685 = arith.constant 0 : index
    %c128_1686 = arith.constant 128 : index
    %1255 = vector.load %arg22[%c0_1683, %c2_1684, %c0_1685, %c128_1686] : memref<2x4x2x256xf32, #tpu.memory_space<vmem>>, vector<1x1x1x128xf32>
    %1256 = vector.shape_cast %1255 : vector<1x1x1x128xf32> to vector<1x128xf32>
    %1257 = vector.shape_cast %1254 : vector<1x128xf32> to vector<1x1x1x128xf32>
    tpu.vector_store %arg22[%c0_1683, %c2_1684, %c0_1685, %c128_1686], %1257 {strides = array<i32>} : memref<2x4x2x256xf32, #tpu.memory_space<vmem>>, vector<1x1x1x128xf32>,
    %1258 = vector.extract_strided_slice %1245 {offsets = [3, 0], sizes = [1, 128], strides = [1, 1]} : vector<8x128xf32> to vector<1x128xf32>
    %c0_1687 = arith.constant 0 : index
    %c2_1688 = arith.constant 2 : index
    %c1_1689 = arith.constant 1 : index
    %c0_1690 = arith.constant 0 : index
    %1259 = vector.load %arg22[%c0_1687, %c2_1688, %c1_1689, %c0_1690] : memref<2x4x2x256xf32, #tpu.memory_space<vmem>>, vector<1x1x1x128xf32>
    %1260 = vector.shape_cast %1259 : vector<1x1x1x128xf32> to vector<1x128xf32>
    %1261 = vector.shape_cast %1258 : vector<1x128xf32> to vector<1x1x1x128xf32>
    tpu.vector_store %arg22[%c0_1687, %c2_1688, %c1_1689, %c0_1690], %1261 {strides = array<i32>} : memref<2x4x2x256xf32, #tpu.memory_space<vmem>>, vector<1x1x1x128xf32>,
    %1262 = vector.extract_strided_slice %1245 {offsets = [4, 0], sizes = [1, 128], strides = [1, 1]} : vector<8x128xf32> to vector<1x128xf32>
    %c1_1691 = arith.constant 1 : index
    %c1_1692 = arith.constant 1 : index
    %c0_1693 = arith.constant 0 : index
    %c128_1694 = arith.constant 128 : index
    %1263 = vector.load %arg22[%c1_1691, %c1_1692, %c0_1693, %c128_1694] : memref<2x4x2x256xf32, #tpu.memory_space<vmem>>, vector<1x1x1x128xf32>
    %1264 = vector.shape_cast %1263 : vector<1x1x1x128xf32> to vector<1x128xf32>
    %1265 = vector.shape_cast %1262 : vector<1x128xf32> to vector<1x1x1x128xf32>
    tpu.vector_store %arg22[%c1_1691, %c1_1692, %c0_1693, %c128_1694], %1265 {strides = array<i32>} : memref<2x4x2x256xf32, #tpu.memory_space<vmem>>, vector<1x1x1x128xf32>,
    %1266 = vector.extract_strided_slice %1245 {offsets = [5, 0], sizes = [1, 128], strides = [1, 1]} : vector<8x128xf32> to vector<1x128xf32>
    %c1_1695 = arith.constant 1 : index
    %c1_1696 = arith.constant 1 : index
    %c1_1697 = arith.constant 1 : index
    %c0_1698 = arith.constant 0 : index
    %1267 = vector.load %arg22[%c1_1695, %c1_1696, %c1_1697, %c0_1698] : memref<2x4x2x256xf32, #tpu.memory_space<vmem>>, vector<1x1x1x128xf32>
    %1268 = vector.shape_cast %1267 : vector<1x1x1x128xf32> to vector<1x128xf32>
    %1269 = vector.shape_cast %1266 : vector<1x128xf32> to vector<1x1x1x128xf32>
    tpu.vector_store %arg22[%c1_1695, %c1_1696, %c1_1697, %c0_1698], %1269 {strides = array<i32>} : memref<2x4x2x256xf32, #tpu.memory_space<vmem>>, vector<1x1x1x128xf32>,
    %1270 = vector.extract_strided_slice %1245 {offsets = [6, 0], sizes = [1, 128], strides = [1, 1]} : vector<8x128xf32> to vector<1x128xf32>
    %c1_1699 = arith.constant 1 : index
    %c2_1700 = arith.constant 2 : index
    %c0_1701 = arith.constant 0 : index
    %c128_1702 = arith.constant 128 : index
    %1271 = vector.load %arg22[%c1_1699, %c2_1700, %c0_1701, %c128_1702] : memref<2x4x2x256xf32, #tpu.memory_space<vmem>>, vector<1x1x1x128xf32>
    %1272 = vector.shape_cast %1271 : vector<1x1x1x128xf32> to vector<1x128xf32>
    %1273 = vector.shape_cast %1270 : vector<1x128xf32> to vector<1x1x1x128xf32>
    tpu.vector_store %arg22[%c1_1699, %c2_1700, %c0_1701, %c128_1702], %1273 {strides = array<i32>} : memref<2x4x2x256xf32, #tpu.memory_space<vmem>>, vector<1x1x1x128xf32>,
    %1274 = vector.extract_strided_slice %1245 {offsets = [7, 0], sizes = [1, 128], strides = [1, 1]} : vector<8x128xf32> to vector<1x128xf32>
    %c1_1703 = arith.constant 1 : index
    %c2_1704 = arith.constant 2 : index
    %c1_1705 = arith.constant 1 : index
    %c0_1706 = arith.constant 0 : index
    %1275 = vector.load %arg22[%c1_1703, %c2_1704, %c1_1705, %c0_1706] : memref<2x4x2x256xf32, #tpu.memory_space<vmem>>, vector<1x1x1x128xf32>
    %1276 = vector.shape_cast %1275 : vector<1x1x1x128xf32> to vector<1x128xf32>
    %1277 = vector.shape_cast %1274 : vector<1x128xf32> to vector<1x1x1x128xf32>
    tpu.vector_store %arg22[%c1_1703, %c2_1704, %c1_1705, %c0_1706], %1277 {strides = array<i32>} : memref<2x4x2x256xf32, #tpu.memory_space<vmem>>, vector<1x1x1x128xf32>,
    %c0_1707 = arith.constant 0 : index
    %c0_1708 = arith.constant 0 : index
    %c0_1709 = arith.constant 0 : index
    %c0_1710 = arith.constant 0 : index
    %1278 = vector.load %arg22[%c0_1707, %c0_1708, %c0_1709, %c0_1710] : memref<2x4x2x256xf32, #tpu.memory_space<vmem>>, vector<1x1x1x256xf32>
    %1279 = vector.shape_cast %1278 : vector<1x1x1x256xf32> to vector<1x256xf32>
    %c0_1711 = arith.constant 0 : index
    %c0_1712 = arith.constant 0 : index
    %1280 = vector.load %arg19[%c0_1711, %c0_1712] : memref<128x1152xf32, #tpu.memory_space<vmem>>, vector<1x256xf32>
    tpu.vector_store %arg19[%c0_1711, %c0_1712], %1279 {strides = array<i32>} : memref<128x1152xf32, #tpu.memory_space<vmem>>, vector<1x256xf32>,
    %c0_1713 = arith.constant 0 : index
    %c0_1714 = arith.constant 0 : index
    %c1_1715 = arith.constant 1 : index
    %c0_1716 = arith.constant 0 : index
    %1281 = vector.load %arg22[%c0_1713, %c0_1714, %c1_1715, %c0_1716] : memref<2x4x2x256xf32, #tpu.memory_space<vmem>>, vector<1x1x1x128xf32>
    %1282 = vector.shape_cast %1281 : vector<1x1x1x128xf32> to vector<1x128xf32>
    %c0_1717 = arith.constant 0 : index
    %c256_1718 = arith.constant 256 : index
    %1283 = vector.load %arg19[%c0_1717, %c256_1718] : memref<128x1152xf32, #tpu.memory_space<vmem>>, vector<1x128xf32>
    tpu.vector_store %arg19[%c0_1717, %c256_1718], %1282 {strides = array<i32>} : memref<128x1152xf32, #tpu.memory_space<vmem>>, vector<1x128xf32>,
    %c0_1719 = arith.constant 0 : index
    %c1_1720 = arith.constant 1 : index
    %c0_1721 = arith.constant 0 : index
    %c0_1722 = arith.constant 0 : index
    %1284 = vector.load %arg22[%c0_1719, %c1_1720, %c0_1721, %c0_1722] : memref<2x4x2x256xf32, #tpu.memory_space<vmem>>, vector<1x1x1x256xf32>
    %1285 = vector.shape_cast %1284 : vector<1x1x1x256xf32> to vector<1x256xf32>
    %c0_1723 = arith.constant 0 : index
    %c384_1724 = arith.constant 384 : index
    %1286 = vector.load %arg19[%c0_1723, %c384_1724] : memref<128x1152xf32, #tpu.memory_space<vmem>>, vector<1x256xf32>
    tpu.vector_store %arg19[%c0_1723, %c384_1724], %1285 {strides = array<i32>} : memref<128x1152xf32, #tpu.memory_space<vmem>>, vector<1x256xf32>,
    %c0_1725 = arith.constant 0 : index
    %c1_1726 = arith.constant 1 : index
    %c1_1727 = arith.constant 1 : index
    %c0_1728 = arith.constant 0 : index
    %1287 = vector.load %arg22[%c0_1725, %c1_1726, %c1_1727, %c0_1728] : memref<2x4x2x256xf32, #tpu.memory_space<vmem>>, vector<1x1x1x128xf32>
    %1288 = vector.shape_cast %1287 : vector<1x1x1x128xf32> to vector<1x128xf32>
    %c0_1729 = arith.constant 0 : index
    %c640_1730 = arith.constant 640 : index
    %1289 = vector.load %arg19[%c0_1729, %c640_1730] : memref<128x1152xf32, #tpu.memory_space<vmem>>, vector<1x128xf32>
    tpu.vector_store %arg19[%c0_1729, %c640_1730], %1288 {strides = array<i32>} : memref<128x1152xf32, #tpu.memory_space<vmem>>, vector<1x128xf32>,
    %c0_1731 = arith.constant 0 : index
    %c2_1732 = arith.constant 2 : index
    %c0_1733 = arith.constant 0 : index
    %c0_1734 = arith.constant 0 : index
    %1290 = vector.load %arg22[%c0_1731, %c2_1732, %c0_1733, %c0_1734] : memref<2x4x2x256xf32, #tpu.memory_space<vmem>>, vector<1x1x1x256xf32>
    %1291 = vector.shape_cast %1290 : vector<1x1x1x256xf32> to vector<1x256xf32>
    %c0_1735 = arith.constant 0 : index
    %c768_1736 = arith.constant 768 : index
    %1292 = vector.load %arg19[%c0_1735, %c768_1736] : memref<128x1152xf32, #tpu.memory_space<vmem>>, vector<1x256xf32>
    tpu.vector_store %arg19[%c0_1735, %c768_1736], %1291 {strides = array<i32>} : memref<128x1152xf32, #tpu.memory_space<vmem>>, vector<1x256xf32>,
    %c0_1737 = arith.constant 0 : index
    %c2_1738 = arith.constant 2 : index
    %c1_1739 = arith.constant 1 : index
    %c0_1740 = arith.constant 0 : index
    %1293 = vector.load %arg22[%c0_1737, %c2_1738, %c1_1739, %c0_1740] : memref<2x4x2x256xf32, #tpu.memory_space<vmem>>, vector<1x1x1x128xf32>
    %1294 = vector.shape_cast %1293 : vector<1x1x1x128xf32> to vector<1x128xf32>
    %c0_1741 = arith.constant 0 : index
    %c1024_1742 = arith.constant 1024 : index
    %1295 = vector.load %arg19[%c0_1741, %c1024_1742] : memref<128x1152xf32, #tpu.memory_space<vmem>>, vector<1x128xf32>
    tpu.vector_store %arg19[%c0_1741, %c1024_1742], %1294 {strides = array<i32>} : memref<128x1152xf32, #tpu.memory_space<vmem>>, vector<1x128xf32>,
    %c1_1743 = arith.constant 1 : index
    %c0_1744 = arith.constant 0 : index
    %c0_1745 = arith.constant 0 : index
    %c0_1746 = arith.constant 0 : index
    %1296 = vector.load %arg22[%c1_1743, %c0_1744, %c0_1745, %c0_1746] : memref<2x4x2x256xf32, #tpu.memory_space<vmem>>, vector<1x1x1x256xf32>
    %1297 = vector.shape_cast %1296 : vector<1x1x1x256xf32> to vector<1x256xf32>
    %c1_1747 = arith.constant 1 : index
    %c0_1748 = arith.constant 0 : index
    %1298 = vector.load %arg19[%c1_1747, %c0_1748] : memref<128x1152xf32, #tpu.memory_space<vmem>>, vector<1x256xf32>
    tpu.vector_store %arg19[%c1_1747, %c0_1748], %1297 {strides = array<i32>} : memref<128x1152xf32, #tpu.memory_space<vmem>>, vector<1x256xf32>,
    %c1_1749 = arith.constant 1 : index
    %c0_1750 = arith.constant 0 : index
    %c1_1751 = arith.constant 1 : index
    %c0_1752 = arith.constant 0 : index
    %1299 = vector.load %arg22[%c1_1749, %c0_1750, %c1_1751, %c0_1752] : memref<2x4x2x256xf32, #tpu.memory_space<vmem>>, vector<1x1x1x128xf32>
    %1300 = vector.shape_cast %1299 : vector<1x1x1x128xf32> to vector<1x128xf32>
    %c1_1753 = arith.constant 1 : index
    %c256_1754 = arith.constant 256 : index
    %1301 = vector.load %arg19[%c1_1753, %c256_1754] : memref<128x1152xf32, #tpu.memory_space<vmem>>, vector<1x128xf32>
    tpu.vector_store %arg19[%c1_1753, %c256_1754], %1300 {strides = array<i32>} : memref<128x1152xf32, #tpu.memory_space<vmem>>, vector<1x128xf32>,
    %c1_1755 = arith.constant 1 : index
    %c1_1756 = arith.constant 1 : index
    %c0_1757 = arith.constant 0 : index
    %c0_1758 = arith.constant 0 : index
    %1302 = vector.load %arg22[%c1_1755, %c1_1756, %c0_1757, %c0_1758] : memref<2x4x2x256xf32, #tpu.memory_space<vmem>>, vector<1x1x1x256xf32>
    %1303 = vector.shape_cast %1302 : vector<1x1x1x256xf32> to vector<1x256xf32>
    %c1_1759 = arith.constant 1 : index
    %c384_1760 = arith.constant 384 : index
    %1304 = vector.load %arg19[%c1_1759, %c384_1760] : memref<128x1152xf32, #tpu.memory_space<vmem>>, vector<1x256xf32>
    tpu.vector_store %arg19[%c1_1759, %c384_1760], %1303 {strides = array<i32>} : memref<128x1152xf32, #tpu.memory_space<vmem>>, vector<1x256xf32>,
    %c1_1761 = arith.constant 1 : index
    %c1_1762 = arith.constant 1 : index
    %c1_1763 = arith.constant 1 : index
    %c0_1764 = arith.constant 0 : index
    %1305 = vector.load %arg22[%c1_1761, %c1_1762, %c1_1763, %c0_1764] : memref<2x4x2x256xf32, #tpu.memory_space<vmem>>, vector<1x1x1x128xf32>
    %1306 = vector.shape_cast %1305 : vector<1x1x1x128xf32> to vector<1x128xf32>
    %c1_1765 = arith.constant 1 : index
    %c640_1766 = arith.constant 640 : index
    %1307 = vector.load %arg19[%c1_1765, %c640_1766] : memref<128x1152xf32, #tpu.memory_space<vmem>>, vector<1x128xf32>
    tpu.vector_store %arg19[%c1_1765, %c640_1766], %1306 {strides = array<i32>} : memref<128x1152xf32, #tpu.memory_space<vmem>>, vector<1x128xf32>,
    %c1_1767 = arith.constant 1 : index
    %c2_1768 = arith.constant 2 : index
    %c0_1769 = arith.constant 0 : index
    %c0_1770 = arith.constant 0 : index
    %1308 = vector.load %arg22[%c1_1767, %c2_1768, %c0_1769, %c0_1770] : memref<2x4x2x256xf32, #tpu.memory_space<vmem>>, vector<1x1x1x256xf32>
    %1309 = vector.shape_cast %1308 : vector<1x1x1x256xf32> to vector<1x256xf32>
    %c1_1771 = arith.constant 1 : index
    %c768_1772 = arith.constant 768 : index
    %1310 = vector.load %arg19[%c1_1771, %c768_1772] : memref<128x1152xf32, #tpu.memory_space<vmem>>, vector<1x256xf32>
    tpu.vector_store %arg19[%c1_1771, %c768_1772], %1309 {strides = array<i32>} : memref<128x1152xf32, #tpu.memory_space<vmem>>, vector<1x256xf32>,
    %c1_1773 = arith.constant 1 : index
    %c2_1774 = arith.constant 2 : index
    %c1_1775 = arith.constant 1 : index
    %c0_1776 = arith.constant 0 : index
    %1311 = vector.load %arg22[%c1_1773, %c2_1774, %c1_1775, %c0_1776] : memref<2x4x2x256xf32, #tpu.memory_space<vmem>>, vector<1x1x1x128xf32>
    %1312 = vector.shape_cast %1311 : vector<1x1x1x128xf32> to vector<1x128xf32>
    %c1_1777 = arith.constant 1 : index
    %c1024_1778 = arith.constant 1024 : index
    %1313 = vector.load %arg19[%c1_1777, %c1024_1778] : memref<128x1152xf32, #tpu.memory_space<vmem>>, vector<1x128xf32>
    tpu.vector_store %arg19[%c1_1777, %c1024_1778], %1312 {strides = array<i32>} : memref<128x1152xf32, #tpu.memory_space<vmem>>, vector<1x128xf32>,
    %c0_1779 = arith.constant 0 : index
    %c0_1780 = arith.constant 0 : index
    %1314 = vector.load %arg19[%c0_1779, %c0_1780] : memref<128x1152xf32, #tpu.memory_space<vmem>>, vector<2x1152xf32>
    %1315 = arith.truncf %1314 : vector<2x1152xf32> to vector<2x1152xbf16>
    %c0_1781 = arith.constant 0 : index
    %c0_1782 = arith.constant 0 : index
    %1316 = vector.load %arg14[%c0_1781, %c0_1782] : memref<1152x256xbf16, #tpu.memory_space<vmem>>, vector<1152x256xbf16>
    %cst_1783 = arith.constant dense<0.000000e+00> : vector<2x256xf32>
    %1317 = tpu.matmul %1315, %1316, %cst_1783 {dimension_numbers = #tpu.dot_dimension_numbers<[1], [0], [0], [1], [0, 0, 1, 1], [], []>} : vector<2x1152xbf16>, vector<1152x256xbf16>, vector<2x256xf32> -> vector<2x256xf32>
    %c0_1784 = arith.constant 0 : index
    %c0_1785 = arith.constant 0 : index
    %1318 = vector.load %arg15[%c0_1784, %c0_1785] : memref<1x256xf32, #tpu.memory_space<vmem>>, vector<1x256xf32>
    %1319 = vector.broadcast %1318 : vector<1x256xf32> to vector<2x256xf32>
    %1320 = arith.addf %1317, %1319 : vector<2x256xf32>
    %cst_1786 = arith.constant 0.000000e+00 : f32
    %1321 = vector.broadcast %cst_1786 : f32 to vector<2x256xf32>
    %1322 = arith.maximumf %1320, %1321 : vector<2x256xf32>
    %cst_1787 = arith.constant dense<0.000000e+00> : vector<256xf32>
    %1323 = vector.multi_reduction <add>, %1322, %cst_1787 [0] : vector<2x256xf32> to vector<256xf32>
    %1324 = vector.shape_cast %1323 : vector<256xf32> to vector<1x256xf32>
    %cst_1788 = arith.constant 2.000000e+00 : f32
    %1325 = vector.broadcast %cst_1788 : f32 to vector<1x256xf32>
    %1326 = arith.divf %1324, %1325 : vector<1x256xf32>
    %1327 = vector.broadcast %1326 : vector<1x256xf32> to vector<2x256xf32>
    %1328 = arith.subf %1322, %1327 : vector<2x256xf32>
    %1329 = arith.mulf %1328, %1328 : vector<2x256xf32>
    %cst_1789 = arith.constant dense<0.000000e+00> : vector<256xf32>
    %1330 = vector.multi_reduction <add>, %1329, %cst_1789 [0] : vector<2x256xf32> to vector<256xf32>
    %1331 = vector.shape_cast %1330 : vector<256xf32> to vector<1x256xf32>
    %cst_1790 = arith.constant 2.000000e+00 : f32
    %1332 = vector.broadcast %cst_1790 : f32 to vector<1x256xf32>
    %1333 = arith.divf %1331, %1332 : vector<1x256xf32>
    %c0_1791 = arith.constant 0 : index
    %c0_1792 = arith.constant 0 : index
    %1334 = vector.load %arg16[%c0_1791, %c0_1792] : memref<1x256xf32, #tpu.memory_space<vmem>>, vector<1x256xf32>
    %cst_1793 = arith.constant 9.99999974E-6 : f32
    %1335 = vector.broadcast %cst_1793 : f32 to vector<1x256xf32>
    %1336 = arith.addf %1333, %1335 : vector<1x256xf32>
    %1337 = math.rsqrt %1336 : vector<1x256xf32>
    %1338 = arith.mulf %1334, %1337 : vector<1x256xf32>
    %c0_1794 = arith.constant 0 : index
    %c0_1795 = arith.constant 0 : index
    %1339 = vector.load %arg17[%c0_1794, %c0_1795] : memref<1x256xf32, #tpu.memory_space<vmem>>, vector<1x256xf32>
    %1340 = arith.mulf %1326, %1338 : vector<1x256xf32>
    %1341 = arith.subf %1339, %1340 : vector<1x256xf32>
    %1342 = vector.broadcast %1338 : vector<1x256xf32> to vector<2x256xf32>
    %1343 = arith.mulf %1322, %1342 : vector<2x256xf32>
    %1344 = vector.broadcast %1341 : vector<1x256xf32> to vector<2x256xf32>
    %1345 = arith.addf %1343, %1344 : vector<2x256xf32>
    %c0_1796 = arith.constant 0 : index
    %c0_1797 = arith.constant 0 : index
    %1346 = vector.load %arg18[%c0_1796, %c0_1797] : memref<2x256xf32, #tpu.memory_space<vmem>>, vector<2x256xf32>
    tpu.vector_store %arg18[%c0_1796, %c0_1797], %1345 {strides = array<i32>} : memref<2x256xf32, #tpu.memory_space<vmem>>, vector<2x256xf32>,
    return
  }
  func.func @transform_0(%arg0: i32) -> (i32, i32, i32, i32) {
    %c0_i32 = arith.constant 0 : i32
    %c0_i32_0 = arith.constant 0 : i32
    %c0_i32_1 = arith.constant 0 : i32
    %c0_i32_2 = arith.constant 0 : i32
    %c0_i32_3 = arith.constant 0 : i32
    return %c0_i32, %c0_i32_0, %c0_i32_1, %c0_i32_2 : i32, i32, i32, i32
  }
  func.func @transform_1(%arg0: i32) -> (i32, i32) {
    %c0_i32 = arith.constant 0 : i32
    %c0_i32_0 = arith.constant 0 : i32
    %c0_i32_1 = arith.constant 0 : i32
    return %c0_i32, %c0_i32_0 : i32, i32
  }
  func.func @transform_2(%arg0: i32) -> (i32, i32) {
    %c0_i32 = arith.constant 0 : i32
    %c0_i32_0 = arith.constant 0 : i32
    %c0_i32_1 = arith.constant 0 : i32
    return %c0_i32, %c0_i32_0 : i32, i32
  }
  func.func @transform_3(%arg0: i32) -> (i32, i32) {
    %c0_i32 = arith.constant 0 : i32
    %c0_i32_0 = arith.constant 0 : i32
    %c0_i32_1 = arith.constant 0 : i32
    return %c0_i32, %c0_i32_0 : i32, i32
  }
  func.func @transform_4(%arg0: i32) -> (i32, i32) {
    %c0_i32 = arith.constant 0 : i32
    %c0_i32_0 = arith.constant 0 : i32
    %c0_i32_1 = arith.constant 0 : i32
    return %c0_i32, %c0_i32_0 : i32, i32
  }
  func.func @transform_5(%arg0: i32) -> (i32, i32) {
    %c0_i32 = arith.constant 0 : i32
    %c0_i32_0 = arith.constant 0 : i32
    %c0_i32_1 = arith.constant 0 : i32
    return %c0_i32, %c0_i32_0 : i32, i32
  }
  func.func @transform_6(%arg0: i32) -> (i32, i32) {
    %c0_i32 = arith.constant 0 : i32
    %c0_i32_0 = arith.constant 0 : i32
    %c0_i32_1 = arith.constant 0 : i32
    return %c0_i32, %c0_i32_0 : i32, i32
  }
  func.func @transform_7(%arg0: i32) -> (i32, i32) {
    %c0_i32 = arith.constant 0 : i32
    %c0_i32_0 = arith.constant 0 : i32
    %c0_i32_1 = arith.constant 0 : i32
    return %c0_i32, %c0_i32_0 : i32, i32
  }
  func.func @transform_8(%arg0: i32) -> (i32, i32) {
    %c0_i32 = arith.constant 0 : i32
    %c0_i32_0 = arith.constant 0 : i32
    %c0_i32_1 = arith.constant 0 : i32
    return %c0_i32, %c0_i32_0 : i32, i32
  }
  func.func @transform_9(%arg0: i32) -> (i32, i32) {
    %c0_i32 = arith.constant 0 : i32
    %c0_i32_0 = arith.constant 0 : i32
    %c0_i32_1 = arith.constant 0 : i32
    return %c0_i32, %c0_i32_0 : i32, i32
  }
  func.func @transform_10(%arg0: i32) -> (i32, i32) {
    %c0_i32 = arith.constant 0 : i32
    %c0_i32_0 = arith.constant 0 : i32
    %c0_i32_1 = arith.constant 0 : i32
    return %c0_i32, %c0_i32_0 : i32, i32
  }
  func.func @transform_11(%arg0: i32) -> (i32, i32) {
    %c0_i32 = arith.constant 0 : i32
    %c0_i32_0 = arith.constant 0 : i32
    %c0_i32_1 = arith.constant 0 : i32
    return %c0_i32, %c0_i32_0 : i32, i32
  }
  func.func @transform_12(%arg0: i32) -> (i32, i32) {
    %c0_i32 = arith.constant 0 : i32
    %c0_i32_0 = arith.constant 0 : i32
    %c0_i32_1 = arith.constant 0 : i32
    return %c0_i32, %c0_i32_0 : i32, i32
  }
  func.func @transform_13(%arg0: i32) -> (i32, i32) {
    %c0_i32 = arith.constant 0 : i32
    %c0_i32_0 = arith.constant 0 : i32
    %c0_i32_1 = arith.constant 0 : i32
    return %c0_i32, %c0_i32_0 : i32, i32
  }
  func.func @transform_14(%arg0: i32) -> (i32, i32) {
    %c0_i32 = arith.constant 0 : i32
    %c0_i32_0 = arith.constant 0 : i32
    %c0_i32_1 = arith.constant 0 : i32
    return %c0_i32, %c0_i32_0 : i32, i32
  }
  func.func @transform_15(%arg0: i32) -> (i32, i32) {
    %c0_i32 = arith.constant 0 : i32
    %c0_i32_0 = arith.constant 0 : i32
    %c0_i32_1 = arith.constant 0 : i32
    return %c0_i32, %c0_i32_0 : i32, i32
  }
  func.func @transform_16(%arg0: i32) -> (i32, i32) {
    %c0_i32 = arith.constant 0 : i32
    %c0_i32_0 = arith.constant 0 : i32
    %c0_i32_1 = arith.constant 0 : i32
    return %c0_i32, %c0_i32_0 : i32, i32
  }
  func.func @transform_17(%arg0: i32) -> (i32, i32) {
    %c0_i32 = arith.constant 0 : i32
    %c0_i32_0 = arith.constant 0 : i32
    %c0_i32_1 = arith.constant 0 : i32
    return %c0_i32, %c0_i32_0 : i32, i32
  }
}

</mosaic_0001>

<llo_original>
// kernel: conv_input_model.1
$region0: #{conv_input_model.1}
  #allocation0 [shape = 'u32[]', space=smem, size = 0x4, offset = 0x4, fixed_abs, tag = 'smem constant byte address 0x4 - core index']
  #allocation1 [shape = 'u32[144,128]{1,0:T(1,128)}', space=vmem, size = 0x12000, scoped, tag = 'internal scratch']
  #allocation2 [shape = 'f32[128,1152]{1,0:T(8,128)}', space=vmem, size = 0x90000, scoped, tag = 'scratch operand']
  #allocation3 [shape = 'f32[2,10,5,256]{3,2,1,0:T(8,128)}', space=vmem, size = 0x28000, scoped, tag = 'scratch operand']
  #allocation4 [shape = 'f32[2,6,3,256]{3,2,1,0:T(4,128)}', space=vmem, size = 0xc000, scoped, tag = 'scratch operand']
  #allocation5 [shape = 'f32[2,4,2,256]{3,2,1,0:T(2,128)}', space=vmem, size = 0x4000, scoped, tag = 'scratch operand']
  %s0 = inlined_call_operand.vmem [shape: f32[2,18,9,256], index: 0, kind: input, shape index: {}]
  %s1 = inlined_call_operand.vmem [shape: bf16[1152,128], index: 1, kind: input, shape index: {}]
  %s2 = inlined_call_operand.vmem [shape: f32[1,128], index: 2, kind: input, shape index: {}]
  %s3 = inlined_call_operand.vmem [shape: f32[1,128], index: 3, kind: input, shape index: {}]
  %s4 = inlined_call_operand.vmem [shape: f32[1,128], index: 4, kind: input, shape index: {}]
  %s5 = inlined_call_operand.vmem [shape: bf16[1152,128], index: 5, kind: input, shape index: {}]
  %s6 = inlined_call_operand.vmem [shape: f32[1,128], index: 6, kind: input, shape index: {}]
  %s7 = inlined_call_operand.vmem [shape: f32[1,128], index: 7, kind: input, shape index: {}]
  %s8 = inlined_call_operand.vmem [shape: f32[1,128], index: 8, kind: input, shape index: {}]
  %s9 = inlined_call_operand.vmem [shape: bf16[1152,128], index: 9, kind: input, shape index: {}]
  %s10 = inlined_call_operand.vmem [shape: f32[1,128], index: 10, kind: input, shape index: {}]
  %s11 = inlined_call_operand.vmem [shape: f32[1,128], index: 11, kind: input, shape index: {}]
  %s12 = inlined_call_operand.vmem [shape: f32[1,128], index: 12, kind: input, shape index: {}]
  %s13 = inlined_call_operand.vmem [shape: bf16[1152,256], index: 13, kind: input, shape index: {}]
  %s14 = inlined_call_operand.vmem [shape: f32[1,256], index: 14, kind: input, shape index: {}]
  %s15 = inlined_call_operand.vmem [shape: f32[1,256], index: 15, kind: input, shape index: {}]
  %s16 = inlined_call_operand.vmem [shape: f32[1,256], index: 16, kind: input, shape index: {}]
  %s17 = inlined_call_operand.vmem [shape: f32[2,256], index: 17, kind: output, shape index: {}]
  %s18 = sld [smem:[#allocation0]]
  $region78: #{conv_input_model.1} parent=0
    _
  %s20 = ssub.s32 1, %s18
  %s21 = scalar_select 0, %s20, %s18
  // Predicated region
  $region2: #{conv_input_model.1} parent=0 // pred_check
    _
  $region3: #{conv_input_model.1} parent=0 // pred_check_branch
    %23 = sbr.rel (0) target = $region5
  $region4: #{conv_input_model.1} parent=0 // pred_region
    _
  $region5: #{conv_input_model.1} parent=0 // pred_fallthru
    _
  // Predicated region
  $region6: #{conv_input_model.1} parent=0 // pred_check
    _
  $region7: #{conv_input_model.1} parent=0 // pred_check_branch
    %25 = sbr.rel (0) target = $region9
  $region8: #{conv_input_model.1} parent=0 // pred_region
    _
  $region9: #{conv_input_model.1} parent=0 // pred_fallthru
    _
  // Predicated region
  $region10: #{conv_input_model.1} parent=0 // pred_check
    _
  $region11: #{conv_input_model.1} parent=0 // pred_check_branch
    %27 = sbr.rel (0) target = $region13
  $region12: #{conv_input_model.1} parent=0 // pred_region
    _
  $region13: #{conv_input_model.1} parent=0 // pred_fallthru
    _
  // Predicated region
  $region14: #{conv_input_model.1} parent=0 // pred_check
    _
  $region15: #{conv_input_model.1} parent=0 // pred_check_branch
    %29 = sbr.rel (0) target = $region17
  $region16: #{conv_input_model.1} parent=0 // pred_region
    _
  $region17: #{conv_input_model.1} parent=0 // pred_fallthru
    _
  // Predicated region
  $region18: #{conv_input_model.1} parent=0 // pred_check
    _
  $region19: #{conv_input_model.1} parent=0 // pred_check_branch
    %31 = sbr.rel (0) target = $region21
  $region20: #{conv_input_model.1} parent=0 // pred_region
    _
  $region21: #{conv_input_model.1} parent=0 // pred_fallthru
    _
  // Predicated region
  $region22: #{conv_input_model.1} parent=0 // pred_check
    _
  $region23: #{conv_input_model.1} parent=0 // pred_check_branch
    %33 = sbr.rel (0) target = $region25
  $region24: #{conv_input_model.1} parent=0 // pred_region
    _
  $region25: #{conv_input_model.1} parent=0 // pred_fallthru
    _
  // Predicated region
  $region26: #{conv_input_model.1} parent=0 // pred_check
    _
  $region27: #{conv_input_model.1} parent=0 // pred_check_branch
    %35 = sbr.rel (0) target = $region29
  $region28: #{conv_input_model.1} parent=0 // pred_region
    _
  $region29: #{conv_input_model.1} parent=0 // pred_fallthru
    _
  // Predicated region
  $region30: #{conv_input_model.1} parent=0 // pred_check
    _
  $region31: #{conv_input_model.1} parent=0 // pred_check_branch
    %37 = sbr.rel (0) target = $region33
  $region32: #{conv_input_model.1} parent=0 // pred_region
    _
  $region33: #{conv_input_model.1} parent=0 // pred_fallthru
    _
  // Predicated region
  $region34: #{conv_input_model.1} parent=0 // pred_check
    _
  $region35: #{conv_input_model.1} parent=0 // pred_check_branch
    %39 = sbr.rel (0) target = $region37
  $region36: #{conv_input_model.1} parent=0 // pred_region
    _
  $region37: #{conv_input_model.1} parent=0 // pred_fallthru
    _
  // Predicated region
  $region38: #{conv_input_model.1} parent=0 // pred_check
    _
  $region39: #{conv_input_model.1} parent=0 // pred_check_branch
    %41 = sbr.rel (0) target = $region41
  $region40: #{conv_input_model.1} parent=0 // pred_region
    _
  $region41: #{conv_input_model.1} parent=0 // pred_fallthru
    _
  // Predicated region
  $region42: #{conv_input_model.1} parent=0 // pred_check
    _
  $region43: #{conv_input_model.1} parent=0 // pred_check_branch
    %43 = sbr.rel (0) target = $region45
  $region44: #{conv_input_model.1} parent=0 // pred_region
    _
  $region45: #{conv_input_model.1} parent=0 // pred_fallthru
    _
  // Predicated region
  $region46: #{conv_input_model.1} parent=0 // pred_check
    _
  $region47: #{conv_input_model.1} parent=0 // pred_check_branch
    %45 = sbr.rel (0) target = $region49
  $region48: #{conv_input_model.1} parent=0 // pred_region
    _
  $region49: #{conv_input_model.1} parent=0 // pred_fallthru
    _
  // Predicated region
  $region50: #{conv_input_model.1} parent=0 // pred_check
    _
  $region51: #{conv_input_model.1} parent=0 // pred_check_branch
    %47 = sbr.rel (0) target = $region53
  $region52: #{conv_input_model.1} parent=0 // pred_region
    _
  $region53: #{conv_input_model.1} parent=0 // pred_fallthru
    _
  // Predicated region
  $region54: #{conv_input_model.1} parent=0 // pred_check
    _
  $region55: #{conv_input_model.1} parent=0 // pred_check_branch
    %49 = sbr.rel (0) target = $region57
  $region56: #{conv_input_model.1} parent=0 // pred_region
    _
  $region57: #{conv_input_model.1} parent=0 // pred_fallthru
    _
  // Predicated region
  $region58: #{conv_input_model.1} parent=0 // pred_check
    _
  $region59: #{conv_input_model.1} parent=0 // pred_check_branch
    %51 = sbr.rel (0) target = $region61
  $region60: #{conv_input_model.1} parent=0 // pred_region
    _
  $region61: #{conv_input_model.1} parent=0 // pred_fallthru
    _
  // Predicated region
  $region62: #{conv_input_model.1} parent=0 // pred_check
    _
  $region63: #{conv_input_model.1} parent=0 // pred_check_branch
    %53 = sbr.rel (0) target = $region65
  $region64: #{conv_input_model.1} parent=0 // pred_region
    _
  $region65: #{conv_input_model.1} parent=0 // pred_fallthru
    _
  // Predicated region
  $region66: #{conv_input_model.1} parent=0 // pred_check
    _
  $region67: #{conv_input_model.1} parent=0 // pred_check_branch
    %55 = sbr.rel (0) target = $region69
  $region68: #{conv_input_model.1} parent=0 // pred_region
    _
  $region69: #{conv_input_model.1} parent=0 // pred_fallthru
    _
  %57 = vst [vmem:[#allocation3] sm:$0x1f] 0.0
  %58 = vst [vmem:[#allocation3 + $0x8] sm:$0x1f] 0.0
  %59 = vst [vmem:[#allocation3 + $0x10] sm:$0x1f] 0.0
  %60 = vst [vmem:[#allocation3 + $0x18] sm:$0x1f] 0.0
  %61 = vst [vmem:[#allocation3 + $0x20] sm:$0x1f] 0.0
  %62 = vst [vmem:[#allocation3 + $0x28] sm:$0x1f] 0.0
  %63 = vst [vmem:[#allocation3 + $0x30] sm:$0x1f] 0.0
  %64 = vst [vmem:[#allocation3 + $0x38] sm:$0x1f] 0.0
  %65 = vst [vmem:[#allocation3 + $0x40] sm:$0x1f] 0.0
  %66 = vst [vmem:[#allocation3 + $0x48] sm:$0x1f] 0.0
  %67 = vst [vmem:[#allocation3 + $0x50] sm:$0x1f] 0.0
  %68 = vst [vmem:[#allocation3 + $0x58] sm:$0x1f] 0.0
  %69 = vst [vmem:[#allocation3 + $0x60] sm:$0x1f] 0.0
  %70 = vst [vmem:[#allocation3 + $0x68] sm:$0x1f] 0.0
  %71 = vst [vmem:[#allocation3 + $0x70] sm:$0x1f] 0.0
  %72 = vst [vmem:[#allocation3 + $0x78] sm:$0x1f] 0.0
  %73 = vst [vmem:[#allocation3 + $0x80] sm:$0x1f] 0.0
  %74 = vst [vmem:[#allocation3 + $0x88] sm:$0x1f] 0.0
  %75 = vst [vmem:[#allocation3 + $0x90] sm:$0x1f] 0.0
  %76 = vst [vmem:[#allocation3 + $0x98] sm:$0x1f] 0.0
  %77 = vst [vmem:[#allocation3 + $0xa0] sm:$0x1f] 0.0
  %78 = vst [vmem:[#allocation3 + $0xa8] sm:$0x1f] 0.0
  %79 = vst [vmem:[#allocation3 + $0xb0] sm:$0x1f] 0.0
  %80 = vst [vmem:[#allocation3 + $0xb8] sm:$0x1f] 0.0
  %81 = vst [vmem:[#allocation3 + $0xc0] sm:$0x1f] 0.0
  %82 = vst [vmem:[#allocation3 + $0xc8] sm:$0x1f] 0.0
  %83 = vst [vmem:[#allocation3 + $0xd0] sm:$0x1f] 0.0
  %84 = vst [vmem:[#allocation3 + $0xd8] sm:$0x1f] 0.0
  %85 = vst [vmem:[#allocation3 + $0xe0] sm:$0x1f] 0.0
  %86 = vst [vmem:[#allocation3 + $0xe8] sm:$0x1f] 0.0
  %87 = vst [vmem:[#allocation3 + $0xf0] sm:$0x1f] 0.0
  %88 = vst [vmem:[#allocation3 + $0xf8] sm:$0x1f] 0.0
  %89 = vst [vmem:[#allocation3 + $0x100] sm:$0x1f] 0.0
  %90 = vst [vmem:[#allocation3 + $0x108] sm:$0x1f] 0.0
  %91 = vst [vmem:[#allocation3 + $0x110] sm:$0x1f] 0.0
  %92 = vst [vmem:[#allocation3 + $0x118] sm:$0x1f] 0.0
  %93 = vst [vmem:[#allocation3 + $0x120] sm:$0x1f] 0.0
  %94 = vst [vmem:[#allocation3 + $0x128] sm:$0x1f] 0.0
  %95 = vst [vmem:[#allocation3 + $0x130] sm:$0x1f] 0.0
  %96 = vst [vmem:[#allocation3 + $0x138] sm:$0x1f] 0.0
  %97 = vst [vmem:[#allocation4] sm:$0x77] 0.0
  %98 = vst [vmem:[#allocation4 + $0x8] sm:$0x77] 0.0
  %99 = vst [vmem:[#allocation4 + $0x10] sm:$0x77] 0.0
  %100 = vst [vmem:[#allocation4 + $0x18] sm:$0x77] 0.0
  %101 = vst [vmem:[#allocation4 + $0x20] sm:$0x77] 0.0
  %102 = vst [vmem:[#allocation4 + $0x28] sm:$0x77] 0.0
  %103 = vst [vmem:[#allocation4 + $0x30] sm:$0x77] 0.0
  %104 = vst [vmem:[#allocation4 + $0x38] sm:$0x77] 0.0
  %105 = vst [vmem:[#allocation4 + $0x40] sm:$0x77] 0.0
  %106 = vst [vmem:[#allocation4 + $0x48] sm:$0x77] 0.0
  %107 = vst [vmem:[#allocation4 + $0x50] sm:$0x77] 0.0
  %108 = vst [vmem:[#allocation4 + $0x58] sm:$0x77] 0.0
  %109 = vst [vmem:[#allocation5] sm:$0xf] 0.0
  %110 = vst [vmem:[#allocation5 + $0x4] sm:$0xf] 0.0
  %111 = vst [vmem:[#allocation5 + $0x8] sm:$0xf] 0.0
  %112 = vst [vmem:[#allocation5 + $0xc] sm:$0xf] 0.0
  %113 = vst [vmem:[#allocation5 + $0x10] sm:$0xf] 0.0
  %114 = vst [vmem:[#allocation5 + $0x14] sm:$0xf] 0.0
  %115 = vst [vmem:[#allocation5 + $0x18] sm:$0xf] 0.0
  %116 = vst [vmem:[#allocation5 + $0x1c] sm:$0xf] 0.0
  %v117 = vld [vmem:[%s0] sm:$0xff]
  %v118 = vld [vmem:[%s0 + $0x8] sm:$0xff]
  %119 = vst [vmem:[#allocation2] sm:$0xff] %v117
  %120 = vst [vmem:[#allocation2 + $0x8] sm:$0xff] %v118
  %v121 = vld [vmem:[%s0] sm:$0xfe]
  %v122 = vld [vmem:[%s0 + $0x10] sm:$0x1]
  %vm125 = vcmask 1046528
  %v126 = vrot.slane %v121, 1
  %v127 = vrot.slane %v122, 1
  %v128 = vsel %vm125, %v126, %v127
  %130 = vst [vmem:[#allocation2 + $0x10] sm:$0xff] %v128
  %s131 = scalar_lea.vmem %s0, 32
  %v132 = vld [vmem:[%s131] sm:$0xff]
  %v133 = vld [vmem:[%s131 + $0x8] sm:$0xff]
  %134 = vst [vmem:[#allocation2 + $0x18] sm:$0xff] %v132
  %135 = vst [vmem:[#allocation2 + $0x20] sm:$0xff] %v133
  %v136 = vld [vmem:[%s131] sm:$0xfe]
  %v137 = vld [vmem:[%s131 + $0x10] sm:$0x1]
  %v140 = vrot.slane %v136, 1
  %v141 = vrot.slane %v137, 1
  %v142 = vsel %vm125, %v140, %v141
  %144 = vst [vmem:[#allocation2 + $0x28] sm:$0xff] %v142
  %s145 = scalar_lea.vmem %s0, 64
  %v146 = vld [vmem:[%s145] sm:$0xff]
  %v147 = vld [vmem:[%s145 + $0x8] sm:$0xff]
  %148 = vst [vmem:[#allocation2 + $0x30] sm:$0xff] %v146
  %149 = vst [vmem:[#allocation2 + $0x38] sm:$0xff] %v147
  %v150 = vld [vmem:[%s145] sm:$0xfe]
  %v151 = vld [vmem:[%s145 + $0x10] sm:$0x1]
  %v154 = vrot.slane %v150, 1
  %v155 = vrot.slane %v151, 1
  %v156 = vsel %vm125, %v154, %v155
  %158 = vst [vmem:[#allocation2 + $0x40] sm:$0xff] %v156
  %v159 = vld [vmem:[%s145] sm:$0xff]
  %v160 = vld [vmem:[%s145 + $0x8] sm:$0xff]
  %161 = vst [vmem:[#allocation2 + $0x48] sm:$0xff] %v159
  %162 = vst [vmem:[#allocation2 + $0x50] sm:$0xff] %v160
  %v163 = vld [vmem:[%s145] sm:$0xfe]
  %v164 = vld [vmem:[%s145 + $0x10] sm:$0x1]
  %v167 = vrot.slane %v163, 1
  %v168 = vrot.slane %v164, 1
  %v169 = vsel %vm125, %v167, %v168
  %171 = vst [vmem:[#allocation2 + $0x58] sm:$0xff] %v169
  %s172 = scalar_lea.vmem %s0, 96
  %v173 = vld [vmem:[%s172] sm:$0xff]
  %v174 = vld [vmem:[%s172 + $0x8] sm:$0xff]
  %175 = vst [vmem:[#allocation2 + $0x60] sm:$0xff] %v173
  %176 = vst [vmem:[#allocation2 + $0x68] sm:$0xff] %v174
  %v177 = vld [vmem:[%s172] sm:$0xfe]
  %v178 = vld [vmem:[%s172 + $0x10] sm:$0x1]
  %v181 = vrot.slane %v177, 1
  %v182 = vrot.slane %v178, 1
  %v183 = vsel %vm125, %v181, %v182
  %185 = vst [vmem:[#allocation2 + $0x70] sm:$0xff] %v183
  %s186 = scalar_lea.vmem %s0, 128
  %v187 = vld [vmem:[%s186] sm:$0xff]
  %v188 = vld [vmem:[%s186 + $0x8] sm:$0xff]
  %189 = vst [vmem:[#allocation2 + $0x78] sm:$0xff] %v187
  %190 = vst [vmem:[#allocation2 + $0x80] sm:$0xff] %v188
  %v191 = vld [vmem:[%s186] sm:$0xfe]
  %v192 = vld [vmem:[%s186 + $0x10] sm:$0x1]
  %v195 = vrot.slane %v191, 1
  %v196 = vrot.slane %v192, 1
  %v197 = vsel %vm125, %v195, %v196
  %199 = vst [vmem:[#allocation2 + $0x88] sm:$0xff] %v197
  %v200 = vld [vmem:[%s186] sm:$0xff]
  %v201 = vld [vmem:[%s186 + $0x8] sm:$0xff]
  %202 = vst [vmem:[#allocation2 + $0x90] sm:$0xff] %v200
  %203 = vst [vmem:[#allocation2 + $0x98] sm:$0xff] %v201
  %v204 = vld [vmem:[%s186] sm:$0xfe]
  %v205 = vld [vmem:[%s186 + $0x10] sm:$0x1]
  %v208 = vrot.slane %v204, 1
  %v209 = vrot.slane %v205, 1
  %v210 = vsel %vm125, %v208, %v209
  %212 = vst [vmem:[#allocation2 + $0xa0] sm:$0xff] %v210
  %s213 = scalar_lea.vmem %s0, 160
  %v214 = vld [vmem:[%s213] sm:$0xff]
  %v215 = vld [vmem:[%s213 + $0x8] sm:$0xff]
  %216 = vst [vmem:[#allocation2 + $0xa8] sm:$0xff] %v214
  %217 = vst [vmem:[#allocation2 + $0xb0] sm:$0xff] %v215
  %v218 = vld [vmem:[%s213] sm:$0xfe]
  %v219 = vld [vmem:[%s213 + $0x10] sm:$0x1]
  %v222 = vrot.slane %v218, 1
  %v223 = vrot.slane %v219, 1
  %v224 = vsel %vm125, %v222, %v223
  %226 = vst [vmem:[#allocation2 + $0xb8] sm:$0xff] %v224
  %s227 = scalar_lea.vmem %s0, 192
  %v228 = vld [vmem:[%s227] sm:$0xff]
  %v229 = vld [vmem:[%s227 + $0x8] sm:$0xff]
  %230 = vst [vmem:[#allocation2 + $0xc0] sm:$0xff] %v228
  %231 = vst [vmem:[#allocation2 + $0xc8] sm:$0xff] %v229
  %v232 = vld [vmem:[%s227] sm:$0xfe]
  %v233 = vld [vmem:[%s227 + $0x10] sm:$0x1]
  %v236 = vrot.slane %v232, 1
  %v237 = vrot.slane %v233, 1
  %v238 = vsel %vm125, %v236, %v237
  %240 = vst [vmem:[#allocation2 + $0xd0] sm:$0xff] %v238
  %v241 = vld [vmem:[%s227] sm:$0xff]
  %v242 = vld [vmem:[%s227 + $0x8] sm:$0xff]
  %243 = vst [vmem:[#allocation2 + $0xd8] sm:$0xff] %v241
  %244 = vst [vmem:[#allocation2 + $0xe0] sm:$0xff] %v242
  %v245 = vld [vmem:[%s227] sm:$0xfe]
  %v246 = vld [vmem:[%s227 + $0x10] sm:$0x1]
  %v249 = vrot.slane %v245, 1
  %v250 = vrot.slane %v246, 1
  %v251 = vsel %vm125, %v249, %v250
  %253 = vst [vmem:[#allocation2 + $0xe8] sm:$0xff] %v251
  %s254 = scalar_lea.vmem %s0, 224
  %v255 = vld [vmem:[%s254] sm:$0xff]
  %v256 = vld [vmem:[%s254 + $0x8] sm:$0xff]
  %257 = vst [vmem:[#allocation2 + $0xf0] sm:$0xff] %v255
  %258 = vst [vmem:[#allocation2 + $0xf8] sm:$0xff] %v256
  %v259 = vld [vmem:[%s254] sm:$0xfe]
  %v260 = vld [vmem:[%s254 + $0x10] sm:$0x1]
  %v263 = vrot.slane %v259, 1
  %v264 = vrot.slane %v260, 1
  %v265 = vsel %vm125, %v263, %v264
  %267 = vst [vmem:[#allocation2 + $0x100] sm:$0xff] %v265
  %s268 = scalar_lea.vmem %s0, 256
  %v269 = vld [vmem:[%s268] sm:$0xff]
  %v270 = vld [vmem:[%s268 + $0x8] sm:$0xff]
  %271 = vst [vmem:[#allocation2 + $0x108] sm:$0xff] %v269
  %272 = vst [vmem:[#allocation2 + $0x110] sm:$0xff] %v270
  %v273 = vld [vmem:[%s268] sm:$0xfe]
  %v274 = vld [vmem:[%s268 + $0x10] sm:$0x1]
  %v277 = vrot.slane %v273, 1
  %v278 = vrot.slane %v274, 1
  %v279 = vsel %vm125, %v277, %v278
  %281 = vst [vmem:[#allocation2 + $0x118] sm:$0xff] %v279
  %v282 = vld [vmem:[%s268] sm:$0xff]
  %v283 = vld [vmem:[%s268 + $0x8] sm:$0xff]
  %284 = vst [vmem:[#allocation2 + $0x120] sm:$0xff] %v282
  %285 = vst [vmem:[#allocation2 + $0x128] sm:$0xff] %v283
  %v286 = vld [vmem:[%s268] sm:$0xfe]
  %v287 = vld [vmem:[%s268 + $0x10] sm:$0x1]
  %v290 = vrot.slane %v286, 1
  %v291 = vrot.slane %v287, 1
  %v292 = vsel %vm125, %v290, %v291
  %294 = vst [vmem:[#allocation2 + $0x130] sm:$0xff] %v292
  %s295 = scalar_lea.vmem %s0, 288
  %v296 = vld [vmem:[%s295] sm:$0xff]
  %v297 = vld [vmem:[%s295 + $0x8] sm:$0xff]
  %298 = vst [vmem:[#allocation2 + $0x138] sm:$0xff] %v296
  %299 = vst [vmem:[#allocation2 + $0x140] sm:$0xff] %v297
  %v300 = vld [vmem:[%s295] sm:$0xfe]
  %v301 = vld [vmem:[%s295 + $0x10] sm:$0x1]
  %v304 = vrot.slane %v300, 1
  %v305 = vrot.slane %v301, 1
  %v306 = vsel %vm125, %v304, %v305
  %308 = vst [vmem:[#allocation2 + $0x148] sm:$0xff] %v306
  %s309 = scalar_lea.vmem %s0, 320
  %v310 = vld [vmem:[%s309] sm:$0xff]
  %v311 = vld [vmem:[%s309 + $0x8] sm:$0xff]
  %312 = vst [vmem:[#allocation2 + $0x150] sm:$0xff] %v310
  %313 = vst [vmem:[#allocation2 + $0x158] sm:$0xff] %v311
  %v314 = vld [vmem:[%s309] sm:$0xfe]
  %v315 = vld [vmem:[%s309 + $0x10] sm:$0x1]
  %v318 = vrot.slane %v314, 1
  %v319 = vrot.slane %v315, 1
  %v320 = vsel %vm125, %v318, %v319
  %322 = vst [vmem:[#allocation2 + $0x160] sm:$0xff] %v320
  %v323 = vld [vmem:[%s309] sm:$0xff]
  %v324 = vld [vmem:[%s309 + $0x8] sm:$0xff]
  %325 = vst [vmem:[#allocation2 + $0x168] sm:$0xff] %v323
  %326 = vst [vmem:[#allocation2 + $0x170] sm:$0xff] %v324
  %v327 = vld [vmem:[%s309] sm:$0xfe]
  %v328 = vld [vmem:[%s309 + $0x10] sm:$0x1]
  %v331 = vrot.slane %v327, 1
  %v332 = vrot.slane %v328, 1
  %v333 = vsel %vm125, %v331, %v332
  %335 = vst [vmem:[#allocation2 + $0x178] sm:$0xff] %v333
  %s336 = scalar_lea.vmem %s0, 352
  %v337 = vld [vmem:[%s336] sm:$0xff]
  %v338 = vld [vmem:[%s336 + $0x8] sm:$0xff]
  %339 = vst [vmem:[#allocation2 + $0x180] sm:$0xff] %v337
  %340 = vst [vmem:[#allocation2 + $0x188] sm:$0xff] %v338
  %v341 = vld [vmem:[%s336] sm:$0xfe]
  %v342 = vld [vmem:[%s336 + $0x10] sm:$0x1]
  %v345 = vrot.slane %v341, 1
  %v346 = vrot.slane %v342, 1
  %v347 = vsel %vm125, %v345, %v346
  %349 = vst [vmem:[#allocation2 + $0x190] sm:$0xff] %v347
  %s350 = scalar_lea.vmem %s0, 384
  %v351 = vld [vmem:[%s350] sm:$0xff]
  %v352 = vld [vmem:[%s350 + $0x8] sm:$0xff]
  %353 = vst [vmem:[#allocation2 + $0x198] sm:$0xff] %v351
  %354 = vst [vmem:[#allocation2 + $0x1a0] sm:$0xff] %v352
  %v355 = vld [vmem:[%s350] sm:$0xfe]
  %v356 = vld [vmem:[%s350 + $0x10] sm:$0x1]
  %v359 = vrot.slane %v355, 1
  %v360 = vrot.slane %v356, 1
  %v361 = vsel %vm125, %v359, %v360
  %363 = vst [vmem:[#allocation2 + $0x1a8] sm:$0xff] %v361
  %v364 = vld [vmem:[%s350] sm:$0xff]
  %v365 = vld [vmem:[%s350 + $0x8] sm:$0xff]
  %366 = vst [vmem:[#allocation2 + $0x1b0] sm:$0xff] %v364
  %367 = vst [vmem:[#allocation2 + $0x1b8] sm:$0xff] %v365
  %v368 = vld [vmem:[%s350] sm:$0xfe]
  %v369 = vld [vmem:[%s350 + $0x10] sm:$0x1]
  %v372 = vrot.slane %v368, 1
  %v373 = vrot.slane %v369, 1
  %v374 = vsel %vm125, %v372, %v373
  %376 = vst [vmem:[#allocation2 + $0x1c0] sm:$0xff] %v374
  %s377 = scalar_lea.vmem %s0, 416
  %v378 = vld [vmem:[%s377] sm:$0xff]
  %v379 = vld [vmem:[%s377 + $0x8] sm:$0xff]
  %380 = vst [vmem:[#allocation2 + $0x1c8] sm:$0xff] %v378
  %381 = vst [vmem:[#allocation2 + $0x1d0] sm:$0xff] %v379
  %v382 = vld [vmem:[%s377] sm:$0xfe]
  %v383 = vld [vmem:[%s377 + $0x10] sm:$0x1]
  %v386 = vrot.slane %v382, 1
  %v387 = vrot.slane %v383, 1
  %v388 = vsel %vm125, %v386, %v387
  %390 = vst [vmem:[#allocation2 + $0x1d8] sm:$0xff] %v388
  %s391 = scalar_lea.vmem %s0, 448
  %v392 = vld [vmem:[%s391] sm:$0xff]
  %v393 = vld [vmem:[%s391 + $0x8] sm:$0xff]
  %394 = vst [vmem:[#allocation2 + $0x1e0] sm:$0xff] %v392
  %395 = vst [vmem:[#allocation2 + $0x1e8] sm:$0xff] %v393
  %v396 = vld [vmem:[%s391] sm:$0xfe]
  %v397 = vld [vmem:[%s391 + $0x10] sm:$0x1]
  %v400 = vrot.slane %v396, 1
  %v401 = vrot.slane %v397, 1
  %v402 = vsel %vm125, %v400, %v401
  %404 = vst [vmem:[#allocation2 + $0x1f0] sm:$0xff] %v402
  %v405 = vld [vmem:[%s391] sm:$0xff]
  %v406 = vld [vmem:[%s391 + $0x8] sm:$0xff]
  %407 = vst [vmem:[#allocation2 + $0x1f8] sm:$0xff] %v405
  %408 = vst [vmem:[#allocation2 + $0x200] sm:$0xff] %v406
  %v409 = vld [vmem:[%s391] sm:$0xfe]
  %v410 = vld [vmem:[%s391 + $0x10] sm:$0x1]
  %v413 = vrot.slane %v409, 1
  %v414 = vrot.slane %v410, 1
  %v415 = vsel %vm125, %v413, %v414
  %417 = vst [vmem:[#allocation2 + $0x208] sm:$0xff] %v415
  %s418 = scalar_lea.vmem %s0, 480
  %v419 = vld [vmem:[%s418] sm:$0xff]
  %v420 = vld [vmem:[%s418 + $0x8] sm:$0xff]
  %421 = vst [vmem:[#allocation2 + $0x210] sm:$0xff] %v419
  %422 = vst [vmem:[#allocation2 + $0x218] sm:$0xff] %v420
  %v423 = vld [vmem:[%s418] sm:$0xfe]
  %v424 = vld [vmem:[%s418 + $0x10] sm:$0x1]
  %v427 = vrot.slane %v423, 1
  %v428 = vrot.slane %v424, 1
  %v429 = vsel %vm125, %v427, %v428
  %431 = vst [vmem:[#allocation2 + $0x220] sm:$0xff] %v429
  %s432 = scalar_lea.vmem %s0, 512
  %v433 = vld [vmem:[%s432] sm:$0xff]
  %v434 = vld [vmem:[%s432 + $0x8] sm:$0xff]
  %435 = vst [vmem:[#allocation2 + $0x228] sm:$0xff] %v433
  %436 = vst [vmem:[#allocation2 + $0x230] sm:$0xff] %v434
  %v437 = vld [vmem:[%s432] sm:$0xfe]
  %v438 = vld [vmem:[%s432 + $0x10] sm:$0x1]
  %v441 = vrot.slane %v437, 1
  %v442 = vrot.slane %v438, 1
  %v443 = vsel %vm125, %v441, %v442
  %445 = vst [vmem:[#allocation2 + $0x238] sm:$0xff] %v443
  %s446 = scalar_lea.vmem %s0, 576
  %v447 = vld [vmem:[%s446] sm:$0xff]
  %v448 = vld [vmem:[%s446 + $0x8] sm:$0xff]
  %449 = vst [vmem:[#allocation2 + $0x240] sm:$0xff] %v447
  %450 = vst [vmem:[#allocation2 + $0x248] sm:$0xff] %v448
  %v451 = vld [vmem:[%s446] sm:$0xfe]
  %v452 = vld [vmem:[%s446 + $0x10] sm:$0x1]
  %v455 = vrot.slane %v451, 1
  %v456 = vrot.slane %v452, 1
  %v457 = vsel %vm125, %v455, %v456
  %459 = vst [vmem:[#allocation2 + $0x250] sm:$0xff] %v457
  %s460 = scalar_lea.vmem %s0, 608
  %v461 = vld [vmem:[%s460] sm:$0xff]
  %v462 = vld [vmem:[%s460 + $0x8] sm:$0xff]
  %463 = vst [vmem:[#allocation2 + $0x258] sm:$0xff] %v461
  %464 = vst [vmem:[#allocation2 + $0x260] sm:$0xff] %v462
  %v465 = vld [vmem:[%s460] sm:$0xfe]
  %v466 = vld [vmem:[%s460 + $0x10] sm:$0x1]
  %v469 = vrot.slane %v465, 1
  %v470 = vrot.slane %v466, 1
  %v471 = vsel %vm125, %v469, %v470
  %473 = vst [vmem:[#allocation2 + $0x268] sm:$0xff] %v471
  %s474 = scalar_lea.vmem %s0, 640
  %v475 = vld [vmem:[%s474] sm:$0xff]
  %v476 = vld [vmem:[%s474 + $0x8] sm:$0xff]
  %477 = vst [vmem:[#allocation2 + $0x270] sm:$0xff] %v475
  %478 = vst [vmem:[#allocation2 + $0x278] sm:$0xff] %v476
  %v479 = vld [vmem:[%s474] sm:$0xfe]
  %v480 = vld [vmem:[%s474 + $0x10] sm:$0x1]
  %v483 = vrot.slane %v479, 1
  %v484 = vrot.slane %v480, 1
  %v485 = vsel %vm125, %v483, %v484
  %487 = vst [vmem:[#allocation2 + $0x280] sm:$0xff] %v485
  %v488 = vld [vmem:[%s474] sm:$0xff]
  %v489 = vld [vmem:[%s474 + $0x8] sm:$0xff]
  %490 = vst [vmem:[#allocation2 + $0x288] sm:$0xff] %v488
  %491 = vst [vmem:[#allocation2 + $0x290] sm:$0xff] %v489
  %v492 = vld [vmem:[%s474] sm:$0xfe]
  %v493 = vld [vmem:[%s474 + $0x10] sm:$0x1]
  %v496 = vrot.slane %v492, 1
  %v497 = vrot.slane %v493, 1
  %v498 = vsel %vm125, %v496, %v497
  %500 = vst [vmem:[#allocation2 + $0x298] sm:$0xff] %v498
  %s501 = scalar_lea.vmem %s0, 672
  %v502 = vld [vmem:[%s501] sm:$0xff]
  %v503 = vld [vmem:[%s501 + $0x8] sm:$0xff]
  %504 = vst [vmem:[#allocation2 + $0x2a0] sm:$0xff] %v502
  %505 = vst [vmem:[#allocation2 + $0x2a8] sm:$0xff] %v503
  %v506 = vld [vmem:[%s501] sm:$0xfe]
  %v507 = vld [vmem:[%s501 + $0x10] sm:$0x1]
  %v510 = vrot.slane %v506, 1
  %v511 = vrot.slane %v507, 1
  %v512 = vsel %vm125, %v510, %v511
  %514 = vst [vmem:[#allocation2 + $0x2b0] sm:$0xff] %v512
  %s515 = scalar_lea.vmem %s0, 704
  %v516 = vld [vmem:[%s515] sm:$0xff]
  %v517 = vld [vmem:[%s515 + $0x8] sm:$0xff]
  %518 = vst [vmem:[#allocation2 + $0x2b8] sm:$0xff] %v516
  %519 = vst [vmem:[#allocation2 + $0x2c0] sm:$0xff] %v517
  %v520 = vld [vmem:[%s515] sm:$0xfe]
  %v521 = vld [vmem:[%s515 + $0x10] sm:$0x1]
  %v524 = vrot.slane %v520, 1
  %v525 = vrot.slane %v521, 1
  %v526 = vsel %vm125, %v524, %v525
  %528 = vst [vmem:[#allocation2 + $0x2c8] sm:$0xff] %v526
  %v529 = vld [vmem:[%s515] sm:$0xff]
  %v530 = vld [vmem:[%s515 + $0x8] sm:$0xff]
  %531 = vst [vmem:[#allocation2 + $0x2d0] sm:$0xff] %v529
  %532 = vst [vmem:[#allocation2 + $0x2d8] sm:$0xff] %v530
  %v533 = vld [vmem:[%s515] sm:$0xfe]
  %v534 = vld [vmem:[%s515 + $0x10] sm:$0x1]
  %v537 = vrot.slane %v533, 1
  %v538 = vrot.slane %v534, 1
  %v539 = vsel %vm125, %v537, %v538
  %541 = vst [vmem:[#allocation2 + $0x2e0] sm:$0xff] %v539
  %s542 = scalar_lea.vmem %s0, 736
  %v543 = vld [vmem:[%s542] sm:$0xff]
  %v544 = vld [vmem:[%s542 + $0x8] sm:$0xff]
  %545 = vst [vmem:[#allocation2 + $0x2e8] sm:$0xff] %v543
  %546 = vst [vmem:[#allocation2 + $0x2f0] sm:$0xff] %v544
  %v547 = vld [vmem:[%s542] sm:$0xfe]
  %v548 = vld [vmem:[%s542 + $0x10] sm:$0x1]
  %v551 = vrot.slane %v547, 1
  %v552 = vrot.slane %v548, 1
  %v553 = vsel %vm125, %v551, %v552
  %555 = vst [vmem:[#allocation2 + $0x2f8] sm:$0xff] %v553
  %s556 = scalar_lea.vmem %s0, 768
  %v557 = vld [vmem:[%s556] sm:$0xff]
  %v558 = vld [vmem:[%s556 + $0x8] sm:$0xff]
  %559 = vst [vmem:[#allocation2 + $0x300] sm:$0xff] %v557
  %560 = vst [vmem:[#allocation2 + $0x308] sm:$0xff] %v558
  %v561 = vld [vmem:[%s556] sm:$0xfe]
  %v562 = vld [vmem:[%s556 + $0x10] sm:$0x1]
  %v565 = vrot.slane %v561, 1
  %v566 = vrot.slane %v562, 1
  %v567 = vsel %vm125, %v565, %v566
  %569 = vst [vmem:[#allocation2 + $0x310] sm:$0xff] %v567
  %v570 = vld [vmem:[%s556] sm:$0xff]
  %v571 = vld [vmem:[%s556 + $0x8] sm:$0xff]
  %572 = vst [vmem:[#allocation2 + $0x318] sm:$0xff] %v570
  %573 = vst [vmem:[#allocation2 + $0x320] sm:$0xff] %v571
  %v574 = vld [vmem:[%s556] sm:$0xfe]
  %v575 = vld [vmem:[%s556 + $0x10] sm:$0x1]
  %v578 = vrot.slane %v574, 1
  %v579 = vrot.slane %v575, 1
  %v580 = vsel %vm125, %v578, %v579
  %582 = vst [vmem:[#allocation2 + $0x328] sm:$0xff] %v580
  %s583 = scalar_lea.vmem %s0, 800
  %v584 = vld [vmem:[%s583] sm:$0xff]
  %v585 = vld [vmem:[%s583 + $0x8] sm:$0xff]
  %586 = vst [vmem:[#allocation2 + $0x330] sm:$0xff] %v584
  %587 = vst [vmem:[#allocation2 + $0x338] sm:$0xff] %v585
  %v588 = vld [vmem:[%s583] sm:$0xfe]
  %v589 = vld [vmem:[%s583 + $0x10] sm:$0x1]
  %v592 = vrot.slane %v588, 1
  %v593 = vrot.slane %v589, 1
  %v594 = vsel %vm125, %v592, %v593
  %596 = vst [vmem:[#allocation2 + $0x340] sm:$0xff] %v594
  %s597 = scalar_lea.vmem %s0, 832
  %v598 = vld [vmem:[%s597] sm:$0xff]
  %v599 = vld [vmem:[%s597 + $0x8] sm:$0xff]
  %600 = vst [vmem:[#allocation2 + $0x348] sm:$0xff] %v598
  %601 = vst [vmem:[#allocation2 + $0x350] sm:$0xff] %v599
  %v602 = vld [vmem:[%s597] sm:$0xfe]
  %v603 = vld [vmem:[%s597 + $0x10] sm:$0x1]
  %v606 = vrot.slane %v602, 1
  %v607 = vrot.slane %v603, 1
  %v608 = vsel %vm125, %v606, %v607
  %610 = vst [vmem:[#allocation2 + $0x358] sm:$0xff] %v608
  %v611 = vld [vmem:[%s597] sm:$0xff]
  %v612 = vld [vmem:[%s597 + $0x8] sm:$0xff]
  %613 = vst [vmem:[#allocation2 + $0x360] sm:$0xff] %v611
  %614 = vst [vmem:[#allocation2 + $0x368] sm:$0xff] %v612
  %v615 = vld [vmem:[%s597] sm:$0xfe]
  %v616 = vld [vmem:[%s597 + $0x10] sm:$0x1]
  %v619 = vrot.slane %v615, 1
  %v620 = vrot.slane %v616, 1
  %v621 = vsel %vm125, %v619, %v620
  %623 = vst [vmem:[#allocation2 + $0x370] sm:$0xff] %v621
  %s624 = scalar_lea.vmem %s0, 864
  %v625 = vld [vmem:[%s624] sm:$0xff]
  %v626 = vld [vmem:[%s624 + $0x8] sm:$0xff]
  %627 = vst [vmem:[#allocation2 + $0x378] sm:$0xff] %v625
  %628 = vst [vmem:[#allocation2 + $0x380] sm:$0xff] %v626
  %v629 = vld [vmem:[%s624] sm:$0xfe]
  %v630 = vld [vmem:[%s624 + $0x10] sm:$0x1]
  %v633 = vrot.slane %v629, 1
  %v634 = vrot.slane %v630, 1
  %v635 = vsel %vm125, %v633, %v634
  %637 = vst [vmem:[#allocation2 + $0x388] sm:$0xff] %v635
  %s638 = scalar_lea.vmem %s0, 896
  %v639 = vld [vmem:[%s638] sm:$0xff]
  %v640 = vld [vmem:[%s638 + $0x8] sm:$0xff]
  %641 = vst [vmem:[#allocation2 + $0x390] sm:$0xff] %v639
  %642 = vst [vmem:[#allocation2 + $0x398] sm:$0xff] %v640
  %v643 = vld [vmem:[%s638] sm:$0xfe]
  %v644 = vld [vmem:[%s638 + $0x10] sm:$0x1]
  %v647 = vrot.slane %v643, 1
  %v648 = vrot.slane %v644, 1
  %v649 = vsel %vm125, %v647, %v648
  %651 = vst [vmem:[#allocation2 + $0x3a0] sm:$0xff] %v649
  %v652 = vld [vmem:[%s638] sm:$0xff]
  %v653 = vld [vmem:[%s638 + $0x8] sm:$0xff]
  %654 = vst [vmem:[#allocation2 + $0x3a8] sm:$0xff] %v652
  %655 = vst [vmem:[#allocation2 + $0x3b0] sm:$0xff] %v653
  %v656 = vld [vmem:[%s638] sm:$0xfe]
  %v657 = vld [vmem:[%s638 + $0x10] sm:$0x1]
  %v660 = vrot.slane %v656, 1
  %v661 = vrot.slane %v657, 1
  %v662 = vsel %vm125, %v660, %v661
  %664 = vst [vmem:[#allocation2 + $0x3b8] sm:$0xff] %v662
  %s665 = scalar_lea.vmem %s0, 928
  %v666 = vld [vmem:[%s665] sm:$0xff]
  %v667 = vld [vmem:[%s665 + $0x8] sm:$0xff]
  %668 = vst [vmem:[#allocation2 + $0x3c0] sm:$0xff] %v666
  %669 = vst [vmem:[#allocation2 + $0x3c8] sm:$0xff] %v667
  %v670 = vld [vmem:[%s665] sm:$0xfe]
  %v671 = vld [vmem:[%s665 + $0x10] sm:$0x1]
  %v674 = vrot.slane %v670, 1
  %v675 = vrot.slane %v671, 1
  %v676 = vsel %vm125, %v674, %v675
  %678 = vst [vmem:[#allocation2 + $0x3d0] sm:$0xff] %v676
  %s679 = scalar_lea.vmem %s0, 960
  %v680 = vld [vmem:[%s679] sm:$0xff]
  %v681 = vld [vmem:[%s679 + $0x8] sm:$0xff]
  %682 = vst [vmem:[#allocation2 + $0x3d8] sm:$0xff] %v680
  %683 = vst [vmem:[#allocation2 + $0x3e0] sm:$0xff] %v681
  %v684 = vld [vmem:[%s679] sm:$0xfe]
  %v685 = vld [vmem:[%s679 + $0x10] sm:$0x1]
  %v688 = vrot.slane %v684, 1
  %v689 = vrot.slane %v685, 1
  %v690 = vsel %vm125, %v688, %v689
  %692 = vst [vmem:[#allocation2 + $0x3e8] sm:$0xff] %v690
  %v693 = vld [vmem:[%s679] sm:$0xff]
  %v694 = vld [vmem:[%s679 + $0x8] sm:$0xff]
  %695 = vst [vmem:[#allocation2 + $0x3f0] sm:$0xff] %v693
  %696 = vst [vmem:[#allocation2 + $0x3f8] sm:$0xff] %v694
  %v697 = vld [vmem:[%s679] sm:$0xfe]
  %v698 = vld [vmem:[%s679 + $0x10] sm:$0x1]
  %v701 = vrot.slane %v697, 1
  %v702 = vrot.slane %v698, 1
  %v703 = vsel %vm125, %v701, %v702
  %705 = vst [vmem:[#allocation2 + $0x400] sm:$0xff] %v703
  %s706 = scalar_lea.vmem %s0, 992
  %v707 = vld [vmem:[%s706] sm:$0xff]
  %v708 = vld [vmem:[%s706 + $0x8] sm:$0xff]
  %709 = vst [vmem:[#allocation2 + $0x408] sm:$0xff] %v707
  %710 = vst [vmem:[#allocation2 + $0x410] sm:$0xff] %v708
  %v711 = vld [vmem:[%s706] sm:$0xfe]
  %v712 = vld [vmem:[%s706 + $0x10] sm:$0x1]
  %v715 = vrot.slane %v711, 1
  %v716 = vrot.slane %v712, 1
  %v717 = vsel %vm125, %v715, %v716
  %719 = vst [vmem:[#allocation2 + $0x418] sm:$0xff] %v717
  %s720 = scalar_lea.vmem %s0, 1024
  %v721 = vld [vmem:[%s720] sm:$0xff]
  %v722 = vld [vmem:[%s720 + $0x8] sm:$0xff]
  %723 = vst [vmem:[#allocation2 + $0x420] sm:$0xff] %v721
  %724 = vst [vmem:[#allocation2 + $0x428] sm:$0xff] %v722
  %v725 = vld [vmem:[%s720] sm:$0xfe]
  %v726 = vld [vmem:[%s720 + $0x10] sm:$0x1]
  %v729 = vrot.slane %v725, 1
  %v730 = vrot.slane %v726, 1
  %v731 = vsel %vm125, %v729, %v730
  %733 = vst [vmem:[#allocation2 + $0x430] sm:$0xff] %v731
  %v734 = vld [vmem:[%s720] sm:$0xff]
  %v735 = vld [vmem:[%s720 + $0x8] sm:$0xff]
  %736 = vst [vmem:[#allocation2 + $0x438] sm:$0xff] %v734
  %737 = vst [vmem:[#allocation2 + $0x440] sm:$0xff] %v735
  %v738 = vld [vmem:[%s720] sm:$0xfe]
  %v739 = vld [vmem:[%s720 + $0x10] sm:$0x1]
  %v742 = vrot.slane %v738, 1
  %v743 = vrot.slane %v739, 1
  %v744 = vsel %vm125, %v742, %v743
  %746 = vst [vmem:[#allocation2 + $0x448] sm:$0xff] %v744
  %s747 = scalar_lea.vmem %s0, 1056
  %v748 = vld [vmem:[%s747] sm:$0xff]
  %v749 = vld [vmem:[%s747 + $0x8] sm:$0xff]
  %750 = vst [vmem:[#allocation2 + $0x450] sm:$0xff] %v748
  %751 = vst [vmem:[#allocation2 + $0x458] sm:$0xff] %v749
  %v752 = vld [vmem:[%s747] sm:$0xfe]
  %v753 = vld [vmem:[%s747 + $0x10] sm:$0x1]
  %v756 = vrot.slane %v752, 1
  %v757 = vrot.slane %v753, 1
  %v758 = vsel %vm125, %v756, %v757
  %760 = vst [vmem:[#allocation2 + $0x460] sm:$0xff] %v758
  %s761 = scalar_lea.vmem %s0, 1088
  %v762 = vld [vmem:[%s761] sm:$0xff]
  %v763 = vld [vmem:[%s761 + $0x8] sm:$0xff]
  %764 = vst [vmem:[#allocation2 + $0x468] sm:$0xff] %v762
  %765 = vst [vmem:[#allocation2 + $0x470] sm:$0xff] %v763
  %v766 = vld [vmem:[%s761] sm:$0xfe]
  %v767 = vld [vmem:[%s761 + $0x10] sm:$0x1]
  %v770 = vrot.slane %v766, 1
  %v771 = vrot.slane %v767, 1
  %v772 = vsel %vm125, %v770, %v771
  %774 = vst [vmem:[#allocation2 + $0x478] sm:$0xff] %v772
  %v775 = vld [vmem:[#allocation2] sm:$0xff]
  %v776 = vld [vmem:[#allocation2 + $0x8] sm:$0xff]
  %v777 = vld [vmem:[#allocation2 + $0x10] sm:$0xff]
  %v778 = vld [vmem:[#allocation2 + $0x18] sm:$0xff]
  %v779 = vld [vmem:[#allocation2 + $0x20] sm:$0xff]
  %v780 = vld [vmem:[#allocation2 + $0x28] sm:$0xff]
  %v781 = vld [vmem:[#allocation2 + $0x30] sm:$0xff]
  %v782 = vld [vmem:[#allocation2 + $0x38] sm:$0xff]
  %v783 = vld [vmem:[#allocation2 + $0x40] sm:$0xff]
  %v784 = vld [vmem:[#allocation2 + $0x48] sm:$0xff]
  %v785 = vld [vmem:[#allocation2 + $0x50] sm:$0xff]
  %v786 = vld [vmem:[#allocation2 + $0x58] sm:$0xff]
  %v787 = vld [vmem:[#allocation2 + $0x60] sm:$0xff]
  %v788 = vld [vmem:[#allocation2 + $0x68] sm:$0xff]
  %v789 = vld [vmem:[#allocation2 + $0x70] sm:$0xff]
  %v790 = vld [vmem:[#allocation2 + $0x78] sm:$0xff]
  %v791 = vld [vmem:[#allocation2 + $0x80] sm:$0xff]
  %v792 = vld [vmem:[#allocation2 + $0x88] sm:$0xff]
  %v793 = vld [vmem:[#allocation2 + $0x90] sm:$0xff]
  %v794 = vld [vmem:[#allocation2 + $0x98] sm:$0xff]
  %v795 = vld [vmem:[#allocation2 + $0xa0] sm:$0xff]
  %v796 = vld [vmem:[#allocation2 + $0xa8] sm:$0xff]
  %v797 = vld [vmem:[#allocation2 + $0xb0] sm:$0xff]
  %v798 = vld [vmem:[#allocation2 + $0xb8] sm:$0xff]
  %v799 = vld [vmem:[#allocation2 + $0xc0] sm:$0xff]
  %v800 = vld [vmem:[#allocation2 + $0xc8] sm:$0xff]
  %v801 = vld [vmem:[#allocation2 + $0xd0] sm:$0xff]
  %v802 = vld [vmem:[#allocation2 + $0xd8] sm:$0xff]
  %v803 = vld [vmem:[#allocation2 + $0xe0] sm:$0xff]
  %v804 = vld [vmem:[#allocation2 + $0xe8] sm:$0xff]
  %v805 = vld [vmem:[#allocation2 + $0xf0] sm:$0xff]
  %v806 = vld [vmem:[#allocation2 + $0xf8] sm:$0xff]
  %v807 = vld [vmem:[#allocation2 + $0x100] sm:$0xff]
  %v808 = vld [vmem:[#allocation2 + $0x108] sm:$0xff]
  %v809 = vld [vmem:[#allocation2 + $0x110] sm:$0xff]
  %v810 = vld [vmem:[#allocation2 + $0x118] sm:$0xff]
  %v811 = vld [vmem:[#allocation2 + $0x120] sm:$0xff]
  %v812 = vld [vmem:[#allocation2 + $0x128] sm:$0xff]
  %v813 = vld [vmem:[#allocation2 + $0x130] sm:$0xff]
  %v814 = vld [vmem:[#allocation2 + $0x138] sm:$0xff]
  %v815 = vld [vmem:[#allocation2 + $0x140] sm:$0xff]
  %v816 = vld [vmem:[#allocation2 + $0x148] sm:$0xff]
  %v817 = vld [vmem:[#allocation2 + $0x150] sm:$0xff]
  %v818 = vld [vmem:[#allocation2 + $0x158] sm:$0xff]
  %v819 = vld [vmem:[#allocation2 + $0x160] sm:$0xff]
  %v820 = vld [vmem:[#allocation2 + $0x168] sm:$0xff]
  %v821 = vld [vmem:[#allocation2 + $0x170] sm:$0xff]
  %v822 = vld [vmem:[#allocation2 + $0x178] sm:$0xff]
  %v823 = vld [vmem:[#allocation2 + $0x180] sm:$0xff]
  %v824 = vld [vmem:[#allocation2 + $0x188] sm:$0xff]
  %v825 = vld [vmem:[#allocation2 + $0x190] sm:$0xff]
  %v826 = vld [vmem:[#allocation2 + $0x198] sm:$0xff]
  %v827 = vld [vmem:[#allocation2 + $0x1a0] sm:$0xff]
  %v828 = vld [vmem:[#allocation2 + $0x1a8] sm:$0xff]
  %v829 = vld [vmem:[#allocation2 + $0x1b0] sm:$0xff]
  %v830 = vld [vmem:[#allocation2 + $0x1b8] sm:$0xff]
  %v831 = vld [vmem:[#allocation2 + $0x1c0] sm:$0xff]
  %v832 = vld [vmem:[#allocation2 + $0x1c8] sm:$0xff]
  %v833 = vld [vmem:[#allocation2 + $0x1d0] sm:$0xff]
  %v834 = vld [vmem:[#allocation2 + $0x1d8] sm:$0xff]
  %v835 = vld [vmem:[#allocation2 + $0x1e0] sm:$0xff]
  %v836 = vld [vmem:[#allocation2 + $0x1e8] sm:$0xff]
  %v837 = vld [vmem:[#allocation2 + $0x1f0] sm:$0xff]
  %v838 = vld [vmem:[#allocation2 + $0x1f8] sm:$0xff]
  %v839 = vld [vmem:[#allocation2 + $0x200] sm:$0xff]
  %v840 = vld [vmem:[#allocation2 + $0x208] sm:$0xff]
  %v841 = vld [vmem:[#allocation2 + $0x210] sm:$0xff]
  %v842 = vld [vmem:[#allocation2 + $0x218] sm:$0xff]
  %v843 = vld [vmem:[#allocation2 + $0x220] sm:$0xff]
  %v844 = vld [vmem:[#allocation2 + $0x228] sm:$0xff]
  %v845 = vld [vmem:[#allocation2 + $0x230] sm:$0xff]
  %v846 = vld [vmem:[#allocation2 + $0x238] sm:$0xff]
  %v847 = vld [vmem:[#allocation2 + $0x240] sm:$0xff]
  %v848 = vld [vmem:[#allocation2 + $0x248] sm:$0xff]
  %v849 = vld [vmem:[#allocation2 + $0x250] sm:$0xff]
  %v850 = vld [vmem:[#allocation2 + $0x258] sm:$0xff]
  %v851 = vld [vmem:[#allocation2 + $0x260] sm:$0xff]
  %v852 = vld [vmem:[#allocation2 + $0x268] sm:$0xff]
  %v853 = vld [vmem:[#allocation2 + $0x270] sm:$0xff]
  %v854 = vld [vmem:[#allocation2 + $0x278] sm:$0xff]
  %v855 = vld [vmem:[#allocation2 + $0x280] sm:$0xff]
  %v856 = vld [vmem:[#allocation2 + $0x288] sm:$0xff]
  %v857 = vld [vmem:[#allocation2 + $0x290] sm:$0xff]
  %v858 = vld [vmem:[#allocation2 + $0x298] sm:$0xff]
  %v859 = vld [vmem:[#allocation2 + $0x2a0] sm:$0xff]
  %v860 = vld [vmem:[#allocation2 + $0x2a8] sm:$0xff]
  %v861 = vld [vmem:[#allocation2 + $0x2b0] sm:$0xff]
  %v862 = vld [vmem:[#allocation2 + $0x2b8] sm:$0xff]
  %v863 = vld [vmem:[#allocation2 + $0x2c0] sm:$0xff]
  %v864 = vld [vmem:[#allocation2 + $0x2c8] sm:$0xff]
  %v865 = vld [vmem:[#allocation2 + $0x2d0] sm:$0xff]
  %v866 = vld [vmem:[#allocation2 + $0x2d8] sm:$0xff]
  %v867 = vld [vmem:[#allocation2 + $0x2e0] sm:$0xff]
  %v868 = vld [vmem:[#allocation2 + $0x2e8] sm:$0xff]
  %v869 = vld [vmem:[#allocation2 + $0x2f0] sm:$0xff]
  %v870 = vld [vmem:[#allocation2 + $0x2f8] sm:$0xff]
  %v871 = vld [vmem:[#allocation2 + $0x300] sm:$0xff]
  %v872 = vld [vmem:[#allocation2 + $0x308] sm:$0xff]
  %v873 = vld [vmem:[#allocation2 + $0x310] sm:$0xff]
  %v874 = vld [vmem:[#allocation2 + $0x318] sm:$0xff]
  %v875 = vld [vmem:[#allocation2 + $0x320] sm:$0xff]
  %v876 = vld [vmem:[#allocation2 + $0x328] sm:$0xff]
  %v877 = vld [vmem:[#allocation2 + $0x330] sm:$0xff]
  %v878 = vld [vmem:[#allocation2 + $0x338] sm:$0xff]
  %v879 = vld [vmem:[#allocation2 + $0x340] sm:$0xff]
  %v880 = vld [vmem:[#allocation2 + $0x348] sm:$0xff]
  %v881 = vld [vmem:[#allocation2 + $0x350] sm:$0xff]
  %v882 = vld [vmem:[#allocation2 + $0x358] sm:$0xff]
  %v883 = vld [vmem:[#allocation2 + $0x360] sm:$0xff]
  %v884 = vld [vmem:[#allocation2 + $0x368] sm:$0xff]
  %v885 = vld [vmem:[#allocation2 + $0x370] sm:$0xff]
  %v886 = vld [vmem:[#allocation2 + $0x378] sm:$0xff]
  %v887 = vld [vmem:[#allocation2 + $0x380] sm:$0xff]
  %v888 = vld [vmem:[#allocation2 + $0x388] sm:$0xff]
  %v889 = vld [vmem:[#allocation2 + $0x390] sm:$0xff]
  %v890 = vld [vmem:[#allocation2 + $0x398] sm:$0xff]
  %v891 = vld [vmem:[#allocation2 + $0x3a0] sm:$0xff]
  %v892 = vld [vmem:[#allocation2 + $0x3a8] sm:$0xff]
  %v893 = vld [vmem:[#allocation2 + $0x3b0] sm:$0xff]
  %v894 = vld [vmem:[#allocation2 + $0x3b8] sm:$0xff]
  %v895 = vld [vmem:[#allocation2 + $0x3c0] sm:$0xff]
  %v896 = vld [vmem:[#allocation2 + $0x3c8] sm:$0xff]
  %v897 = vld [vmem:[#allocation2 + $0x3d0] sm:$0xff]
  %v898 = vld [vmem:[#allocation2 + $0x3d8] sm:$0xff]
  %v899 = vld [vmem:[#allocation2 + $0x3e0] sm:$0xff]
  %v900 = vld [vmem:[#allocation2 + $0x3e8] sm:$0xff]
  %v901 = vld [vmem:[#allocation2 + $0x3f0] sm:$0xff]
  %v902 = vld [vmem:[#allocation2 + $0x3f8] sm:$0xff]
  %v903 = vld [vmem:[#allocation2 + $0x400] sm:$0xff]
  %v904 = vld [vmem:[#allocation2 + $0x408] sm:$0xff]
  %v905 = vld [vmem:[#allocation2 + $0x410] sm:$0xff]
  %v906 = vld [vmem:[#allocation2 + $0x418] sm:$0xff]
  %v907 = vld [vmem:[#allocation2 + $0x420] sm:$0xff]
  %v908 = vld [vmem:[#allocation2 + $0x428] sm:$0xff]
  %v909 = vld [vmem:[#allocation2 + $0x430] sm:$0xff]
  %v910 = vld [vmem:[#allocation2 + $0x438] sm:$0xff]
  %v911 = vld [vmem:[#allocation2 + $0x440] sm:$0xff]
  %v912 = vld [vmem:[#allocation2 + $0x448] sm:$0xff]
  %v913 = vld [vmem:[#allocation2 + $0x450] sm:$0xff]
  %v914 = vld [vmem:[#allocation2 + $0x458] sm:$0xff]
  %v915 = vld [vmem:[#allocation2 + $0x460] sm:$0xff]
  %v916 = vld [vmem:[#allocation2 + $0x468] sm:$0xff]
  %v917 = vld [vmem:[#allocation2 + $0x470] sm:$0xff]
  %v918 = vld [vmem:[#allocation2 + $0x478] sm:$0xff]
  %v919 = vpack.c.bf16 %v784, %v775
  %v920 = vpack.c.bf16 %v785, %v776
  %v921 = vpack.c.bf16 %v786, %v777
  %v922 = vpack.c.bf16 %v787, %v778
  %v923 = vpack.c.bf16 %v788, %v779
  %v924 = vpack.c.bf16 %v789, %v780
  %v925 = vpack.c.bf16 %v790, %v781
  %v926 = vpack.c.bf16 %v791, %v782
  %v927 = vpack.c.bf16 %v792, %v783
  %v928 = vpack.c.bf16 %v802, %v793
  %v929 = vpack.c.bf16 %v803, %v794
  %v930 = vpack.c.bf16 %v804, %v795
  %v931 = vpack.c.bf16 %v805, %v796
  %v932 = vpack.c.bf16 %v806, %v797
  %v933 = vpack.c.bf16 %v807, %v798
  %v934 = vpack.c.bf16 %v808, %v799
  %v935 = vpack.c.bf16 %v809, %v800
  %v936 = vpack.c.bf16 %v810, %v801
  %v937 = vpack.c.bf16 %v820, %v811
  %v938 = vpack.c.bf16 %v821, %v812
  %v939 = vpack.c.bf16 %v822, %v813
  %v940 = vpack.c.bf16 %v823, %v814
  %v941 = vpack.c.bf16 %v824, %v815
  %v942 = vpack.c.bf16 %v825, %v816
  %v943 = vpack.c.bf16 %v826, %v817
  %v944 = vpack.c.bf16 %v827, %v818
  %v945 = vpack.c.bf16 %v828, %v819
  %v946 = vpack.c.bf16 %v838, %v829
  %v947 = vpack.c.bf16 %v839, %v830
  %v948 = vpack.c.bf16 %v840, %v831
  %v949 = vpack.c.bf16 %v841, %v832
  %v950 = vpack.c.bf16 %v842, %v833
  %v951 = vpack.c.bf16 %v843, %v834
  %v952 = vpack.c.bf16 %v844, %v835
  %v953 = vpack.c.bf16 %v845, %v836
  %v954 = vpack.c.bf16 %v846, %v837
  %v955 = vpack.c.bf16 %v856, %v847
  %v956 = vpack.c.bf16 %v857, %v848
  %v957 = vpack.c.bf16 %v858, %v849
  %v958 = vpack.c.bf16 %v859, %v850
  %v959 = vpack.c.bf16 %v860, %v851
  %v960 = vpack.c.bf16 %v861, %v852
  %v961 = vpack.c.bf16 %v862, %v853
  %v962 = vpack.c.bf16 %v863, %v854
  %v963 = vpack.c.bf16 %v864, %v855
  %v964 = vpack.c.bf16 %v874, %v865
  %v965 = vpack.c.bf16 %v875, %v866
  %v966 = vpack.c.bf16 %v876, %v867
  %v967 = vpack.c.bf16 %v877, %v868
  %v968 = vpack.c.bf16 %v878, %v869
  %v969 = vpack.c.bf16 %v879, %v870
  %v970 = vpack.c.bf16 %v880, %v871
  %v971 = vpack.c.bf16 %v881, %v872
  %v972 = vpack.c.bf16 %v882, %v873
  %v973 = vpack.c.bf16 %v892, %v883
  %v974 = vpack.c.bf16 %v893, %v884
  %v975 = vpack.c.bf16 %v894, %v885
  %v976 = vpack.c.bf16 %v895, %v886
  %v977 = vpack.c.bf16 %v896, %v887
  %v978 = vpack.c.bf16 %v897, %v888
  %v979 = vpack.c.bf16 %v898, %v889
  %v980 = vpack.c.bf16 %v899, %v890
  %v981 = vpack.c.bf16 %v900, %v891
  %v982 = vpack.c.bf16 %v910, %v901
  %v983 = vpack.c.bf16 %v911, %v902
  %v984 = vpack.c.bf16 %v912, %v903
  %v985 = vpack.c.bf16 %v913, %v904
  %v986 = vpack.c.bf16 %v914, %v905
  %v987 = vpack.c.bf16 %v915, %v906
  %v988 = vpack.c.bf16 %v916, %v907
  %v989 = vpack.c.bf16 %v917, %v908
  %v990 = vpack.c.bf16 %v918, %v909
  %v991 = vld [vmem:[%s1] sm:$0xf]
  %v992 = vld [vmem:[%s1 + $0x4] sm:$0xf]
  %v993 = vld [vmem:[%s1 + $0x8] sm:$0xf]
  %v994 = vld [vmem:[%s1 + $0xc] sm:$0xf]
  %v995 = vld [vmem:[%s1 + $0x10] sm:$0xf]
  %v996 = vld [vmem:[%s1 + $0x14] sm:$0xf]
  %v997 = vld [vmem:[%s1 + $0x18] sm:$0xf]
  %v998 = vld [vmem:[%s1 + $0x1c] sm:$0xf]
  %v999 = vld [vmem:[%s1 + $0x20] sm:$0xf]
  %v1000 = vld [vmem:[%s1 + $0x24] sm:$0xf]
  %v1001 = vld [vmem:[%s1 + $0x28] sm:$0xf]
  %v1002 = vld [vmem:[%s1 + $0x2c] sm:$0xf]
  %v1003 = vld [vmem:[%s1 + $0x30] sm:$0xf]
  %v1004 = vld [vmem:[%s1 + $0x34] sm:$0xf]
  %v1005 = vld [vmem:[%s1 + $0x38] sm:$0xf]
  %v1006 = vld [vmem:[%s1 + $0x3c] sm:$0xf]
  %v1007 = vld [vmem:[%s1 + $0x40] sm:$0xf]
  %v1008 = vld [vmem:[%s1 + $0x44] sm:$0xf]
  %v1009 = vld [vmem:[%s1 + $0x48] sm:$0xf]
  %v1010 = vld [vmem:[%s1 + $0x4c] sm:$0xf]
  %v1011 = vld [vmem:[%s1 + $0x50] sm:$0xf]
  %v1012 = vld [vmem:[%s1 + $0x54] sm:$0xf]
  %v1013 = vld [vmem:[%s1 + $0x58] sm:$0xf]
  %v1014 = vld [vmem:[%s1 + $0x5c] sm:$0xf]
  %v1015 = vld [vmem:[%s1 + $0x60] sm:$0xf]
  %v1016 = vld [vmem:[%s1 + $0x64] sm:$0xf]
  %v1017 = vld [vmem:[%s1 + $0x68] sm:$0xf]
  %v1018 = vld [vmem:[%s1 + $0x6c] sm:$0xf]
  %v1019 = vld [vmem:[%s1 + $0x70] sm:$0xf]
  %v1020 = vld [vmem:[%s1 + $0x74] sm:$0xf]
  %v1021 = vld [vmem:[%s1 + $0x78] sm:$0xf]
  %v1022 = vld [vmem:[%s1 + $0x7c] sm:$0xf]
  %v1023 = vld [vmem:[%s1 + $0x80] sm:$0xf]
  %v1024 = vld [vmem:[%s1 + $0x84] sm:$0xf]
  %v1025 = vld [vmem:[%s1 + $0x88] sm:$0xf]
  %v1026 = vld [vmem:[%s1 + $0x8c] sm:$0xf]
  %v1027 = vld [vmem:[%s1 + $0x90] sm:$0xf]
  %v1028 = vld [vmem:[%s1 + $0x94] sm:$0xf]
  %v1029 = vld [vmem:[%s1 + $0x98] sm:$0xf]
  %v1030 = vld [vmem:[%s1 + $0x9c] sm:$0xf]
  %v1031 = vld [vmem:[%s1 + $0xa0] sm:$0xf]
  %v1032 = vld [vmem:[%s1 + $0xa4] sm:$0xf]
  %v1033 = vld [vmem:[%s1 + $0xa8] sm:$0xf]
  %v1034 = vld [vmem:[%s1 + $0xac] sm:$0xf]
  %v1035 = vld [vmem:[%s1 + $0xb0] sm:$0xf]
  %v1036 = vld [vmem:[%s1 + $0xb4] sm:$0xf]
  %v1037 = vld [vmem:[%s1 + $0xb8] sm:$0xf]
  %v1038 = vld [vmem:[%s1 + $0xbc] sm:$0xf]
  %v1039 = vld [vmem:[%s1 + $0xc0] sm:$0xf]
  %v1040 = vld [vmem:[%s1 + $0xc4] sm:$0xf]
  %v1041 = vld [vmem:[%s1 + $0xc8] sm:$0xf]
  %v1042 = vld [vmem:[%s1 + $0xcc] sm:$0xf]
  %v1043 = vld [vmem:[%s1 + $0xd0] sm:$0xf]
  %v1044 = vld [vmem:[%s1 + $0xd4] sm:$0xf]
  %v1045 = vld [vmem:[%s1 + $0xd8] sm:$0xf]
  %v1046 = vld [vmem:[%s1 + $0xdc] sm:$0xf]
  %v1047 = vld [vmem:[%s1 + $0xe0] sm:$0xf]
  %v1048 = vld [vmem:[%s1 + $0xe4] sm:$0xf]
  %v1049 = vld [vmem:[%s1 + $0xe8] sm:$0xf]
  %v1050 = vld [vmem:[%s1 + $0xec] sm:$0xf]
  %v1051 = vld [vmem:[%s1 + $0xf0] sm:$0xf]
  %v1052 = vld [vmem:[%s1 + $0xf4] sm:$0xf]
  %v1053 = vld [vmem:[%s1 + $0xf8] sm:$0xf]
  %v1054 = vld [vmem:[%s1 + $0xfc] sm:$0xf]
  %v1055 = vld [vmem:[%s1 + $0x100] sm:$0xf]
  %v1056 = vld [vmem:[%s1 + $0x104] sm:$0xf]
  %v1057 = vld [vmem:[%s1 + $0x108] sm:$0xf]
  %v1058 = vld [vmem:[%s1 + $0x10c] sm:$0xf]
  %v1059 = vld [vmem:[%s1 + $0x110] sm:$0xf]
  %v1060 = vld [vmem:[%s1 + $0x114] sm:$0xf]
  %v1061 = vld [vmem:[%s1 + $0x118] sm:$0xf]
  %v1062 = vld [vmem:[%s1 + $0x11c] sm:$0xf]
  %v1063 = vld [vmem:[%s1 + $0x120] sm:$0xf]
  %v1064 = vld [vmem:[%s1 + $0x124] sm:$0xf]
  %v1065 = vld [vmem:[%s1 + $0x128] sm:$0xf]
  %v1066 = vld [vmem:[%s1 + $0x12c] sm:$0xf]
  %v1067 = vld [vmem:[%s1 + $0x130] sm:$0xf]
  %v1068 = vld [vmem:[%s1 + $0x134] sm:$0xf]
  %v1069 = vld [vmem:[%s1 + $0x138] sm:$0xf]
  %v1070 = vld [vmem:[%s1 + $0x13c] sm:$0xf]
  %v1071 = vld [vmem:[%s1 + $0x140] sm:$0xf]
  %v1072 = vld [vmem:[%s1 + $0x144] sm:$0xf]
  %v1073 = vld [vmem:[%s1 + $0x148] sm:$0xf]
  %v1074 = vld [vmem:[%s1 + $0x14c] sm:$0xf]
  %v1075 = vld [vmem:[%s1 + $0x150] sm:$0xf]
  %v1076 = vld [vmem:[%s1 + $0x154] sm:$0xf]
  %v1077 = vld [vmem:[%s1 + $0x158] sm:$0xf]
  %v1078 = vld [vmem:[%s1 + $0x15c] sm:$0xf]
  %v1079 = vld [vmem:[%s1 + $0x160] sm:$0xf]
  %v1080 = vld [vmem:[%s1 + $0x164] sm:$0xf]
  %v1081 = vld [vmem:[%s1 + $0x168] sm:$0xf]
  %v1082 = vld [vmem:[%s1 + $0x16c] sm:$0xf]
  %v1083 = vld [vmem:[%s1 + $0x170] sm:$0xf]
  %v1084 = vld [vmem:[%s1 + $0x174] sm:$0xf]
  %v1085 = vld [vmem:[%s1 + $0x178] sm:$0xf]
  %v1086 = vld [vmem:[%s1 + $0x17c] sm:$0xf]
  %v1087 = vld [vmem:[%s1 + $0x180] sm:$0xf]
  %v1088 = vld [vmem:[%s1 + $0x184] sm:$0xf]
  %v1089 = vld [vmem:[%s1 + $0x188] sm:$0xf]
  %v1090 = vld [vmem:[%s1 + $0x18c] sm:$0xf]
  %v1091 = vld [vmem:[%s1 + $0x190] sm:$0xf]
  %v1092 = vld [vmem:[%s1 + $0x194] sm:$0xf]
  %v1093 = vld [vmem:[%s1 + $0x198] sm:$0xf]
  %v1094 = vld [vmem:[%s1 + $0x19c] sm:$0xf]
  %v1095 = vld [vmem:[%s1 + $0x1a0] sm:$0xf]
  %v1096 = vld [vmem:[%s1 + $0x1a4] sm:$0xf]
  %v1097 = vld [vmem:[%s1 + $0x1a8] sm:$0xf]
  %v1098 = vld [vmem:[%s1 + $0x1ac] sm:$0xf]
  %v1099 = vld [vmem:[%s1 + $0x1b0] sm:$0xf]
  %v1100 = vld [vmem:[%s1 + $0x1b4] sm:$0xf]
  %v1101 = vld [vmem:[%s1 + $0x1b8] sm:$0xf]
  %v1102 = vld [vmem:[%s1 + $0x1bc] sm:$0xf]
  %v1103 = vld [vmem:[%s1 + $0x1c0] sm:$0xf]
  %v1104 = vld [vmem:[%s1 + $0x1c4] sm:$0xf]
  %v1105 = vld [vmem:[%s1 + $0x1c8] sm:$0xf]
  %v1106 = vld [vmem:[%s1 + $0x1cc] sm:$0xf]
  %v1107 = vld [vmem:[%s1 + $0x1d0] sm:$0xf]
  %v1108 = vld [vmem:[%s1 + $0x1d4] sm:$0xf]
  %v1109 = vld [vmem:[%s1 + $0x1d8] sm:$0xf]
  %v1110 = vld [vmem:[%s1 + $0x1dc] sm:$0xf]
  %v1111 = vld [vmem:[%s1 + $0x1e0] sm:$0xf]
  %v1112 = vld [vmem:[%s1 + $0x1e4] sm:$0xf]
  %v1113 = vld [vmem:[%s1 + $0x1e8] sm:$0xf]
  %v1114 = vld [vmem:[%s1 + $0x1ec] sm:$0xf]
  %v1115 = vld [vmem:[%s1 + $0x1f0] sm:$0xf]
  %v1116 = vld [vmem:[%s1 + $0x1f4] sm:$0xf]
  %v1117 = vld [vmem:[%s1 + $0x1f8] sm:$0xf]
  %v1118 = vld [vmem:[%s1 + $0x1fc] sm:$0xf]
  %v1119 = vld [vmem:[%s1 + $0x200] sm:$0xf]
  %v1120 = vld [vmem:[%s1 + $0x204] sm:$0xf]
  %v1121 = vld [vmem:[%s1 + $0x208] sm:$0xf]
  %v1122 = vld [vmem:[%s1 + $0x20c] sm:$0xf]
  %v1123 = vld [vmem:[%s1 + $0x210] sm:$0xf]
  %v1124 = vld [vmem:[%s1 + $0x214] sm:$0xf]
  %v1125 = vld [vmem:[%s1 + $0x218] sm:$0xf]
  %v1126 = vld [vmem:[%s1 + $0x21c] sm:$0xf]
  %v1127 = vld [vmem:[%s1 + $0x220] sm:$0xf]
  %v1128 = vld [vmem:[%s1 + $0x224] sm:$0xf]
  %v1129 = vld [vmem:[%s1 + $0x228] sm:$0xf]
  %v1130 = vld [vmem:[%s1 + $0x22c] sm:$0xf]
  %v1131 = vld [vmem:[%s1 + $0x230] sm:$0xf]
  %v1132 = vld [vmem:[%s1 + $0x234] sm:$0xf]
  %v1133 = vld [vmem:[%s1 + $0x238] sm:$0xf]
  %v1134 = vld [vmem:[%s1 + $0x23c] sm:$0xf]
  %v1135 = vld [vmem:[%s2] sm:$0x1]
  %v1137 = vlaneseq
  %v1138 = vshrl.u32 %v1137, 7
  %v1139 = vsub.s32 0, %v1138
  %v1140 = vrot.slane %v1135, %v1139
  %v1286 = vunpack.c.l.b16 %v991
  %v1287 = vunpack.c.l.b16 %v992
  %v1288 = vunpack.c.l.b16 %v993
  %v1289 = vunpack.c.l.b16 %v994
  %v1290 = vunpack.c.l.b16 %v995
  %v1291 = vunpack.c.l.b16 %v996
  %v1292 = vunpack.c.l.b16 %v997
  %v1293 = vunpack.c.l.b16 %v998
  %v1294 = vunpack.c.l.b16 %v999
  %v1295 = vunpack.c.l.b16 %v1000
  %v1296 = vunpack.c.l.b16 %v1001
  %v1297 = vunpack.c.l.b16 %v1002
  %v1298 = vunpack.c.l.b16 %v1003
  %v1299 = vunpack.c.l.b16 %v1004
  %v1300 = vunpack.c.l.b16 %v1005
  %v1301 = vunpack.c.l.b16 %v1006
  %v1302 = vunpack.c.l.b16 %v1007
  %v1303 = vunpack.c.l.b16 %v1008
  %v1304 = vunpack.c.l.b16 %v1009
  %v1305 = vunpack.c.l.b16 %v1010
  %v1306 = vunpack.c.l.b16 %v1011
  %v1307 = vunpack.c.l.b16 %v1012
  %v1308 = vunpack.c.l.b16 %v1013
  %v1309 = vunpack.c.l.b16 %v1014
  %v1310 = vunpack.c.l.b16 %v1015
  %v1311 = vunpack.c.l.b16 %v1016
  %v1312 = vunpack.c.l.b16 %v1017
  %v1313 = vunpack.c.l.b16 %v1018
  %v1314 = vunpack.c.l.b16 %v1019
  %v1315 = vunpack.c.l.b16 %v1020
  %v1316 = vunpack.c.l.b16 %v1021
  %v1317 = vunpack.c.l.b16 %v1022
  %v1318 = vunpack.c.l.b16 %v1023
  %v1319 = vunpack.c.l.b16 %v1024
  %v1320 = vunpack.c.l.b16 %v1025
  %v1321 = vunpack.c.l.b16 %v1026
  %v1322 = vunpack.c.l.b16 %v1027
  %v1323 = vunpack.c.l.b16 %v1028
  %v1324 = vunpack.c.l.b16 %v1029
  %v1325 = vunpack.c.l.b16 %v1030
  %v1326 = vunpack.c.l.b16 %v1031
  %v1327 = vunpack.c.l.b16 %v1032
  %v1328 = vunpack.c.l.b16 %v1033
  %v1329 = vunpack.c.l.b16 %v1034
  %v1330 = vunpack.c.l.b16 %v1035
  %v1331 = vunpack.c.l.b16 %v1036
  %v1332 = vunpack.c.l.b16 %v1037
  %v1333 = vunpack.c.l.b16 %v1038
  %v1334 = vunpack.c.l.b16 %v1039
  %v1335 = vunpack.c.l.b16 %v1040
  %v1336 = vunpack.c.l.b16 %v1041
  %v1337 = vunpack.c.l.b16 %v1042
  %v1338 = vunpack.c.l.b16 %v1043
  %v1339 = vunpack.c.l.b16 %v1044
  %v1340 = vunpack.c.l.b16 %v1045
  %v1341 = vunpack.c.l.b16 %v1046
  %v1342 = vunpack.c.l.b16 %v1047
  %v1343 = vunpack.c.l.b16 %v1048
  %v1344 = vunpack.c.l.b16 %v1049
  %v1345 = vunpack.c.l.b16 %v1050
  %v1346 = vunpack.c.l.b16 %v1051
  %v1347 = vunpack.c.l.b16 %v1052
  %v1348 = vunpack.c.l.b16 %v1053
  %v1349 = vunpack.c.l.b16 %v1054
  %v1350 = vunpack.c.l.b16 %v1055
  %v1351 = vunpack.c.l.b16 %v1056
  %v1352 = vunpack.c.l.b16 %v1057
  %v1353 = vunpack.c.l.b16 %v1058
  %v1354 = vunpack.c.l.b16 %v1059
  %v1355 = vunpack.c.l.b16 %v1060
  %v1356 = vunpack.c.l.b16 %v1061
  %v1357 = vunpack.c.l.b16 %v1062
  %v1358 = vunpack.c.l.b16 %v1063
  %v1359 = vunpack.c.l.b16 %v1064
  %v1360 = vunpack.c.l.b16 %v1065
  %v1361 = vunpack.c.l.b16 %v1066
  %v1362 = vunpack.c.l.b16 %v1067
  %v1363 = vunpack.c.l.b16 %v1068
  %v1364 = vunpack.c.l.b16 %v1069
  %v1365 = vunpack.c.l.b16 %v1070
  %v1366 = vunpack.c.l.b16 %v1071
  %v1367 = vunpack.c.l.b16 %v1072
  %v1368 = vunpack.c.l.b16 %v1073
  %v1369 = vunpack.c.l.b16 %v1074
  %v1370 = vunpack.c.l.b16 %v1075
  %v1371 = vunpack.c.l.b16 %v1076
  %v1372 = vunpack.c.l.b16 %v1077
  %v1373 = vunpack.c.l.b16 %v1078
  %v1374 = vunpack.c.l.b16 %v1079
  %v1375 = vunpack.c.l.b16 %v1080
  %v1376 = vunpack.c.l.b16 %v1081
  %v1377 = vunpack.c.l.b16 %v1082
  %v1378 = vunpack.c.l.b16 %v1083
  %v1379 = vunpack.c.l.b16 %v1084
  %v1380 = vunpack.c.l.b16 %v1085
  %v1381 = vunpack.c.l.b16 %v1086
  %v1382 = vunpack.c.l.b16 %v1087
  %v1383 = vunpack.c.l.b16 %v1088
  %v1384 = vunpack.c.l.b16 %v1089
  %v1385 = vunpack.c.l.b16 %v1090
  %v1386 = vunpack.c.l.b16 %v1091
  %v1387 = vunpack.c.l.b16 %v1092
  %v1388 = vunpack.c.l.b16 %v1093
  %v1389 = vunpack.c.l.b16 %v1094
  %v1390 = vunpack.c.l.b16 %v1095
  %v1391 = vunpack.c.l.b16 %v1096
  %v1392 = vunpack.c.l.b16 %v1097
  %v1393 = vunpack.c.l.b16 %v1098
  %v1394 = vunpack.c.l.b16 %v1099
  %v1395 = vunpack.c.l.b16 %v1100
  %v1396 = vunpack.c.l.b16 %v1101
  %v1397 = vunpack.c.l.b16 %v1102
  %v1398 = vunpack.c.l.b16 %v1103
  %v1399 = vunpack.c.l.b16 %v1104
  %v1400 = vunpack.c.l.b16 %v1105
  %v1401 = vunpack.c.l.b16 %v1106
  %v1402 = vunpack.c.l.b16 %v1107
  %v1403 = vunpack.c.l.b16 %v1108
  %v1404 = vunpack.c.l.b16 %v1109
  %v1405 = vunpack.c.l.b16 %v1110
  %v1406 = vunpack.c.l.b16 %v1111
  %v1407 = vunpack.c.l.b16 %v1112
  %v1408 = vunpack.c.l.b16 %v1113
  %v1409 = vunpack.c.l.b16 %v1114
  %v1410 = vunpack.c.l.b16 %v1115
  %v1411 = vunpack.c.l.b16 %v1116
  %v1412 = vunpack.c.l.b16 %v1117
  %v1413 = vunpack.c.l.b16 %v1118
  %v1414 = vunpack.c.l.b16 %v1119
  %v1415 = vunpack.c.l.b16 %v1120
  %v1416 = vunpack.c.l.b16 %v1121
  %v1417 = vunpack.c.l.b16 %v1122
  %v1418 = vunpack.c.l.b16 %v1123
  %v1419 = vunpack.c.l.b16 %v1124
  %v1420 = vunpack.c.l.b16 %v1125
  %v1421 = vunpack.c.l.b16 %v1126
  %v1422 = vunpack.c.l.b16 %v1127
  %v1423 = vunpack.c.l.b16 %v1128
  %v1424 = vunpack.c.l.b16 %v1129
  %v1425 = vunpack.c.l.b16 %v1130
  %v1426 = vunpack.c.l.b16 %v1131
  %v1427 = vunpack.c.l.b16 %v1132
  %v1428 = vunpack.c.l.b16 %v1133
  %v1429 = vunpack.c.l.b16 %v1134
  %v1430 = vpack.c.b16 %v1287, %v1286
  %v1431 = vpack.c.b16 %v1289, %v1288
  %v1432 = vpack.c.b16 %v1291, %v1290
  %v1433 = vpack.c.b16 %v1293, %v1292
  %v1434 = vpack.c.b16 %v1295, %v1294
  %v1435 = vpack.c.b16 %v1297, %v1296
  %v1436 = vpack.c.b16 %v1299, %v1298
  %v1437 = vpack.c.b16 %v1301, %v1300
  %v1438 = vpack.c.b16 %v1303, %v1302
  %v1439 = vpack.c.b16 %v1305, %v1304
  %v1440 = vpack.c.b16 %v1307, %v1306
  %v1441 = vpack.c.b16 %v1309, %v1308
  %v1442 = vpack.c.b16 %v1311, %v1310
  %v1443 = vpack.c.b16 %v1313, %v1312
  %v1444 = vpack.c.b16 %v1315, %v1314
  %v1445 = vpack.c.b16 %v1317, %v1316
  %v1446 = vpack.c.b16 %v1319, %v1318
  %v1447 = vpack.c.b16 %v1321, %v1320
  %v1448 = vpack.c.b16 %v1323, %v1322
  %v1449 = vpack.c.b16 %v1325, %v1324
  %v1450 = vpack.c.b16 %v1327, %v1326
  %v1451 = vpack.c.b16 %v1329, %v1328
  %v1452 = vpack.c.b16 %v1331, %v1330
  %v1453 = vpack.c.b16 %v1333, %v1332
  %v1454 = vpack.c.b16 %v1335, %v1334
  %v1455 = vpack.c.b16 %v1337, %v1336
  %v1456 = vpack.c.b16 %v1339, %v1338
  %v1457 = vpack.c.b16 %v1341, %v1340
  %v1458 = vpack.c.b16 %v1343, %v1342
  %v1459 = vpack.c.b16 %v1345, %v1344
  %v1460 = vpack.c.b16 %v1347, %v1346
  %v1461 = vpack.c.b16 %v1349, %v1348
  %v1462 = vpack.c.b16 %v1351, %v1350
  %v1463 = vpack.c.b16 %v1353, %v1352
  %v1464 = vpack.c.b16 %v1355, %v1354
  %v1465 = vpack.c.b16 %v1357, %v1356
  %v1466 = vpack.c.b16 %v1359, %v1358
  %v1467 = vpack.c.b16 %v1361, %v1360
  %v1468 = vpack.c.b16 %v1363, %v1362
  %v1469 = vpack.c.b16 %v1365, %v1364
  %v1470 = vpack.c.b16 %v1367, %v1366
  %v1471 = vpack.c.b16 %v1369, %v1368
  %v1472 = vpack.c.b16 %v1371, %v1370
  %v1473 = vpack.c.b16 %v1373, %v1372
  %v1474 = vpack.c.b16 %v1375, %v1374
  %v1475 = vpack.c.b16 %v1377, %v1376
  %v1476 = vpack.c.b16 %v1379, %v1378
  %v1477 = vpack.c.b16 %v1381, %v1380
  %v1478 = vpack.c.b16 %v1383, %v1382
  %v1479 = vpack.c.b16 %v1385, %v1384
  %v1480 = vpack.c.b16 %v1387, %v1386
  %v1481 = vpack.c.b16 %v1389, %v1388
  %v1482 = vpack.c.b16 %v1391, %v1390
  %v1483 = vpack.c.b16 %v1393, %v1392
  %v1484 = vpack.c.b16 %v1395, %v1394
  %v1485 = vpack.c.b16 %v1397, %v1396
  %v1486 = vpack.c.b16 %v1399, %v1398
  %v1487 = vpack.c.b16 %v1401, %v1400
  %v1488 = vpack.c.b16 %v1403, %v1402
  %v1489 = vpack.c.b16 %v1405, %v1404
  %v1490 = vpack.c.b16 %v1407, %v1406
  %v1491 = vpack.c.b16 %v1409, %v1408
  %v1492 = vpack.c.b16 %v1411, %v1410
  %v1493 = vpack.c.b16 %v1413, %v1412
  %v1494 = vpack.c.b16 %v1415, %v1414
  %v1495 = vpack.c.b16 %v1417, %v1416
  %v1496 = vpack.c.b16 %v1419, %v1418
  %v1497 = vpack.c.b16 %v1421, %v1420
  %v1498 = vpack.c.b16 %v1423, %v1422
  %v1499 = vpack.c.b16 %v1425, %v1424
  %v1500 = vpack.c.b16 %v1427, %v1426
  %v1501 = vpack.c.b16 %v1429, %v1428
  %1574 = vmatprep.subr.bf16.mxu0 0
  %1575 = vmatpush1.bf16.msra.mxu0 %v1430
  %1576 = vmatprep.subr.bf16.mxu0 0
  %1577 = vmatpush1.bf16.msra.mxu0 %v1431
  %1578 = vmatprep.subr.bf16.mxu0 0
  %1579 = vmatpush1.bf16.msra.mxu0 %v1432
  %1580 = vmatprep.subr.bf16.mxu0 0
  %1581 = vmatpush1.bf16.msra.mxu0 %v1433
  %1582 = vmatprep.subr.bf16.mxu0 0
  %1583 = vmatpush1.bf16.msra.mxu0 %v1434
  %1584 = vmatprep.subr.bf16.mxu0 0
  %1585 = vmatpush1.bf16.msra.mxu0 %v1435
  %1586 = vmatprep.subr.bf16.mxu0 0
  %1587 = vmatpush1.bf16.msra.mxu0 %v1436
  %1588 = vmatprep.subr.bf16.mxu0 0
  %1589 = vmatpush1.bf16.msra.mxu0 %v1437
  %1590 = vmatprep.subr.bf16.mxu0 0
  %1591 = vmatpush1.bf16.msra.mxu0 %v1438
  %1592 = vmatprep.subr.bf16.mxu0 0
  %1593 = vmatpush1.bf16.msra.mxu0 %v1439
  %1594 = vmatprep.subr.bf16.mxu0 0
  %1595 = vmatpush1.bf16.msra.mxu0 %v1440
  %1596 = vmatprep.subr.bf16.mxu0 0
  %1597 = vmatpush1.bf16.msra.mxu0 %v1441
  %1598 = vmatprep.subr.bf16.mxu0 0
  %1599 = vmatpush1.bf16.msra.mxu0 %v1442
  %1600 = vmatprep.subr.bf16.mxu0 0
  %1601 = vmatpush1.bf16.msra.mxu0 %v1443
  %1602 = vmatprep.subr.bf16.mxu0 0
  %1603 = vmatpush1.bf16.msra.mxu0 %v1444
  %1604 = vmatprep.subr.bf16.mxu0 0
  %1605 = vmatpush1.bf16.msra.mxu0 %v1445
  %1606 = vmatprep.mubr.bf16.mxu0 %v920
  %1607 = vmatmul.mubr.bf16.gmra.mrb[0].mxu0 %v919
  %v1608 = vpop.f32.mrb[0].mxu0
  %v1609 = vadd.f32 %v1140, %v1608
  %v1610 = vpop.f32.mrb[0].mxu0
  %v1611 = vpop.f32.mrb[0].mxu0
  %v1612 = vadd.f32 %v1140, %v1611
  %v1613 = vpop.f32.mrb[0].mxu0
  %1614 = vmatprep.mubr.bf16.mxu0 %v929
  %1615 = vmatmul.mubr.bf16.gmra.mrb[0].mxu0 %v928
  %v1616 = vpop.f32.mrb[0].mxu0
  %v1617 = vadd.f32 %v1140, %v1616
  %v1618 = vpop.f32.mrb[0].mxu0
  %v1619 = vpop.f32.mrb[0].mxu0
  %v1620 = vadd.f32 %v1140, %v1619
  %v1621 = vpop.f32.mrb[0].mxu0
  %1622 = vmatprep.mubr.bf16.mxu0 %v938
  %1623 = vmatmul.mubr.bf16.gmra.mrb[0].mxu0 %v937
  %v1624 = vpop.f32.mrb[0].mxu0
  %v1625 = vadd.f32 %v1140, %v1624
  %v1626 = vpop.f32.mrb[0].mxu0
  %v1627 = vpop.f32.mrb[0].mxu0
  %v1628 = vadd.f32 %v1140, %v1627
  %v1629 = vpop.f32.mrb[0].mxu0
  %1630 = vmatprep.mubr.bf16.mxu0 %v947
  %1631 = vmatmul.mubr.bf16.gmra.mrb[0].mxu0 %v946
  %v1632 = vpop.f32.mrb[0].mxu0
  %v1633 = vadd.f32 %v1140, %v1632
  %v1634 = vpop.f32.mrb[0].mxu0
  %v1635 = vpop.f32.mrb[0].mxu0
  %v1636 = vadd.f32 %v1140, %v1635
  %v1637 = vpop.f32.mrb[0].mxu0
  %1638 = vmatprep.mubr.bf16.mxu0 %v956
  %1639 = vmatmul.mubr.bf16.gmra.mrb[0].mxu0 %v955
  %v1640 = vpop.f32.mrb[0].mxu0
  %v1641 = vadd.f32 %v1140, %v1640
  %v1642 = vpop.f32.mrb[0].mxu0
  %v1643 = vpop.f32.mrb[0].mxu0
  %v1644 = vadd.f32 %v1140, %v1643
  %v1645 = vpop.f32.mrb[0].mxu0
  %1646 = vmatprep.mubr.bf16.mxu0 %v965
  %1647 = vmatmul.mubr.bf16.gmra.mrb[0].mxu0 %v964
  %v1648 = vpop.f32.mrb[0].mxu0
  %v1649 = vadd.f32 %v1140, %v1648
  %v1650 = vpop.f32.mrb[0].mxu0
  %v1651 = vpop.f32.mrb[0].mxu0
  %v1652 = vadd.f32 %v1140, %v1651
  %v1653 = vpop.f32.mrb[0].mxu0
  %1654 = vmatprep.mubr.bf16.mxu0 %v974
  %1655 = vmatmul.mubr.bf16.gmra.mrb[0].mxu0 %v973
  %v1656 = vpop.f32.mrb[0].mxu0
  %v1657 = vadd.f32 %v1140, %v1656
  %v1658 = vpop.f32.mrb[0].mxu0
  %v1659 = vpop.f32.mrb[0].mxu0
  %v1660 = vadd.f32 %v1140, %v1659
  %v1661 = vpop.f32.mrb[0].mxu0
  %1662 = vmatprep.mubr.bf16.mxu0 %v983
  %1663 = vmatmul.mubr.bf16.gmra.mrb[0].mxu0 %v982
  %v1664 = vpop.f32.mrb[0].mxu0
  %v1665 = vadd.f32 %v1140, %v1664
  %v1666 = vpop.f32.mrb[0].mxu0
  %v1667 = vpop.f32.mrb[0].mxu0
  %v1668 = vadd.f32 %v1140, %v1667
  %v1669 = vpop.f32.mrb[0].mxu0
  %1670 = vdwg.mxu0
  %1671 = vmatprep.subr.bf16.mxu0 0
  %1672 = vmatpush1.bf16.msra.mxu0 %v1446
  %1673 = vmatprep.subr.bf16.mxu0 0
  %1674 = vmatpush1.bf16.msra.mxu0 %v1447
  %1675 = vmatprep.subr.bf16.mxu0 0
  %1676 = vmatpush1.bf16.msra.mxu0 %v1448
  %1677 = vmatprep.subr.bf16.mxu0 0
  %1678 = vmatpush1.bf16.msra.mxu0 %v1449
  %1679 = vmatprep.subr.bf16.mxu0 0
  %1680 = vmatpush1.bf16.msra.mxu0 %v1450
  %1681 = vmatprep.subr.bf16.mxu0 0
  %1682 = vmatpush1.bf16.msra.mxu0 %v1451
  %1683 = vmatprep.subr.bf16.mxu0 0
  %1684 = vmatpush1.bf16.msra.mxu0 %v1452
  %1685 = vmatprep.subr.bf16.mxu0 0
  %1686 = vmatpush1.bf16.msra.mxu0 %v1453
  %1687 = vmatprep.subr.bf16.mxu0 0
  %1688 = vmatpush1.bf16.msra.mxu0 %v1454
  %1689 = vmatprep.subr.bf16.mxu0 0
  %1690 = vmatpush1.bf16.msra.mxu0 %v1455
  %1691 = vmatprep.subr.bf16.mxu0 0
  %1692 = vmatpush1.bf16.msra.mxu0 %v1456
  %1693 = vmatprep.subr.bf16.mxu0 0
  %1694 = vmatpush1.bf16.msra.mxu0 %v1457
  %1695 = vmatprep.subr.bf16.mxu0 0
  %1696 = vmatpush1.bf16.msra.mxu0 %v1458
  %1697 = vmatprep.subr.bf16.mxu0 0
  %1698 = vmatpush1.bf16.msra.mxu0 %v1459
  %1699 = vmatprep.subr.bf16.mxu0 0
  %1700 = vmatpush1.bf16.msra.mxu0 %v1460
  %1701 = vmatprep.subr.bf16.mxu0 0
  %1702 = vmatpush1.bf16.msra.mxu0 %v1461
  %1703 = vmatprep.mubr.bf16.mxu0 %v922
  %1704 = vmatmul.mubr.bf16.gmra.mrb[0].mxu0 %v921
  %v1705 = vpop.f32.mrb[0].mxu0
  %v1706 = vadd.f32 %v1609, %v1705
  %v1707 = vpop.f32.mrb[0].mxu0
  %v1708 = vpop.f32.mrb[0].mxu0
  %v1709 = vadd.f32 %v1612, %v1708
  %v1710 = vpop.f32.mrb[0].mxu0
  %1711 = vmatprep.mubr.bf16.mxu0 %v931
  %1712 = vmatmul.mubr.bf16.gmra.mrb[0].mxu0 %v930
  %v1713 = vpop.f32.mrb[0].mxu0
  %v1714 = vadd.f32 %v1617, %v1713
  %v1715 = vpop.f32.mrb[0].mxu0
  %v1716 = vpop.f32.mrb[0].mxu0
  %v1717 = vadd.f32 %v1620, %v1716
  %v1718 = vpop.f32.mrb[0].mxu0
  %1719 = vmatprep.mubr.bf16.mxu0 %v940
  %1720 = vmatmul.mubr.bf16.gmra.mrb[0].mxu0 %v939
  %v1721 = vpop.f32.mrb[0].mxu0
  %v1722 = vadd.f32 %v1625, %v1721
  %v1723 = vpop.f32.mrb[0].mxu0
  %v1724 = vpop.f32.mrb[0].mxu0
  %v1725 = vadd.f32 %v1628, %v1724
  %v1726 = vpop.f32.mrb[0].mxu0
  %1727 = vmatprep.mubr.bf16.mxu0 %v949
  %1728 = vmatmul.mubr.bf16.gmra.mrb[0].mxu0 %v948
  %v1729 = vpop.f32.mrb[0].mxu0
  %v1730 = vadd.f32 %v1633, %v1729
  %v1731 = vpop.f32.mrb[0].mxu0
  %v1732 = vpop.f32.mrb[0].mxu0
  %v1733 = vadd.f32 %v1636, %v1732
  %v1734 = vpop.f32.mrb[0].mxu0
  %1735 = vmatprep.mubr.bf16.mxu0 %v958
  %1736 = vmatmul.mubr.bf16.gmra.mrb[0].mxu0 %v957
  %v1737 = vpop.f32.mrb[0].mxu0
  %v1738 = vadd.f32 %v1641, %v1737
  %v1739 = vpop.f32.mrb[0].mxu0
  %v1740 = vpop.f32.mrb[0].mxu0
  %v1741 = vadd.f32 %v1644, %v1740
  %v1742 = vpop.f32.mrb[0].mxu0
  %1743 = vmatprep.mubr.bf16.mxu0 %v967
  %1744 = vmatmul.mubr.bf16.gmra.mrb[0].mxu0 %v966
  %v1745 = vpop.f32.mrb[0].mxu0
  %v1746 = vadd.f32 %v1649, %v1745
  %v1747 = vpop.f32.mrb[0].mxu0
  %v1748 = vpop.f32.mrb[0].mxu0
  %v1749 = vadd.f32 %v1652, %v1748
  %v1750 = vpop.f32.mrb[0].mxu0
  %1751 = vmatprep.mubr.bf16.mxu0 %v976
  %1752 = vmatmul.mubr.bf16.gmra.mrb[0].mxu0 %v975
  %v1753 = vpop.f32.mrb[0].mxu0
  %v1754 = vadd.f32 %v1657, %v1753
  %v1755 = vpop.f32.mrb[0].mxu0
  %v1756 = vpop.f32.mrb[0].mxu0
  %v1757 = vadd.f32 %v1660, %v1756
  %v1758 = vpop.f32.mrb[0].mxu0
  %1759 = vmatprep.mubr.bf16.mxu0 %v985
  %1760 = vmatmul.mubr.bf16.gmra.mrb[0].mxu0 %v984
  %v1761 = vpop.f32.mrb[0].mxu0
  %v1762 = vadd.f32 %v1665, %v1761
  %v1763 = vpop.f32.mrb[0].mxu0
  %v1764 = vpop.f32.mrb[0].mxu0
  %v1765 = vadd.f32 %v1668, %v1764
  %v1766 = vpop.f32.mrb[0].mxu0
  %1767 = vdwg.mxu0
  %1768 = vmatprep.subr.bf16.mxu0 0
  %1769 = vmatpush1.bf16.msra.mxu0 %v1462
  %1770 = vmatprep.subr.bf16.mxu0 0
  %1771 = vmatpush1.bf16.msra.mxu0 %v1463
  %1772 = vmatprep.subr.bf16.mxu0 0
  %1773 = vmatpush1.bf16.msra.mxu0 %v1464
  %1774 = vmatprep.subr.bf16.mxu0 0
  %1775 = vmatpush1.bf16.msra.mxu0 %v1465
  %1776 = vmatprep.subr.bf16.mxu0 0
  %1777 = vmatpush1.bf16.msra.mxu0 %v1466
  %1778 = vmatprep.subr.bf16.mxu0 0
  %1779 = vmatpush1.bf16.msra.mxu0 %v1467
  %1780 = vmatprep.subr.bf16.mxu0 0
  %1781 = vmatpush1.bf16.msra.mxu0 %v1468
  %1782 = vmatprep.subr.bf16.mxu0 0
  %1783 = vmatpush1.bf16.msra.mxu0 %v1469
  %1784 = vmatprep.subr.bf16.mxu0 0
  %1785 = vmatpush1.bf16.msra.mxu0 %v1470
  %1786 = vmatprep.subr.bf16.mxu0 0
  %1787 = vmatpush1.bf16.msra.mxu0 %v1471
  %1788 = vmatprep.subr.bf16.mxu0 0
  %1789 = vmatpush1.bf16.msra.mxu0 %v1472
  %1790 = vmatprep.subr.bf16.mxu0 0
  %1791 = vmatpush1.bf16.msra.mxu0 %v1473
  %1792 = vmatprep.subr.bf16.mxu0 0
  %1793 = vmatpush1.bf16.msra.mxu0 %v1474
  %1794 = vmatprep.subr.bf16.mxu0 0
  %1795 = vmatpush1.bf16.msra.mxu0 %v1475
  %1796 = vmatprep.subr.bf16.mxu0 0
  %1797 = vmatpush1.bf16.msra.mxu0 %v1476
  %1798 = vmatprep.subr.bf16.mxu0 0
  %1799 = vmatpush1.bf16.msra.mxu0 %v1477
  %1800 = vmatprep.mubr.bf16.mxu0 %v924
  %1801 = vmatmul.mubr.bf16.gmra.mrb[0].mxu0 %v923
  %v1802 = vpop.f32.mrb[0].mxu0
  %v1803 = vadd.f32 %v1706, %v1802
  %v1804 = vpop.f32.mrb[0].mxu0
  %v1805 = vpop.f32.mrb[0].mxu0
  %v1806 = vadd.f32 %v1709, %v1805
  %v1807 = vpop.f32.mrb[0].mxu0
  %1808 = vmatprep.mubr.bf16.mxu0 %v933
  %1809 = vmatmul.mubr.bf16.gmra.mrb[0].mxu0 %v932
  %v1810 = vpop.f32.mrb[0].mxu0
  %v1811 = vadd.f32 %v1714, %v1810
  %v1812 = vpop.f32.mrb[0].mxu0
  %v1813 = vpop.f32.mrb[0].mxu0
  %v1814 = vadd.f32 %v1717, %v1813
  %v1815 = vpop.f32.mrb[0].mxu0
  %1816 = vmatprep.mubr.bf16.mxu0 %v942
  %1817 = vmatmul.mubr.bf16.gmra.mrb[0].mxu0 %v941
  %v1818 = vpop.f32.mrb[0].mxu0
  %v1819 = vadd.f32 %v1722, %v1818
  %v1820 = vpop.f32.mrb[0].mxu0
  %v1821 = vpop.f32.mrb[0].mxu0
  %v1822 = vadd.f32 %v1725, %v1821
  %v1823 = vpop.f32.mrb[0].mxu0
  %1824 = vmatprep.mubr.bf16.mxu0 %v951
  %1825 = vmatmul.mubr.bf16.gmra.mrb[0].mxu0 %v950
  %v1826 = vpop.f32.mrb[0].mxu0
  %v1827 = vadd.f32 %v1730, %v1826
  %v1828 = vpop.f32.mrb[0].mxu0
  %v1829 = vpop.f32.mrb[0].mxu0
  %v1830 = vadd.f32 %v1733, %v1829
  %v1831 = vpop.f32.mrb[0].mxu0
  %1832 = vmatprep.mubr.bf16.mxu0 %v960
  %1833 = vmatmul.mubr.bf16.gmra.mrb[0].mxu0 %v959
  %v1834 = vpop.f32.mrb[0].mxu0
  %v1835 = vadd.f32 %v1738, %v1834
  %v1836 = vpop.f32.mrb[0].mxu0
  %v1837 = vpop.f32.mrb[0].mxu0
  %v1838 = vadd.f32 %v1741, %v1837
  %v1839 = vpop.f32.mrb[0].mxu0
  %1840 = vmatprep.mubr.bf16.mxu0 %v969
  %1841 = vmatmul.mubr.bf16.gmra.mrb[0].mxu0 %v968
  %v1842 = vpop.f32.mrb[0].mxu0
  %v1843 = vadd.f32 %v1746, %v1842
  %v1844 = vpop.f32.mrb[0].mxu0
  %v1845 = vpop.f32.mrb[0].mxu0
  %v1846 = vadd.f32 %v1749, %v1845
  %v1847 = vpop.f32.mrb[0].mxu0
  %1848 = vmatprep.mubr.bf16.mxu0 %v978
  %1849 = vmatmul.mubr.bf16.gmra.mrb[0].mxu0 %v977
  %v1850 = vpop.f32.mrb[0].mxu0
  %v1851 = vadd.f32 %v1754, %v1850
  %v1852 = vpop.f32.mrb[0].mxu0
  %v1853 = vpop.f32.mrb[0].mxu0
  %v1854 = vadd.f32 %v1757, %v1853
  %v1855 = vpop.f32.mrb[0].mxu0
  %1856 = vmatprep.mubr.bf16.mxu0 %v987
  %1857 = vmatmul.mubr.bf16.gmra.mrb[0].mxu0 %v986
  %v1858 = vpop.f32.mrb[0].mxu0
  %v1859 = vadd.f32 %v1762, %v1858
  %v1860 = vpop.f32.mrb[0].mxu0
  %v1861 = vpop.f32.mrb[0].mxu0
  %v1862 = vadd.f32 %v1765, %v1861
  %v1863 = vpop.f32.mrb[0].mxu0
  %1864 = vdwg.mxu0
  %1865 = vmatprep.subr.bf16.mxu0 0
  %1866 = vmatpush1.bf16.msra.mxu0 %v1478
  %1867 = vmatprep.subr.bf16.mxu0 0
  %1868 = vmatpush1.bf16.msra.mxu0 %v1479
  %1869 = vmatprep.subr.bf16.mxu0 0
  %1870 = vmatpush1.bf16.msra.mxu0 %v1480
  %1871 = vmatprep.subr.bf16.mxu0 0
  %1872 = vmatpush1.bf16.msra.mxu0 %v1481
  %1873 = vmatprep.subr.bf16.mxu0 0
  %1874 = vmatpush1.bf16.msra.mxu0 %v1482
  %1875 = vmatprep.subr.bf16.mxu0 0
  %1876 = vmatpush1.bf16.msra.mxu0 %v1483
  %1877 = vmatprep.subr.bf16.mxu0 0
  %1878 = vmatpush1.bf16.msra.mxu0 %v1484
  %1879 = vmatprep.subr.bf16.mxu0 0
  %1880 = vmatpush1.bf16.msra.mxu0 %v1485
  %1881 = vmatprep.subr.bf16.mxu0 0
  %1882 = vmatpush1.bf16.msra.mxu0 %v1486
  %1883 = vmatprep.subr.bf16.mxu0 0
  %1884 = vmatpush1.bf16.msra.mxu0 %v1487
  %1885 = vmatprep.subr.bf16.mxu0 0
  %1886 = vmatpush1.bf16.msra.mxu0 %v1488
  %1887 = vmatprep.subr.bf16.mxu0 0
  %1888 = vmatpush1.bf16.msra.mxu0 %v1489
  %1889 = vmatprep.subr.bf16.mxu0 0
  %1890 = vmatpush1.bf16.msra.mxu0 %v1490
  %1891 = vmatprep.subr.bf16.mxu0 0
  %1892 = vmatpush1.bf16.msra.mxu0 %v1491
  %1893 = vmatprep.subr.bf16.mxu0 0
  %1894 = vmatpush1.bf16.msra.mxu0 %v1492
  %1895 = vmatprep.subr.bf16.mxu0 0
  %1896 = vmatpush1.bf16.msra.mxu0 %v1493
  %1897 = vmatprep.mubr.bf16.mxu0 %v926
  %1898 = vmatmul.mubr.bf16.gmra.mrb[0].mxu0 %v925
  %v1899 = vpop.f32.mrb[0].mxu0
  %v1900 = vadd.f32 %v1803, %v1899
  %v1901 = vpop.f32.mrb[0].mxu0
  %v1902 = vpop.f32.mrb[0].mxu0
  %v1903 = vadd.f32 %v1806, %v1902
  %v1904 = vpop.f32.mrb[0].mxu0
  %1905 = vmatprep.mubr.bf16.mxu0 %v935
  %1906 = vmatmul.mubr.bf16.gmra.mrb[0].mxu0 %v934
  %v1907 = vpop.f32.mrb[0].mxu0
  %v1908 = vadd.f32 %v1811, %v1907
  %v1909 = vpop.f32.mrb[0].mxu0
  %v1910 = vpop.f32.mrb[0].mxu0
  %v1911 = vadd.f32 %v1814, %v1910
  %v1912 = vpop.f32.mrb[0].mxu0
  %1913 = vmatprep.mubr.bf16.mxu0 %v944
  %1914 = vmatmul.mubr.bf16.gmra.mrb[0].mxu0 %v943
  %v1915 = vpop.f32.mrb[0].mxu0
  %v1916 = vadd.f32 %v1819, %v1915
  %v1917 = vpop.f32.mrb[0].mxu0
  %v1918 = vpop.f32.mrb[0].mxu0
  %v1919 = vadd.f32 %v1822, %v1918
  %v1920 = vpop.f32.mrb[0].mxu0
  %1921 = vmatprep.mubr.bf16.mxu0 %v953
  %1922 = vmatmul.mubr.bf16.gmra.mrb[0].mxu0 %v952
  %v1923 = vpop.f32.mrb[0].mxu0
  %v1924 = vadd.f32 %v1827, %v1923
  %v1925 = vpop.f32.mrb[0].mxu0
  %v1926 = vpop.f32.mrb[0].mxu0
  %v1927 = vadd.f32 %v1830, %v1926
  %v1928 = vpop.f32.mrb[0].mxu0
  %1929 = vmatprep.mubr.bf16.mxu0 %v962
  %1930 = vmatmul.mubr.bf16.gmra.mrb[0].mxu0 %v961
  %v1931 = vpop.f32.mrb[0].mxu0
  %v1932 = vadd.f32 %v1835, %v1931
  %v1933 = vpop.f32.mrb[0].mxu0
  %v1934 = vpop.f32.mrb[0].mxu0
  %v1935 = vadd.f32 %v1838, %v1934
  %v1936 = vpop.f32.mrb[0].mxu0
  %1937 = vmatprep.mubr.bf16.mxu0 %v971
  %1938 = vmatmul.mubr.bf16.gmra.mrb[0].mxu0 %v970
  %v1939 = vpop.f32.mrb[0].mxu0
  %v1940 = vadd.f32 %v1843, %v1939
  %v1941 = vpop.f32.mrb[0].mxu0
  %v1942 = vpop.f32.mrb[0].mxu0
  %v1943 = vadd.f32 %v1846, %v1942
  %v1944 = vpop.f32.mrb[0].mxu0
  %1945 = vmatprep.mubr.bf16.mxu0 %v980
  %1946 = vmatmul.mubr.bf16.gmra.mrb[0].mxu0 %v979
  %v1947 = vpop.f32.mrb[0].mxu0
  %v1948 = vadd.f32 %v1851, %v1947
  %v1949 = vpop.f32.mrb[0].mxu0
  %v1950 = vpop.f32.mrb[0].mxu0
  %v1951 = vadd.f32 %v1854, %v1950
  %v1952 = vpop.f32.mrb[0].mxu0
  %1953 = vmatprep.mubr.bf16.mxu0 %v989
  %1954 = vmatmul.mubr.bf16.gmra.mrb[0].mxu0 %v988
  %v1955 = vpop.f32.mrb[0].mxu0
  %v1956 = vadd.f32 %v1859, %v1955
  %v1957 = vpop.f32.mrb[0].mxu0
  %v1958 = vpop.f32.mrb[0].mxu0
  %v1959 = vadd.f32 %v1862, %v1958
  %v1960 = vpop.f32.mrb[0].mxu0
  %1961 = vdwg.mxu0
  %1962 = vmatprep.subr.bf16.mxu0 0
  %1963 = vmatpush1.bf16.msra.mxu0 %v1494
  %1964 = vmatprep.subr.bf16.mxu0 0
  %1965 = vmatpush1.bf16.msra.mxu0 %v1495
  %1966 = vmatprep.subr.bf16.mxu0 0
  %1967 = vmatpush1.bf16.msra.mxu0 %v1496
  %1968 = vmatprep.subr.bf16.mxu0 0
  %1969 = vmatpush1.bf16.msra.mxu0 %v1497
  %1970 = vmatprep.subr.bf16.mxu0 0
  %1971 = vmatpush1.bf16.msra.mxu0 %v1498
  %1972 = vmatprep.subr.bf16.mxu0 0
  %1973 = vmatpush1.bf16.msra.mxu0 %v1499
  %1974 = vmatprep.subr.bf16.mxu0 0
  %1975 = vmatpush1.bf16.msra.mxu0 %v1500
  %1976 = vmatprep.subr.bf16.mxu0 0
  %1977 = vmatpush1.bf16.msra.mxu0 %v1501
  %1978 = vmatprep.subr.bf16.mxu0 0
  %1979 = vmatpush1.bf16.msra.mxu0 0
  %1980 = vmatprep.subr.bf16.mxu0 0
  %1981 = vmatpush1.bf16.msra.mxu0 0
  %1982 = vmatprep.subr.bf16.mxu0 0
  %1983 = vmatpush1.bf16.msra.mxu0 0
  %1984 = vmatprep.subr.bf16.mxu0 0
  %1985 = vmatpush1.bf16.msra.mxu0 0
  %1986 = vmatprep.subr.bf16.mxu0 0
  %1987 = vmatpush1.bf16.msra.mxu0 0
  %1988 = vmatprep.subr.bf16.mxu0 0
  %1989 = vmatpush1.bf16.msra.mxu0 0
  %1990 = vmatprep.subr.bf16.mxu0 0
  %1991 = vmatpush1.bf16.msra.mxu0 0
  %1992 = vmatprep.subr.bf16.mxu0 0
  %1993 = vmatpush1.bf16.msra.mxu0 0
  %1994 = vmatprep.mubr.bf16.mxu0 0
  %1995 = vmatmul.mubr.bf16.gmra.mrb[0].mxu0 %v927
  %v1996 = vpop.f32.mrb[0].mxu0
  %v1997 = vadd.f32 %v1900, %v1996
  %v1998 = vpop.f32.mrb[0].mxu0
  %v1999 = vpop.f32.mrb[0].mxu0
  %v2000 = vadd.f32 %v1903, %v1999
  %v2001 = vpop.f32.mrb[0].mxu0
  %2002 = vmatprep.mubr.bf16.mxu0 0
  %2003 = vmatmul.mubr.bf16.gmra.mrb[0].mxu0 %v936
  %v2004 = vpop.f32.mrb[0].mxu0
  %v2005 = vadd.f32 %v1908, %v2004
  %v2006 = vpop.f32.mrb[0].mxu0
  %v2007 = vpop.f32.mrb[0].mxu0
  %v2008 = vadd.f32 %v1911, %v2007
  %v2009 = vpop.f32.mrb[0].mxu0
  %2010 = vmatprep.mubr.bf16.mxu0 0
  %2011 = vmatmul.mubr.bf16.gmra.mrb[0].mxu0 %v945
  %v2012 = vpop.f32.mrb[0].mxu0
  %v2013 = vadd.f32 %v1916, %v2012
  %v2014 = vpop.f32.mrb[0].mxu0
  %v2015 = vpop.f32.mrb[0].mxu0
  %v2016 = vadd.f32 %v1919, %v2015
  %v2017 = vpop.f32.mrb[0].mxu0
  %2018 = vmatprep.mubr.bf16.mxu0 0
  %2019 = vmatmul.mubr.bf16.gmra.mrb[0].mxu0 %v954
  %v2020 = vpop.f32.mrb[0].mxu0
  %v2021 = vadd.f32 %v1924, %v2020
  %v2022 = vpop.f32.mrb[0].mxu0
  %v2023 = vpop.f32.mrb[0].mxu0
  %v2024 = vadd.f32 %v1927, %v2023
  %v2025 = vpop.f32.mrb[0].mxu0
  %2026 = vmatprep.mubr.bf16.mxu0 0
  %2027 = vmatmul.mubr.bf16.gmra.mrb[0].mxu0 %v963
  %v2028 = vpop.f32.mrb[0].mxu0
  %v2029 = vadd.f32 %v1932, %v2028
  %v2030 = vpop.f32.mrb[0].mxu0
  %v2031 = vpop.f32.mrb[0].mxu0
  %v2032 = vadd.f32 %v1935, %v2031
  %v2033 = vpop.f32.mrb[0].mxu0
  %2034 = vmatprep.mubr.bf16.mxu0 0
  %2035 = vmatmul.mubr.bf16.gmra.mrb[0].mxu0 %v972
  %v2036 = vpop.f32.mrb[0].mxu0
  %v2037 = vadd.f32 %v1940, %v2036
  %v2038 = vpop.f32.mrb[0].mxu0
  %v2039 = vpop.f32.mrb[0].mxu0
  %v2040 = vadd.f32 %v1943, %v2039
  %v2041 = vpop.f32.mrb[0].mxu0
  %2042 = vmatprep.mubr.bf16.mxu0 0
  %2043 = vmatmul.mubr.bf16.gmra.mrb[0].mxu0 %v981
  %v2044 = vpop.f32.mrb[0].mxu0
  %v2045 = vadd.f32 %v1948, %v2044
  %v2046 = vpop.f32.mrb[0].mxu0
  %v2047 = vpop.f32.mrb[0].mxu0
  %v2048 = vadd.f32 %v1951, %v2047
  %v2049 = vpop.f32.mrb[0].mxu0
  %2050 = vmatprep.mubr.bf16.mxu0 0
  %2051 = vmatmul.mubr.bf16.gmra.mrb[0].mxu0 %v990
  %v2052 = vpop.f32.mrb[0].mxu0
  %v2053 = vadd.f32 %v1956, %v2052
  %v2054 = vpop.f32.mrb[0].mxu0
  %v2055 = vpop.f32.mrb[0].mxu0
  %v2056 = vadd.f32 %v1959, %v2055
  %v2057 = vpop.f32.mrb[0].mxu0
  %2058 = vdwg.mxu0
  %v2059 = vmax.f32 %v1997, 0.0
  %v2060 = vmax.f32 %v2000, 0.0
  %v2061 = vmax.f32 %v2005, 0.0
  %v2062 = vmax.f32 %v2008, 0.0
  %v2063 = vmax.f32 %v2013, 0.0
  %v2064 = vmax.f32 %v2016, 0.0
  %v2065 = vmax.f32 %v2021, 0.0
  %v2066 = vmax.f32 %v2024, 0.0
  %v2067 = vmax.f32 %v2029, 0.0
  %v2068 = vmax.f32 %v2032, 0.0
  %v2069 = vmax.f32 %v2037, 0.0
  %v2070 = vmax.f32 %v2040, 0.0
  %v2071 = vmax.f32 %v2045, 0.0
  %v2072 = vmax.f32 %v2048, 0.0
  %v2073 = vmax.f32 %v2053, 0.0
  %v2074 = vmax.f32 %v2056, 0.0
  %v2075 = vadd.f32 %v2059, %v2060
  %v2076 = vadd.f32 %v2075, %v2061
  %v2077 = vadd.f32 %v2076, %v2062
  %v2078 = vadd.f32 %v2077, %v2063
  %v2079 = vadd.f32 %v2078, %v2064
  %v2080 = vadd.f32 %v2079, %v2065
  %v2081 = vadd.f32 %v2080, %v2066
  %v2082 = vadd.f32 %v2081, %v2067
  %v2083 = vadd.f32 %v2082, %v2068
  %v2084 = vadd.f32 %v2083, %v2069
  %v2085 = vadd.f32 %v2084, %v2070
  %v2086 = vadd.f32 %v2085, %v2071
  %v2087 = vadd.f32 %v2086, %v2072
  %v2088 = vadd.f32 %v2087, %v2073
  %v2089 = vadd.f32 %v2088, %v2074
  %v2090 = vrot.slane %v2089, 4
  %v2091 = vadd.f32 %v2089, %v2090
  %v2092 = vrot.slane %v2091, 2
  %v2093 = vadd.f32 %v2091, %v2092
  %v2094 = vrot.slane %v2093, 1
  %v2095 = vadd.f32 %v2093, %v2094
  %v2096 = vrcp.pop 128.0
  %v2097 = vmul.f32 %v2095, %v2096
  %v2098 = vsub.f32 %v2059, %v2097
  %v2099 = vsub.f32 %v2060, %v2097
  %v2100 = vsub.f32 %v2061, %v2097
  %v2101 = vsub.f32 %v2062, %v2097
  %v2102 = vsub.f32 %v2063, %v2097
  %v2103 = vsub.f32 %v2064, %v2097
  %v2104 = vsub.f32 %v2065, %v2097
  %v2105 = vsub.f32 %v2066, %v2097
  %v2106 = vsub.f32 %v2067, %v2097
  %v2107 = vsub.f32 %v2068, %v2097
  %v2108 = vsub.f32 %v2069, %v2097
  %v2109 = vsub.f32 %v2070, %v2097
  %v2110 = vsub.f32 %v2071, %v2097
  %v2111 = vsub.f32 %v2072, %v2097
  %v2112 = vsub.f32 %v2073, %v2097
  %v2113 = vsub.f32 %v2074, %v2097
  %v2114 = vmul.f32 %v2098, %v2098
  %v2115 = vmul.f32 %v2099, %v2099
  %v2116 = vmul.f32 %v2100, %v2100
  %v2117 = vmul.f32 %v2101, %v2101
  %v2118 = vmul.f32 %v2102, %v2102
  %v2119 = vmul.f32 %v2103, %v2103
  %v2120 = vmul.f32 %v2104, %v2104
  %v2121 = vmul.f32 %v2105, %v2105
  %v2122 = vmul.f32 %v2106, %v2106
  %v2123 = vmul.f32 %v2107, %v2107
  %v2124 = vmul.f32 %v2108, %v2108
  %v2125 = vmul.f32 %v2109, %v2109
  %v2126 = vmul.f32 %v2110, %v2110
  %v2127 = vmul.f32 %v2111, %v2111
  %v2128 = vmul.f32 %v2112, %v2112
  %v2129 = vmul.f32 %v2113, %v2113
  %v2130 = vadd.f32 %v2114, %v2115
  %v2131 = vadd.f32 %v2130, %v2116
  %v2132 = vadd.f32 %v2131, %v2117
  %v2133 = vadd.f32 %v2132, %v2118
  %v2134 = vadd.f32 %v2133, %v2119
  %v2135 = vadd.f32 %v2134, %v2120
  %v2136 = vadd.f32 %v2135, %v2121
  %v2137 = vadd.f32 %v2136, %v2122
  %v2138 = vadd.f32 %v2137, %v2123
  %v2139 = vadd.f32 %v2138, %v2124
  %v2140 = vadd.f32 %v2139, %v2125
  %v2141 = vadd.f32 %v2140, %v2126
  %v2142 = vadd.f32 %v2141, %v2127
  %v2143 = vadd.f32 %v2142, %v2128
  %v2144 = vadd.f32 %v2143, %v2129
  %v2145 = vrot.slane %v2144, 4
  %v2146 = vadd.f32 %v2144, %v2145
  %v2147 = vrot.slane %v2146, 2
  %v2148 = vadd.f32 %v2146, %v2147
  %v2149 = vrot.slane %v2148, 1
  %v2150 = vadd.f32 %v2148, %v2149
  %v2151 = vmul.f32 %v2150, %v2096
  %v2152 = vld [vmem:[%s3] sm:$0x1]
  %v2153 = vadd.f32 %v2151, 1e-05
  %v2154 = vrsqrt.pop %v2153
  %v2155 = vmul.f32 %v2152, %v2154
  %v2156 = vld [vmem:[%s4] sm:$0x1]
  %v2157 = vmul.f32 %v2097, %v2155
  %v2158 = vsub.f32 %v2156, %v2157
  %v2160 = vlaneseq
  %v2161 = vshrl.u32 %v2160, 7
  %v2162 = vsub.s32 0, %v2161
  %v2163 = vrot.slane %v2155, %v2162
  %v2165 = vmul.f32 %v2059, %v2163
  %v2166 = vmul.f32 %v2060, %v2163
  %v2167 = vmul.f32 %v2061, %v2163
  %v2168 = vmul.f32 %v2062, %v2163
  %v2169 = vmul.f32 %v2063, %v2163
  %v2170 = vmul.f32 %v2064, %v2163
  %v2171 = vmul.f32 %v2065, %v2163
  %v2172 = vmul.f32 %v2066, %v2163
  %v2173 = vmul.f32 %v2067, %v2163
  %v2174 = vmul.f32 %v2068, %v2163
  %v2175 = vmul.f32 %v2069, %v2163
  %v2176 = vmul.f32 %v2070, %v2163
  %v2177 = vmul.f32 %v2071, %v2163
  %v2178 = vmul.f32 %v2072, %v2163
  %v2179 = vmul.f32 %v2073, %v2163
  %v2180 = vmul.f32 %v2074, %v2163
  %v2182 = vlaneseq
  %v2183 = vshrl.u32 %v2182, 7
  %v2184 = vsub.s32 0, %v2183
  %v2185 = vrot.slane %v2158, %v2184
  %v2187 = vadd.f32 %v2165, %v2185
  %v2188 = vadd.f32 %v2166, %v2185
  %v2189 = vadd.f32 %v2167, %v2185
  %v2190 = vadd.f32 %v2168, %v2185
  %v2191 = vadd.f32 %v2169, %v2185
  %v2192 = vadd.f32 %v2170, %v2185
  %v2193 = vadd.f32 %v2171, %v2185
  %v2194 = vadd.f32 %v2172, %v2185
  %v2195 = vadd.f32 %v2173, %v2185
  %v2196 = vadd.f32 %v2174, %v2185
  %v2197 = vadd.f32 %v2175, %v2185
  %v2198 = vadd.f32 %v2176, %v2185
  %v2199 = vadd.f32 %v2177, %v2185
  %v2200 = vadd.f32 %v2178, %v2185
  %v2201 = vadd.f32 %v2179, %v2185
  %v2202 = vadd.f32 %v2180, %v2185
  %s2203 = scalar_lea.vmem [#allocation3], 16
  %2204 = vst [vmem:[%s2203 + $0x8] sm:$0x1] %v2187
  %v2206 = vrot.slane %v2187, 1
  %2208 = vst [vmem:[%s2203 + $0x1] sm:$0x1] %v2206
  %v2209 = vrot.slane %v2187, 2
  %2211 = vst [vmem:[%s2203 + $0x9] sm:$0x1] %v2209
  %v2212 = vrot.slane %v2187, 3
  %2214 = vst [vmem:[%s2203 + $0x2] sm:$0x1] %v2212
  %v2215 = vrot.slane %v2187, 4
  %2217 = vst [vmem:[%s2203 + $0xa] sm:$0x1] %v2215
  %v2218 = vrot.slane %v2187, 5
  %2220 = vst [vmem:[%s2203 + $0x3] sm:$0x1] %v2218
  %v2221 = vrot.slane %v2187, 6
  %2223 = vst [vmem:[%s2203 + $0xb] sm:$0x1] %v2221
  %v2224 = vrot.slane %v2187, 7
  %2226 = vst [vmem:[%s2203 + $0x4] sm:$0x1] %v2224
  %s2227 = scalar_lea.vmem [#allocation3], 32
  %2228 = vst [vmem:[%s2227 + $0x8] sm:$0x1] %v2188
  %v2230 = vrot.slane %v2188, 1
  %2232 = vst [vmem:[%s2227 + $0x1] sm:$0x1] %v2230
  %v2233 = vrot.slane %v2188, 2
  %2235 = vst [vmem:[%s2227 + $0x9] sm:$0x1] %v2233
  %v2236 = vrot.slane %v2188, 3
  %2238 = vst [vmem:[%s2227 + $0x2] sm:$0x1] %v2236
  %v2239 = vrot.slane %v2188, 4
  %2241 = vst [vmem:[%s2227 + $0xa] sm:$0x1] %v2239
  %v2242 = vrot.slane %v2188, 5
  %2244 = vst [vmem:[%s2227 + $0x3] sm:$0x1] %v2242
  %v2245 = vrot.slane %v2188, 6
  %2247 = vst [vmem:[%s2227 + $0xb] sm:$0x1] %v2245
  %v2248 = vrot.slane %v2188, 7
  %2250 = vst [vmem:[%s2227 + $0x4] sm:$0x1] %v2248
  %s2251 = scalar_lea.vmem [#allocation3], 48
  %2252 = vst [vmem:[%s2251 + $0x8] sm:$0x1] %v2189
  %v2254 = vrot.slane %v2189, 1
  %2256 = vst [vmem:[%s2251 + $0x1] sm:$0x1] %v2254
  %v2257 = vrot.slane %v2189, 2
  %2259 = vst [vmem:[%s2251 + $0x9] sm:$0x1] %v2257
  %v2260 = vrot.slane %v2189, 3
  %2262 = vst [vmem:[%s2251 + $0x2] sm:$0x1] %v2260
  %v2263 = vrot.slane %v2189, 4
  %2265 = vst [vmem:[%s2251 + $0xa] sm:$0x1] %v2263
  %v2266 = vrot.slane %v2189, 5
  %2268 = vst [vmem:[%s2251 + $0x3] sm:$0x1] %v2266
  %v2269 = vrot.slane %v2189, 6
  %2271 = vst [vmem:[%s2251 + $0xb] sm:$0x1] %v2269
  %v2272 = vrot.slane %v2189, 7
  %2274 = vst [vmem:[%s2251 + $0x4] sm:$0x1] %v2272
  %s2275 = scalar_lea.vmem [#allocation3], 64
  %2276 = vst [vmem:[%s2275 + $0x8] sm:$0x1] %v2190
  %v2278 = vrot.slane %v2190, 1
  %2280 = vst [vmem:[%s2275 + $0x1] sm:$0x1] %v2278
  %v2281 = vrot.slane %v2190, 2
  %2283 = vst [vmem:[%s2275 + $0x9] sm:$0x1] %v2281
  %v2284 = vrot.slane %v2190, 3
  %2286 = vst [vmem:[%s2275 + $0x2] sm:$0x1] %v2284
  %v2287 = vrot.slane %v2190, 4
  %2289 = vst [vmem:[%s2275 + $0xa] sm:$0x1] %v2287
  %v2290 = vrot.slane %v2190, 5
  %2292 = vst [vmem:[%s2275 + $0x3] sm:$0x1] %v2290
  %v2293 = vrot.slane %v2190, 6
  %2295 = vst [vmem:[%s2275 + $0xb] sm:$0x1] %v2293
  %v2296 = vrot.slane %v2190, 7
  %2298 = vst [vmem:[%s2275 + $0x4] sm:$0x1] %v2296
  %s2299 = scalar_lea.vmem [#allocation3], 80
  %2300 = vst [vmem:[%s2299 + $0x8] sm:$0x1] %v2191
  %v2302 = vrot.slane %v2191, 1
  %2304 = vst [vmem:[%s2299 + $0x1] sm:$0x1] %v2302
  %v2305 = vrot.slane %v2191, 2
  %2307 = vst [vmem:[%s2299 + $0x9] sm:$0x1] %v2305
  %v2308 = vrot.slane %v2191, 3
  %2310 = vst [vmem:[%s2299 + $0x2] sm:$0x1] %v2308
  %v2311 = vrot.slane %v2191, 4
  %2313 = vst [vmem:[%s2299 + $0xa] sm:$0x1] %v2311
  %v2314 = vrot.slane %v2191, 5
  %2316 = vst [vmem:[%s2299 + $0x3] sm:$0x1] %v2314
  %v2317 = vrot.slane %v2191, 6
  %2319 = vst [vmem:[%s2299 + $0xb] sm:$0x1] %v2317
  %v2320 = vrot.slane %v2191, 7
  %2322 = vst [vmem:[%s2299 + $0x4] sm:$0x1] %v2320
  %s2323 = scalar_lea.vmem [#allocation3], 96
  %2324 = vst [vmem:[%s2323 + $0x8] sm:$0x1] %v2192
  %v2326 = vrot.slane %v2192, 1
  %2328 = vst [vmem:[%s2323 + $0x1] sm:$0x1] %v2326
  %v2329 = vrot.slane %v2192, 2
  %2331 = vst [vmem:[%s2323 + $0x9] sm:$0x1] %v2329
  %v2332 = vrot.slane %v2192, 3
  %2334 = vst [vmem:[%s2323 + $0x2] sm:$0x1] %v2332
  %v2335 = vrot.slane %v2192, 4
  %2337 = vst [vmem:[%s2323 + $0xa] sm:$0x1] %v2335
  %v2338 = vrot.slane %v2192, 5
  %2340 = vst [vmem:[%s2323 + $0x3] sm:$0x1] %v2338
  %v2341 = vrot.slane %v2192, 6
  %2343 = vst [vmem:[%s2323 + $0xb] sm:$0x1] %v2341
  %v2344 = vrot.slane %v2192, 7
  %2346 = vst [vmem:[%s2323 + $0x4] sm:$0x1] %v2344
  %s2347 = scalar_lea.vmem [#allocation3], 112
  %2348 = vst [vmem:[%s2347 + $0x8] sm:$0x1] %v2193
  %v2350 = vrot.slane %v2193, 1
  %2352 = vst [vmem:[%s2347 + $0x1] sm:$0x1] %v2350
  %v2353 = vrot.slane %v2193, 2
  %2355 = vst [vmem:[%s2347 + $0x9] sm:$0x1] %v2353
  %v2356 = vrot.slane %v2193, 3
  %2358 = vst [vmem:[%s2347 + $0x2] sm:$0x1] %v2356
  %v2359 = vrot.slane %v2193, 4
  %2361 = vst [vmem:[%s2347 + $0xa] sm:$0x1] %v2359
  %v2362 = vrot.slane %v2193, 5
  %2364 = vst [vmem:[%s2347 + $0x3] sm:$0x1] %v2362
  %v2365 = vrot.slane %v2193, 6
  %2367 = vst [vmem:[%s2347 + $0xb] sm:$0x1] %v2365
  %v2368 = vrot.slane %v2193, 7
  %2370 = vst [vmem:[%s2347 + $0x4] sm:$0x1] %v2368
  %s2371 = scalar_lea.vmem [#allocation3], 128
  %2372 = vst [vmem:[%s2371 + $0x8] sm:$0x1] %v2194
  %v2374 = vrot.slane %v2194, 1
  %2376 = vst [vmem:[%s2371 + $0x1] sm:$0x1] %v2374
  %v2377 = vrot.slane %v2194, 2
  %2379 = vst [vmem:[%s2371 + $0x9] sm:$0x1] %v2377
  %v2380 = vrot.slane %v2194, 3
  %2382 = vst [vmem:[%s2371 + $0x2] sm:$0x1] %v2380
  %v2383 = vrot.slane %v2194, 4
  %2385 = vst [vmem:[%s2371 + $0xa] sm:$0x1] %v2383
  %v2386 = vrot.slane %v2194, 5
  %2388 = vst [vmem:[%s2371 + $0x3] sm:$0x1] %v2386
  %v2389 = vrot.slane %v2194, 6
  %2391 = vst [vmem:[%s2371 + $0xb] sm:$0x1] %v2389
  %v2392 = vrot.slane %v2194, 7
  %2394 = vst [vmem:[%s2371 + $0x4] sm:$0x1] %v2392
  %s2395 = scalar_lea.vmem [#allocation3], 176
  %2396 = vst [vmem:[%s2395 + $0x8] sm:$0x1] %v2195
  %v2398 = vrot.slane %v2195, 1
  %2400 = vst [vmem:[%s2395 + $0x1] sm:$0x1] %v2398
  %v2401 = vrot.slane %v2195, 2
  %2403 = vst [vmem:[%s2395 + $0x9] sm:$0x1] %v2401
  %v2404 = vrot.slane %v2195, 3
  %2406 = vst [vmem:[%s2395 + $0x2] sm:$0x1] %v2404
  %v2407 = vrot.slane %v2195, 4
  %2409 = vst [vmem:[%s2395 + $0xa] sm:$0x1] %v2407
  %v2410 = vrot.slane %v2195, 5
  %2412 = vst [vmem:[%s2395 + $0x3] sm:$0x1] %v2410
  %v2413 = vrot.slane %v2195, 6
  %2415 = vst [vmem:[%s2395 + $0xb] sm:$0x1] %v2413
  %v2416 = vrot.slane %v2195, 7
  %2418 = vst [vmem:[%s2395 + $0x4] sm:$0x1] %v2416
  %s2419 = scalar_lea.vmem [#allocation3], 192
  %2420 = vst [vmem:[%s2419 + $0x8] sm:$0x1] %v2196
  %v2422 = vrot.slane %v2196, 1
  %2424 = vst [vmem:[%s2419 + $0x1] sm:$0x1] %v2422
  %v2425 = vrot.slane %v2196, 2
  %2427 = vst [vmem:[%s2419 + $0x9] sm:$0x1] %v2425
  %v2428 = vrot.slane %v2196, 3
  %2430 = vst [vmem:[%s2419 + $0x2] sm:$0x1] %v2428
  %v2431 = vrot.slane %v2196, 4
  %2433 = vst [vmem:[%s2419 + $0xa] sm:$0x1] %v2431
  %v2434 = vrot.slane %v2196, 5
  %2436 = vst [vmem:[%s2419 + $0x3] sm:$0x1] %v2434
  %v2437 = vrot.slane %v2196, 6
  %2439 = vst [vmem:[%s2419 + $0xb] sm:$0x1] %v2437
  %v2440 = vrot.slane %v2196, 7
  %2442 = vst [vmem:[%s2419 + $0x4] sm:$0x1] %v2440
  %s2443 = scalar_lea.vmem [#allocation3], 208
  %2444 = vst [vmem:[%s2443 + $0x8] sm:$0x1] %v2197
  %v2446 = vrot.slane %v2197, 1
  %2448 = vst [vmem:[%s2443 + $0x1] sm:$0x1] %v2446
  %v2449 = vrot.slane %v2197, 2
  %2451 = vst [vmem:[%s2443 + $0x9] sm:$0x1] %v2449
  %v2452 = vrot.slane %v2197, 3
  %2454 = vst [vmem:[%s2443 + $0x2] sm:$0x1] %v2452
  %v2455 = vrot.slane %v2197, 4
  %2457 = vst [vmem:[%s2443 + $0xa] sm:$0x1] %v2455
  %v2458 = vrot.slane %v2197, 5
  %2460 = vst [vmem:[%s2443 + $0x3] sm:$0x1] %v2458
  %v2461 = vrot.slane %v2197, 6
  %2463 = vst [vmem:[%s2443 + $0xb] sm:$0x1] %v2461
  %v2464 = vrot.slane %v2197, 7
  %2466 = vst [vmem:[%s2443 + $0x4] sm:$0x1] %v2464
  %s2467 = scalar_lea.vmem [#allocation3], 224
  %2468 = vst [vmem:[%s2467 + $0x8] sm:$0x1] %v2198
  %v2470 = vrot.slane %v2198, 1
  %2472 = vst [vmem:[%s2467 + $0x1] sm:$0x1] %v2470
  %v2473 = vrot.slane %v2198, 2
  %2475 = vst [vmem:[%s2467 + $0x9] sm:$0x1] %v2473
  %v2476 = vrot.slane %v2198, 3
  %2478 = vst [vmem:[%s2467 + $0x2] sm:$0x1] %v2476
  %v2479 = vrot.slane %v2198, 4
  %2481 = vst [vmem:[%s2467 + $0xa] sm:$0x1] %v2479
  %v2482 = vrot.slane %v2198, 5
  %2484 = vst [vmem:[%s2467 + $0x3] sm:$0x1] %v2482
  %v2485 = vrot.slane %v2198, 6
  %2487 = vst [vmem:[%s2467 + $0xb] sm:$0x1] %v2485
  %v2488 = vrot.slane %v2198, 7
  %2490 = vst [vmem:[%s2467 + $0x4] sm:$0x1] %v2488
  %s2491 = scalar_lea.vmem [#allocation3], 240
  %2492 = vst [vmem:[%s2491 + $0x8] sm:$0x1] %v2199
  %v2494 = vrot.slane %v2199, 1
  %2496 = vst [vmem:[%s2491 + $0x1] sm:$0x1] %v2494
  %v2497 = vrot.slane %v2199, 2
  %2499 = vst [vmem:[%s2491 + $0x9] sm:$0x1] %v2497
  %v2500 = vrot.slane %v2199, 3
  %2502 = vst [vmem:[%s2491 + $0x2] sm:$0x1] %v2500
  %v2503 = vrot.slane %v2199, 4
  %2505 = vst [vmem:[%s2491 + $0xa] sm:$0x1] %v2503
  %v2506 = vrot.slane %v2199, 5
  %2508 = vst [vmem:[%s2491 + $0x3] sm:$0x1] %v2506
  %v2509 = vrot.slane %v2199, 6
  %2511 = vst [vmem:[%s2491 + $0xb] sm:$0x1] %v2509
  %v2512 = vrot.slane %v2199, 7
  %2514 = vst [vmem:[%s2491 + $0x4] sm:$0x1] %v2512
  %s2515 = scalar_lea.vmem [#allocation3], 256
  %2516 = vst [vmem:[%s2515 + $0x8] sm:$0x1] %v2200
  %v2518 = vrot.slane %v2200, 1
  %2520 = vst [vmem:[%s2515 + $0x1] sm:$0x1] %v2518
  %v2521 = vrot.slane %v2200, 2
  %2523 = vst [vmem:[%s2515 + $0x9] sm:$0x1] %v2521
  %v2524 = vrot.slane %v2200, 3
  %2526 = vst [vmem:[%s2515 + $0x2] sm:$0x1] %v2524
  %v2527 = vrot.slane %v2200, 4
  %2529 = vst [vmem:[%s2515 + $0xa] sm:$0x1] %v2527
  %v2530 = vrot.slane %v2200, 5
  %2532 = vst [vmem:[%s2515 + $0x3] sm:$0x1] %v2530
  %v2533 = vrot.slane %v2200, 6
  %2535 = vst [vmem:[%s2515 + $0xb] sm:$0x1] %v2533
  %v2536 = vrot.slane %v2200, 7
  %2538 = vst [vmem:[%s2515 + $0x4] sm:$0x1] %v2536
  %s2539 = scalar_lea.vmem [#allocation3], 272
  %2540 = vst [vmem:[%s2539 + $0x8] sm:$0x1] %v2201
  %v2542 = vrot.slane %v2201, 1
  %2544 = vst [vmem:[%s2539 + $0x1] sm:$0x1] %v2542
  %v2545 = vrot.slane %v2201, 2
  %2547 = vst [vmem:[%s2539 + $0x9] sm:$0x1] %v2545
  %v2548 = vrot.slane %v2201, 3
  %2550 = vst [vmem:[%s2539 + $0x2] sm:$0x1] %v2548
  %v2551 = vrot.slane %v2201, 4
  %2553 = vst [vmem:[%s2539 + $0xa] sm:$0x1] %v2551
  %v2554 = vrot.slane %v2201, 5
  %2556 = vst [vmem:[%s2539 + $0x3] sm:$0x1] %v2554
  %v2557 = vrot.slane %v2201, 6
  %2559 = vst [vmem:[%s2539 + $0xb] sm:$0x1] %v2557
  %v2560 = vrot.slane %v2201, 7
  %2562 = vst [vmem:[%s2539 + $0x4] sm:$0x1] %v2560
  %s2563 = scalar_lea.vmem [#allocation3], 288
  %2564 = vst [vmem:[%s2563 + $0x8] sm:$0x1] %v2202
  %v2566 = vrot.slane %v2202, 1
  %2568 = vst [vmem:[%s2563 + $0x1] sm:$0x1] %v2566
  %v2569 = vrot.slane %v2202, 2
  %2571 = vst [vmem:[%s2563 + $0x9] sm:$0x1] %v2569
  %v2572 = vrot.slane %v2202, 3
  %2574 = vst [vmem:[%s2563 + $0x2] sm:$0x1] %v2572
  %v2575 = vrot.slane %v2202, 4
  %2577 = vst [vmem:[%s2563 + $0xa] sm:$0x1] %v2575
  %v2578 = vrot.slane %v2202, 5
  %2580 = vst [vmem:[%s2563 + $0x3] sm:$0x1] %v2578
  %v2581 = vrot.slane %v2202, 6
  %2583 = vst [vmem:[%s2563 + $0xb] sm:$0x1] %v2581
  %v2584 = vrot.slane %v2202, 7
  %2586 = vst [vmem:[%s2563 + $0x4] sm:$0x1] %v2584
  %v2587 = vld [vmem:[#allocation3] sm:$0xf]
  %v2588 = vld [vmem:[#allocation3 + $0x8] sm:$0xf]
  %2589 = vst [vmem:[#allocation2] sm:$0xf] %v2587
  %2590 = vst [vmem:[#allocation2 + $0x8] sm:$0xf] %v2588
  %v2591 = vld [vmem:[#allocation3] sm:$0x1e]
  %v2593 = vrot.slane %v2591, 1
  %2595 = vst [vmem:[#allocation2 + $0x10] sm:$0xf] %v2593
  %v2596 = vld [vmem:[%s2203] sm:$0xf]
  %v2597 = vld [vmem:[%s2203 + $0x8] sm:$0xf]
  %2598 = vst [vmem:[#allocation2 + $0x18] sm:$0xf] %v2596
  %2599 = vst [vmem:[#allocation2 + $0x20] sm:$0xf] %v2597
  %v2600 = vld [vmem:[%s2203] sm:$0x1e]
  %v2602 = vrot.slane %v2600, 1
  %2604 = vst [vmem:[#allocation2 + $0x28] sm:$0xf] %v2602
  %v2605 = vld [vmem:[%s2227] sm:$0xf]
  %v2606 = vld [vmem:[%s2227 + $0x8] sm:$0xf]
  %2607 = vst [vmem:[#allocation2 + $0x30] sm:$0xf] %v2605
  %2608 = vst [vmem:[#allocation2 + $0x38] sm:$0xf] %v2606
  %v2609 = vld [vmem:[%s2227] sm:$0x1e]
  %v2611 = vrot.slane %v2609, 1
  %2613 = vst [vmem:[#allocation2 + $0x40] sm:$0xf] %v2611
  %v2614 = vld [vmem:[%s2227] sm:$0xf]
  %v2615 = vld [vmem:[%s2227 + $0x8] sm:$0xf]
  %v2618 = vrot.slane %v2614, 4
  %v2619 = vrot.slane %v2615, 4
  %2622 = vst [vmem:[#allocation2] sm:$0xf0] %v2618
  %2623 = vst [vmem:[#allocation2 + $0x8] sm:$0xf0] %v2619
  %v2624 = vld [vmem:[%s2227] sm:$0x1e]
  %v2626 = vrot.slane %v2624, 5
  %2628 = vst [vmem:[#allocation2 + $0x10] sm:$0xf0] %v2626
  %v2629 = vld [vmem:[%s2251] sm:$0xf]
  %v2630 = vld [vmem:[%s2251 + $0x8] sm:$0xf]
  %v2633 = vrot.slane %v2629, 4
  %v2634 = vrot.slane %v2630, 4
  %2637 = vst [vmem:[#allocation2 + $0x18] sm:$0xf0] %v2633
  %2638 = vst [vmem:[#allocation2 + $0x20] sm:$0xf0] %v2634
  %v2639 = vld [vmem:[%s2251] sm:$0x1e]
  %v2641 = vrot.slane %v2639, 5
  %2643 = vst [vmem:[#allocation2 + $0x28] sm:$0xf0] %v2641
  %v2644 = vld [vmem:[%s2275] sm:$0xf]
  %v2645 = vld [vmem:[%s2275 + $0x8] sm:$0xf]
  %v2648 = vrot.slane %v2644, 4
  %v2649 = vrot.slane %v2645, 4
  %2652 = vst [vmem:[#allocation2 + $0x30] sm:$0xf0] %v2648
  %2653 = vst [vmem:[#allocation2 + $0x38] sm:$0xf0] %v2649
  %v2654 = vld [vmem:[%s2275] sm:$0x1e]
  %v2656 = vrot.slane %v2654, 5
  %2658 = vst [vmem:[#allocation2 + $0x40] sm:$0xf0] %v2656
  %v2659 = vld [vmem:[%s2275] sm:$0xf]
  %v2660 = vld [vmem:[%s2275 + $0x8] sm:$0xf]
  %2661 = vst [vmem:[#allocation2 + $0x48] sm:$0xf] %v2659
  %2662 = vst [vmem:[#allocation2 + $0x50] sm:$0xf] %v2660
  %v2663 = vld [vmem:[%s2275] sm:$0x1e]
  %v2665 = vrot.slane %v2663, 1
  %2667 = vst [vmem:[#allocation2 + $0x58] sm:$0xf] %v2665
  %v2668 = vld [vmem:[%s2299] sm:$0xf]
  %v2669 = vld [vmem:[%s2299 + $0x8] sm:$0xf]
  %2670 = vst [vmem:[#allocation2 + $0x60] sm:$0xf] %v2668
  %2671 = vst [vmem:[#allocation2 + $0x68] sm:$0xf] %v2669
  %v2672 = vld [vmem:[%s2299] sm:$0x1e]
  %v2674 = vrot.slane %v2672, 1
  %2676 = vst [vmem:[#allocation2 + $0x70] sm:$0xf] %v2674
  %v2677 = vld [vmem:[%s2323] sm:$0xf]
  %v2678 = vld [vmem:[%s2323 + $0x8] sm:$0xf]
  %2679 = vst [vmem:[#allocation2 + $0x78] sm:$0xf] %v2677
  %2680 = vst [vmem:[#allocation2 + $0x80] sm:$0xf] %v2678
  %v2681 = vld [vmem:[%s2323] sm:$0x1e]
  %v2683 = vrot.slane %v2681, 1
  %2685 = vst [vmem:[#allocation2 + $0x88] sm:$0xf] %v2683
  %v2686 = vld [vmem:[%s2323] sm:$0xf]
  %v2687 = vld [vmem:[%s2323 + $0x8] sm:$0xf]
  %v2690 = vrot.slane %v2686, 4
  %v2691 = vrot.slane %v2687, 4
  %2694 = vst [vmem:[#allocation2 + $0x48] sm:$0xf0] %v2690
  %2695 = vst [vmem:[#allocation2 + $0x50] sm:$0xf0] %v2691
  %v2696 = vld [vmem:[%s2323] sm:$0x1e]
  %v2698 = vrot.slane %v2696, 5
  %2700 = vst [vmem:[#allocation2 + $0x58] sm:$0xf0] %v2698
  %v2701 = vld [vmem:[%s2347] sm:$0xf]
  %v2702 = vld [vmem:[%s2347 + $0x8] sm:$0xf]
  %v2705 = vrot.slane %v2701, 4
  %v2706 = vrot.slane %v2702, 4
  %2709 = vst [vmem:[#allocation2 + $0x60] sm:$0xf0] %v2705
  %2710 = vst [vmem:[#allocation2 + $0x68] sm:$0xf0] %v2706
  %v2711 = vld [vmem:[%s2347] sm:$0x1e]
  %v2713 = vrot.slane %v2711, 5
  %2715 = vst [vmem:[#allocation2 + $0x70] sm:$0xf0] %v2713
  %v2716 = vld [vmem:[%s2371] sm:$0xf]
  %v2717 = vld [vmem:[%s2371 + $0x8] sm:$0xf]
  %v2720 = vrot.slane %v2716, 4
  %v2721 = vrot.slane %v2717, 4
  %2724 = vst [vmem:[#allocation2 + $0x78] sm:$0xf0] %v2720
  %2725 = vst [vmem:[#allocation2 + $0x80] sm:$0xf0] %v2721
  %v2726 = vld [vmem:[%s2371] sm:$0x1e]
  %v2728 = vrot.slane %v2726, 5
  %2730 = vst [vmem:[#allocation2 + $0x88] sm:$0xf0] %v2728
  %s2731 = scalar_lea.vmem [#allocation3], 160
  %v2732 = vld [vmem:[%s2731] sm:$0xf]
  %v2733 = vld [vmem:[%s2731 + $0x8] sm:$0xf]
  %2734 = vst [vmem:[#allocation2 + $0x90] sm:$0xf] %v2732
  %2735 = vst [vmem:[#allocation2 + $0x98] sm:$0xf] %v2733
  %v2736 = vld [vmem:[%s2731] sm:$0x1e]
  %v2738 = vrot.slane %v2736, 1
  %2740 = vst [vmem:[#allocation2 + $0xa0] sm:$0xf] %v2738
  %v2741 = vld [vmem:[%s2395] sm:$0xf]
  %v2742 = vld [vmem:[%s2395 + $0x8] sm:$0xf]
  %2743 = vst [vmem:[#allocation2 + $0xa8] sm:$0xf] %v2741
  %2744 = vst [vmem:[#allocation2 + $0xb0] sm:$0xf] %v2742
  %v2745 = vld [vmem:[%s2395] sm:$0x1e]
  %v2747 = vrot.slane %v2745, 1
  %2749 = vst [vmem:[#allocation2 + $0xb8] sm:$0xf] %v2747
  %v2750 = vld [vmem:[%s2419] sm:$0xf]
  %v2751 = vld [vmem:[%s2419 + $0x8] sm:$0xf]
  %2752 = vst [vmem:[#allocation2 + $0xc0] sm:$0xf] %v2750
  %2753 = vst [vmem:[#allocation2 + $0xc8] sm:$0xf] %v2751
  %v2754 = vld [vmem:[%s2419] sm:$0x1e]
  %v2756 = vrot.slane %v2754, 1
  %2758 = vst [vmem:[#allocation2 + $0xd0] sm:$0xf] %v2756
  %v2759 = vld [vmem:[%s2419] sm:$0xf]
  %v2760 = vld [vmem:[%s2419 + $0x8] sm:$0xf]
  %v2763 = vrot.slane %v2759, 4
  %v2764 = vrot.slane %v2760, 4
  %2767 = vst [vmem:[#allocation2 + $0x90] sm:$0xf0] %v2763
  %2768 = vst [vmem:[#allocation2 + $0x98] sm:$0xf0] %v2764
  %v2769 = vld [vmem:[%s2419] sm:$0x1e]
  %v2771 = vrot.slane %v2769, 5
  %2773 = vst [vmem:[#allocation2 + $0xa0] sm:$0xf0] %v2771
  %v2774 = vld [vmem:[%s2443] sm:$0xf]
  %v2775 = vld [vmem:[%s2443 + $0x8] sm:$0xf]
  %v2778 = vrot.slane %v2774, 4
  %v2779 = vrot.slane %v2775, 4
  %2782 = vst [vmem:[#allocation2 + $0xa8] sm:$0xf0] %v2778
  %2783 = vst [vmem:[#allocation2 + $0xb0] sm:$0xf0] %v2779
  %v2784 = vld [vmem:[%s2443] sm:$0x1e]
  %v2786 = vrot.slane %v2784, 5
  %2788 = vst [vmem:[#allocation2 + $0xb8] sm:$0xf0] %v2786
  %v2789 = vld [vmem:[%s2467] sm:$0xf]
  %v2790 = vld [vmem:[%s2467 + $0x8] sm:$0xf]
  %v2793 = vrot.slane %v2789, 4
  %v2794 = vrot.slane %v2790, 4
  %2797 = vst [vmem:[#allocation2 + $0xc0] sm:$0xf0] %v2793
  %2798 = vst [vmem:[#allocation2 + $0xc8] sm:$0xf0] %v2794
  %v2799 = vld [vmem:[%s2467] sm:$0x1e]
  %v2801 = vrot.slane %v2799, 5
  %2803 = vst [vmem:[#allocation2 + $0xd0] sm:$0xf0] %v2801
  %v2804 = vld [vmem:[%s2467] sm:$0xf]
  %v2805 = vld [vmem:[%s2467 + $0x8] sm:$0xf]
  %2806 = vst [vmem:[#allocation2 + $0xd8] sm:$0xf] %v2804
  %2807 = vst [vmem:[#allocation2 + $0xe0] sm:$0xf] %v2805
  %v2808 = vld [vmem:[%s2467] sm:$0x1e]
  %v2810 = vrot.slane %v2808, 1
  %2812 = vst [vmem:[#allocation2 + $0xe8] sm:$0xf] %v2810
  %v2813 = vld [vmem:[%s2491] sm:$0xf]
  %v2814 = vld [vmem:[%s2491 + $0x8] sm:$0xf]
  %2815 = vst [vmem:[#allocation2 + $0xf0] sm:$0xf] %v2813
  %2816 = vst [vmem:[#allocation2 + $0xf8] sm:$0xf] %v2814
  %v2817 = vld [vmem:[%s2491] sm:$0x1e]
  %v2819 = vrot.slane %v2817, 1
  %2821 = vst [vmem:[#allocation2 + $0x100] sm:$0xf] %v2819
  %v2822 = vld [vmem:[%s2515] sm:$0xf]
  %v2823 = vld [vmem:[%s2515 + $0x8] sm:$0xf]
  %2824 = vst [vmem:[#allocation2 + $0x108] sm:$0xf] %v2822
  %2825 = vst [vmem:[#allocation2 + $0x110] sm:$0xf] %v2823
  %v2826 = vld [vmem:[%s2515] sm:$0x1e]
  %v2828 = vrot.slane %v2826, 1
  %2830 = vst [vmem:[#allocation2 + $0x118] sm:$0xf] %v2828
  %v2831 = vld [vmem:[%s2515] sm:$0xf]
  %v2832 = vld [vmem:[%s2515 + $0x8] sm:$0xf]
  %v2835 = vrot.slane %v2831, 4
  %v2836 = vrot.slane %v2832, 4
  %2839 = vst [vmem:[#allocation2 + $0xd8] sm:$0xf0] %v2835
  %2840 = vst [vmem:[#allocation2 + $0xe0] sm:$0xf0] %v2836
  %v2841 = vld [vmem:[%s2515] sm:$0x1e]
  %v2843 = vrot.slane %v2841, 5
  %2845 = vst [vmem:[#allocation2 + $0xe8] sm:$0xf0] %v2843
  %v2846 = vld [vmem:[%s2539] sm:$0xf]
  %v2847 = vld [vmem:[%s2539 + $0x8] sm:$0xf]
  %v2850 = vrot.slane %v2846, 4
  %v2851 = vrot.slane %v2847, 4
  %2854 = vst [vmem:[#allocation2 + $0xf0] sm:$0xf0] %v2850
  %2855 = vst [vmem:[#allocation2 + $0xf8] sm:$0xf0] %v2851
  %v2856 = vld [vmem:[%s2539] sm:$0x1e]
  %v2858 = vrot.slane %v2856, 5
  %2860 = vst [vmem:[#allocation2 + $0x100] sm:$0xf0] %v2858
  %v2861 = vld [vmem:[%s2563] sm:$0xf]
  %v2862 = vld [vmem:[%s2563 + $0x8] sm:$0xf]
  %v2865 = vrot.slane %v2861, 4
  %v2866 = vrot.slane %v2862, 4
  %2869 = vst [vmem:[#allocation2 + $0x108] sm:$0xf0] %v2865
  %2870 = vst [vmem:[#allocation2 + $0x110] sm:$0xf0] %v2866
  %v2871 = vld [vmem:[%s2563] sm:$0x1e]
  %v2873 = vrot.slane %v2871, 5
  %2875 = vst [vmem:[#allocation2 + $0x118] sm:$0xf0] %v2873
  %v2876 = vld [vmem:[#allocation2] sm:$0xff]
  %v2877 = vld [vmem:[#allocation2 + $0x8] sm:$0xff]
  %v2878 = vld [vmem:[#allocation2 + $0x10] sm:$0xff]
  %v2879 = vld [vmem:[#allocation2 + $0x18] sm:$0xff]
  %v2880 = vld [vmem:[#allocation2 + $0x20] sm:$0xff]
  %v2881 = vld [vmem:[#allocation2 + $0x28] sm:$0xff]
  %v2882 = vld [vmem:[#allocation2 + $0x30] sm:$0xff]
  %v2883 = vld [vmem:[#allocation2 + $0x38] sm:$0xff]
  %v2884 = vld [vmem:[#allocation2 + $0x40] sm:$0xff]
  %v2885 = vld [vmem:[#allocation2 + $0x48] sm:$0xff]
  %v2886 = vld [vmem:[#allocation2 + $0x50] sm:$0xff]
  %v2887 = vld [vmem:[#allocation2 + $0x58] sm:$0xff]
  %v2888 = vld [vmem:[#allocation2 + $0x60] sm:$0xff]
  %v2889 = vld [vmem:[#allocation2 + $0x68] sm:$0xff]
  %v2890 = vld [vmem:[#allocation2 + $0x70] sm:$0xff]
  %v2891 = vld [vmem:[#allocation2 + $0x78] sm:$0xff]
  %v2892 = vld [vmem:[#allocation2 + $0x80] sm:$0xff]
  %v2893 = vld [vmem:[#allocation2 + $0x88] sm:$0xff]
  %v2894 = vld [vmem:[#allocation2 + $0x90] sm:$0xff]
  %v2895 = vld [vmem:[#allocation2 + $0x98] sm:$0xff]
  %v2896 = vld [vmem:[#allocation2 + $0xa0] sm:$0xff]
  %v2897 = vld [vmem:[#allocation2 + $0xa8] sm:$0xff]
  %v2898 = vld [vmem:[#allocation2 + $0xb0] sm:$0xff]
  %v2899 = vld [vmem:[#allocation2 + $0xb8] sm:$0xff]
  %v2900 = vld [vmem:[#allocation2 + $0xc0] sm:$0xff]
  %v2901 = vld [vmem:[#allocation2 + $0xc8] sm:$0xff]
  %v2902 = vld [vmem:[#allocation2 + $0xd0] sm:$0xff]
  %v2903 = vld [vmem:[#allocation2 + $0xd8] sm:$0xff]
  %v2904 = vld [vmem:[#allocation2 + $0xe0] sm:$0xff]
  %v2905 = vld [vmem:[#allocation2 + $0xe8] sm:$0xff]
  %v2906 = vld [vmem:[#allocation2 + $0xf0] sm:$0xff]
  %v2907 = vld [vmem:[#allocation2 + $0xf8] sm:$0xff]
  %v2908 = vld [vmem:[#allocation2 + $0x100] sm:$0xff]
  %v2909 = vld [vmem:[#allocation2 + $0x108] sm:$0xff]
  %v2910 = vld [vmem:[#allocation2 + $0x110] sm:$0xff]
  %v2911 = vld [vmem:[#allocation2 + $0x118] sm:$0xff]
  %v2912 = vpack.c.bf16 %v2885, %v2876
  %v2913 = vpack.c.bf16 %v2886, %v2877
  %v2914 = vpack.c.bf16 %v2887, %v2878
  %v2915 = vpack.c.bf16 %v2888, %v2879
  %v2916 = vpack.c.bf16 %v2889, %v2880
  %v2917 = vpack.c.bf16 %v2890, %v2881
  %v2918 = vpack.c.bf16 %v2891, %v2882
  %v2919 = vpack.c.bf16 %v2892, %v2883
  %v2920 = vpack.c.bf16 %v2893, %v2884
  %v2921 = vpack.c.bf16 %v2903, %v2894
  %v2922 = vpack.c.bf16 %v2904, %v2895
  %v2923 = vpack.c.bf16 %v2905, %v2896
  %v2924 = vpack.c.bf16 %v2906, %v2897
  %v2925 = vpack.c.bf16 %v2907, %v2898
  %v2926 = vpack.c.bf16 %v2908, %v2899
  %v2927 = vpack.c.bf16 %v2909, %v2900
  %v2928 = vpack.c.bf16 %v2910, %v2901
  %v2929 = vpack.c.bf16 %v2911, %v2902
  %v2930 = vld [vmem:[%s5] sm:$0xf]
  %v2931 = vld [vmem:[%s5 + $0x4] sm:$0xf]
  %v2932 = vld [vmem:[%s5 + $0x8] sm:$0xf]
  %v2933 = vld [vmem:[%s5 + $0xc] sm:$0xf]
  %v2934 = vld [vmem:[%s5 + $0x10] sm:$0xf]
  %v2935 = vld [vmem:[%s5 + $0x14] sm:$0xf]
  %v2936 = vld [vmem:[%s5 + $0x18] sm:$0xf]
  %v2937 = vld [vmem:[%s5 + $0x1c] sm:$0xf]
  %v2938 = vld [vmem:[%s5 + $0x20] sm:$0xf]
  %v2939 = vld [vmem:[%s5 + $0x24] sm:$0xf]
  %v2940 = vld [vmem:[%s5 + $0x28] sm:$0xf]
  %v2941 = vld [vmem:[%s5 + $0x2c] sm:$0xf]
  %v2942 = vld [vmem:[%s5 + $0x30] sm:$0xf]
  %v2943 = vld [vmem:[%s5 + $0x34] sm:$0xf]
  %v2944 = vld [vmem:[%s5 + $0x38] sm:$0xf]
  %v2945 = vld [vmem:[%s5 + $0x3c] sm:$0xf]
  %v2946 = vld [vmem:[%s5 + $0x40] sm:$0xf]
  %v2947 = vld [vmem:[%s5 + $0x44] sm:$0xf]
  %v2948 = vld [vmem:[%s5 + $0x48] sm:$0xf]
  %v2949 = vld [vmem:[%s5 + $0x4c] sm:$0xf]
  %v2950 = vld [vmem:[%s5 + $0x50] sm:$0xf]
  %v2951 = vld [vmem:[%s5 + $0x54] sm:$0xf]
  %v2952 = vld [vmem:[%s5 + $0x58] sm:$0xf]
  %v2953 = vld [vmem:[%s5 + $0x5c] sm:$0xf]
  %v2954 = vld [vmem:[%s5 + $0x60] sm:$0xf]
  %v2955 = vld [vmem:[%s5 + $0x64] sm:$0xf]
  %v2956 = vld [vmem:[%s5 + $0x68] sm:$0xf]
  %v2957 = vld [vmem:[%s5 + $0x6c] sm:$0xf]
  %v2958 = vld [vmem:[%s5 + $0x70] sm:$0xf]
  %v2959 = vld [vmem:[%s5 + $0x74] sm:$0xf]
  %v2960 = vld [vmem:[%s5 + $0x78] sm:$0xf]
  %v2961 = vld [vmem:[%s5 + $0x7c] sm:$0xf]
  %v2962 = vld [vmem:[%s5 + $0x80] sm:$0xf]
  %v2963 = vld [vmem:[%s5 + $0x84] sm:$0xf]
  %v2964 = vld [vmem:[%s5 + $0x88] sm:$0xf]
  %v2965 = vld [vmem:[%s5 + $0x8c] sm:$0xf]
  %v2966 = vld [vmem:[%s5 + $0x90] sm:$0xf]
  %v2967 = vld [vmem:[%s5 + $0x94] sm:$0xf]
  %v2968 = vld [vmem:[%s5 + $0x98] sm:$0xf]
  %v2969 = vld [vmem:[%s5 + $0x9c] sm:$0xf]
  %v2970 = vld [vmem:[%s5 + $0xa0] sm:$0xf]
  %v2971 = vld [vmem:[%s5 + $0xa4] sm:$0xf]
  %v2972 = vld [vmem:[%s5 + $0xa8] sm:$0xf]
  %v2973 = vld [vmem:[%s5 + $0xac] sm:$0xf]
  %v2974 = vld [vmem:[%s5 + $0xb0] sm:$0xf]
  %v2975 = vld [vmem:[%s5 + $0xb4] sm:$0xf]
  %v2976 = vld [vmem:[%s5 + $0xb8] sm:$0xf]
  %v2977 = vld [vmem:[%s5 + $0xbc] sm:$0xf]
  %v2978 = vld [vmem:[%s5 + $0xc0] sm:$0xf]
  %v2979 = vld [vmem:[%s5 + $0xc4] sm:$0xf]
  %v2980 = vld [vmem:[%s5 + $0xc8] sm:$0xf]
  %v2981 = vld [vmem:[%s5 + $0xcc] sm:$0xf]
  %v2982 = vld [vmem:[%s5 + $0xd0] sm:$0xf]
  %v2983 = vld [vmem:[%s5 + $0xd4] sm:$0xf]
  %v2984 = vld [vmem:[%s5 + $0xd8] sm:$0xf]
  %v2985 = vld [vmem:[%s5 + $0xdc] sm:$0xf]
  %v2986 = vld [vmem:[%s5 + $0xe0] sm:$0xf]
  %v2987 = vld [vmem:[%s5 + $0xe4] sm:$0xf]
  %v2988 = vld [vmem:[%s5 + $0xe8] sm:$0xf]
  %v2989 = vld [vmem:[%s5 + $0xec] sm:$0xf]
  %v2990 = vld [vmem:[%s5 + $0xf0] sm:$0xf]
  %v2991 = vld [vmem:[%s5 + $0xf4] sm:$0xf]
  %v2992 = vld [vmem:[%s5 + $0xf8] sm:$0xf]
  %v2993 = vld [vmem:[%s5 + $0xfc] sm:$0xf]
  %v2994 = vld [vmem:[%s5 + $0x100] sm:$0xf]
  %v2995 = vld [vmem:[%s5 + $0x104] sm:$0xf]
  %v2996 = vld [vmem:[%s5 + $0x108] sm:$0xf]
  %v2997 = vld [vmem:[%s5 + $0x10c] sm:$0xf]
  %v2998 = vld [vmem:[%s5 + $0x110] sm:$0xf]
  %v2999 = vld [vmem:[%s5 + $0x114] sm:$0xf]
  %v3000 = vld [vmem:[%s5 + $0x118] sm:$0xf]
  %v3001 = vld [vmem:[%s5 + $0x11c] sm:$0xf]
  %v3002 = vld [vmem:[%s5 + $0x120] sm:$0xf]
  %v3003 = vld [vmem:[%s5 + $0x124] sm:$0xf]
  %v3004 = vld [vmem:[%s5 + $0x128] sm:$0xf]
  %v3005 = vld [vmem:[%s5 + $0x12c] sm:$0xf]
  %v3006 = vld [vmem:[%s5 + $0x130] sm:$0xf]
  %v3007 = vld [vmem:[%s5 + $0x134] sm:$0xf]
  %v3008 = vld [vmem:[%s5 + $0x138] sm:$0xf]
  %v3009 = vld [vmem:[%s5 + $0x13c] sm:$0xf]
  %v3010 = vld [vmem:[%s5 + $0x140] sm:$0xf]
  %v3011 = vld [vmem:[%s5 + $0x144] sm:$0xf]
  %v3012 = vld [vmem:[%s5 + $0x148] sm:$0xf]
  %v3013 = vld [vmem:[%s5 + $0x14c] sm:$0xf]
  %v3014 = vld [vmem:[%s5 + $0x150] sm:$0xf]
  %v3015 = vld [vmem:[%s5 + $0x154] sm:$0xf]
  %v3016 = vld [vmem:[%s5 + $0x158] sm:$0xf]
  %v3017 = vld [vmem:[%s5 + $0x15c] sm:$0xf]
  %v3018 = vld [vmem:[%s5 + $0x160] sm:$0xf]
  %v3019 = vld [vmem:[%s5 + $0x164] sm:$0xf]
  %v3020 = vld [vmem:[%s5 + $0x168] sm:$0xf]
  %v3021 = vld [vmem:[%s5 + $0x16c] sm:$0xf]
  %v3022 = vld [vmem:[%s5 + $0x170] sm:$0xf]
  %v3023 = vld [vmem:[%s5 + $0x174] sm:$0xf]
  %v3024 = vld [vmem:[%s5 + $0x178] sm:$0xf]
  %v3025 = vld [vmem:[%s5 + $0x17c] sm:$0xf]
  %v3026 = vld [vmem:[%s5 + $0x180] sm:$0xf]
  %v3027 = vld [vmem:[%s5 + $0x184] sm:$0xf]
  %v3028 = vld [vmem:[%s5 + $0x188] sm:$0xf]
  %v3029 = vld [vmem:[%s5 + $0x18c] sm:$0xf]
  %v3030 = vld [vmem:[%s5 + $0x190] sm:$0xf]
  %v3031 = vld [vmem:[%s5 + $0x194] sm:$0xf]
  %v3032 = vld [vmem:[%s5 + $0x198] sm:$0xf]
  %v3033 = vld [vmem:[%s5 + $0x19c] sm:$0xf]
  %v3034 = vld [vmem:[%s5 + $0x1a0] sm:$0xf]
  %v3035 = vld [vmem:[%s5 + $0x1a4] sm:$0xf]
  %v3036 = vld [vmem:[%s5 + $0x1a8] sm:$0xf]
  %v3037 = vld [vmem:[%s5 + $0x1ac] sm:$0xf]
  %v3038 = vld [vmem:[%s5 + $0x1b0] sm:$0xf]
  %v3039 = vld [vmem:[%s5 + $0x1b4] sm:$0xf]
  %v3040 = vld [vmem:[%s5 + $0x1b8] sm:$0xf]
  %v3041 = vld [vmem:[%s5 + $0x1bc] sm:$0xf]
  %v3042 = vld [vmem:[%s5 + $0x1c0] sm:$0xf]
  %v3043 = vld [vmem:[%s5 + $0x1c4] sm:$0xf]
  %v3044 = vld [vmem:[%s5 + $0x1c8] sm:$0xf]
  %v3045 = vld [vmem:[%s5 + $0x1cc] sm:$0xf]
  %v3046 = vld [vmem:[%s5 + $0x1d0] sm:$0xf]
  %v3047 = vld [vmem:[%s5 + $0x1d4] sm:$0xf]
  %v3048 = vld [vmem:[%s5 + $0x1d8] sm:$0xf]
  %v3049 = vld [vmem:[%s5 + $0x1dc] sm:$0xf]
  %v3050 = vld [vmem:[%s5 + $0x1e0] sm:$0xf]
  %v3051 = vld [vmem:[%s5 + $0x1e4] sm:$0xf]
  %v3052 = vld [vmem:[%s5 + $0x1e8] sm:$0xf]
  %v3053 = vld [vmem:[%s5 + $0x1ec] sm:$0xf]
  %v3054 = vld [vmem:[%s5 + $0x1f0] sm:$0xf]
  %v3055 = vld [vmem:[%s5 + $0x1f4] sm:$0xf]
  %v3056 = vld [vmem:[%s5 + $0x1f8] sm:$0xf]
  %v3057 = vld [vmem:[%s5 + $0x1fc] sm:$0xf]
  %v3058 = vld [vmem:[%s5 + $0x200] sm:$0xf]
  %v3059 = vld [vmem:[%s5 + $0x204] sm:$0xf]
  %v3060 = vld [vmem:[%s5 + $0x208] sm:$0xf]
  %v3061 = vld [vmem:[%s5 + $0x20c] sm:$0xf]
  %v3062 = vld [vmem:[%s5 + $0x210] sm:$0xf]
  %v3063 = vld [vmem:[%s5 + $0x214] sm:$0xf]
  %v3064 = vld [vmem:[%s5 + $0x218] sm:$0xf]
  %v3065 = vld [vmem:[%s5 + $0x21c] sm:$0xf]
  %v3066 = vld [vmem:[%s5 + $0x220] sm:$0xf]
  %v3067 = vld [vmem:[%s5 + $0x224] sm:$0xf]
  %v3068 = vld [vmem:[%s5 + $0x228] sm:$0xf]
  %v3069 = vld [vmem:[%s5 + $0x22c] sm:$0xf]
  %v3070 = vld [vmem:[%s5 + $0x230] sm:$0xf]
  %v3071 = vld [vmem:[%s5 + $0x234] sm:$0xf]
  %v3072 = vld [vmem:[%s5 + $0x238] sm:$0xf]
  %v3073 = vld [vmem:[%s5 + $0x23c] sm:$0xf]
  %v3074 = vld [vmem:[%s6] sm:$0x1]
  %v3076 = vlaneseq
  %v3077 = vshrl.u32 %v3076, 7
  %v3078 = vsub.s32 0, %v3077
  %v3079 = vrot.slane %v3074, %v3078
  %v3225 = vunpack.c.l.b16 %v2930
  %v3226 = vunpack.c.l.b16 %v2931
  %v3227 = vunpack.c.l.b16 %v2932
  %v3228 = vunpack.c.l.b16 %v2933
  %v3229 = vunpack.c.l.b16 %v2934
  %v3230 = vunpack.c.l.b16 %v2935
  %v3231 = vunpack.c.l.b16 %v2936
  %v3232 = vunpack.c.l.b16 %v2937
  %v3233 = vunpack.c.l.b16 %v2938
  %v3234 = vunpack.c.l.b16 %v2939
  %v3235 = vunpack.c.l.b16 %v2940
  %v3236 = vunpack.c.l.b16 %v2941
  %v3237 = vunpack.c.l.b16 %v2942
  %v3238 = vunpack.c.l.b16 %v2943
  %v3239 = vunpack.c.l.b16 %v2944
  %v3240 = vunpack.c.l.b16 %v2945
  %v3241 = vunpack.c.l.b16 %v2946
  %v3242 = vunpack.c.l.b16 %v2947
  %v3243 = vunpack.c.l.b16 %v2948
  %v3244 = vunpack.c.l.b16 %v2949
  %v3245 = vunpack.c.l.b16 %v2950
  %v3246 = vunpack.c.l.b16 %v2951
  %v3247 = vunpack.c.l.b16 %v2952
  %v3248 = vunpack.c.l.b16 %v2953
  %v3249 = vunpack.c.l.b16 %v2954
  %v3250 = vunpack.c.l.b16 %v2955
  %v3251 = vunpack.c.l.b16 %v2956
  %v3252 = vunpack.c.l.b16 %v2957
  %v3253 = vunpack.c.l.b16 %v2958
  %v3254 = vunpack.c.l.b16 %v2959
  %v3255 = vunpack.c.l.b16 %v2960
  %v3256 = vunpack.c.l.b16 %v2961
  %v3257 = vunpack.c.l.b16 %v2962
  %v3258 = vunpack.c.l.b16 %v2963
  %v3259 = vunpack.c.l.b16 %v2964
  %v3260 = vunpack.c.l.b16 %v2965
  %v3261 = vunpack.c.l.b16 %v2966
  %v3262 = vunpack.c.l.b16 %v2967
  %v3263 = vunpack.c.l.b16 %v2968
  %v3264 = vunpack.c.l.b16 %v2969
  %v3265 = vunpack.c.l.b16 %v2970
  %v3266 = vunpack.c.l.b16 %v2971
  %v3267 = vunpack.c.l.b16 %v2972
  %v3268 = vunpack.c.l.b16 %v2973
  %v3269 = vunpack.c.l.b16 %v2974
  %v3270 = vunpack.c.l.b16 %v2975
  %v3271 = vunpack.c.l.b16 %v2976
  %v3272 = vunpack.c.l.b16 %v2977
  %v3273 = vunpack.c.l.b16 %v2978
  %v3274 = vunpack.c.l.b16 %v2979
  %v3275 = vunpack.c.l.b16 %v2980
  %v3276 = vunpack.c.l.b16 %v2981
  %v3277 = vunpack.c.l.b16 %v2982
  %v3278 = vunpack.c.l.b16 %v2983
  %v3279 = vunpack.c.l.b16 %v2984
  %v3280 = vunpack.c.l.b16 %v2985
  %v3281 = vunpack.c.l.b16 %v2986
  %v3282 = vunpack.c.l.b16 %v2987
  %v3283 = vunpack.c.l.b16 %v2988
  %v3284 = vunpack.c.l.b16 %v2989
  %v3285 = vunpack.c.l.b16 %v2990
  %v3286 = vunpack.c.l.b16 %v2991
  %v3287 = vunpack.c.l.b16 %v2992
  %v3288 = vunpack.c.l.b16 %v2993
  %v3289 = vunpack.c.l.b16 %v2994
  %v3290 = vunpack.c.l.b16 %v2995
  %v3291 = vunpack.c.l.b16 %v2996
  %v3292 = vunpack.c.l.b16 %v2997
  %v3293 = vunpack.c.l.b16 %v2998
  %v3294 = vunpack.c.l.b16 %v2999
  %v3295 = vunpack.c.l.b16 %v3000
  %v3296 = vunpack.c.l.b16 %v3001
  %v3297 = vunpack.c.l.b16 %v3002
  %v3298 = vunpack.c.l.b16 %v3003
  %v3299 = vunpack.c.l.b16 %v3004
  %v3300 = vunpack.c.l.b16 %v3005
  %v3301 = vunpack.c.l.b16 %v3006
  %v3302 = vunpack.c.l.b16 %v3007
  %v3303 = vunpack.c.l.b16 %v3008
  %v3304 = vunpack.c.l.b16 %v3009
  %v3305 = vunpack.c.l.b16 %v3010
  %v3306 = vunpack.c.l.b16 %v3011
  %v3307 = vunpack.c.l.b16 %v3012
  %v3308 = vunpack.c.l.b16 %v3013
  %v3309 = vunpack.c.l.b16 %v3014
  %v3310 = vunpack.c.l.b16 %v3015
  %v3311 = vunpack.c.l.b16 %v3016
  %v3312 = vunpack.c.l.b16 %v3017
  %v3313 = vunpack.c.l.b16 %v3018
  %v3314 = vunpack.c.l.b16 %v3019
  %v3315 = vunpack.c.l.b16 %v3020
  %v3316 = vunpack.c.l.b16 %v3021
  %v3317 = vunpack.c.l.b16 %v3022
  %v3318 = vunpack.c.l.b16 %v3023
  %v3319 = vunpack.c.l.b16 %v3024
  %v3320 = vunpack.c.l.b16 %v3025
  %v3321 = vunpack.c.l.b16 %v3026
  %v3322 = vunpack.c.l.b16 %v3027
  %v3323 = vunpack.c.l.b16 %v3028
  %v3324 = vunpack.c.l.b16 %v3029
  %v3325 = vunpack.c.l.b16 %v3030
  %v3326 = vunpack.c.l.b16 %v3031
  %v3327 = vunpack.c.l.b16 %v3032
  %v3328 = vunpack.c.l.b16 %v3033
  %v3329 = vunpack.c.l.b16 %v3034
  %v3330 = vunpack.c.l.b16 %v3035
  %v3331 = vunpack.c.l.b16 %v3036
  %v3332 = vunpack.c.l.b16 %v3037
  %v3333 = vunpack.c.l.b16 %v3038
  %v3334 = vunpack.c.l.b16 %v3039
  %v3335 = vunpack.c.l.b16 %v3040
  %v3336 = vunpack.c.l.b16 %v3041
  %v3337 = vunpack.c.l.b16 %v3042
  %v3338 = vunpack.c.l.b16 %v3043
  %v3339 = vunpack.c.l.b16 %v3044
  %v3340 = vunpack.c.l.b16 %v3045
  %v3341 = vunpack.c.l.b16 %v3046
  %v3342 = vunpack.c.l.b16 %v3047
  %v3343 = vunpack.c.l.b16 %v3048
  %v3344 = vunpack.c.l.b16 %v3049
  %v3345 = vunpack.c.l.b16 %v3050
  %v3346 = vunpack.c.l.b16 %v3051
  %v3347 = vunpack.c.l.b16 %v3052
  %v3348 = vunpack.c.l.b16 %v3053
  %v3349 = vunpack.c.l.b16 %v3054
  %v3350 = vunpack.c.l.b16 %v3055
  %v3351 = vunpack.c.l.b16 %v3056
  %v3352 = vunpack.c.l.b16 %v3057
  %v3353 = vunpack.c.l.b16 %v3058
  %v3354 = vunpack.c.l.b16 %v3059
  %v3355 = vunpack.c.l.b16 %v3060
  %v3356 = vunpack.c.l.b16 %v3061
  %v3357 = vunpack.c.l.b16 %v3062
  %v3358 = vunpack.c.l.b16 %v3063
  %v3359 = vunpack.c.l.b16 %v3064
  %v3360 = vunpack.c.l.b16 %v3065
  %v3361 = vunpack.c.l.b16 %v3066
  %v3362 = vunpack.c.l.b16 %v3067
  %v3363 = vunpack.c.l.b16 %v3068
  %v3364 = vunpack.c.l.b16 %v3069
  %v3365 = vunpack.c.l.b16 %v3070
  %v3366 = vunpack.c.l.b16 %v3071
  %v3367 = vunpack.c.l.b16 %v3072
  %v3368 = vunpack.c.l.b16 %v3073
  %v3369 = vpack.c.b16 %v3226, %v3225
  %v3370 = vpack.c.b16 %v3228, %v3227
  %v3371 = vpack.c.b16 %v3230, %v3229
  %v3372 = vpack.c.b16 %v3232, %v3231
  %v3373 = vpack.c.b16 %v3234, %v3233
  %v3374 = vpack.c.b16 %v3236, %v3235
  %v3375 = vpack.c.b16 %v3238, %v3237
  %v3376 = vpack.c.b16 %v3240, %v3239
  %v3377 = vpack.c.b16 %v3242, %v3241
  %v3378 = vpack.c.b16 %v3244, %v3243
  %v3379 = vpack.c.b16 %v3246, %v3245
  %v3380 = vpack.c.b16 %v3248, %v3247
  %v3381 = vpack.c.b16 %v3250, %v3249
  %v3382 = vpack.c.b16 %v3252, %v3251
  %v3383 = vpack.c.b16 %v3254, %v3253
  %v3384 = vpack.c.b16 %v3256, %v3255
  %v3385 = vpack.c.b16 %v3258, %v3257
  %v3386 = vpack.c.b16 %v3260, %v3259
  %v3387 = vpack.c.b16 %v3262, %v3261
  %v3388 = vpack.c.b16 %v3264, %v3263
  %v3389 = vpack.c.b16 %v3266, %v3265
  %v3390 = vpack.c.b16 %v3268, %v3267
  %v3391 = vpack.c.b16 %v3270, %v3269
  %v3392 = vpack.c.b16 %v3272, %v3271
  %v3393 = vpack.c.b16 %v3274, %v3273
  %v3394 = vpack.c.b16 %v3276, %v3275
  %v3395 = vpack.c.b16 %v3278, %v3277
  %v3396 = vpack.c.b16 %v3280, %v3279
  %v3397 = vpack.c.b16 %v3282, %v3281
  %v3398 = vpack.c.b16 %v3284, %v3283
  %v3399 = vpack.c.b16 %v3286, %v3285
  %v3400 = vpack.c.b16 %v3288, %v3287
  %v3401 = vpack.c.b16 %v3290, %v3289
  %v3402 = vpack.c.b16 %v3292, %v3291
  %v3403 = vpack.c.b16 %v3294, %v3293
  %v3404 = vpack.c.b16 %v3296, %v3295
  %v3405 = vpack.c.b16 %v3298, %v3297
  %v3406 = vpack.c.b16 %v3300, %v3299
  %v3407 = vpack.c.b16 %v3302, %v3301
  %v3408 = vpack.c.b16 %v3304, %v3303
  %v3409 = vpack.c.b16 %v3306, %v3305
  %v3410 = vpack.c.b16 %v3308, %v3307
  %v3411 = vpack.c.b16 %v3310, %v3309
  %v3412 = vpack.c.b16 %v3312, %v3311
  %v3413 = vpack.c.b16 %v3314, %v3313
  %v3414 = vpack.c.b16 %v3316, %v3315
  %v3415 = vpack.c.b16 %v3318, %v3317
  %v3416 = vpack.c.b16 %v3320, %v3319
  %v3417 = vpack.c.b16 %v3322, %v3321
  %v3418 = vpack.c.b16 %v3324, %v3323
  %v3419 = vpack.c.b16 %v3326, %v3325
  %v3420 = vpack.c.b16 %v3328, %v3327
  %v3421 = vpack.c.b16 %v3330, %v3329
  %v3422 = vpack.c.b16 %v3332, %v3331
  %v3423 = vpack.c.b16 %v3334, %v3333
  %v3424 = vpack.c.b16 %v3336, %v3335
  %v3425 = vpack.c.b16 %v3338, %v3337
  %v3426 = vpack.c.b16 %v3340, %v3339
  %v3427 = vpack.c.b16 %v3342, %v3341
  %v3428 = vpack.c.b16 %v3344, %v3343
  %v3429 = vpack.c.b16 %v3346, %v3345
  %v3430 = vpack.c.b16 %v3348, %v3347
  %v3431 = vpack.c.b16 %v3350, %v3349
  %v3432 = vpack.c.b16 %v3352, %v3351
  %v3433 = vpack.c.b16 %v3354, %v3353
  %v3434 = vpack.c.b16 %v3356, %v3355
  %v3435 = vpack.c.b16 %v3358, %v3357
  %v3436 = vpack.c.b16 %v3360, %v3359
  %v3437 = vpack.c.b16 %v3362, %v3361
  %v3438 = vpack.c.b16 %v3364, %v3363
  %v3439 = vpack.c.b16 %v3366, %v3365
  %v3440 = vpack.c.b16 %v3368, %v3367
  %3513 = vmatprep.subr.bf16.mxu0 0
  %3514 = vmatpush1.bf16.msra.mxu0 %v3369
  %3515 = vmatprep.subr.bf16.mxu0 0
  %3516 = vmatpush1.bf16.msra.mxu0 %v3370
  %3517 = vmatprep.subr.bf16.mxu0 0
  %3518 = vmatpush1.bf16.msra.mxu0 %v3371
  %3519 = vmatprep.subr.bf16.mxu0 0
  %3520 = vmatpush1.bf16.msra.mxu0 %v3372
  %3521 = vmatprep.subr.bf16.mxu0 0
  %3522 = vmatpush1.bf16.msra.mxu0 %v3373
  %3523 = vmatprep.subr.bf16.mxu0 0
  %3524 = vmatpush1.bf16.msra.mxu0 %v3374
  %3525 = vmatprep.subr.bf16.mxu0 0
  %3526 = vmatpush1.bf16.msra.mxu0 %v3375
  %3527 = vmatprep.subr.bf16.mxu0 0
  %3528 = vmatpush1.bf16.msra.mxu0 %v3376
  %3529 = vmatprep.subr.bf16.mxu0 0
  %3530 = vmatpush1.bf16.msra.mxu0 %v3377
  %3531 = vmatprep.subr.bf16.mxu0 0
  %3532 = vmatpush1.bf16.msra.mxu0 %v3378
  %3533 = vmatprep.subr.bf16.mxu0 0
  %3534 = vmatpush1.bf16.msra.mxu0 %v3379
  %3535 = vmatprep.subr.bf16.mxu0 0
  %3536 = vmatpush1.bf16.msra.mxu0 %v3380
  %3537 = vmatprep.subr.bf16.mxu0 0
  %3538 = vmatpush1.bf16.msra.mxu0 %v3381
  %3539 = vmatprep.subr.bf16.mxu0 0
  %3540 = vmatpush1.bf16.msra.mxu0 %v3382
  %3541 = vmatprep.subr.bf16.mxu0 0
  %3542 = vmatpush1.bf16.msra.mxu0 %v3383
  %3543 = vmatprep.subr.bf16.mxu0 0
  %3544 = vmatpush1.bf16.msra.mxu0 %v3384
  %3545 = vmatprep.mubr.bf16.mxu0 %v2913
  %3546 = vmatmul.mubr.bf16.gmra.mrb[0].mxu0 %v2912
  %v3547 = vpop.f32.mrb[0].mxu0
  %v3548 = vadd.f32 %v3079, %v3547
  %v3549 = vpop.f32.mrb[0].mxu0
  %v3550 = vpop.f32.mrb[0].mxu0
  %v3551 = vadd.f32 %v3079, %v3550
  %v3552 = vpop.f32.mrb[0].mxu0
  %3553 = vmatprep.mubr.bf16.mxu0 %v2922
  %3554 = vmatmul.mubr.bf16.gmra.mrb[0].mxu0 %v2921
  %v3555 = vpop.f32.mrb[0].mxu0
  %v3556 = vadd.f32 %v3079, %v3555
  %v3557 = vpop.f32.mrb[0].mxu0
  %v3558 = vpop.f32.mrb[0].mxu0
  %v3559 = vadd.f32 %v3079, %v3558
  %v3560 = vpop.f32.mrb[0].mxu0
  %3561 = vdwg.mxu0
  %3562 = vmatprep.subr.bf16.mxu0 0
  %3563 = vmatpush1.bf16.msra.mxu0 %v3385
  %3564 = vmatprep.subr.bf16.mxu0 0
  %3565 = vmatpush1.bf16.msra.mxu0 %v3386
  %3566 = vmatprep.subr.bf16.mxu0 0
  %3567 = vmatpush1.bf16.msra.mxu0 %v3387
  %3568 = vmatprep.subr.bf16.mxu0 0
  %3569 = vmatpush1.bf16.msra.mxu0 %v3388
  %3570 = vmatprep.subr.bf16.mxu0 0
  %3571 = vmatpush1.bf16.msra.mxu0 %v3389
  %3572 = vmatprep.subr.bf16.mxu0 0
  %3573 = vmatpush1.bf16.msra.mxu0 %v3390
  %3574 = vmatprep.subr.bf16.mxu0 0
  %3575 = vmatpush1.bf16.msra.mxu0 %v3391
  %3576 = vmatprep.subr.bf16.mxu0 0
  %3577 = vmatpush1.bf16.msra.mxu0 %v3392
  %3578 = vmatprep.subr.bf16.mxu0 0
  %3579 = vmatpush1.bf16.msra.mxu0 %v3393
  %3580 = vmatprep.subr.bf16.mxu0 0
  %3581 = vmatpush1.bf16.msra.mxu0 %v3394
  %3582 = vmatprep.subr.bf16.mxu0 0
  %3583 = vmatpush1.bf16.msra.mxu0 %v3395
  %3584 = vmatprep.subr.bf16.mxu0 0
  %3585 = vmatpush1.bf16.msra.mxu0 %v3396
  %3586 = vmatprep.subr.bf16.mxu0 0
  %3587 = vmatpush1.bf16.msra.mxu0 %v3397
  %3588 = vmatprep.subr.bf16.mxu0 0
  %3589 = vmatpush1.bf16.msra.mxu0 %v3398
  %3590 = vmatprep.subr.bf16.mxu0 0
  %3591 = vmatpush1.bf16.msra.mxu0 %v3399
  %3592 = vmatprep.subr.bf16.mxu0 0
  %3593 = vmatpush1.bf16.msra.mxu0 %v3400
  %3594 = vmatprep.mubr.bf16.mxu0 %v2915
  %3595 = vmatmul.mubr.bf16.gmra.mrb[0].mxu0 %v2914
  %v3596 = vpop.f32.mrb[0].mxu0
  %v3597 = vadd.f32 %v3548, %v3596
  %v3598 = vpop.f32.mrb[0].mxu0
  %v3599 = vpop.f32.mrb[0].mxu0
  %v3600 = vadd.f32 %v3551, %v3599
  %v3601 = vpop.f32.mrb[0].mxu0
  %3602 = vmatprep.mubr.bf16.mxu0 %v2924
  %3603 = vmatmul.mubr.bf16.gmra.mrb[0].mxu0 %v2923
  %v3604 = vpop.f32.mrb[0].mxu0
  %v3605 = vadd.f32 %v3556, %v3604
  %v3606 = vpop.f32.mrb[0].mxu0
  %v3607 = vpop.f32.mrb[0].mxu0
  %v3608 = vadd.f32 %v3559, %v3607
  %v3609 = vpop.f32.mrb[0].mxu0
  %3610 = vdwg.mxu0
  %3611 = vmatprep.subr.bf16.mxu0 0
  %3612 = vmatpush1.bf16.msra.mxu0 %v3401
  %3613 = vmatprep.subr.bf16.mxu0 0
  %3614 = vmatpush1.bf16.msra.mxu0 %v3402
  %3615 = vmatprep.subr.bf16.mxu0 0
  %3616 = vmatpush1.bf16.msra.mxu0 %v3403
  %3617 = vmatprep.subr.bf16.mxu0 0
  %3618 = vmatpush1.bf16.msra.mxu0 %v3404
  %3619 = vmatprep.subr.bf16.mxu0 0
  %3620 = vmatpush1.bf16.msra.mxu0 %v3405
  %3621 = vmatprep.subr.bf16.mxu0 0
  %3622 = vmatpush1.bf16.msra.mxu0 %v3406
  %3623 = vmatprep.subr.bf16.mxu0 0
  %3624 = vmatpush1.bf16.msra.mxu0 %v3407
  %3625 = vmatprep.subr.bf16.mxu0 0
  %3626 = vmatpush1.bf16.msra.mxu0 %v3408
  %3627 = vmatprep.subr.bf16.mxu0 0
  %3628 = vmatpush1.bf16.msra.mxu0 %v3409
  %3629 = vmatprep.subr.bf16.mxu0 0
  %3630 = vmatpush1.bf16.msra.mxu0 %v3410
  %3631 = vmatprep.subr.bf16.mxu0 0
  %3632 = vmatpush1.bf16.msra.mxu0 %v3411
  %3633 = vmatprep.subr.bf16.mxu0 0
  %3634 = vmatpush1.bf16.msra.mxu0 %v3412
  %3635 = vmatprep.subr.bf16.mxu0 0
  %3636 = vmatpush1.bf16.msra.mxu0 %v3413
  %3637 = vmatprep.subr.bf16.mxu0 0
  %3638 = vmatpush1.bf16.msra.mxu0 %v3414
  %3639 = vmatprep.subr.bf16.mxu0 0
  %3640 = vmatpush1.bf16.msra.mxu0 %v3415
  %3641 = vmatprep.subr.bf16.mxu0 0
  %3642 = vmatpush1.bf16.msra.mxu0 %v3416
  %3643 = vmatprep.mubr.bf16.mxu0 %v2917
  %3644 = vmatmul.mubr.bf16.gmra.mrb[0].mxu0 %v2916
  %v3645 = vpop.f32.mrb[0].mxu0
  %v3646 = vadd.f32 %v3597, %v3645
  %v3647 = vpop.f32.mrb[0].mxu0
  %v3648 = vpop.f32.mrb[0].mxu0
  %v3649 = vadd.f32 %v3600, %v3648
  %v3650 = vpop.f32.mrb[0].mxu0
  %3651 = vmatprep.mubr.bf16.mxu0 %v2926
  %3652 = vmatmul.mubr.bf16.gmra.mrb[0].mxu0 %v2925
  %v3653 = vpop.f32.mrb[0].mxu0
  %v3654 = vadd.f32 %v3605, %v3653
  %v3655 = vpop.f32.mrb[0].mxu0
  %v3656 = vpop.f32.mrb[0].mxu0
  %v3657 = vadd.f32 %v3608, %v3656
  %v3658 = vpop.f32.mrb[0].mxu0
  %3659 = vdwg.mxu0
  %3660 = vmatprep.subr.bf16.mxu0 0
  %3661 = vmatpush1.bf16.msra.mxu0 %v3417
  %3662 = vmatprep.subr.bf16.mxu0 0
  %3663 = vmatpush1.bf16.msra.mxu0 %v3418
  %3664 = vmatprep.subr.bf16.mxu0 0
  %3665 = vmatpush1.bf16.msra.mxu0 %v3419
  %3666 = vmatprep.subr.bf16.mxu0 0
  %3667 = vmatpush1.bf16.msra.mxu0 %v3420
  %3668 = vmatprep.subr.bf16.mxu0 0
  %3669 = vmatpush1.bf16.msra.mxu0 %v3421
  %3670 = vmatprep.subr.bf16.mxu0 0
  %3671 = vmatpush1.bf16.msra.mxu0 %v3422
  %3672 = vmatprep.subr.bf16.mxu0 0
  %3673 = vmatpush1.bf16.msra.mxu0 %v3423
  %3674 = vmatprep.subr.bf16.mxu0 0
  %3675 = vmatpush1.bf16.msra.mxu0 %v3424
  %3676 = vmatprep.subr.bf16.mxu0 0
  %3677 = vmatpush1.bf16.msra.mxu0 %v3425
  %3678 = vmatprep.subr.bf16.mxu0 0
  %3679 = vmatpush1.bf16.msra.mxu0 %v3426
  %3680 = vmatprep.subr.bf16.mxu0 0
  %3681 = vmatpush1.bf16.msra.mxu0 %v3427
  %3682 = vmatprep.subr.bf16.mxu0 0
  %3683 = vmatpush1.bf16.msra.mxu0 %v3428
  %3684 = vmatprep.subr.bf16.mxu0 0
  %3685 = vmatpush1.bf16.msra.mxu0 %v3429
  %3686 = vmatprep.subr.bf16.mxu0 0
  %3687 = vmatpush1.bf16.msra.mxu0 %v3430
  %3688 = vmatprep.subr.bf16.mxu0 0
  %3689 = vmatpush1.bf16.msra.mxu0 %v3431
  %3690 = vmatprep.subr.bf16.mxu0 0
  %3691 = vmatpush1.bf16.msra.mxu0 %v3432
  %3692 = vmatprep.mubr.bf16.mxu0 %v2919
  %3693 = vmatmul.mubr.bf16.gmra.mrb[0].mxu0 %v2918
  %v3694 = vpop.f32.mrb[0].mxu0
  %v3695 = vadd.f32 %v3646, %v3694
  %v3696 = vpop.f32.mrb[0].mxu0
  %v3697 = vpop.f32.mrb[0].mxu0
  %v3698 = vadd.f32 %v3649, %v3697
  %v3699 = vpop.f32.mrb[0].mxu0
  %3700 = vmatprep.mubr.bf16.mxu0 %v2928
  %3701 = vmatmul.mubr.bf16.gmra.mrb[0].mxu0 %v2927
  %v3702 = vpop.f32.mrb[0].mxu0
  %v3703 = vadd.f32 %v3654, %v3702
  %v3704 = vpop.f32.mrb[0].mxu0
  %v3705 = vpop.f32.mrb[0].mxu0
  %v3706 = vadd.f32 %v3657, %v3705
  %v3707 = vpop.f32.mrb[0].mxu0
  %3708 = vdwg.mxu0
  %3709 = vmatprep.subr.bf16.mxu0 0
  %3710 = vmatpush1.bf16.msra.mxu0 %v3433
  %3711 = vmatprep.subr.bf16.mxu0 0
  %3712 = vmatpush1.bf16.msra.mxu0 %v3434
  %3713 = vmatprep.subr.bf16.mxu0 0
  %3714 = vmatpush1.bf16.msra.mxu0 %v3435
  %3715 = vmatprep.subr.bf16.mxu0 0
  %3716 = vmatpush1.bf16.msra.mxu0 %v3436
  %3717 = vmatprep.subr.bf16.mxu0 0
  %3718 = vmatpush1.bf16.msra.mxu0 %v3437
  %3719 = vmatprep.subr.bf16.mxu0 0
  %3720 = vmatpush1.bf16.msra.mxu0 %v3438
  %3721 = vmatprep.subr.bf16.mxu0 0
  %3722 = vmatpush1.bf16.msra.mxu0 %v3439
  %3723 = vmatprep.subr.bf16.mxu0 0
  %3724 = vmatpush1.bf16.msra.mxu0 %v3440
  %3725 = vmatprep.subr.bf16.mxu0 0
  %3726 = vmatpush1.bf16.msra.mxu0 0
  %3727 = vmatprep.subr.bf16.mxu0 0
  %3728 = vmatpush1.bf16.msra.mxu0 0
  %3729 = vmatprep.subr.bf16.mxu0 0
  %3730 = vmatpush1.bf16.msra.mxu0 0
  %3731 = vmatprep.subr.bf16.mxu0 0
  %3732 = vmatpush1.bf16.msra.mxu0 0
  %3733 = vmatprep.subr.bf16.mxu0 0
  %3734 = vmatpush1.bf16.msra.mxu0 0
  %3735 = vmatprep.subr.bf16.mxu0 0
  %3736 = vmatpush1.bf16.msra.mxu0 0
  %3737 = vmatprep.subr.bf16.mxu0 0
  %3738 = vmatpush1.bf16.msra.mxu0 0
  %3739 = vmatprep.subr.bf16.mxu0 0
  %3740 = vmatpush1.bf16.msra.mxu0 0
  %3741 = vmatprep.mubr.bf16.mxu0 0
  %3742 = vmatmul.mubr.bf16.gmra.mrb[0].mxu0 %v2920
  %v3743 = vpop.f32.mrb[0].mxu0
  %v3744 = vadd.f32 %v3695, %v3743
  %v3745 = vpop.f32.mrb[0].mxu0
  %v3746 = vpop.f32.mrb[0].mxu0
  %v3747 = vadd.f32 %v3698, %v3746
  %v3748 = vpop.f32.mrb[0].mxu0
  %3749 = vmatprep.mubr.bf16.mxu0 0
  %3750 = vmatmul.mubr.bf16.gmra.mrb[0].mxu0 %v2929
  %v3751 = vpop.f32.mrb[0].mxu0
  %v3752 = vadd.f32 %v3703, %v3751
  %v3753 = vpop.f32.mrb[0].mxu0
  %v3754 = vpop.f32.mrb[0].mxu0
  %v3755 = vadd.f32 %v3706, %v3754
  %v3756 = vpop.f32.mrb[0].mxu0
  %3757 = vdwg.mxu0
  %v3758 = vmax.f32 %v3744, 0.0
  %v3759 = vmax.f32 %v3747, 0.0
  %v3760 = vmax.f32 %v3752, 0.0
  %v3761 = vmax.f32 %v3755, 0.0
  %v3762 = vadd.f32 %v3758, %v3759
  %v3763 = vadd.f32 %v3762, %v3760
  %v3764 = vadd.f32 %v3763, %v3761
  %v3765 = vrot.slane %v3764, 4
  %v3766 = vadd.f32 %v3764, %v3765
  %v3767 = vrot.slane %v3766, 2
  %v3768 = vadd.f32 %v3766, %v3767
  %v3769 = vrot.slane %v3768, 1
  %v3770 = vadd.f32 %v3768, %v3769
  %v3771 = vrcp.pop 32.0
  %v3772 = vmul.f32 %v3770, %v3771
  %v3773 = vsub.f32 %v3758, %v3772
  %v3774 = vsub.f32 %v3759, %v3772
  %v3775 = vsub.f32 %v3760, %v3772
  %v3776 = vsub.f32 %v3761, %v3772
  %v3777 = vmul.f32 %v3773, %v3773
  %v3778 = vmul.f32 %v3774, %v3774
  %v3779 = vmul.f32 %v3775, %v3775
  %v3780 = vmul.f32 %v3776, %v3776
  %v3781 = vadd.f32 %v3777, %v3778
  %v3782 = vadd.f32 %v3781, %v3779
  %v3783 = vadd.f32 %v3782, %v3780
  %v3784 = vrot.slane %v3783, 4
  %v3785 = vadd.f32 %v3783, %v3784
  %v3786 = vrot.slane %v3785, 2
  %v3787 = vadd.f32 %v3785, %v3786
  %v3788 = vrot.slane %v3787, 1
  %v3789 = vadd.f32 %v3787, %v3788
  %v3790 = vmul.f32 %v3789, %v3771
  %v3791 = vld [vmem:[%s7] sm:$0x1]
  %v3792 = vadd.f32 %v3790, 1e-05
  %v3793 = vrsqrt.pop %v3792
  %v3794 = vmul.f32 %v3791, %v3793
  %v3795 = vld [vmem:[%s8] sm:$0x1]
  %v3796 = vmul.f32 %v3772, %v3794
  %v3797 = vsub.f32 %v3795, %v3796
  %v3799 = vlaneseq
  %v3800 = vshrl.u32 %v3799, 7
  %v3801 = vsub.s32 0, %v3800
  %v3802 = vrot.slane %v3794, %v3801
  %v3804 = vmul.f32 %v3758, %v3802
  %v3805 = vmul.f32 %v3759, %v3802
  %v3806 = vmul.f32 %v3760, %v3802
  %v3807 = vmul.f32 %v3761, %v3802
  %v3809 = vlaneseq
  %v3810 = vshrl.u32 %v3809, 7
  %v3811 = vsub.s32 0, %v3810
  %v3812 = vrot.slane %v3797, %v3811
  %v3814 = vadd.f32 %v3804, %v3812
  %v3815 = vadd.f32 %v3805, %v3812
  %v3816 = vadd.f32 %v3806, %v3812
  %v3817 = vadd.f32 %v3807, %v3812
  %s3818 = scalar_lea.vmem [#allocation4], 8
  %3819 = vst [vmem:[%s3818 + $0x4] sm:$0x1] %v3814
  %v3821 = vrot.slane %v3814, 5
  %v3822 = vrot.slane %v3821, 4
  %3824 = vst [vmem:[%s3818 + $0x1] sm:$0x1] %v3822
  %v3825 = vrot.slane %v3814, 6
  %v3826 = vrot.slane %v3825, 4
  %3828 = vst [vmem:[%s3818 + $0x5] sm:$0x1] %v3826
  %v3829 = vrot.slane %v3814, 7
  %v3830 = vrot.slane %v3829, 4
  %3832 = vst [vmem:[%s3818 + $0x2] sm:$0x1] %v3830
  %v3833 = vcombine.high %v3814, %v3814
  %s3835 = scalar_lea.vmem [#allocation4], 16
  %3836 = vst [vmem:[%s3835 + $0x4] sm:$0x1] %v3833
  %v3837 = vrot.slane %v3833, 5
  %v3838 = vrot.slane %v3837, 4
  %3840 = vst [vmem:[%s3835 + $0x1] sm:$0x1] %v3838
  %v3841 = vrot.slane %v3833, 6
  %v3842 = vrot.slane %v3841, 4
  %3844 = vst [vmem:[%s3835 + $0x5] sm:$0x1] %v3842
  %v3845 = vrot.slane %v3833, 7
  %v3846 = vrot.slane %v3845, 4
  %3848 = vst [vmem:[%s3835 + $0x2] sm:$0x1] %v3846
  %s3849 = scalar_lea.vmem [#allocation4], 24
  %3850 = vst [vmem:[%s3849 + $0x4] sm:$0x1] %v3815
  %v3852 = vrot.slane %v3815, 5
  %v3853 = vrot.slane %v3852, 4
  %3855 = vst [vmem:[%s3849 + $0x1] sm:$0x1] %v3853
  %v3856 = vrot.slane %v3815, 6
  %v3857 = vrot.slane %v3856, 4
  %3859 = vst [vmem:[%s3849 + $0x5] sm:$0x1] %v3857
  %v3860 = vrot.slane %v3815, 7
  %v3861 = vrot.slane %v3860, 4
  %3863 = vst [vmem:[%s3849 + $0x2] sm:$0x1] %v3861
  %v3864 = vcombine.high %v3815, %v3815
  %s3866 = scalar_lea.vmem [#allocation4], 32
  %3867 = vst [vmem:[%s3866 + $0x4] sm:$0x1] %v3864
  %v3868 = vrot.slane %v3864, 5
  %v3869 = vrot.slane %v3868, 4
  %3871 = vst [vmem:[%s3866 + $0x1] sm:$0x1] %v3869
  %v3872 = vrot.slane %v3864, 6
  %v3873 = vrot.slane %v3872, 4
  %3875 = vst [vmem:[%s3866 + $0x5] sm:$0x1] %v3873
  %v3876 = vrot.slane %v3864, 7
  %v3877 = vrot.slane %v3876, 4
  %3879 = vst [vmem:[%s3866 + $0x2] sm:$0x1] %v3877
  %s3880 = scalar_lea.vmem [#allocation4], 56
  %3881 = vst [vmem:[%s3880 + $0x4] sm:$0x1] %v3816
  %v3883 = vrot.slane %v3816, 5
  %v3884 = vrot.slane %v3883, 4
  %3886 = vst [vmem:[%s3880 + $0x1] sm:$0x1] %v3884
  %v3887 = vrot.slane %v3816, 6
  %v3888 = vrot.slane %v3887, 4
  %3890 = vst [vmem:[%s3880 + $0x5] sm:$0x1] %v3888
  %v3891 = vrot.slane %v3816, 7
  %v3892 = vrot.slane %v3891, 4
  %3894 = vst [vmem:[%s3880 + $0x2] sm:$0x1] %v3892
  %v3895 = vcombine.high %v3816, %v3816
  %s3897 = scalar_lea.vmem [#allocation4], 64
  %3898 = vst [vmem:[%s3897 + $0x4] sm:$0x1] %v3895
  %v3899 = vrot.slane %v3895, 5
  %v3900 = vrot.slane %v3899, 4
  %3902 = vst [vmem:[%s3897 + $0x1] sm:$0x1] %v3900
  %v3903 = vrot.slane %v3895, 6
  %v3904 = vrot.slane %v3903, 4
  %3906 = vst [vmem:[%s3897 + $0x5] sm:$0x1] %v3904
  %v3907 = vrot.slane %v3895, 7
  %v3908 = vrot.slane %v3907, 4
  %3910 = vst [vmem:[%s3897 + $0x2] sm:$0x1] %v3908
  %s3911 = scalar_lea.vmem [#allocation4], 72
  %3912 = vst [vmem:[%s3911 + $0x4] sm:$0x1] %v3817
  %v3914 = vrot.slane %v3817, 5
  %v3915 = vrot.slane %v3914, 4
  %3917 = vst [vmem:[%s3911 + $0x1] sm:$0x1] %v3915
  %v3918 = vrot.slane %v3817, 6
  %v3919 = vrot.slane %v3918, 4
  %3921 = vst [vmem:[%s3911 + $0x5] sm:$0x1] %v3919
  %v3922 = vrot.slane %v3817, 7
  %v3923 = vrot.slane %v3922, 4
  %3925 = vst [vmem:[%s3911 + $0x2] sm:$0x1] %v3923
  %v3926 = vcombine.high %v3817, %v3817
  %s3928 = scalar_lea.vmem [#allocation4], 80
  %3929 = vst [vmem:[%s3928 + $0x4] sm:$0x1] %v3926
  %v3930 = vrot.slane %v3926, 5
  %v3931 = vrot.slane %v3930, 4
  %3933 = vst [vmem:[%s3928 + $0x1] sm:$0x1] %v3931
  %v3934 = vrot.slane %v3926, 6
  %v3935 = vrot.slane %v3934, 4
  %3937 = vst [vmem:[%s3928 + $0x5] sm:$0x1] %v3935
  %v3938 = vrot.slane %v3926, 7
  %v3939 = vrot.slane %v3938, 4
  %3941 = vst [vmem:[%s3928 + $0x2] sm:$0x1] %v3939
  %v3942 = vld [vmem:[#allocation4] sm:$0x33]
  %v3944 = vcombine.high %v3942, %v3942
  %3946 = vst [vmem:[#allocation2] sm:$0x3] %v3942
  %3947 = vst [vmem:[#allocation2 + $0x8] sm:$0x3] %v3944
  %v3948 = vld [vmem:[#allocation4] sm:$0x6]
  %v3950 = vrot.slane %v3948, 1
  %3952 = vst [vmem:[#allocation2 + $0x10] sm:$0x3] %v3950
  %v3953 = vld [vmem:[%s3818] sm:$0x33]
  %v3955 = vcombine.high %v3953, %v3953
  %3957 = vst [vmem:[#allocation2 + $0x18] sm:$0x3] %v3953
  %3958 = vst [vmem:[#allocation2 + $0x20] sm:$0x3] %v3955
  %v3959 = vld [vmem:[%s3818] sm:$0x6]
  %v3961 = vrot.slane %v3959, 1
  %3963 = vst [vmem:[#allocation2 + $0x28] sm:$0x3] %v3961
  %v3964 = vld [vmem:[%s3835] sm:$0x33]
  %v3966 = vcombine.high %v3964, %v3964
  %3968 = vst [vmem:[#allocation2 + $0x30] sm:$0x3] %v3964
  %3969 = vst [vmem:[#allocation2 + $0x38] sm:$0x3] %v3966
  %v3970 = vld [vmem:[%s3835] sm:$0x6]
  %v3972 = vrot.slane %v3970, 1
  %3974 = vst [vmem:[#allocation2 + $0x40] sm:$0x3] %v3972
  %v3975 = vld [vmem:[%s3835] sm:$0x33]
  %v3977 = vcombine.high %v3975, %v3975
  %v3978 = vrot.slane %v3975, 6
  %v3979 = vrot.slane %v3977, 6
  %3982 = vst [vmem:[#allocation2] sm:$0xc] %v3978
  %3983 = vst [vmem:[#allocation2 + $0x8] sm:$0xc] %v3979
  %v3984 = vld [vmem:[%s3835] sm:$0x6]
  %v3986 = vrot.slane %v3984, 7
  %3988 = vst [vmem:[#allocation2 + $0x10] sm:$0xc] %v3986
  %v3989 = vld [vmem:[%s3849] sm:$0x33]
  %v3991 = vcombine.high %v3989, %v3989
  %v3992 = vrot.slane %v3989, 6
  %v3993 = vrot.slane %v3991, 6
  %3996 = vst [vmem:[#allocation2 + $0x18] sm:$0xc] %v3992
  %3997 = vst [vmem:[#allocation2 + $0x20] sm:$0xc] %v3993
  %v3998 = vld [vmem:[%s3849] sm:$0x6]
  %v4000 = vrot.slane %v3998, 7
  %4002 = vst [vmem:[#allocation2 + $0x28] sm:$0xc] %v4000
  %v4003 = vld [vmem:[%s3866] sm:$0x33]
  %v4005 = vcombine.high %v4003, %v4003
  %v4006 = vrot.slane %v4003, 6
  %v4007 = vrot.slane %v4005, 6
  %4010 = vst [vmem:[#allocation2 + $0x30] sm:$0xc] %v4006
  %4011 = vst [vmem:[#allocation2 + $0x38] sm:$0xc] %v4007
  %v4012 = vld [vmem:[%s3866] sm:$0x6]
  %v4014 = vrot.slane %v4012, 7
  %4016 = vst [vmem:[#allocation2 + $0x40] sm:$0xc] %v4014
  %s4017 = scalar_lea.vmem [#allocation4], 48
  %v4018 = vld [vmem:[%s4017] sm:$0x33]
  %v4020 = vcombine.low %v4018, %v4018
  %4022 = vst [vmem:[#allocation2] sm:$0x30] %v4020
  %4023 = vst [vmem:[#allocation2 + $0x8] sm:$0x30] %v4018
  %v4024 = vld [vmem:[%s4017] sm:$0x6]
  %v4026 = vrot.slane %v4024, 5
  %4028 = vst [vmem:[#allocation2 + $0x10] sm:$0x30] %v4026
  %v4029 = vld [vmem:[%s3880] sm:$0x33]
  %v4031 = vcombine.low %v4029, %v4029
  %4033 = vst [vmem:[#allocation2 + $0x18] sm:$0x30] %v4031
  %4034 = vst [vmem:[#allocation2 + $0x20] sm:$0x30] %v4029
  %v4035 = vld [vmem:[%s3880] sm:$0x6]
  %v4037 = vrot.slane %v4035, 5
  %4039 = vst [vmem:[#allocation2 + $0x28] sm:$0x30] %v4037
  %v4040 = vld [vmem:[%s3897] sm:$0x33]
  %v4042 = vcombine.low %v4040, %v4040
  %4044 = vst [vmem:[#allocation2 + $0x30] sm:$0x30] %v4042
  %4045 = vst [vmem:[#allocation2 + $0x38] sm:$0x30] %v4040
  %v4046 = vld [vmem:[%s3897] sm:$0x6]
  %v4048 = vrot.slane %v4046, 5
  %4050 = vst [vmem:[#allocation2 + $0x40] sm:$0x30] %v4048
  %v4051 = vld [vmem:[%s3897] sm:$0x33]
  %v4053 = vcombine.high %v4051, %v4051
  %v4054 = vrot.slane %v4051, 2
  %v4055 = vrot.slane %v4053, 2
  %4058 = vst [vmem:[#allocation2] sm:$0xc0] %v4054
  %4059 = vst [vmem:[#allocation2 + $0x8] sm:$0xc0] %v4055
  %v4060 = vld [vmem:[%s3897] sm:$0x6]
  %v4062 = vrot.slane %v4060, 3
  %4064 = vst [vmem:[#allocation2 + $0x10] sm:$0xc0] %v4062
  %v4065 = vld [vmem:[%s3911] sm:$0x33]
  %v4067 = vcombine.high %v4065, %v4065
  %v4068 = vrot.slane %v4065, 2
  %v4069 = vrot.slane %v4067, 2
  %4072 = vst [vmem:[#allocation2 + $0x18] sm:$0xc0] %v4068
  %4073 = vst [vmem:[#allocation2 + $0x20] sm:$0xc0] %v4069
  %v4074 = vld [vmem:[%s3911] sm:$0x6]
  %v4076 = vrot.slane %v4074, 3
  %4078 = vst [vmem:[#allocation2 + $0x28] sm:$0xc0] %v4076
  %v4079 = vld [vmem:[%s3928] sm:$0x33]
  %v4081 = vcombine.high %v4079, %v4079
  %v4082 = vrot.slane %v4079, 2
  %v4083 = vrot.slane %v4081, 2
  %4086 = vst [vmem:[#allocation2 + $0x30] sm:$0xc0] %v4082
  %4087 = vst [vmem:[#allocation2 + $0x38] sm:$0xc0] %v4083
  %v4088 = vld [vmem:[%s3928] sm:$0x6]
  %v4090 = vrot.slane %v4088, 3
  %4092 = vst [vmem:[#allocation2 + $0x40] sm:$0xc0] %v4090
  %v4093 = vld [vmem:[#allocation2] sm:$0xff]
  %v4094 = vld [vmem:[#allocation2 + $0x8] sm:$0xff]
  %v4095 = vld [vmem:[#allocation2 + $0x10] sm:$0xff]
  %v4096 = vld [vmem:[#allocation2 + $0x18] sm:$0xff]
  %v4097 = vld [vmem:[#allocation2 + $0x20] sm:$0xff]
  %v4098 = vld [vmem:[#allocation2 + $0x28] sm:$0xff]
  %v4099 = vld [vmem:[#allocation2 + $0x30] sm:$0xff]
  %v4100 = vld [vmem:[#allocation2 + $0x38] sm:$0xff]
  %v4101 = vld [vmem:[#allocation2 + $0x40] sm:$0xff]
  %v4102 = vpack.c.bf16 %v4093, %v4093
  %v4103 = vpack.c.bf16 %v4094, %v4094
  %v4104 = vpack.c.bf16 %v4095, %v4095
  %v4105 = vpack.c.bf16 %v4096, %v4096
  %v4106 = vpack.c.bf16 %v4097, %v4097
  %v4107 = vpack.c.bf16 %v4098, %v4098
  %v4108 = vpack.c.bf16 %v4099, %v4099
  %v4109 = vpack.c.bf16 %v4100, %v4100
  %v4110 = vpack.c.bf16 %v4101, %v4101
  %v4111 = vld [vmem:[%s9] sm:$0xf]
  %v4112 = vld [vmem:[%s9 + $0x4] sm:$0xf]
  %v4113 = vld [vmem:[%s9 + $0x8] sm:$0xf]
  %v4114 = vld [vmem:[%s9 + $0xc] sm:$0xf]
  %v4115 = vld [vmem:[%s9 + $0x10] sm:$0xf]
  %v4116 = vld [vmem:[%s9 + $0x14] sm:$0xf]
  %v4117 = vld [vmem:[%s9 + $0x18] sm:$0xf]
  %v4118 = vld [vmem:[%s9 + $0x1c] sm:$0xf]
  %v4119 = vld [vmem:[%s9 + $0x20] sm:$0xf]
  %v4120 = vld [vmem:[%s9 + $0x24] sm:$0xf]
  %v4121 = vld [vmem:[%s9 + $0x28] sm:$0xf]
  %v4122 = vld [vmem:[%s9 + $0x2c] sm:$0xf]
  %v4123 = vld [vmem:[%s9 + $0x30] sm:$0xf]
  %v4124 = vld [vmem:[%s9 + $0x34] sm:$0xf]
  %v4125 = vld [vmem:[%s9 + $0x38] sm:$0xf]
  %v4126 = vld [vmem:[%s9 + $0x3c] sm:$0xf]
  %v4127 = vld [vmem:[%s9 + $0x40] sm:$0xf]
  %v4128 = vld [vmem:[%s9 + $0x44] sm:$0xf]
  %v4129 = vld [vmem:[%s9 + $0x48] sm:$0xf]
  %v4130 = vld [vmem:[%s9 + $0x4c] sm:$0xf]
  %v4131 = vld [vmem:[%s9 + $0x50] sm:$0xf]
  %v4132 = vld [vmem:[%s9 + $0x54] sm:$0xf]
  %v4133 = vld [vmem:[%s9 + $0x58] sm:$0xf]
  %v4134 = vld [vmem:[%s9 + $0x5c] sm:$0xf]
  %v4135 = vld [vmem:[%s9 + $0x60] sm:$0xf]
  %v4136 = vld [vmem:[%s9 + $0x64] sm:$0xf]
  %v4137 = vld [vmem:[%s9 + $0x68] sm:$0xf]
  %v4138 = vld [vmem:[%s9 + $0x6c] sm:$0xf]
  %v4139 = vld [vmem:[%s9 + $0x70] sm:$0xf]
  %v4140 = vld [vmem:[%s9 + $0x74] sm:$0xf]
  %v4141 = vld [vmem:[%s9 + $0x78] sm:$0xf]
  %v4142 = vld [vmem:[%s9 + $0x7c] sm:$0xf]
  %v4143 = vld [vmem:[%s9 + $0x80] sm:$0xf]
  %v4144 = vld [vmem:[%s9 + $0x84] sm:$0xf]
  %v4145 = vld [vmem:[%s9 + $0x88] sm:$0xf]
  %v4146 = vld [vmem:[%s9 + $0x8c] sm:$0xf]
  %v4147 = vld [vmem:[%s9 + $0x90] sm:$0xf]
  %v4148 = vld [vmem:[%s9 + $0x94] sm:$0xf]
  %v4149 = vld [vmem:[%s9 + $0x98] sm:$0xf]
  %v4150 = vld [vmem:[%s9 + $0x9c] sm:$0xf]
  %v4151 = vld [vmem:[%s9 + $0xa0] sm:$0xf]
  %v4152 = vld [vmem:[%s9 + $0xa4] sm:$0xf]
  %v4153 = vld [vmem:[%s9 + $0xa8] sm:$0xf]
  %v4154 = vld [vmem:[%s9 + $0xac] sm:$0xf]
  %v4155 = vld [vmem:[%s9 + $0xb0] sm:$0xf]
  %v4156 = vld [vmem:[%s9 + $0xb4] sm:$0xf]
  %v4157 = vld [vmem:[%s9 + $0xb8] sm:$0xf]
  %v4158 = vld [vmem:[%s9 + $0xbc] sm:$0xf]
  %v4159 = vld [vmem:[%s9 + $0xc0] sm:$0xf]
  %v4160 = vld [vmem:[%s9 + $0xc4] sm:$0xf]
  %v4161 = vld [vmem:[%s9 + $0xc8] sm:$0xf]
  %v4162 = vld [vmem:[%s9 + $0xcc] sm:$0xf]
  %v4163 = vld [vmem:[%s9 + $0xd0] sm:$0xf]
  %v4164 = vld [vmem:[%s9 + $0xd4] sm:$0xf]
  %v4165 = vld [vmem:[%s9 + $0xd8] sm:$0xf]
  %v4166 = vld [vmem:[%s9 + $0xdc] sm:$0xf]
  %v4167 = vld [vmem:[%s9 + $0xe0] sm:$0xf]
  %v4168 = vld [vmem:[%s9 + $0xe4] sm:$0xf]
  %v4169 = vld [vmem:[%s9 + $0xe8] sm:$0xf]
  %v4170 = vld [vmem:[%s9 + $0xec] sm:$0xf]
  %v4171 = vld [vmem:[%s9 + $0xf0] sm:$0xf]
  %v4172 = vld [vmem:[%s9 + $0xf4] sm:$0xf]
  %v4173 = vld [vmem:[%s9 + $0xf8] sm:$0xf]
  %v4174 = vld [vmem:[%s9 + $0xfc] sm:$0xf]
  %v4175 = vld [vmem:[%s9 + $0x100] sm:$0xf]
  %v4176 = vld [vmem:[%s9 + $0x104] sm:$0xf]
  %v4177 = vld [vmem:[%s9 + $0x108] sm:$0xf]
  %v4178 = vld [vmem:[%s9 + $0x10c] sm:$0xf]
  %v4179 = vld [vmem:[%s9 + $0x110] sm:$0xf]
  %v4180 = vld [vmem:[%s9 + $0x114] sm:$0xf]
  %v4181 = vld [vmem:[%s9 + $0x118] sm:$0xf]
  %v4182 = vld [vmem:[%s9 + $0x11c] sm:$0xf]
  %v4183 = vld [vmem:[%s9 + $0x120] sm:$0xf]
  %v4184 = vld [vmem:[%s9 + $0x124] sm:$0xf]
  %v4185 = vld [vmem:[%s9 + $0x128] sm:$0xf]
  %v4186 = vld [vmem:[%s9 + $0x12c] sm:$0xf]
  %v4187 = vld [vmem:[%s9 + $0x130] sm:$0xf]
  %v4188 = vld [vmem:[%s9 + $0x134] sm:$0xf]
  %v4189 = vld [vmem:[%s9 + $0x138] sm:$0xf]
  %v4190 = vld [vmem:[%s9 + $0x13c] sm:$0xf]
  %v4191 = vld [vmem:[%s9 + $0x140] sm:$0xf]
  %v4192 = vld [vmem:[%s9 + $0x144] sm:$0xf]
  %v4193 = vld [vmem:[%s9 + $0x148] sm:$0xf]
  %v4194 = vld [vmem:[%s9 + $0x14c] sm:$0xf]
  %v4195 = vld [vmem:[%s9 + $0x150] sm:$0xf]
  %v4196 = vld [vmem:[%s9 + $0x154] sm:$0xf]
  %v4197 = vld [vmem:[%s9 + $0x158] sm:$0xf]
  %v4198 = vld [vmem:[%s9 + $0x15c] sm:$0xf]
  %v4199 = vld [vmem:[%s9 + $0x160] sm:$0xf]
  %v4200 = vld [vmem:[%s9 + $0x164] sm:$0xf]
  %v4201 = vld [vmem:[%s9 + $0x168] sm:$0xf]
  %v4202 = vld [vmem:[%s9 + $0x16c] sm:$0xf]
  %v4203 = vld [vmem:[%s9 + $0x170] sm:$0xf]
  %v4204 = vld [vmem:[%s9 + $0x174] sm:$0xf]
  %v4205 = vld [vmem:[%s9 + $0x178] sm:$0xf]
  %v4206 = vld [vmem:[%s9 + $0x17c] sm:$0xf]
  %v4207 = vld [vmem:[%s9 + $0x180] sm:$0xf]
  %v4208 = vld [vmem:[%s9 + $0x184] sm:$0xf]
  %v4209 = vld [vmem:[%s9 + $0x188] sm:$0xf]
  %v4210 = vld [vmem:[%s9 + $0x18c] sm:$0xf]
  %v4211 = vld [vmem:[%s9 + $0x190] sm:$0xf]
  %v4212 = vld [vmem:[%s9 + $0x194] sm:$0xf]
  %v4213 = vld [vmem:[%s9 + $0x198] sm:$0xf]
  %v4214 = vld [vmem:[%s9 + $0x19c] sm:$0xf]
  %v4215 = vld [vmem:[%s9 + $0x1a0] sm:$0xf]
  %v4216 = vld [vmem:[%s9 + $0x1a4] sm:$0xf]
  %v4217 = vld [vmem:[%s9 + $0x1a8] sm:$0xf]
  %v4218 = vld [vmem:[%s9 + $0x1ac] sm:$0xf]
  %v4219 = vld [vmem:[%s9 + $0x1b0] sm:$0xf]
  %v4220 = vld [vmem:[%s9 + $0x1b4] sm:$0xf]
  %v4221 = vld [vmem:[%s9 + $0x1b8] sm:$0xf]
  %v4222 = vld [vmem:[%s9 + $0x1bc] sm:$0xf]
  %v4223 = vld [vmem:[%s9 + $0x1c0] sm:$0xf]
  %v4224 = vld [vmem:[%s9 + $0x1c4] sm:$0xf]
  %v4225 = vld [vmem:[%s9 + $0x1c8] sm:$0xf]
  %v4226 = vld [vmem:[%s9 + $0x1cc] sm:$0xf]
  %v4227 = vld [vmem:[%s9 + $0x1d0] sm:$0xf]
  %v4228 = vld [vmem:[%s9 + $0x1d4] sm:$0xf]
  %v4229 = vld [vmem:[%s9 + $0x1d8] sm:$0xf]
  %v4230 = vld [vmem:[%s9 + $0x1dc] sm:$0xf]
  %v4231 = vld [vmem:[%s9 + $0x1e0] sm:$0xf]
  %v4232 = vld [vmem:[%s9 + $0x1e4] sm:$0xf]
  %v4233 = vld [vmem:[%s9 + $0x1e8] sm:$0xf]
  %v4234 = vld [vmem:[%s9 + $0x1ec] sm:$0xf]
  %v4235 = vld [vmem:[%s9 + $0x1f0] sm:$0xf]
  %v4236 = vld [vmem:[%s9 + $0x1f4] sm:$0xf]
  %v4237 = vld [vmem:[%s9 + $0x1f8] sm:$0xf]
  %v4238 = vld [vmem:[%s9 + $0x1fc] sm:$0xf]
  %v4239 = vld [vmem:[%s9 + $0x200] sm:$0xf]
  %v4240 = vld [vmem:[%s9 + $0x204] sm:$0xf]
  %v4241 = vld [vmem:[%s9 + $0x208] sm:$0xf]
  %v4242 = vld [vmem:[%s9 + $0x20c] sm:$0xf]
  %v4243 = vld [vmem:[%s9 + $0x210] sm:$0xf]
  %v4244 = vld [vmem:[%s9 + $0x214] sm:$0xf]
  %v4245 = vld [vmem:[%s9 + $0x218] sm:$0xf]
  %v4246 = vld [vmem:[%s9 + $0x21c] sm:$0xf]
  %v4247 = vld [vmem:[%s9 + $0x220] sm:$0xf]
  %v4248 = vld [vmem:[%s9 + $0x224] sm:$0xf]
  %v4249 = vld [vmem:[%s9 + $0x228] sm:$0xf]
  %v4250 = vld [vmem:[%s9 + $0x22c] sm:$0xf]
  %v4251 = vld [vmem:[%s9 + $0x230] sm:$0xf]
  %v4252 = vld [vmem:[%s9 + $0x234] sm:$0xf]
  %v4253 = vld [vmem:[%s9 + $0x238] sm:$0xf]
  %v4254 = vld [vmem:[%s9 + $0x23c] sm:$0xf]
  %v4255 = vld [vmem:[%s10] sm:$0x1]
  %v4257 = vlaneseq
  %v4258 = vshrl.u32 %v4257, 7
  %v4259 = vsub.s32 0, %v4258
  %v4260 = vrot.slane %v4255, %v4259
  %v4406 = vunpack.c.l.b16 %v4111
  %v4407 = vunpack.c.l.b16 %v4112
  %v4408 = vunpack.c.l.b16 %v4113
  %v4409 = vunpack.c.l.b16 %v4114
  %v4410 = vunpack.c.l.b16 %v4115
  %v4411 = vunpack.c.l.b16 %v4116
  %v4412 = vunpack.c.l.b16 %v4117
  %v4413 = vunpack.c.l.b16 %v4118
  %v4414 = vunpack.c.l.b16 %v4119
  %v4415 = vunpack.c.l.b16 %v4120
  %v4416 = vunpack.c.l.b16 %v4121
  %v4417 = vunpack.c.l.b16 %v4122
  %v4418 = vunpack.c.l.b16 %v4123
  %v4419 = vunpack.c.l.b16 %v4124
  %v4420 = vunpack.c.l.b16 %v4125
  %v4421 = vunpack.c.l.b16 %v4126
  %v4422 = vunpack.c.l.b16 %v4127
  %v4423 = vunpack.c.l.b16 %v4128
  %v4424 = vunpack.c.l.b16 %v4129
  %v4425 = vunpack.c.l.b16 %v4130
  %v4426 = vunpack.c.l.b16 %v4131
  %v4427 = vunpack.c.l.b16 %v4132
  %v4428 = vunpack.c.l.b16 %v4133
  %v4429 = vunpack.c.l.b16 %v4134
  %v4430 = vunpack.c.l.b16 %v4135
  %v4431 = vunpack.c.l.b16 %v4136
  %v4432 = vunpack.c.l.b16 %v4137
  %v4433 = vunpack.c.l.b16 %v4138
  %v4434 = vunpack.c.l.b16 %v4139
  %v4435 = vunpack.c.l.b16 %v4140
  %v4436 = vunpack.c.l.b16 %v4141
  %v4437 = vunpack.c.l.b16 %v4142
  %v4438 = vunpack.c.l.b16 %v4143
  %v4439 = vunpack.c.l.b16 %v4144
  %v4440 = vunpack.c.l.b16 %v4145
  %v4441 = vunpack.c.l.b16 %v4146
  %v4442 = vunpack.c.l.b16 %v4147
  %v4443 = vunpack.c.l.b16 %v4148
  %v4444 = vunpack.c.l.b16 %v4149
  %v4445 = vunpack.c.l.b16 %v4150
  %v4446 = vunpack.c.l.b16 %v4151
  %v4447 = vunpack.c.l.b16 %v4152
  %v4448 = vunpack.c.l.b16 %v4153
  %v4449 = vunpack.c.l.b16 %v4154
  %v4450 = vunpack.c.l.b16 %v4155
  %v4451 = vunpack.c.l.b16 %v4156
  %v4452 = vunpack.c.l.b16 %v4157
  %v4453 = vunpack.c.l.b16 %v4158
  %v4454 = vunpack.c.l.b16 %v4159
  %v4455 = vunpack.c.l.b16 %v4160
  %v4456 = vunpack.c.l.b16 %v4161
  %v4457 = vunpack.c.l.b16 %v4162
  %v4458 = vunpack.c.l.b16 %v4163
  %v4459 = vunpack.c.l.b16 %v4164
  %v4460 = vunpack.c.l.b16 %v4165
  %v4461 = vunpack.c.l.b16 %v4166
  %v4462 = vunpack.c.l.b16 %v4167
  %v4463 = vunpack.c.l.b16 %v4168
  %v4464 = vunpack.c.l.b16 %v4169
  %v4465 = vunpack.c.l.b16 %v4170
  %v4466 = vunpack.c.l.b16 %v4171
  %v4467 = vunpack.c.l.b16 %v4172
  %v4468 = vunpack.c.l.b16 %v4173
  %v4469 = vunpack.c.l.b16 %v4174
  %v4470 = vunpack.c.l.b16 %v4175
  %v4471 = vunpack.c.l.b16 %v4176
  %v4472 = vunpack.c.l.b16 %v4177
  %v4473 = vunpack.c.l.b16 %v4178
  %v4474 = vunpack.c.l.b16 %v4179
  %v4475 = vunpack.c.l.b16 %v4180
  %v4476 = vunpack.c.l.b16 %v4181
  %v4477 = vunpack.c.l.b16 %v4182
  %v4478 = vunpack.c.l.b16 %v4183
  %v4479 = vunpack.c.l.b16 %v4184
  %v4480 = vunpack.c.l.b16 %v4185
  %v4481 = vunpack.c.l.b16 %v4186
  %v4482 = vunpack.c.l.b16 %v4187
  %v4483 = vunpack.c.l.b16 %v4188
  %v4484 = vunpack.c.l.b16 %v4189
  %v4485 = vunpack.c.l.b16 %v4190
  %v4486 = vunpack.c.l.b16 %v4191
  %v4487 = vunpack.c.l.b16 %v4192
  %v4488 = vunpack.c.l.b16 %v4193
  %v4489 = vunpack.c.l.b16 %v4194
  %v4490 = vunpack.c.l.b16 %v4195
  %v4491 = vunpack.c.l.b16 %v4196
  %v4492 = vunpack.c.l.b16 %v4197
  %v4493 = vunpack.c.l.b16 %v4198
  %v4494 = vunpack.c.l.b16 %v4199
  %v4495 = vunpack.c.l.b16 %v4200
  %v4496 = vunpack.c.l.b16 %v4201
  %v4497 = vunpack.c.l.b16 %v4202
  %v4498 = vunpack.c.l.b16 %v4203
  %v4499 = vunpack.c.l.b16 %v4204
  %v4500 = vunpack.c.l.b16 %v4205
  %v4501 = vunpack.c.l.b16 %v4206
  %v4502 = vunpack.c.l.b16 %v4207
  %v4503 = vunpack.c.l.b16 %v4208
  %v4504 = vunpack.c.l.b16 %v4209
  %v4505 = vunpack.c.l.b16 %v4210
  %v4506 = vunpack.c.l.b16 %v4211
  %v4507 = vunpack.c.l.b16 %v4212
  %v4508 = vunpack.c.l.b16 %v4213
  %v4509 = vunpack.c.l.b16 %v4214
  %v4510 = vunpack.c.l.b16 %v4215
  %v4511 = vunpack.c.l.b16 %v4216
  %v4512 = vunpack.c.l.b16 %v4217
  %v4513 = vunpack.c.l.b16 %v4218
  %v4514 = vunpack.c.l.b16 %v4219
  %v4515 = vunpack.c.l.b16 %v4220
  %v4516 = vunpack.c.l.b16 %v4221
  %v4517 = vunpack.c.l.b16 %v4222
  %v4518 = vunpack.c.l.b16 %v4223
  %v4519 = vunpack.c.l.b16 %v4224
  %v4520 = vunpack.c.l.b16 %v4225
  %v4521 = vunpack.c.l.b16 %v4226
  %v4522 = vunpack.c.l.b16 %v4227
  %v4523 = vunpack.c.l.b16 %v4228
  %v4524 = vunpack.c.l.b16 %v4229
  %v4525 = vunpack.c.l.b16 %v4230
  %v4526 = vunpack.c.l.b16 %v4231
  %v4527 = vunpack.c.l.b16 %v4232
  %v4528 = vunpack.c.l.b16 %v4233
  %v4529 = vunpack.c.l.b16 %v4234
  %v4530 = vunpack.c.l.b16 %v4235
  %v4531 = vunpack.c.l.b16 %v4236
  %v4532 = vunpack.c.l.b16 %v4237
  %v4533 = vunpack.c.l.b16 %v4238
  %v4534 = vunpack.c.l.b16 %v4239
  %v4535 = vunpack.c.l.b16 %v4240
  %v4536 = vunpack.c.l.b16 %v4241
  %v4537 = vunpack.c.l.b16 %v4242
  %v4538 = vunpack.c.l.b16 %v4243
  %v4539 = vunpack.c.l.b16 %v4244
  %v4540 = vunpack.c.l.b16 %v4245
  %v4541 = vunpack.c.l.b16 %v4246
  %v4542 = vunpack.c.l.b16 %v4247
  %v4543 = vunpack.c.l.b16 %v4248
  %v4544 = vunpack.c.l.b16 %v4249
  %v4545 = vunpack.c.l.b16 %v4250
  %v4546 = vunpack.c.l.b16 %v4251
  %v4547 = vunpack.c.l.b16 %v4252
  %v4548 = vunpack.c.l.b16 %v4253
  %v4549 = vunpack.c.l.b16 %v4254
  %v4550 = vpack.c.b16 %v4407, %v4406
  %v4551 = vpack.c.b16 %v4409, %v4408
  %v4552 = vpack.c.b16 %v4411, %v4410
  %v4553 = vpack.c.b16 %v4413, %v4412
  %v4554 = vpack.c.b16 %v4415, %v4414
  %v4555 = vpack.c.b16 %v4417, %v4416
  %v4556 = vpack.c.b16 %v4419, %v4418
  %v4557 = vpack.c.b16 %v4421, %v4420
  %v4558 = vpack.c.b16 %v4423, %v4422
  %v4559 = vpack.c.b16 %v4425, %v4424
  %v4560 = vpack.c.b16 %v4427, %v4426
  %v4561 = vpack.c.b16 %v4429, %v4428
  %v4562 = vpack.c.b16 %v4431, %v4430
  %v4563 = vpack.c.b16 %v4433, %v4432
  %v4564 = vpack.c.b16 %v4435, %v4434
  %v4565 = vpack.c.b16 %v4437, %v4436
  %v4566 = vpack.c.b16 %v4439, %v4438
  %v4567 = vpack.c.b16 %v4441, %v4440
  %v4568 = vpack.c.b16 %v4443, %v4442
  %v4569 = vpack.c.b16 %v4445, %v4444
  %v4570 = vpack.c.b16 %v4447, %v4446
  %v4571 = vpack.c.b16 %v4449, %v4448
  %v4572 = vpack.c.b16 %v4451, %v4450
  %v4573 = vpack.c.b16 %v4453, %v4452
  %v4574 = vpack.c.b16 %v4455, %v4454
  %v4575 = vpack.c.b16 %v4457, %v4456
  %v4576 = vpack.c.b16 %v4459, %v4458
  %v4577 = vpack.c.b16 %v4461, %v4460
  %v4578 = vpack.c.b16 %v4463, %v4462
  %v4579 = vpack.c.b16 %v4465, %v4464
  %v4580 = vpack.c.b16 %v4467, %v4466
  %v4581 = vpack.c.b16 %v4469, %v4468
  %v4582 = vpack.c.b16 %v4471, %v4470
  %v4583 = vpack.c.b16 %v4473, %v4472
  %v4584 = vpack.c.b16 %v4475, %v4474
  %v4585 = vpack.c.b16 %v4477, %v4476
  %v4586 = vpack.c.b16 %v4479, %v4478
  %v4587 = vpack.c.b16 %v4481, %v4480
  %v4588 = vpack.c.b16 %v4483, %v4482
  %v4589 = vpack.c.b16 %v4485, %v4484
  %v4590 = vpack.c.b16 %v4487, %v4486
  %v4591 = vpack.c.b16 %v4489, %v4488
  %v4592 = vpack.c.b16 %v4491, %v4490
  %v4593 = vpack.c.b16 %v4493, %v4492
  %v4594 = vpack.c.b16 %v4495, %v4494
  %v4595 = vpack.c.b16 %v4497, %v4496
  %v4596 = vpack.c.b16 %v4499, %v4498
  %v4597 = vpack.c.b16 %v4501, %v4500
  %v4598 = vpack.c.b16 %v4503, %v4502
  %v4599 = vpack.c.b16 %v4505, %v4504
  %v4600 = vpack.c.b16 %v4507, %v4506
  %v4601 = vpack.c.b16 %v4509, %v4508
  %v4602 = vpack.c.b16 %v4511, %v4510
  %v4603 = vpack.c.b16 %v4513, %v4512
  %v4604 = vpack.c.b16 %v4515, %v4514
  %v4605 = vpack.c.b16 %v4517, %v4516
  %v4606 = vpack.c.b16 %v4519, %v4518
  %v4607 = vpack.c.b16 %v4521, %v4520
  %v4608 = vpack.c.b16 %v4523, %v4522
  %v4609 = vpack.c.b16 %v4525, %v4524
  %v4610 = vpack.c.b16 %v4527, %v4526
  %v4611 = vpack.c.b16 %v4529, %v4528
  %v4612 = vpack.c.b16 %v4531, %v4530
  %v4613 = vpack.c.b16 %v4533, %v4532
  %v4614 = vpack.c.b16 %v4535, %v4534
  %v4615 = vpack.c.b16 %v4537, %v4536
  %v4616 = vpack.c.b16 %v4539, %v4538
  %v4617 = vpack.c.b16 %v4541, %v4540
  %v4618 = vpack.c.b16 %v4543, %v4542
  %v4619 = vpack.c.b16 %v4545, %v4544
  %v4620 = vpack.c.b16 %v4547, %v4546
  %v4621 = vpack.c.b16 %v4549, %v4548
  %4694 = vmatprep.subr.bf16.mxu0 0
  %4695 = vmatpush1.bf16.msra.mxu0 %v4550
  %4696 = vmatprep.subr.bf16.mxu0 0
  %4697 = vmatpush1.bf16.msra.mxu0 %v4551
  %4698 = vmatprep.subr.bf16.mxu0 0
  %4699 = vmatpush1.bf16.msra.mxu0 %v4552
  %4700 = vmatprep.subr.bf16.mxu0 0
  %4701 = vmatpush1.bf16.msra.mxu0 %v4553
  %4702 = vmatprep.subr.bf16.mxu0 0
  %4703 = vmatpush1.bf16.msra.mxu0 %v4554
  %4704 = vmatprep.subr.bf16.mxu0 0
  %4705 = vmatpush1.bf16.msra.mxu0 %v4555
  %4706 = vmatprep.subr.bf16.mxu0 0
  %4707 = vmatpush1.bf16.msra.mxu0 %v4556
  %4708 = vmatprep.subr.bf16.mxu0 0
  %4709 = vmatpush1.bf16.msra.mxu0 %v4557
  %4710 = vmatprep.subr.bf16.mxu0 0
  %4711 = vmatpush1.bf16.msra.mxu0 %v4558
  %4712 = vmatprep.subr.bf16.mxu0 0
  %4713 = vmatpush1.bf16.msra.mxu0 %v4559
  %4714 = vmatprep.subr.bf16.mxu0 0
  %4715 = vmatpush1.bf16.msra.mxu0 %v4560
  %4716 = vmatprep.subr.bf16.mxu0 0
  %4717 = vmatpush1.bf16.msra.mxu0 %v4561
  %4718 = vmatprep.subr.bf16.mxu0 0
  %4719 = vmatpush1.bf16.msra.mxu0 %v4562
  %4720 = vmatprep.subr.bf16.mxu0 0
  %4721 = vmatpush1.bf16.msra.mxu0 %v4563
  %4722 = vmatprep.subr.bf16.mxu0 0
  %4723 = vmatpush1.bf16.msra.mxu0 %v4564
  %4724 = vmatprep.subr.bf16.mxu0 0
  %4725 = vmatpush1.bf16.msra.mxu0 %v4565
  %4726 = vmatprep.mubr.bf16.mxu0 %v4103
  %4727 = vmatmul.mubr.bf16.gmra.mrb[0].mxu0 %v4102
  %v4728 = vpop.f32.mrb[0].mxu0
  %v4729 = vadd.f32 %v4260, %v4728
  %v4730 = vpop.f32.mrb[0].mxu0
  %v4731 = vpop.f32.mrb[0].mxu0
  %v4732 = vpop.f32.mrb[0].mxu0
  %4733 = vdwg.mxu0
  %4734 = vmatprep.subr.bf16.mxu0 0
  %4735 = vmatpush1.bf16.msra.mxu0 %v4566
  %4736 = vmatprep.subr.bf16.mxu0 0
  %4737 = vmatpush1.bf16.msra.mxu0 %v4567
  %4738 = vmatprep.subr.bf16.mxu0 0
  %4739 = vmatpush1.bf16.msra.mxu0 %v4568
  %4740 = vmatprep.subr.bf16.mxu0 0
  %4741 = vmatpush1.bf16.msra.mxu0 %v4569
  %4742 = vmatprep.subr.bf16.mxu0 0
  %4743 = vmatpush1.bf16.msra.mxu0 %v4570
  %4744 = vmatprep.subr.bf16.mxu0 0
  %4745 = vmatpush1.bf16.msra.mxu0 %v4571
  %4746 = vmatprep.subr.bf16.mxu0 0
  %4747 = vmatpush1.bf16.msra.mxu0 %v4572
  %4748 = vmatprep.subr.bf16.mxu0 0
  %4749 = vmatpush1.bf16.msra.mxu0 %v4573
  %4750 = vmatprep.subr.bf16.mxu0 0
  %4751 = vmatpush1.bf16.msra.mxu0 %v4574
  %4752 = vmatprep.subr.bf16.mxu0 0
  %4753 = vmatpush1.bf16.msra.mxu0 %v4575
  %4754 = vmatprep.subr.bf16.mxu0 0
  %4755 = vmatpush1.bf16.msra.mxu0 %v4576
  %4756 = vmatprep.subr.bf16.mxu0 0
  %4757 = vmatpush1.bf16.msra.mxu0 %v4577
  %4758 = vmatprep.subr.bf16.mxu0 0
  %4759 = vmatpush1.bf16.msra.mxu0 %v4578
  %4760 = vmatprep.subr.bf16.mxu0 0
  %4761 = vmatpush1.bf16.msra.mxu0 %v4579
  %4762 = vmatprep.subr.bf16.mxu0 0
  %4763 = vmatpush1.bf16.msra.mxu0 %v4580
  %4764 = vmatprep.subr.bf16.mxu0 0
  %4765 = vmatpush1.bf16.msra.mxu0 %v4581
  %4766 = vmatprep.mubr.bf16.mxu0 %v4105
  %4767 = vmatmul.mubr.bf16.gmra.mrb[0].mxu0 %v4104
  %v4768 = vpop.f32.mrb[0].mxu0
  %v4769 = vadd.f32 %v4729, %v4768
  %v4770 = vpop.f32.mrb[0].mxu0
  %v4771 = vpop.f32.mrb[0].mxu0
  %v4772 = vpop.f32.mrb[0].mxu0
  %4773 = vdwg.mxu0
  %4774 = vmatprep.subr.bf16.mxu0 0
  %4775 = vmatpush1.bf16.msra.mxu0 %v4582
  %4776 = vmatprep.subr.bf16.mxu0 0
  %4777 = vmatpush1.bf16.msra.mxu0 %v4583
  %4778 = vmatprep.subr.bf16.mxu0 0
  %4779 = vmatpush1.bf16.msra.mxu0 %v4584
  %4780 = vmatprep.subr.bf16.mxu0 0
  %4781 = vmatpush1.bf16.msra.mxu0 %v4585
  %4782 = vmatprep.subr.bf16.mxu0 0
  %4783 = vmatpush1.bf16.msra.mxu0 %v4586
  %4784 = vmatprep.subr.bf16.mxu0 0
  %4785 = vmatpush1.bf16.msra.mxu0 %v4587
  %4786 = vmatprep.subr.bf16.mxu0 0
  %4787 = vmatpush1.bf16.msra.mxu0 %v4588
  %4788 = vmatprep.subr.bf16.mxu0 0
  %4789 = vmatpush1.bf16.msra.mxu0 %v4589
  %4790 = vmatprep.subr.bf16.mxu0 0
  %4791 = vmatpush1.bf16.msra.mxu0 %v4590
  %4792 = vmatprep.subr.bf16.mxu0 0
  %4793 = vmatpush1.bf16.msra.mxu0 %v4591
  %4794 = vmatprep.subr.bf16.mxu0 0
  %4795 = vmatpush1.bf16.msra.mxu0 %v4592
  %4796 = vmatprep.subr.bf16.mxu0 0
  %4797 = vmatpush1.bf16.msra.mxu0 %v4593
  %4798 = vmatprep.subr.bf16.mxu0 0
  %4799 = vmatpush1.bf16.msra.mxu0 %v4594
  %4800 = vmatprep.subr.bf16.mxu0 0
  %4801 = vmatpush1.bf16.msra.mxu0 %v4595
  %4802 = vmatprep.subr.bf16.mxu0 0
  %4803 = vmatpush1.bf16.msra.mxu0 %v4596
  %4804 = vmatprep.subr.bf16.mxu0 0
  %4805 = vmatpush1.bf16.msra.mxu0 %v4597
  %4806 = vmatprep.mubr.bf16.mxu0 %v4107
  %4807 = vmatmul.mubr.bf16.gmra.mrb[0].mxu0 %v4106
  %v4808 = vpop.f32.mrb[0].mxu0
  %v4809 = vadd.f32 %v4769, %v4808
  %v4810 = vpop.f32.mrb[0].mxu0
  %v4811 = vpop.f32.mrb[0].mxu0
  %v4812 = vpop.f32.mrb[0].mxu0
  %4813 = vdwg.mxu0
  %4814 = vmatprep.subr.bf16.mxu0 0
  %4815 = vmatpush1.bf16.msra.mxu0 %v4598
  %4816 = vmatprep.subr.bf16.mxu0 0
  %4817 = vmatpush1.bf16.msra.mxu0 %v4599
  %4818 = vmatprep.subr.bf16.mxu0 0
  %4819 = vmatpush1.bf16.msra.mxu0 %v4600
  %4820 = vmatprep.subr.bf16.mxu0 0
  %4821 = vmatpush1.bf16.msra.mxu0 %v4601
  %4822 = vmatprep.subr.bf16.mxu0 0
  %4823 = vmatpush1.bf16.msra.mxu0 %v4602
  %4824 = vmatprep.subr.bf16.mxu0 0
  %4825 = vmatpush1.bf16.msra.mxu0 %v4603
  %4826 = vmatprep.subr.bf16.mxu0 0
  %4827 = vmatpush1.bf16.msra.mxu0 %v4604
  %4828 = vmatprep.subr.bf16.mxu0 0
  %4829 = vmatpush1.bf16.msra.mxu0 %v4605
  %4830 = vmatprep.subr.bf16.mxu0 0
  %4831 = vmatpush1.bf16.msra.mxu0 %v4606
  %4832 = vmatprep.subr.bf16.mxu0 0
  %4833 = vmatpush1.bf16.msra.mxu0 %v4607
  %4834 = vmatprep.subr.bf16.mxu0 0
  %4835 = vmatpush1.bf16.msra.mxu0 %v4608
  %4836 = vmatprep.subr.bf16.mxu0 0
  %4837 = vmatpush1.bf16.msra.mxu0 %v4609
  %4838 = vmatprep.subr.bf16.mxu0 0
  %4839 = vmatpush1.bf16.msra.mxu0 %v4610
  %4840 = vmatprep.subr.bf16.mxu0 0
  %4841 = vmatpush1.bf16.msra.mxu0 %v4611
  %4842 = vmatprep.subr.bf16.mxu0 0
  %4843 = vmatpush1.bf16.msra.mxu0 %v4612
  %4844 = vmatprep.subr.bf16.mxu0 0
  %4845 = vmatpush1.bf16.msra.mxu0 %v4613
  %4846 = vmatprep.mubr.bf16.mxu0 %v4109
  %4847 = vmatmul.mubr.bf16.gmra.mrb[0].mxu0 %v4108
  %v4848 = vpop.f32.mrb[0].mxu0
  %v4849 = vadd.f32 %v4809, %v4848
  %v4850 = vpop.f32.mrb[0].mxu0
  %v4851 = vpop.f32.mrb[0].mxu0
  %v4852 = vpop.f32.mrb[0].mxu0
  %4853 = vdwg.mxu0
  %4854 = vmatprep.subr.bf16.mxu0 0
  %4855 = vmatpush1.bf16.msra.mxu0 %v4614
  %4856 = vmatprep.subr.bf16.mxu0 0
  %4857 = vmatpush1.bf16.msra.mxu0 %v4615
  %4858 = vmatprep.subr.bf16.mxu0 0
  %4859 = vmatpush1.bf16.msra.mxu0 %v4616
  %4860 = vmatprep.subr.bf16.mxu0 0
  %4861 = vmatpush1.bf16.msra.mxu0 %v4617
  %4862 = vmatprep.subr.bf16.mxu0 0
  %4863 = vmatpush1.bf16.msra.mxu0 %v4618
  %4864 = vmatprep.subr.bf16.mxu0 0
  %4865 = vmatpush1.bf16.msra.mxu0 %v4619
  %4866 = vmatprep.subr.bf16.mxu0 0
  %4867 = vmatpush1.bf16.msra.mxu0 %v4620
  %4868 = vmatprep.subr.bf16.mxu0 0
  %4869 = vmatpush1.bf16.msra.mxu0 %v4621
  %4870 = vmatprep.subr.bf16.mxu0 0
  %4871 = vmatpush1.bf16.msra.mxu0 0
  %4872 = vmatprep.subr.bf16.mxu0 0
  %4873 = vmatpush1.bf16.msra.mxu0 0
  %4874 = vmatprep.subr.bf16.mxu0 0
  %4875 = vmatpush1.bf16.msra.mxu0 0
  %4876 = vmatprep.subr.bf16.mxu0 0
  %4877 = vmatpush1.bf16.msra.mxu0 0
  %4878 = vmatprep.subr.bf16.mxu0 0
  %4879 = vmatpush1.bf16.msra.mxu0 0
  %4880 = vmatprep.subr.bf16.mxu0 0
  %4881 = vmatpush1.bf16.msra.mxu0 0
  %4882 = vmatprep.subr.bf16.mxu0 0
  %4883 = vmatpush1.bf16.msra.mxu0 0
  %4884 = vmatprep.subr.bf16.mxu0 0
  %4885 = vmatpush1.bf16.msra.mxu0 0
  %4886 = vmatprep.mubr.bf16.mxu0 0
  %4887 = vmatmul.mubr.bf16.gmra.mrb[0].mxu0 %v4110
  %v4888 = vpop.f32.mrb[0].mxu0
  %v4889 = vadd.f32 %v4849, %v4888
  %v4890 = vpop.f32.mrb[0].mxu0
  %v4891 = vpop.f32.mrb[0].mxu0
  %v4892 = vpop.f32.mrb[0].mxu0
  %4893 = vdwg.mxu0
  %v4894 = vmax.f32 %v4889, 0.0
  %v4895 = vrot.slane %v4894, 4
  %v4896 = vadd.f32 %v4894, %v4895
  %v4897 = vrot.slane %v4896, 2
  %v4898 = vadd.f32 %v4896, %v4897
  %v4899 = vrot.slane %v4898, 1
  %v4900 = vadd.f32 %v4898, %v4899
  %v4901 = vrcp.pop 8.0
  %v4902 = vmul.f32 %v4900, %v4901
  %v4903 = vsub.f32 %v4894, %v4902
  %v4904 = vmul.f32 %v4903, %v4903
  %v4905 = vrot.slane %v4904, 4
  %v4906 = vadd.f32 %v4904, %v4905
  %v4907 = vrot.slane %v4906, 2
  %v4908 = vadd.f32 %v4906, %v4907
  %v4909 = vrot.slane %v4908, 1
  %v4910 = vadd.f32 %v4908, %v4909
  %v4911 = vmul.f32 %v4910, %v4901
  %v4912 = vld [vmem:[%s11] sm:$0x1]
  %v4913 = vadd.f32 %v4911, 1e-05
  %v4914 = vrsqrt.pop %v4913
  %v4915 = vmul.f32 %v4912, %v4914
  %v4916 = vld [vmem:[%s12] sm:$0x1]
  %v4917 = vmul.f32 %v4902, %v4915
  %v4918 = vsub.f32 %v4916, %v4917
  %v4920 = vlaneseq
  %v4921 = vshrl.u32 %v4920, 7
  %v4922 = vsub.s32 0, %v4921
  %v4923 = vrot.slane %v4915, %v4922
  %v4925 = vmul.f32 %v4894, %v4923
  %v4927 = vlaneseq
  %v4928 = vshrl.u32 %v4927, 7
  %v4929 = vsub.s32 0, %v4928
  %v4930 = vrot.slane %v4918, %v4929
  %v4932 = vadd.f32 %v4925, %v4930
  %s4933 = scalar_lea.vmem [#allocation5], 4
  %4934 = vst [vmem:[%s4933 + $0x2] sm:$0x1] %v4932
  %v4937 = vunpack.c.l.s4 1983009808
  %v4938 = vunpack.c.0.s8 %v4937
  %v4939 = vlaneseq
  %v4940 = vshrl.u32 %v4939, 7
  %v4941 = vsub.s32 %v4938, %v4940
  %v4942 = vrot.slane %v4932, %v4941
  %v4943 = vrot.slane %v4942, 7
  %v4944 = vrot.slane %v4943, 2
  %4946 = vst [vmem:[%s4933 + $0x1] sm:$0x1] %v4944
  %v4947 = vcombine.high %v4942, %v4942
  %s4949 = scalar_lea.vmem [#allocation5], 8
  %4950 = vst [vmem:[%s4949 + $0x2] sm:$0x1] %v4947
  %v4951 = vrot.slane %v4947, 7
  %v4952 = vrot.slane %v4951, 2
  %4954 = vst [vmem:[%s4949 + $0x1] sm:$0x1] %v4952
  %v4955 = vcombine.high %v4932, %v4932
  %v4957 = vunpack.c.l.s4 1983009808
  %v4958 = vunpack.c.0.s8 %v4957
  %v4959 = vlaneseq
  %v4960 = vshrl.u32 %v4959, 7
  %v4961 = vsub.s32 %v4958, %v4960
  %v4962 = vrot.slane %v4955, %v4961
  %s4964 = scalar_lea.vmem [#allocation5], 20
  %4965 = vst [vmem:[%s4964 + $0x2] sm:$0x1] %v4962
  %v4966 = vrot.slane %v4962, 7
  %v4967 = vrot.slane %v4966, 2
  %4969 = vst [vmem:[%s4964 + $0x1] sm:$0x1] %v4967
  %v4970 = vcombine.high %v4962, %v4962
  %s4972 = scalar_lea.vmem [#allocation5], 24
  %4973 = vst [vmem:[%s4972 + $0x2] sm:$0x1] %v4970
  %v4974 = vrot.slane %v4970, 7
  %v4975 = vrot.slane %v4974, 2
  %4977 = vst [vmem:[%s4972 + $0x1] sm:$0x1] %v4975
  %v4978 = vld [vmem:[#allocation5] ss:$2 sm:$0x3]
  %v4979 = vlaneseq
  %vm4980 = vcmp.ge.s32.totalorder %v4979, 0
  %vm4981 = vcmp.lt.s32.totalorder %v4979, 256
  %vm4982 = vmand %vm4980, %vm4981
  %4983 = vst.msk [vmem:[#allocation2] ss:$8 sm:$0x3] %vm4982, %v4978
  %4984 = vst.msk [vmem:[#allocation2] ss:$8 sm:$0x0] %vm4982, %v4978
  %v4985 = vld [vmem:[#allocation5 + $0x1] sm:$0x1]
  %4986 = vst [vmem:[#allocation2 + $0x10] sm:$0x1] %v4985
  %v4987 = vld [vmem:[%s4933] ss:$2 sm:$0x3]
  %s4988 = scalar_lea.vmem [#allocation2], 24
  %4989 = vst.msk [vmem:[%s4988] ss:$8 sm:$0x3] %vm4982, %v4987
  %4990 = vst.msk [vmem:[%s4988] ss:$8 sm:$0x0] %vm4982, %v4987
  %v4991 = vld [vmem:[%s4933 + $0x1] sm:$0x1]
  %4992 = vst [vmem:[#allocation2 + $0x28] sm:$0x1] %v4991
  %v4993 = vld [vmem:[%s4949] ss:$2 sm:$0x3]
  %s4994 = scalar_lea.vmem [#allocation2], 48
  %4995 = vst.msk [vmem:[%s4994] ss:$8 sm:$0x3] %vm4982, %v4993
  %4996 = vst.msk [vmem:[%s4994] ss:$8 sm:$0x0] %vm4982, %v4993
  %v4997 = vld [vmem:[%s4949 + $0x1] sm:$0x1]
  %4998 = vst [vmem:[#allocation2 + $0x40] sm:$0x1] %v4997
  %s4999 = scalar_lea.vmem [#allocation5], 16
  %v5000 = vld [vmem:[%s4999] ss:$2 sm:$0x3]
  %s5001 = scalar_lea.vmem [#allocation2], 1
  %5002 = vst.msk [vmem:[%s5001] ss:$8 sm:$0x3] %vm4982, %v5000
  %5003 = vst.msk [vmem:[%s5001] ss:$8 sm:$0x0] %vm4982, %v5000
  %v5004 = vld [vmem:[%s4999 + $0x1] sm:$0x1]
  %5005 = vst [vmem:[#allocation2 + $0x11] sm:$0x1] %v5004
  %v5006 = vld [vmem:[%s4964] ss:$2 sm:$0x3]
  %s5007 = scalar_lea.vmem [#allocation2], 25
  %5008 = vst.msk [vmem:[%s5007] ss:$8 sm:$0x3] %vm4982, %v5006
  %5009 = vst.msk [vmem:[%s5007] ss:$8 sm:$0x0] %vm4982, %v5006
  %v5010 = vld [vmem:[%s4964 + $0x1] sm:$0x1]
  %5011 = vst [vmem:[#allocation2 + $0x29] sm:$0x1] %v5010
  %v5012 = vld [vmem:[%s4972] ss:$2 sm:$0x3]
  %s5013 = scalar_lea.vmem [#allocation2], 49
  %5014 = vst.msk [vmem:[%s5013] ss:$8 sm:$0x3] %vm4982, %v5012
  %5015 = vst.msk [vmem:[%s5013] ss:$8 sm:$0x0] %vm4982, %v5012
  %v5016 = vld [vmem:[%s4972 + $0x1] sm:$0x1]
  %5017 = vst [vmem:[#allocation2 + $0x41] sm:$0x1] %v5016
  %v5018 = vld [vmem:[#allocation2] sm:$0x3]
  %v5019 = vld [vmem:[#allocation2 + $0x8] sm:$0x3]
  %v5020 = vld [vmem:[#allocation2 + $0x10] sm:$0x3]
  %v5021 = vld [vmem:[#allocation2 + $0x18] sm:$0x3]
  %v5022 = vld [vmem:[#allocation2 + $0x20] sm:$0x3]
  %v5023 = vld [vmem:[#allocation2 + $0x28] sm:$0x3]
  %v5024 = vld [vmem:[#allocation2 + $0x30] sm:$0x3]
  %v5025 = vld [vmem:[#allocation2 + $0x38] sm:$0x3]
  %v5026 = vld [vmem:[#allocation2 + $0x40] sm:$0x3]
  %v5027 = vpack.c.bf16 %v5018, %v5018
  %v5028 = vpack.c.bf16 %v5019, %v5019
  %v5029 = vpack.c.bf16 %v5020, %v5020
  %v5030 = vpack.c.bf16 %v5021, %v5021
  %v5031 = vpack.c.bf16 %v5022, %v5022
  %v5032 = vpack.c.bf16 %v5023, %v5023
  %v5033 = vpack.c.bf16 %v5024, %v5024
  %v5034 = vpack.c.bf16 %v5025, %v5025
  %v5035 = vpack.c.bf16 %v5026, %v5026
  %v5036 = vld [vmem:[%s13] sm:$0xff]
  %v5037 = vld [vmem:[%s13 + $0x8] sm:$0xff]
  %v5038 = vld [vmem:[%s13 + $0x10] sm:$0xff]
  %v5039 = vld [vmem:[%s13 + $0x18] sm:$0xff]
  %v5040 = vld [vmem:[%s13 + $0x20] sm:$0xff]
  %v5041 = vld [vmem:[%s13 + $0x28] sm:$0xff]
  %v5042 = vld [vmem:[%s13 + $0x30] sm:$0xff]
  %v5043 = vld [vmem:[%s13 + $0x38] sm:$0xff]
  %v5044 = vld [vmem:[%s13 + $0x40] sm:$0xff]
  %v5045 = vld [vmem:[%s13 + $0x48] sm:$0xff]
  %v5046 = vld [vmem:[%s13 + $0x50] sm:$0xff]
  %v5047 = vld [vmem:[%s13 + $0x58] sm:$0xff]
  %v5048 = vld [vmem:[%s13 + $0x60] sm:$0xff]
  %v5049 = vld [vmem:[%s13 + $0x68] sm:$0xff]
  %v5050 = vld [vmem:[%s13 + $0x70] sm:$0xff]
  %v5051 = vld [vmem:[%s13 + $0x78] sm:$0xff]
  %v5052 = vld [vmem:[%s13 + $0x80] sm:$0xff]
  %v5053 = vld [vmem:[%s13 + $0x88] sm:$0xff]
  %v5054 = vld [vmem:[%s13 + $0x90] sm:$0xff]
  %v5055 = vld [vmem:[%s13 + $0x98] sm:$0xff]
  %v5056 = vld [vmem:[%s13 + $0xa0] sm:$0xff]
  %v5057 = vld [vmem:[%s13 + $0xa8] sm:$0xff]
  %v5058 = vld [vmem:[%s13 + $0xb0] sm:$0xff]
  %v5059 = vld [vmem:[%s13 + $0xb8] sm:$0xff]
  %v5060 = vld [vmem:[%s13 + $0xc0] sm:$0xff]
  %v5061 = vld [vmem:[%s13 + $0xc8] sm:$0xff]
  %v5062 = vld [vmem:[%s13 + $0xd0] sm:$0xff]
  %v5063 = vld [vmem:[%s13 + $0xd8] sm:$0xff]
  %v5064 = vld [vmem:[%s13 + $0xe0] sm:$0xff]
  %v5065 = vld [vmem:[%s13 + $0xe8] sm:$0xff]
  %v5066 = vld [vmem:[%s13 + $0xf0] sm:$0xff]
  %v5067 = vld [vmem:[%s13 + $0xf8] sm:$0xff]
  %v5068 = vld [vmem:[%s13 + $0x100] sm:$0xff]
  %v5069 = vld [vmem:[%s13 + $0x108] sm:$0xff]
  %v5070 = vld [vmem:[%s13 + $0x110] sm:$0xff]
  %v5071 = vld [vmem:[%s13 + $0x118] sm:$0xff]
  %v5072 = vld [vmem:[%s13 + $0x120] sm:$0xff]
  %v5073 = vld [vmem:[%s13 + $0x128] sm:$0xff]
  %v5074 = vld [vmem:[%s13 + $0x130] sm:$0xff]
  %v5075 = vld [vmem:[%s13 + $0x138] sm:$0xff]
  %v5076 = vld [vmem:[%s13 + $0x140] sm:$0xff]
  %v5077 = vld [vmem:[%s13 + $0x148] sm:$0xff]
  %v5078 = vld [vmem:[%s13 + $0x150] sm:$0xff]
  %v5079 = vld [vmem:[%s13 + $0x158] sm:$0xff]
  %v5080 = vld [vmem:[%s13 + $0x160] sm:$0xff]
  %v5081 = vld [vmem:[%s13 + $0x168] sm:$0xff]
  %v5082 = vld [vmem:[%s13 + $0x170] sm:$0xff]
  %v5083 = vld [vmem:[%s13 + $0x178] sm:$0xff]
  %v5084 = vld [vmem:[%s13 + $0x180] sm:$0xff]
  %v5085 = vld [vmem:[%s13 + $0x188] sm:$0xff]
  %v5086 = vld [vmem:[%s13 + $0x190] sm:$0xff]
  %v5087 = vld [vmem:[%s13 + $0x198] sm:$0xff]
  %v5088 = vld [vmem:[%s13 + $0x1a0] sm:$0xff]
  %v5089 = vld [vmem:[%s13 + $0x1a8] sm:$0xff]
  %v5090 = vld [vmem:[%s13 + $0x1b0] sm:$0xff]
  %v5091 = vld [vmem:[%s13 + $0x1b8] sm:$0xff]
  %v5092 = vld [vmem:[%s13 + $0x1c0] sm:$0xff]
  %v5093 = vld [vmem:[%s13 + $0x1c8] sm:$0xff]
  %v5094 = vld [vmem:[%s13 + $0x1d0] sm:$0xff]
  %v5095 = vld [vmem:[%s13 + $0x1d8] sm:$0xff]
  %v5096 = vld [vmem:[%s13 + $0x1e0] sm:$0xff]
  %v5097 = vld [vmem:[%s13 + $0x1e8] sm:$0xff]
  %v5098 = vld [vmem:[%s13 + $0x1f0] sm:$0xff]
  %v5099 = vld [vmem:[%s13 + $0x1f8] sm:$0xff]
  %v5100 = vld [vmem:[%s13 + $0x200] sm:$0xff]
  %v5101 = vld [vmem:[%s13 + $0x208] sm:$0xff]
  %v5102 = vld [vmem:[%s13 + $0x210] sm:$0xff]
  %v5103 = vld [vmem:[%s13 + $0x218] sm:$0xff]
  %v5104 = vld [vmem:[%s13 + $0x220] sm:$0xff]
  %v5105 = vld [vmem:[%s13 + $0x228] sm:$0xff]
  %v5106 = vld [vmem:[%s13 + $0x230] sm:$0xff]
  %v5107 = vld [vmem:[%s13 + $0x238] sm:$0xff]
  %v5108 = vld [vmem:[%s13 + $0x240] sm:$0xff]
  %v5109 = vld [vmem:[%s13 + $0x248] sm:$0xff]
  %v5110 = vld [vmem:[%s13 + $0x250] sm:$0xff]
  %v5111 = vld [vmem:[%s13 + $0x258] sm:$0xff]
  %v5112 = vld [vmem:[%s13 + $0x260] sm:$0xff]
  %v5113 = vld [vmem:[%s13 + $0x268] sm:$0xff]
  %v5114 = vld [vmem:[%s13 + $0x270] sm:$0xff]
  %v5115 = vld [vmem:[%s13 + $0x278] sm:$0xff]
  %v5116 = vld [vmem:[%s13 + $0x280] sm:$0xff]
  %v5117 = vld [vmem:[%s13 + $0x288] sm:$0xff]
  %v5118 = vld [vmem:[%s13 + $0x290] sm:$0xff]
  %v5119 = vld [vmem:[%s13 + $0x298] sm:$0xff]
  %v5120 = vld [vmem:[%s13 + $0x2a0] sm:$0xff]
  %v5121 = vld [vmem:[%s13 + $0x2a8] sm:$0xff]
  %v5122 = vld [vmem:[%s13 + $0x2b0] sm:$0xff]
  %v5123 = vld [vmem:[%s13 + $0x2b8] sm:$0xff]
  %v5124 = vld [vmem:[%s13 + $0x2c0] sm:$0xff]
  %v5125 = vld [vmem:[%s13 + $0x2c8] sm:$0xff]
  %v5126 = vld [vmem:[%s13 + $0x2d0] sm:$0xff]
  %v5127 = vld [vmem:[%s13 + $0x2d8] sm:$0xff]
  %v5128 = vld [vmem:[%s13 + $0x2e0] sm:$0xff]
  %v5129 = vld [vmem:[%s13 + $0x2e8] sm:$0xff]
  %v5130 = vld [vmem:[%s13 + $0x2f0] sm:$0xff]
  %v5131 = vld [vmem:[%s13 + $0x2f8] sm:$0xff]
  %v5132 = vld [vmem:[%s13 + $0x300] sm:$0xff]
  %v5133 = vld [vmem:[%s13 + $0x308] sm:$0xff]
  %v5134 = vld [vmem:[%s13 + $0x310] sm:$0xff]
  %v5135 = vld [vmem:[%s13 + $0x318] sm:$0xff]
  %v5136 = vld [vmem:[%s13 + $0x320] sm:$0xff]
  %v5137 = vld [vmem:[%s13 + $0x328] sm:$0xff]
  %v5138 = vld [vmem:[%s13 + $0x330] sm:$0xff]
  %v5139 = vld [vmem:[%s13 + $0x338] sm:$0xff]
  %v5140 = vld [vmem:[%s13 + $0x340] sm:$0xff]
  %v5141 = vld [vmem:[%s13 + $0x348] sm:$0xff]
  %v5142 = vld [vmem:[%s13 + $0x350] sm:$0xff]
  %v5143 = vld [vmem:[%s13 + $0x358] sm:$0xff]
  %v5144 = vld [vmem:[%s13 + $0x360] sm:$0xff]
  %v5145 = vld [vmem:[%s13 + $0x368] sm:$0xff]
  %v5146 = vld [vmem:[%s13 + $0x370] sm:$0xff]
  %v5147 = vld [vmem:[%s13 + $0x378] sm:$0xff]
  %v5148 = vld [vmem:[%s13 + $0x380] sm:$0xff]
  %v5149 = vld [vmem:[%s13 + $0x388] sm:$0xff]
  %v5150 = vld [vmem:[%s13 + $0x390] sm:$0xff]
  %v5151 = vld [vmem:[%s13 + $0x398] sm:$0xff]
  %v5152 = vld [vmem:[%s13 + $0x3a0] sm:$0xff]
  %v5153 = vld [vmem:[%s13 + $0x3a8] sm:$0xff]
  %v5154 = vld [vmem:[%s13 + $0x3b0] sm:$0xff]
  %v5155 = vld [vmem:[%s13 + $0x3b8] sm:$0xff]
  %v5156 = vld [vmem:[%s13 + $0x3c0] sm:$0xff]
  %v5157 = vld [vmem:[%s13 + $0x3c8] sm:$0xff]
  %v5158 = vld [vmem:[%s13 + $0x3d0] sm:$0xff]
  %v5159 = vld [vmem:[%s13 + $0x3d8] sm:$0xff]
  %v5160 = vld [vmem:[%s13 + $0x3e0] sm:$0xff]
  %v5161 = vld [vmem:[%s13 + $0x3e8] sm:$0xff]
  %v5162 = vld [vmem:[%s13 + $0x3f0] sm:$0xff]
  %v5163 = vld [vmem:[%s13 + $0x3f8] sm:$0xff]
  %v5164 = vld [vmem:[%s13 + $0x400] sm:$0xff]
  %v5165 = vld [vmem:[%s13 + $0x408] sm:$0xff]
  %v5166 = vld [vmem:[%s13 + $0x410] sm:$0xff]
  %v5167 = vld [vmem:[%s13 + $0x418] sm:$0xff]
  %v5168 = vld [vmem:[%s13 + $0x420] sm:$0xff]
  %v5169 = vld [vmem:[%s13 + $0x428] sm:$0xff]
  %v5170 = vld [vmem:[%s13 + $0x430] sm:$0xff]
  %v5171 = vld [vmem:[%s13 + $0x438] sm:$0xff]
  %v5172 = vld [vmem:[%s13 + $0x440] sm:$0xff]
  %v5173 = vld [vmem:[%s13 + $0x448] sm:$0xff]
  %v5174 = vld [vmem:[%s13 + $0x450] sm:$0xff]
  %v5175 = vld [vmem:[%s13 + $0x458] sm:$0xff]
  %v5176 = vld [vmem:[%s13 + $0x460] sm:$0xff]
  %v5177 = vld [vmem:[%s13 + $0x468] sm:$0xff]
  %v5178 = vld [vmem:[%s13 + $0x470] sm:$0xff]
  %v5179 = vld [vmem:[%s13 + $0x478] sm:$0xff]
  %v5180 = vld [vmem:[%s14] sm:$0x3]
  %v5182 = vlaneseq
  %v5183 = vshrl.u32 %v5182, 7
  %v5184 = vsub.s32 0, %v5183
  %v5185 = vrot.slane %v5180, %v5184
  %v5186 = vlaneseq
  %v5187 = vshrl.u32 %v5186, 7
  %v5188 = vsub.s32 1, %v5187
  %v5189 = vrot.slane %v5180, %v5188
  %v5336 = vunpack.c.l.b16 %v5036
  %v5337 = vunpack.c.h.b16 %v5036
  %v5338 = vunpack.c.l.b16 %v5037
  %v5339 = vunpack.c.h.b16 %v5037
  %v5340 = vunpack.c.l.b16 %v5038
  %v5341 = vunpack.c.h.b16 %v5038
  %v5342 = vunpack.c.l.b16 %v5039
  %v5343 = vunpack.c.h.b16 %v5039
  %v5344 = vunpack.c.l.b16 %v5040
  %v5345 = vunpack.c.h.b16 %v5040
  %v5346 = vunpack.c.l.b16 %v5041
  %v5347 = vunpack.c.h.b16 %v5041
  %v5348 = vunpack.c.l.b16 %v5042
  %v5349 = vunpack.c.h.b16 %v5042
  %v5350 = vunpack.c.l.b16 %v5043
  %v5351 = vunpack.c.h.b16 %v5043
  %v5352 = vunpack.c.l.b16 %v5044
  %v5353 = vunpack.c.h.b16 %v5044
  %v5354 = vunpack.c.l.b16 %v5045
  %v5355 = vunpack.c.h.b16 %v5045
  %v5356 = vunpack.c.l.b16 %v5046
  %v5357 = vunpack.c.h.b16 %v5046
  %v5358 = vunpack.c.l.b16 %v5047
  %v5359 = vunpack.c.h.b16 %v5047
  %v5360 = vunpack.c.l.b16 %v5048
  %v5361 = vunpack.c.h.b16 %v5048
  %v5362 = vunpack.c.l.b16 %v5049
  %v5363 = vunpack.c.h.b16 %v5049
  %v5364 = vunpack.c.l.b16 %v5050
  %v5365 = vunpack.c.h.b16 %v5050
  %v5366 = vunpack.c.l.b16 %v5051
  %v5367 = vunpack.c.h.b16 %v5051
  %v5368 = vunpack.c.l.b16 %v5052
  %v5369 = vunpack.c.h.b16 %v5052
  %v5370 = vunpack.c.l.b16 %v5053
  %v5371 = vunpack.c.h.b16 %v5053
  %v5372 = vunpack.c.l.b16 %v5054
  %v5373 = vunpack.c.h.b16 %v5054
  %v5374 = vunpack.c.l.b16 %v5055
  %v5375 = vunpack.c.h.b16 %v5055
  %v5376 = vunpack.c.l.b16 %v5056
  %v5377 = vunpack.c.h.b16 %v5056
  %v5378 = vunpack.c.l.b16 %v5057
  %v5379 = vunpack.c.h.b16 %v5057
  %v5380 = vunpack.c.l.b16 %v5058
  %v5381 = vunpack.c.h.b16 %v5058
  %v5382 = vunpack.c.l.b16 %v5059
  %v5383 = vunpack.c.h.b16 %v5059
  %v5384 = vunpack.c.l.b16 %v5060
  %v5385 = vunpack.c.h.b16 %v5060
  %v5386 = vunpack.c.l.b16 %v5061
  %v5387 = vunpack.c.h.b16 %v5061
  %v5388 = vunpack.c.l.b16 %v5062
  %v5389 = vunpack.c.h.b16 %v5062
  %v5390 = vunpack.c.l.b16 %v5063
  %v5391 = vunpack.c.h.b16 %v5063
  %v5392 = vunpack.c.l.b16 %v5064
  %v5393 = vunpack.c.h.b16 %v5064
  %v5394 = vunpack.c.l.b16 %v5065
  %v5395 = vunpack.c.h.b16 %v5065
  %v5396 = vunpack.c.l.b16 %v5066
  %v5397 = vunpack.c.h.b16 %v5066
  %v5398 = vunpack.c.l.b16 %v5067
  %v5399 = vunpack.c.h.b16 %v5067
  %v5400 = vunpack.c.l.b16 %v5068
  %v5401 = vunpack.c.h.b16 %v5068
  %v5402 = vunpack.c.l.b16 %v5069
  %v5403 = vunpack.c.h.b16 %v5069
  %v5404 = vunpack.c.l.b16 %v5070
  %v5405 = vunpack.c.h.b16 %v5070
  %v5406 = vunpack.c.l.b16 %v5071
  %v5407 = vunpack.c.h.b16 %v5071
  %v5408 = vunpack.c.l.b16 %v5072
  %v5409 = vunpack.c.h.b16 %v5072
  %v5410 = vunpack.c.l.b16 %v5073
  %v5411 = vunpack.c.h.b16 %v5073
  %v5412 = vunpack.c.l.b16 %v5074
  %v5413 = vunpack.c.h.b16 %v5074
  %v5414 = vunpack.c.l.b16 %v5075
  %v5415 = vunpack.c.h.b16 %v5075
  %v5416 = vunpack.c.l.b16 %v5076
  %v5417 = vunpack.c.h.b16 %v5076
  %v5418 = vunpack.c.l.b16 %v5077
  %v5419 = vunpack.c.h.b16 %v5077
  %v5420 = vunpack.c.l.b16 %v5078
  %v5421 = vunpack.c.h.b16 %v5078
  %v5422 = vunpack.c.l.b16 %v5079
  %v5423 = vunpack.c.h.b16 %v5079
  %v5424 = vunpack.c.l.b16 %v5080
  %v5425 = vunpack.c.h.b16 %v5080
  %v5426 = vunpack.c.l.b16 %v5081
  %v5427 = vunpack.c.h.b16 %v5081
  %v5428 = vunpack.c.l.b16 %v5082
  %v5429 = vunpack.c.h.b16 %v5082
  %v5430 = vunpack.c.l.b16 %v5083
  %v5431 = vunpack.c.h.b16 %v5083
  %v5432 = vunpack.c.l.b16 %v5084
  %v5433 = vunpack.c.h.b16 %v5084
  %v5434 = vunpack.c.l.b16 %v5085
  %v5435 = vunpack.c.h.b16 %v5085
  %v5436 = vunpack.c.l.b16 %v5086
  %v5437 = vunpack.c.h.b16 %v5086
  %v5438 = vunpack.c.l.b16 %v5087
  %v5439 = vunpack.c.h.b16 %v5087
  %v5440 = vunpack.c.l.b16 %v5088
  %v5441 = vunpack.c.h.b16 %v5088
  %v5442 = vunpack.c.l.b16 %v5089
  %v5443 = vunpack.c.h.b16 %v5089
  %v5444 = vunpack.c.l.b16 %v5090
  %v5445 = vunpack.c.h.b16 %v5090
  %v5446 = vunpack.c.l.b16 %v5091
  %v5447 = vunpack.c.h.b16 %v5091
  %v5448 = vunpack.c.l.b16 %v5092
  %v5449 = vunpack.c.h.b16 %v5092
  %v5450 = vunpack.c.l.b16 %v5093
  %v5451 = vunpack.c.h.b16 %v5093
  %v5452 = vunpack.c.l.b16 %v5094
  %v5453 = vunpack.c.h.b16 %v5094
  %v5454 = vunpack.c.l.b16 %v5095
  %v5455 = vunpack.c.h.b16 %v5095
  %v5456 = vunpack.c.l.b16 %v5096
  %v5457 = vunpack.c.h.b16 %v5096
  %v5458 = vunpack.c.l.b16 %v5097
  %v5459 = vunpack.c.h.b16 %v5097
  %v5460 = vunpack.c.l.b16 %v5098
  %v5461 = vunpack.c.h.b16 %v5098
  %v5462 = vunpack.c.l.b16 %v5099
  %v5463 = vunpack.c.h.b16 %v5099
  %v5464 = vunpack.c.l.b16 %v5100
  %v5465 = vunpack.c.h.b16 %v5100
  %v5466 = vunpack.c.l.b16 %v5101
  %v5467 = vunpack.c.h.b16 %v5101
  %v5468 = vunpack.c.l.b16 %v5102
  %v5469 = vunpack.c.h.b16 %v5102
  %v5470 = vunpack.c.l.b16 %v5103
  %v5471 = vunpack.c.h.b16 %v5103
  %v5472 = vunpack.c.l.b16 %v5104
  %v5473 = vunpack.c.h.b16 %v5104
  %v5474 = vunpack.c.l.b16 %v5105
  %v5475 = vunpack.c.h.b16 %v5105
  %v5476 = vunpack.c.l.b16 %v5106
  %v5477 = vunpack.c.h.b16 %v5106
  %v5478 = vunpack.c.l.b16 %v5107
  %v5479 = vunpack.c.h.b16 %v5107
  %v5480 = vunpack.c.l.b16 %v5108
  %v5481 = vunpack.c.h.b16 %v5108
  %v5482 = vunpack.c.l.b16 %v5109
  %v5483 = vunpack.c.h.b16 %v5109
  %v5484 = vunpack.c.l.b16 %v5110
  %v5485 = vunpack.c.h.b16 %v5110
  %v5486 = vunpack.c.l.b16 %v5111
  %v5487 = vunpack.c.h.b16 %v5111
  %v5488 = vunpack.c.l.b16 %v5112
  %v5489 = vunpack.c.h.b16 %v5112
  %v5490 = vunpack.c.l.b16 %v5113
  %v5491 = vunpack.c.h.b16 %v5113
  %v5492 = vunpack.c.l.b16 %v5114
  %v5493 = vunpack.c.h.b16 %v5114
  %v5494 = vunpack.c.l.b16 %v5115
  %v5495 = vunpack.c.h.b16 %v5115
  %v5496 = vunpack.c.l.b16 %v5116
  %v5497 = vunpack.c.h.b16 %v5116
  %v5498 = vunpack.c.l.b16 %v5117
  %v5499 = vunpack.c.h.b16 %v5117
  %v5500 = vunpack.c.l.b16 %v5118
  %v5501 = vunpack.c.h.b16 %v5118
  %v5502 = vunpack.c.l.b16 %v5119
  %v5503 = vunpack.c.h.b16 %v5119
  %v5504 = vunpack.c.l.b16 %v5120
  %v5505 = vunpack.c.h.b16 %v5120
  %v5506 = vunpack.c.l.b16 %v5121
  %v5507 = vunpack.c.h.b16 %v5121
  %v5508 = vunpack.c.l.b16 %v5122
  %v5509 = vunpack.c.h.b16 %v5122
  %v5510 = vunpack.c.l.b16 %v5123
  %v5511 = vunpack.c.h.b16 %v5123
  %v5512 = vunpack.c.l.b16 %v5124
  %v5513 = vunpack.c.h.b16 %v5124
  %v5514 = vunpack.c.l.b16 %v5125
  %v5515 = vunpack.c.h.b16 %v5125
  %v5516 = vunpack.c.l.b16 %v5126
  %v5517 = vunpack.c.h.b16 %v5126
  %v5518 = vunpack.c.l.b16 %v5127
  %v5519 = vunpack.c.h.b16 %v5127
  %v5520 = vunpack.c.l.b16 %v5128
  %v5521 = vunpack.c.h.b16 %v5128
  %v5522 = vunpack.c.l.b16 %v5129
  %v5523 = vunpack.c.h.b16 %v5129
  %v5524 = vunpack.c.l.b16 %v5130
  %v5525 = vunpack.c.h.b16 %v5130
  %v5526 = vunpack.c.l.b16 %v5131
  %v5527 = vunpack.c.h.b16 %v5131
  %v5528 = vunpack.c.l.b16 %v5132
  %v5529 = vunpack.c.h.b16 %v5132
  %v5530 = vunpack.c.l.b16 %v5133
  %v5531 = vunpack.c.h.b16 %v5133
  %v5532 = vunpack.c.l.b16 %v5134
  %v5533 = vunpack.c.h.b16 %v5134
  %v5534 = vunpack.c.l.b16 %v5135
  %v5535 = vunpack.c.h.b16 %v5135
  %v5536 = vunpack.c.l.b16 %v5136
  %v5537 = vunpack.c.h.b16 %v5136
  %v5538 = vunpack.c.l.b16 %v5137
  %v5539 = vunpack.c.h.b16 %v5137
  %v5540 = vunpack.c.l.b16 %v5138
  %v5541 = vunpack.c.h.b16 %v5138
  %v5542 = vunpack.c.l.b16 %v5139
  %v5543 = vunpack.c.h.b16 %v5139
  %v5544 = vunpack.c.l.b16 %v5140
  %v5545 = vunpack.c.h.b16 %v5140
  %v5546 = vunpack.c.l.b16 %v5141
  %v5547 = vunpack.c.h.b16 %v5141
  %v5548 = vunpack.c.l.b16 %v5142
  %v5549 = vunpack.c.h.b16 %v5142
  %v5550 = vunpack.c.l.b16 %v5143
  %v5551 = vunpack.c.h.b16 %v5143
  %v5552 = vunpack.c.l.b16 %v5144
  %v5553 = vunpack.c.h.b16 %v5144
  %v5554 = vunpack.c.l.b16 %v5145
  %v5555 = vunpack.c.h.b16 %v5145
  %v5556 = vunpack.c.l.b16 %v5146
  %v5557 = vunpack.c.h.b16 %v5146
  %v5558 = vunpack.c.l.b16 %v5147
  %v5559 = vunpack.c.h.b16 %v5147
  %v5560 = vunpack.c.l.b16 %v5148
  %v5561 = vunpack.c.h.b16 %v5148
  %v5562 = vunpack.c.l.b16 %v5149
  %v5563 = vunpack.c.h.b16 %v5149
  %v5564 = vunpack.c.l.b16 %v5150
  %v5565 = vunpack.c.h.b16 %v5150
  %v5566 = vunpack.c.l.b16 %v5151
  %v5567 = vunpack.c.h.b16 %v5151
  %v5568 = vunpack.c.l.b16 %v5152
  %v5569 = vunpack.c.h.b16 %v5152
  %v5570 = vunpack.c.l.b16 %v5153
  %v5571 = vunpack.c.h.b16 %v5153
  %v5572 = vunpack.c.l.b16 %v5154
  %v5573 = vunpack.c.h.b16 %v5154
  %v5574 = vunpack.c.l.b16 %v5155
  %v5575 = vunpack.c.h.b16 %v5155
  %v5576 = vunpack.c.l.b16 %v5156
  %v5577 = vunpack.c.h.b16 %v5156
  %v5578 = vunpack.c.l.b16 %v5157
  %v5579 = vunpack.c.h.b16 %v5157
  %v5580 = vunpack.c.l.b16 %v5158
  %v5581 = vunpack.c.h.b16 %v5158
  %v5582 = vunpack.c.l.b16 %v5159
  %v5583 = vunpack.c.h.b16 %v5159
  %v5584 = vunpack.c.l.b16 %v5160
  %v5585 = vunpack.c.h.b16 %v5160
  %v5586 = vunpack.c.l.b16 %v5161
  %v5587 = vunpack.c.h.b16 %v5161
  %v5588 = vunpack.c.l.b16 %v5162
  %v5589 = vunpack.c.h.b16 %v5162
  %v5590 = vunpack.c.l.b16 %v5163
  %v5591 = vunpack.c.h.b16 %v5163
  %v5592 = vunpack.c.l.b16 %v5164
  %v5593 = vunpack.c.h.b16 %v5164
  %v5594 = vunpack.c.l.b16 %v5165
  %v5595 = vunpack.c.h.b16 %v5165
  %v5596 = vunpack.c.l.b16 %v5166
  %v5597 = vunpack.c.h.b16 %v5166
  %v5598 = vunpack.c.l.b16 %v5167
  %v5599 = vunpack.c.h.b16 %v5167
  %v5600 = vunpack.c.l.b16 %v5168
  %v5601 = vunpack.c.h.b16 %v5168
  %v5602 = vunpack.c.l.b16 %v5169
  %v5603 = vunpack.c.h.b16 %v5169
  %v5604 = vunpack.c.l.b16 %v5170
  %v5605 = vunpack.c.h.b16 %v5170
  %v5606 = vunpack.c.l.b16 %v5171
  %v5607 = vunpack.c.h.b16 %v5171
  %v5608 = vunpack.c.l.b16 %v5172
  %v5609 = vunpack.c.h.b16 %v5172
  %v5610 = vunpack.c.l.b16 %v5173
  %v5611 = vunpack.c.h.b16 %v5173
  %v5612 = vunpack.c.l.b16 %v5174
  %v5613 = vunpack.c.h.b16 %v5174
  %v5614 = vunpack.c.l.b16 %v5175
  %v5615 = vunpack.c.h.b16 %v5175
  %v5616 = vunpack.c.l.b16 %v5176
  %v5617 = vunpack.c.h.b16 %v5176
  %v5618 = vunpack.c.l.b16 %v5177
  %v5619 = vunpack.c.h.b16 %v5177
  %v5620 = vunpack.c.l.b16 %v5178
  %v5621 = vunpack.c.h.b16 %v5178
  %v5622 = vunpack.c.l.b16 %v5179
  %v5623 = vunpack.c.h.b16 %v5179
  %v5624 = vpack.c.b16 %v5338, %v5336
  %v5625 = vpack.c.b16 %v5339, %v5337
  %v5626 = vpack.c.b16 %v5342, %v5340
  %v5627 = vpack.c.b16 %v5343, %v5341
  %v5628 = vpack.c.b16 %v5346, %v5344
  %v5629 = vpack.c.b16 %v5347, %v5345
  %v5630 = vpack.c.b16 %v5350, %v5348
  %v5631 = vpack.c.b16 %v5351, %v5349
  %v5632 = vpack.c.b16 %v5354, %v5352
  %v5633 = vpack.c.b16 %v5355, %v5353
  %v5634 = vpack.c.b16 %v5358, %v5356
  %v5635 = vpack.c.b16 %v5359, %v5357
  %v5636 = vpack.c.b16 %v5362, %v5360
  %v5637 = vpack.c.b16 %v5363, %v5361
  %v5638 = vpack.c.b16 %v5366, %v5364
  %v5639 = vpack.c.b16 %v5367, %v5365
  %v5640 = vpack.c.b16 %v5370, %v5368
  %v5641 = vpack.c.b16 %v5371, %v5369
  %v5642 = vpack.c.b16 %v5374, %v5372
  %v5643 = vpack.c.b16 %v5375, %v5373
  %v5644 = vpack.c.b16 %v5378, %v5376
  %v5645 = vpack.c.b16 %v5379, %v5377
  %v5646 = vpack.c.b16 %v5382, %v5380
  %v5647 = vpack.c.b16 %v5383, %v5381
  %v5648 = vpack.c.b16 %v5386, %v5384
  %v5649 = vpack.c.b16 %v5387, %v5385
  %v5650 = vpack.c.b16 %v5390, %v5388
  %v5651 = vpack.c.b16 %v5391, %v5389
  %v5652 = vpack.c.b16 %v5394, %v5392
  %v5653 = vpack.c.b16 %v5395, %v5393
  %v5654 = vpack.c.b16 %v5398, %v5396
  %v5655 = vpack.c.b16 %v5399, %v5397
  %v5656 = vpack.c.b16 %v5402, %v5400
  %v5657 = vpack.c.b16 %v5403, %v5401
  %v5658 = vpack.c.b16 %v5406, %v5404
  %v5659 = vpack.c.b16 %v5407, %v5405
  %v5660 = vpack.c.b16 %v5410, %v5408
  %v5661 = vpack.c.b16 %v5411, %v5409
  %v5662 = vpack.c.b16 %v5414, %v5412
  %v5663 = vpack.c.b16 %v5415, %v5413
  %v5664 = vpack.c.b16 %v5418, %v5416
  %v5665 = vpack.c.b16 %v5419, %v5417
  %v5666 = vpack.c.b16 %v5422, %v5420
  %v5667 = vpack.c.b16 %v5423, %v5421
  %v5668 = vpack.c.b16 %v5426, %v5424
  %v5669 = vpack.c.b16 %v5427, %v5425
  %v5670 = vpack.c.b16 %v5430, %v5428
  %v5671 = vpack.c.b16 %v5431, %v5429
  %v5672 = vpack.c.b16 %v5434, %v5432
  %v5673 = vpack.c.b16 %v5435, %v5433
  %v5674 = vpack.c.b16 %v5438, %v5436
  %v5675 = vpack.c.b16 %v5439, %v5437
  %v5676 = vpack.c.b16 %v5442, %v5440
  %v5677 = vpack.c.b16 %v5443, %v5441
  %v5678 = vpack.c.b16 %v5446, %v5444
  %v5679 = vpack.c.b16 %v5447, %v5445
  %v5680 = vpack.c.b16 %v5450, %v5448
  %v5681 = vpack.c.b16 %v5451, %v5449
  %v5682 = vpack.c.b16 %v5454, %v5452
  %v5683 = vpack.c.b16 %v5455, %v5453
  %v5684 = vpack.c.b16 %v5458, %v5456
  %v5685 = vpack.c.b16 %v5459, %v5457
  %v5686 = vpack.c.b16 %v5462, %v5460
  %v5687 = vpack.c.b16 %v5463, %v5461
  %v5688 = vpack.c.b16 %v5466, %v5464
  %v5689 = vpack.c.b16 %v5467, %v5465
  %v5690 = vpack.c.b16 %v5470, %v5468
  %v5691 = vpack.c.b16 %v5471, %v5469
  %v5692 = vpack.c.b16 %v5474, %v5472
  %v5693 = vpack.c.b16 %v5475, %v5473
  %v5694 = vpack.c.b16 %v5478, %v5476
  %v5695 = vpack.c.b16 %v5479, %v5477
  %v5696 = vpack.c.b16 %v5482, %v5480
  %v5697 = vpack.c.b16 %v5483, %v5481
  %v5698 = vpack.c.b16 %v5486, %v5484
  %v5699 = vpack.c.b16 %v5487, %v5485
  %v5700 = vpack.c.b16 %v5490, %v5488
  %v5701 = vpack.c.b16 %v5491, %v5489
  %v5702 = vpack.c.b16 %v5494, %v5492
  %v5703 = vpack.c.b16 %v5495, %v5493
  %v5704 = vpack.c.b16 %v5498, %v5496
  %v5705 = vpack.c.b16 %v5499, %v5497
  %v5706 = vpack.c.b16 %v5502, %v5500
  %v5707 = vpack.c.b16 %v5503, %v5501
  %v5708 = vpack.c.b16 %v5506, %v5504
  %v5709 = vpack.c.b16 %v5507, %v5505
  %v5710 = vpack.c.b16 %v5510, %v5508
  %v5711 = vpack.c.b16 %v5511, %v5509
  %v5712 = vpack.c.b16 %v5514, %v5512
  %v5713 = vpack.c.b16 %v5515, %v5513
  %v5714 = vpack.c.b16 %v5518, %v5516
  %v5715 = vpack.c.b16 %v5519, %v5517
  %v5716 = vpack.c.b16 %v5522, %v5520
  %v5717 = vpack.c.b16 %v5523, %v5521
  %v5718 = vpack.c.b16 %v5526, %v5524
  %v5719 = vpack.c.b16 %v5527, %v5525
  %v5720 = vpack.c.b16 %v5530, %v5528
  %v5721 = vpack.c.b16 %v5531, %v5529
  %v5722 = vpack.c.b16 %v5534, %v5532
  %v5723 = vpack.c.b16 %v5535, %v5533
  %v5724 = vpack.c.b16 %v5538, %v5536
  %v5725 = vpack.c.b16 %v5539, %v5537
  %v5726 = vpack.c.b16 %v5542, %v5540
  %v5727 = vpack.c.b16 %v5543, %v5541
  %v5728 = vpack.c.b16 %v5546, %v5544
  %v5729 = vpack.c.b16 %v5547, %v5545
  %v5730 = vpack.c.b16 %v5550, %v5548
  %v5731 = vpack.c.b16 %v5551, %v5549
  %v5732 = vpack.c.b16 %v5554, %v5552
  %v5733 = vpack.c.b16 %v5555, %v5553
  %v5734 = vpack.c.b16 %v5558, %v5556
  %v5735 = vpack.c.b16 %v5559, %v5557
  %v5736 = vpack.c.b16 %v5562, %v5560
  %v5737 = vpack.c.b16 %v5563, %v5561
  %v5738 = vpack.c.b16 %v5566, %v5564
  %v5739 = vpack.c.b16 %v5567, %v5565
  %v5740 = vpack.c.b16 %v5570, %v5568
  %v5741 = vpack.c.b16 %v5571, %v5569
  %v5742 = vpack.c.b16 %v5574, %v5572
  %v5743 = vpack.c.b16 %v5575, %v5573
  %v5744 = vpack.c.b16 %v5578, %v5576
  %v5745 = vpack.c.b16 %v5579, %v5577
  %v5746 = vpack.c.b16 %v5582, %v5580
  %v5747 = vpack.c.b16 %v5583, %v5581
  %v5748 = vpack.c.b16 %v5586, %v5584
  %v5749 = vpack.c.b16 %v5587, %v5585
  %v5750 = vpack.c.b16 %v5590, %v5588
  %v5751 = vpack.c.b16 %v5591, %v5589
  %v5752 = vpack.c.b16 %v5594, %v5592
  %v5753 = vpack.c.b16 %v5595, %v5593
  %v5754 = vpack.c.b16 %v5598, %v5596
  %v5755 = vpack.c.b16 %v5599, %v5597
  %v5756 = vpack.c.b16 %v5602, %v5600
  %v5757 = vpack.c.b16 %v5603, %v5601
  %v5758 = vpack.c.b16 %v5606, %v5604
  %v5759 = vpack.c.b16 %v5607, %v5605
  %v5760 = vpack.c.b16 %v5610, %v5608
  %v5761 = vpack.c.b16 %v5611, %v5609
  %v5762 = vpack.c.b16 %v5614, %v5612
  %v5763 = vpack.c.b16 %v5615, %v5613
  %v5764 = vpack.c.b16 %v5618, %v5616
  %v5765 = vpack.c.b16 %v5619, %v5617
  %v5766 = vpack.c.b16 %v5622, %v5620
  %v5767 = vpack.c.b16 %v5623, %v5621
  %5912 = vmatprep.subr.bf16.mxu0 %v5625
  %5913 = vmatpush1.bf16.msra.mxu0 %v5624
  %5914 = vmatprep.subr.bf16.mxu0 %v5627
  %5915 = vmatpush1.bf16.msra.mxu0 %v5626
  %5916 = vmatprep.subr.bf16.mxu0 %v5629
  %5917 = vmatpush1.bf16.msra.mxu0 %v5628
  %5918 = vmatprep.subr.bf16.mxu0 %v5631
  %5919 = vmatpush1.bf16.msra.mxu0 %v5630
  %5920 = vmatprep.subr.bf16.mxu0 %v5633
  %5921 = vmatpush1.bf16.msra.mxu0 %v5632
  %5922 = vmatprep.subr.bf16.mxu0 %v5635
  %5923 = vmatpush1.bf16.msra.mxu0 %v5634
  %5924 = vmatprep.subr.bf16.mxu0 %v5637
  %5925 = vmatpush1.bf16.msra.mxu0 %v5636
  %5926 = vmatprep.subr.bf16.mxu0 %v5639
  %5927 = vmatpush1.bf16.msra.mxu0 %v5638
  %5928 = vmatprep.subr.bf16.mxu0 %v5641
  %5929 = vmatpush1.bf16.msra.mxu0 %v5640
  %5930 = vmatprep.subr.bf16.mxu0 %v5643
  %5931 = vmatpush1.bf16.msra.mxu0 %v5642
  %5932 = vmatprep.subr.bf16.mxu0 %v5645
  %5933 = vmatpush1.bf16.msra.mxu0 %v5644
  %5934 = vmatprep.subr.bf16.mxu0 %v5647
  %5935 = vmatpush1.bf16.msra.mxu0 %v5646
  %5936 = vmatprep.subr.bf16.mxu0 %v5649
  %5937 = vmatpush1.bf16.msra.mxu0 %v5648
  %5938 = vmatprep.subr.bf16.mxu0 %v5651
  %5939 = vmatpush1.bf16.msra.mxu0 %v5650
  %5940 = vmatprep.subr.bf16.mxu0 %v5653
  %5941 = vmatpush1.bf16.msra.mxu0 %v5652
  %5942 = vmatprep.subr.bf16.mxu0 %v5655
  %5943 = vmatpush1.bf16.msra.mxu0 %v5654
  %5944 = vmatprep.mubr.bf16.mxu0 %v5028
  %5945 = vmatmul.mubr.bf16.gmra.mrb[0].mxu0 %v5027
  %v5946 = vpop.f32.mrb[0].mxu0
  %v5947 = vadd.f32 %v5185, %v5946
  %v5948 = vpop.f32.mrb[0].mxu0
  %v5949 = vadd.f32 %v5189, %v5948
  %v5950 = vpop.f32.mrb[0].mxu0
  %v5951 = vpop.f32.mrb[0].mxu0
  %5952 = vdwg.mxu0
  %5953 = vmatprep.subr.bf16.mxu0 %v5657
  %5954 = vmatpush1.bf16.msra.mxu0 %v5656
  %5955 = vmatprep.subr.bf16.mxu0 %v5659
  %5956 = vmatpush1.bf16.msra.mxu0 %v5658
  %5957 = vmatprep.subr.bf16.mxu0 %v5661
  %5958 = vmatpush1.bf16.msra.mxu0 %v5660
  %5959 = vmatprep.subr.bf16.mxu0 %v5663
  %5960 = vmatpush1.bf16.msra.mxu0 %v5662
  %5961 = vmatprep.subr.bf16.mxu0 %v5665
  %5962 = vmatpush1.bf16.msra.mxu0 %v5664
  %5963 = vmatprep.subr.bf16.mxu0 %v5667
  %5964 = vmatpush1.bf16.msra.mxu0 %v5666
  %5965 = vmatprep.subr.bf16.mxu0 %v5669
  %5966 = vmatpush1.bf16.msra.mxu0 %v5668
  %5967 = vmatprep.subr.bf16.mxu0 %v5671
  %5968 = vmatpush1.bf16.msra.mxu0 %v5670
  %5969 = vmatprep.subr.bf16.mxu0 %v5673
  %5970 = vmatpush1.bf16.msra.mxu0 %v5672
  %5971 = vmatprep.subr.bf16.mxu0 %v5675
  %5972 = vmatpush1.bf16.msra.mxu0 %v5674
  %5973 = vmatprep.subr.bf16.mxu0 %v5677
  %5974 = vmatpush1.bf16.msra.mxu0 %v5676
  %5975 = vmatprep.subr.bf16.mxu0 %v5679
  %5976 = vmatpush1.bf16.msra.mxu0 %v5678
  %5977 = vmatprep.subr.bf16.mxu0 %v5681
  %5978 = vmatpush1.bf16.msra.mxu0 %v5680
  %5979 = vmatprep.subr.bf16.mxu0 %v5683
  %5980 = vmatpush1.bf16.msra.mxu0 %v5682
  %5981 = vmatprep.subr.bf16.mxu0 %v5685
  %5982 = vmatpush1.bf16.msra.mxu0 %v5684
  %5983 = vmatprep.subr.bf16.mxu0 %v5687
  %5984 = vmatpush1.bf16.msra.mxu0 %v5686
  %5985 = vmatprep.mubr.bf16.mxu0 %v5030
  %5986 = vmatmul.mubr.bf16.gmra.mrb[0].mxu0 %v5029
  %v5987 = vpop.f32.mrb[0].mxu0
  %v5988 = vadd.f32 %v5947, %v5987
  %v5989 = vpop.f32.mrb[0].mxu0
  %v5990 = vadd.f32 %v5949, %v5989
  %v5991 = vpop.f32.mrb[0].mxu0
  %v5992 = vpop.f32.mrb[0].mxu0
  %5993 = vdwg.mxu0
  %5994 = vmatprep.subr.bf16.mxu0 %v5689
  %5995 = vmatpush1.bf16.msra.mxu0 %v5688
  %5996 = vmatprep.subr.bf16.mxu0 %v5691
  %5997 = vmatpush1.bf16.msra.mxu0 %v5690
  %5998 = vmatprep.subr.bf16.mxu0 %v5693
  %5999 = vmatpush1.bf16.msra.mxu0 %v5692
  %6000 = vmatprep.subr.bf16.mxu0 %v5695
  %6001 = vmatpush1.bf16.msra.mxu0 %v5694
  %6002 = vmatprep.subr.bf16.mxu0 %v5697
  %6003 = vmatpush1.bf16.msra.mxu0 %v5696
  %6004 = vmatprep.subr.bf16.mxu0 %v5699
  %6005 = vmatpush1.bf16.msra.mxu0 %v5698
  %6006 = vmatprep.subr.bf16.mxu0 %v5701
  %6007 = vmatpush1.bf16.msra.mxu0 %v5700
  %6008 = vmatprep.subr.bf16.mxu0 %v5703
  %6009 = vmatpush1.bf16.msra.mxu0 %v5702
  %6010 = vmatprep.subr.bf16.mxu0 %v5705
  %6011 = vmatpush1.bf16.msra.mxu0 %v5704
  %6012 = vmatprep.subr.bf16.mxu0 %v5707
  %6013 = vmatpush1.bf16.msra.mxu0 %v5706
  %6014 = vmatprep.subr.bf16.mxu0 %v5709
  %6015 = vmatpush1.bf16.msra.mxu0 %v5708
  %6016 = vmatprep.subr.bf16.mxu0 %v5711
  %6017 = vmatpush1.bf16.msra.mxu0 %v5710
  %6018 = vmatprep.subr.bf16.mxu0 %v5713
  %6019 = vmatpush1.bf16.msra.mxu0 %v5712
  %6020 = vmatprep.subr.bf16.mxu0 %v5715
  %6021 = vmatpush1.bf16.msra.mxu0 %v5714
  %6022 = vmatprep.subr.bf16.mxu0 %v5717
  %6023 = vmatpush1.bf16.msra.mxu0 %v5716
  %6024 = vmatprep.subr.bf16.mxu0 %v5719
  %6025 = vmatpush1.bf16.msra.mxu0 %v5718
  %6026 = vmatprep.mubr.bf16.mxu0 %v5032
  %6027 = vmatmul.mubr.bf16.gmra.mrb[0].mxu0 %v5031
  %v6028 = vpop.f32.mrb[0].mxu0
  %v6029 = vadd.f32 %v5988, %v6028
  %v6030 = vpop.f32.mrb[0].mxu0
  %v6031 = vadd.f32 %v5990, %v6030
  %v6032 = vpop.f32.mrb[0].mxu0
  %v6033 = vpop.f32.mrb[0].mxu0
  %6034 = vdwg.mxu0
  %6035 = vmatprep.subr.bf16.mxu0 %v5721
  %6036 = vmatpush1.bf16.msra.mxu0 %v5720
  %6037 = vmatprep.subr.bf16.mxu0 %v5723
  %6038 = vmatpush1.bf16.msra.mxu0 %v5722
  %6039 = vmatprep.subr.bf16.mxu0 %v5725
  %6040 = vmatpush1.bf16.msra.mxu0 %v5724
  %6041 = vmatprep.subr.bf16.mxu0 %v5727
  %6042 = vmatpush1.bf16.msra.mxu0 %v5726
  %6043 = vmatprep.subr.bf16.mxu0 %v5729
  %6044 = vmatpush1.bf16.msra.mxu0 %v5728
  %6045 = vmatprep.subr.bf16.mxu0 %v5731
  %6046 = vmatpush1.bf16.msra.mxu0 %v5730
  %6047 = vmatprep.subr.bf16.mxu0 %v5733
  %6048 = vmatpush1.bf16.msra.mxu0 %v5732
  %6049 = vmatprep.subr.bf16.mxu0 %v5735
  %6050 = vmatpush1.bf16.msra.mxu0 %v5734
  %6051 = vmatprep.subr.bf16.mxu0 %v5737
  %6052 = vmatpush1.bf16.msra.mxu0 %v5736
  %6053 = vmatprep.subr.bf16.mxu0 %v5739
  %6054 = vmatpush1.bf16.msra.mxu0 %v5738
  %6055 = vmatprep.subr.bf16.mxu0 %v5741
  %6056 = vmatpush1.bf16.msra.mxu0 %v5740
  %6057 = vmatprep.subr.bf16.mxu0 %v5743
  %6058 = vmatpush1.bf16.msra.mxu0 %v5742
  %6059 = vmatprep.subr.bf16.mxu0 %v5745
  %6060 = vmatpush1.bf16.msra.mxu0 %v5744
  %6061 = vmatprep.subr.bf16.mxu0 %v5747
  %6062 = vmatpush1.bf16.msra.mxu0 %v5746
  %6063 = vmatprep.subr.bf16.mxu0 %v5749
  %6064 = vmatpush1.bf16.msra.mxu0 %v5748
  %6065 = vmatprep.subr.bf16.mxu0 %v5751
  %6066 = vmatpush1.bf16.msra.mxu0 %v5750
  %6067 = vmatprep.mubr.bf16.mxu0 %v5034
  %6068 = vmatmul.mubr.bf16.gmra.mrb[0].mxu0 %v5033
  %v6069 = vpop.f32.mrb[0].mxu0
  %v6070 = vadd.f32 %v6029, %v6069
  %v6071 = vpop.f32.mrb[0].mxu0
  %v6072 = vadd.f32 %v6031, %v6071
  %v6073 = vpop.f32.mrb[0].mxu0
  %v6074 = vpop.f32.mrb[0].mxu0
  %6075 = vdwg.mxu0
  %6076 = vmatprep.subr.bf16.mxu0 %v5753
  %6077 = vmatpush1.bf16.msra.mxu0 %v5752
  %6078 = vmatprep.subr.bf16.mxu0 %v5755
  %6079 = vmatpush1.bf16.msra.mxu0 %v5754
  %6080 = vmatprep.subr.bf16.mxu0 %v5757
  %6081 = vmatpush1.bf16.msra.mxu0 %v5756
  %6082 = vmatprep.subr.bf16.mxu0 %v5759
  %6083 = vmatpush1.bf16.msra.mxu0 %v5758
  %6084 = vmatprep.subr.bf16.mxu0 %v5761
  %6085 = vmatpush1.bf16.msra.mxu0 %v5760
  %6086 = vmatprep.subr.bf16.mxu0 %v5763
  %6087 = vmatpush1.bf16.msra.mxu0 %v5762
  %6088 = vmatprep.subr.bf16.mxu0 %v5765
  %6089 = vmatpush1.bf16.msra.mxu0 %v5764
  %6090 = vmatprep.subr.bf16.mxu0 %v5767
  %6091 = vmatpush1.bf16.msra.mxu0 %v5766
  %6092 = vmatprep.subr.bf16.mxu0 0
  %6093 = vmatpush1.bf16.msra.mxu0 0
  %6094 = vmatprep.subr.bf16.mxu0 0
  %6095 = vmatpush1.bf16.msra.mxu0 0
  %6096 = vmatprep.subr.bf16.mxu0 0
  %6097 = vmatpush1.bf16.msra.mxu0 0
  %6098 = vmatprep.subr.bf16.mxu0 0
  %6099 = vmatpush1.bf16.msra.mxu0 0
  %6100 = vmatprep.subr.bf16.mxu0 0
  %6101 = vmatpush1.bf16.msra.mxu0 0
  %6102 = vmatprep.subr.bf16.mxu0 0
  %6103 = vmatpush1.bf16.msra.mxu0 0
  %6104 = vmatprep.subr.bf16.mxu0 0
  %6105 = vmatpush1.bf16.msra.mxu0 0
  %6106 = vmatprep.subr.bf16.mxu0 0
  %6107 = vmatpush1.bf16.msra.mxu0 0
  %6108 = vmatprep.mubr.bf16.mxu0 0
  %6109 = vmatmul.mubr.bf16.gmra.mrb[0].mxu0 %v5035
  %v6110 = vpop.f32.mrb[0].mxu0
  %v6111 = vadd.f32 %v6070, %v6110
  %v6112 = vpop.f32.mrb[0].mxu0
  %v6113 = vadd.f32 %v6072, %v6112
  %v6114 = vpop.f32.mrb[0].mxu0
  %v6115 = vpop.f32.mrb[0].mxu0
  %6116 = vdwg.mxu0
  %v6117 = vmax.f32 %v6111, 0.0
  %v6118 = vmax.f32 %v6113, 0.0
  %vm6119 = vcmask 1041408
  %v6120 = vsel %vm6119, %v6117, 0.0
  %v6121 = vrot.slane %v6120, 4
  %v6122 = vadd.f32 %v6120, %v6121
  %v6123 = vrot.slane %v6122, 2
  %v6124 = vadd.f32 %v6122, %v6123
  %v6125 = vrot.slane %v6124, 1
  %v6126 = vadd.f32 %v6124, %v6125
  %v6127 = vsel %vm6119, %v6118, 0.0
  %v6128 = vrot.slane %v6127, 4
  %v6129 = vadd.f32 %v6127, %v6128
  %v6130 = vrot.slane %v6129, 2
  %v6131 = vadd.f32 %v6129, %v6130
  %v6132 = vrot.slane %v6131, 1
  %v6133 = vadd.f32 %v6131, %v6132
  %v6134 = vrcp.pop 2.0
  %v6135 = vmul.f32 %v6126, %v6134
  %v6136 = vmul.f32 %v6133, %v6134
  %v6137 = vsub.f32 %v6117, %v6135
  %v6138 = vsub.f32 %v6118, %v6136
  %v6139 = vmul.f32 %v6137, %v6137
  %v6140 = vmul.f32 %v6138, %v6138
  %v6141 = vsel %vm6119, %v6139, 0.0
  %v6142 = vrot.slane %v6141, 4
  %v6143 = vadd.f32 %v6141, %v6142
  %v6144 = vrot.slane %v6143, 2
  %v6145 = vadd.f32 %v6143, %v6144
  %v6146 = vrot.slane %v6145, 1
  %v6147 = vadd.f32 %v6145, %v6146
  %v6148 = vsel %vm6119, %v6140, 0.0
  %v6149 = vrot.slane %v6148, 4
  %v6150 = vadd.f32 %v6148, %v6149
  %v6151 = vrot.slane %v6150, 2
  %v6152 = vadd.f32 %v6150, %v6151
  %v6153 = vrot.slane %v6152, 1
  %v6154 = vadd.f32 %v6152, %v6153
  %v6155 = vmul.f32 %v6147, %v6134
  %v6156 = vmul.f32 %v6154, %v6134
  %v6157 = vld [vmem:[%s15] sm:$0x3]
  %v6158 = vadd.f32 %v6155, 1e-05
  %v6159 = vadd.f32 %v6156, 1e-05
  %v6160 = vrsqrt.pop %v6158
  %v6161 = vrsqrt.pop %v6159
  %v6164 = vcombine.low %v6160, %v6161
  %v6166 = vunpack.c.l.s4 1966171168
  %v6167 = vunpack.c.0.s8 %v6166
  %v6168 = vlaneseq
  %v6169 = vshrl.u32 %v6168, 7
  %v6170 = vsub.s32 %v6167, %v6169
  %v6171 = vrot.slane %v6164, %v6170
  %v6173 = vunpack.c.l.s4 1966171168
  %v6174 = vunpack.c.0.s8 %v6173
  %v6175 = vlaneseq
  %v6176 = vshrl.u32 %v6175, 7
  %v6177 = vsub.s32 %v6174, %v6176
  %v6178 = vrot.slane %v6171, %v6177
  %v6180 = vmul.f32 %v6157, %v6178
  %v6181 = vld [vmem:[%s16] sm:$0x3]
  %v6183 = vlaneseq
  %v6184 = vshrl.u32 %v6183, 7
  %v6185 = vsub.s32 0, %v6184
  %v6186 = vrot.slane %v6180, %v6185
  %v6187 = vlaneseq
  %v6188 = vshrl.u32 %v6187, 7
  %v6189 = vsub.s32 1, %v6188
  %v6190 = vrot.slane %v6180, %v6189
  %v6193 = vmul.f32 %v6135, %v6186
  %v6194 = vmul.f32 %v6136, %v6190
  %v6197 = vcombine.low %v6193, %v6194
  %v6199 = vunpack.c.l.s4 1966171168
  %v6200 = vunpack.c.0.s8 %v6199
  %v6201 = vlaneseq
  %v6202 = vshrl.u32 %v6201, 7
  %v6203 = vsub.s32 %v6200, %v6202
  %v6204 = vrot.slane %v6197, %v6203
  %v6206 = vunpack.c.l.s4 1966171168
  %v6207 = vunpack.c.0.s8 %v6206
  %v6208 = vlaneseq
  %v6209 = vshrl.u32 %v6208, 7
  %v6210 = vsub.s32 %v6207, %v6209
  %v6211 = vrot.slane %v6204, %v6210
  %v6213 = vsub.f32 %v6181, %v6211
  %v6214 = vmul.f32 %v6117, %v6186
  %v6215 = vmul.f32 %v6118, %v6190
  %v6217 = vlaneseq
  %v6218 = vshrl.u32 %v6217, 7
  %v6219 = vsub.s32 0, %v6218
  %v6220 = vrot.slane %v6213, %v6219
  %v6221 = vlaneseq
  %v6222 = vshrl.u32 %v6221, 7
  %v6223 = vsub.s32 1, %v6222
  %v6224 = vrot.slane %v6213, %v6223
  %v6227 = vadd.f32 %v6214, %v6220
  %v6228 = vadd.f32 %v6215, %v6224
  %v6231 = vcombine.low %v6227, %v6228
  %v6233 = vunpack.c.l.s4 1983009808
  %v6234 = vunpack.c.0.s8 %v6233
  %v6235 = vlaneseq
  %v6236 = vshrl.u32 %v6235, 7
  %v6237 = vsub.s32 %v6234, %v6236
  %v6238 = vrot.slane %v6231, %v6237
  %6240 = vst [vmem:[%s17] sm:$0xf] %v6238
  // Predicated region
  $region70: #{conv_input_model.1} parent=0 // pred_check
    _
  $region71: #{conv_input_model.1} parent=0 // pred_check_branch
    %6242 = sbr.rel (0) target = $region73
  $region72: #{conv_input_model.1} parent=0 // pred_region
    _
  $region73: #{conv_input_model.1} parent=0 // pred_fallthru
    _
  // Predicated region
  $region74: #{conv_input_model.1} parent=0 // pred_check
    _
  $region75: #{conv_input_model.1} parent=0 // pred_check_branch
    %6244 = sbr.rel (0) target = $region77
  $region76: #{conv_input_model.1} parent=0 // pred_region
    _
  $region77: #{conv_input_model.1} parent=0 // pred_fallthru
    _

</llo_original>
